<compile_context>
chip_gen: v7x
topology: tpu7x:2x2x1
jax: 0.10.0
libtpu: 0.0.40
codegen_flags: <defaults>
</compile_context>

<pallas_src>
import functools

import jax
import jax.numpy as jnp
from jax.experimental import pallas as pl
from jax.experimental.pallas import tpu as pltpu

K_IN = 3072
N_OUT = 768


def _linear_residual_kernel(x_ref, w_ref, b_ref, r_ref, o_ref, acc_ref):
    """K-streamed matmul with f32 accumulator; fused bias + (identity dropout) + residual epilogue."""
    k = pl.program_id(1)

    @pl.when(k == 0)
    def _():
        acc_ref[...] = jnp.zeros_like(acc_ref)

    # x_ref: (M, tk) f32 -> cast to bf16 in-kernel (hides under DMA); w_ref: (tk, Nc) bf16.
    acc_ref[...] += jnp.dot(
        x_ref[...].astype(jnp.bfloat16),
        w_ref[...],
        preferred_element_type=jnp.float32,
    )

    @pl.when(k == pl.num_programs(1) - 1)
    def _():
        o_ref[...] = (acc_ref[...] + b_ref[...] + r_ref[...]).astype(o_ref.dtype)


def prepare_weight(weight_nk):
    """One-time (model-load) weight prep: PyTorch [N, K] -> [K, N], cast to bf16."""
    return jnp.asarray(weight_nk).T.astype(jnp.bfloat16)


@functools.partial(jax.jit, static_argnames=("tk", "n_splits"))
def linear_dropout_add(x444, w_kn, bias, x442, *, tk=768, n_splits=1):
    """x444: [B,S,K] f32, w_kn: [K,N] bf16 (pre-transposed), bias: [N] f32, x442: [B,S,N] f32.

    n_splits: shard the N (output-feature) axis across TensorCores (use 2 on v7x megacore);
    default 1 is single-core and reads every HBM byte exactly once (best for v5e/v6e).
    """
    B, S, K = x444.shape
    Kw, N = w_kn.shape
    assert K == Kw
    M = B * S
    assert M % 8 == 0, "row count must be a multiple of 8 (sublane alignment)"
    assert K % tk == 0, "K must tile evenly by tk"
    Nc = N // n_splits
    assert N % n_splits == 0 and Nc % 128 == 0, "N split must stay lane-dense"

    x = x444.reshape(M, K)            # stays f32; bf16 cast happens inside the kernel
    r = x442.reshape(M, N)
    b = bias.reshape(1, N).astype(jnp.float32)

    bytes_accessed = (
        M * K * 4      # X (f32, read once)
        + K * N * 2    # W (bf16, read once)
        + N * 4        # bias
        + M * N * 4    # residual (f32)
        + M * N * 4    # output (f32)
    )
    cost = pl.CostEstimate(
        flops=2 * M * K * N, transcendentals=0, bytes_accessed=bytes_accessed
    )

    out = pl.pallas_call(
        _linear_residual_kernel,
        out_shape=jax.ShapeDtypeStruct((M, N), x444.dtype),
        grid_spec=pltpu.PrefetchScalarGridSpec(
            num_scalar_prefetch=0,
            grid=(n_splits, K // tk),                           # reduction (K) axis last
            in_specs=[
                pl.BlockSpec((M, tk), lambda n, k: (0, k)),     # X: full-M row block, K-streamed
                pl.BlockSpec((tk, Nc), lambda n, k: (k, n)),    # W: streamed along K, disjoint per N shard
                pl.BlockSpec((1, Nc), lambda n, k: (0, n)),     # bias (grid-invariant per shard)
                pl.BlockSpec((M, Nc), lambda n, k: (0, n)),     # residual (grid-invariant per shard)
            ],
            out_specs=pl.BlockSpec((M, Nc), lambda n, k: (0, n)),
            scratch_shapes=[pltpu.VMEM((M, Nc), jnp.float32)],  # f32 accumulator
        ),
        compiler_params=pltpu.CompilerParams(
            dimension_semantics=("parallel", "arbitrary"),
            vmem_limit_bytes=32 * 1024 * 1024,
        ),
        cost_estimate=cost,
    )(x, w_kn, b, r)

    return out.reshape(B, S, N)


if __name__ == "__main__":
    # Shapes from the original module: [1, 384, 3072] -> Linear(3072, 768) -> + [1, 384, 768].
    B, S, K, N = 1, 384, K_IN, N_OUT

    key = jax.random.PRNGKey(0)
    k1, k2, k3, k4 = jax.random.split(key, 4)

    x444 = jax.random.normal(k1, (B, S, K), dtype=jnp.float32)
    x442 = jax.random.normal(k2, (B, S, N), dtype=jnp.float32)

    # Deterministic parameter init (Linear(3072, 768) shapes, PyTorch [out, in] layout).
    weight = jax.random.normal(k3, (N, K), dtype=jnp.float32) * 0.02
    bias = jax.random.normal(k4, (N,), dtype=jnp.float32) * 0.1

    # One-time weight prep (transpose + bf16 cast) outside the jitted hot path.
    w_kn = prepare_weight(weight)

    # tk=768 -> grid=(1, 4): 4 K-steps so the weight stream overlaps the MXU work.
    # On v7x megacore, pass n_splits=2 to shard N across the two TensorCores.
    out = linear_dropout_add(x444, w_kn, bias, x442, tk=768, n_splits=1)
    out = jax.block_until_ready(out)
    assert out.shape == (B, S, N)

    # Check 1: against a reference using identical bf16 matmul inputs (isolates kernel bugs
    # from the bf16 precision choice) -- should match to accumulation-order noise.
    ref_bf16 = (
        jnp.dot(
            x444.reshape(-1, K).astype(jnp.bfloat16),
            w_kn,
            preferred_element_type=jnp.float32,
        ).reshape(B, S, N)
        + bias
        + x442
    )
    assert jnp.allclose(out, ref_bf16, atol=1e-2, rtol=1e-2)

    # Check 2: loose check against the full-f32 reference (bf16 matmul precision).
    ref_f32 = jnp.einsum("bsk,nk->bsn", x444, weight) + bias + x442
    assert jnp.allclose(out, ref_f32, atol=6e-2, rtol=6e-2)

    print("KERNEL_OK")
</pallas_src>

<mosaic_0001>
module attributes {stable_mosaic.version = 11 : i64} {
  func.func @_linear_residual_kernel(%arg0: i32, %arg1: i32, %arg2: memref<384x768xf32, #tpu.memory_space<vmem>>, %arg3: memref<768x768xbf16, #tpu.memory_space<vmem>>, %arg4: memref<1x768xf32, #tpu.memory_space<vmem>>, %arg5: memref<384x768xf32, #tpu.memory_space<vmem>>, %arg6: memref<384x768xf32, #tpu.memory_space<vmem>>, %arg7: memref<384x768xf32, #tpu.memory_space<vmem>>) attributes {dimension_semantics = [#tpu.dimension_semantics<parallel>, #tpu.dimension_semantics<arbitrary>], iteration_bounds = array<i64: 1, 4>, scalar_prefetch = 0 : i64, scratch_operands = 1 : i64, tpu.core_type = #tpu.core_type<tc>, window_params = [{transform_indices = @transform_0, window_bounds = array<i64: 384, 768>}, {transform_indices = @transform_1, window_bounds = array<i64: 768, 768>}, {transform_indices = @transform_2, window_bounds = array<i64: 1, 768>}, {transform_indices = @transform_3, window_bounds = array<i64: 384, 768>}, {transform_indices = @transform_4, window_bounds = array<i64: 384, 768>}]} {
    %c0_i32 = arith.constant 0 : i32
    %0 = arith.cmpi eq, %arg1, %c0_i32 : i32
    %1 = arith.extui %0 : i1 to i32
    %c0_i32_0 = arith.constant 0 : i32
    %2 = arith.cmpi ne, %1, %c0_i32_0 : i32
    scf.if %2 {
      %cst_9 = arith.constant 0.000000e+00 : f32
      %13 = vector.broadcast %cst_9 : f32 to vector<384x768xf32>
      %c0_10 = arith.constant 0 : index
      %c0_11 = arith.constant 0 : index
      %14 = vector.load %arg7[%c0_10, %c0_11] : memref<384x768xf32, #tpu.memory_space<vmem>>, vector<384x768xf32>
      tpu.vector_store %arg7[%c0_10, %c0_11], %13 {strides = array<i32>} : memref<384x768xf32, #tpu.memory_space<vmem>>, vector<384x768xf32>,
    } else {
    }
    %c0 = arith.constant 0 : index
    %c0_1 = arith.constant 0 : index
    %3 = vector.load %arg7[%c0, %c0_1] : memref<384x768xf32, #tpu.memory_space<vmem>>, vector<384x768xf32>
    %c0_2 = arith.constant 0 : index
    %c0_3 = arith.constant 0 : index
    %4 = vector.load %arg2[%c0_2, %c0_3] : memref<384x768xf32, #tpu.memory_space<vmem>>, vector<384x768xf32>
    %5 = arith.truncf %4 : vector<384x768xf32> to vector<384x768xbf16>
    %c0_4 = arith.constant 0 : index
    %c0_5 = arith.constant 0 : index
    %6 = vector.load %arg3[%c0_4, %c0_5] : memref<768x768xbf16, #tpu.memory_space<vmem>>, vector<768x768xbf16>
    %cst = arith.constant dense<0.000000e+00> : vector<384x768xf32>
    %7 = tpu.matmul %5, %6, %cst {dimension_numbers = #tpu.dot_dimension_numbers<[1], [0], [0], [1], [0, 0, 1, 1], [], []>} : vector<384x768xbf16>, vector<768x768xbf16>, vector<384x768xf32> -> vector<384x768xf32>
    %8 = arith.addf %3, %7 : vector<384x768xf32>
    %c0_6 = arith.constant 0 : index
    %c0_7 = arith.constant 0 : index
    %9 = vector.load %arg7[%c0_6, %c0_7] : memref<384x768xf32, #tpu.memory_space<vmem>>, vector<384x768xf32>
    tpu.vector_store %arg7[%c0_6, %c0_7], %8 {strides = array<i32>} : memref<384x768xf32, #tpu.memory_space<vmem>>, vector<384x768xf32>,
    %c3_i32 = arith.constant 3 : i32
    %10 = arith.cmpi eq, %arg1, %c3_i32 : i32
    %11 = arith.extui %10 : i1 to i32
    %c0_i32_8 = arith.constant 0 : i32
    %12 = arith.cmpi ne, %11, %c0_i32_8 : i32
    scf.if %12 {
      %c0_9 = arith.constant 0 : index
      %c0_10 = arith.constant 0 : index
      %13 = vector.load %arg7[%c0_9, %c0_10] : memref<384x768xf32, #tpu.memory_space<vmem>>, vector<384x768xf32>
      %c0_11 = arith.constant 0 : index
      %c0_12 = arith.constant 0 : index
      %14 = vector.load %arg4[%c0_11, %c0_12] : memref<1x768xf32, #tpu.memory_space<vmem>>, vector<1x768xf32>
      %15 = vector.broadcast %14 : vector<1x768xf32> to vector<384x768xf32>
      %16 = arith.addf %13, %15 : vector<384x768xf32>
      %c0_13 = arith.constant 0 : index
      %c0_14 = arith.constant 0 : index
      %17 = vector.load %arg5[%c0_13, %c0_14] : memref<384x768xf32, #tpu.memory_space<vmem>>, vector<384x768xf32>
      %18 = arith.addf %16, %17 : vector<384x768xf32>
      %c0_15 = arith.constant 0 : index
      %c0_16 = arith.constant 0 : index
      %19 = vector.load %arg6[%c0_15, %c0_16] : memref<384x768xf32, #tpu.memory_space<vmem>>, vector<384x768xf32>
      tpu.vector_store %arg6[%c0_15, %c0_16], %18 {strides = array<i32>} : memref<384x768xf32, #tpu.memory_space<vmem>>, vector<384x768xf32>,
    } else {
    }
    return
  }
  func.func @transform_0(%arg0: i32, %arg1: i32) -> (i32, i32) {
    %c0_i32 = arith.constant 0 : i32
    %c0_i32_0 = arith.constant 0 : i32
    return %c0_i32, %arg1 : i32, i32
  }
  func.func @transform_1(%arg0: i32, %arg1: i32) -> (i32, i32) {
    %c0_i32 = arith.constant 0 : i32
    return %arg1, %arg0 : i32, i32
  }
  func.func @transform_2(%arg0: i32, %arg1: i32) -> (i32, i32) {
    %c0_i32 = arith.constant 0 : i32
    %c0_i32_0 = arith.constant 0 : i32
    return %c0_i32, %arg0 : i32, i32
  }
  func.func @transform_3(%arg0: i32, %arg1: i32) -> (i32, i32) {
    %c0_i32 = arith.constant 0 : i32
    %c0_i32_0 = arith.constant 0 : i32
    return %c0_i32, %arg0 : i32, i32
  }
  func.func @transform_4(%arg0: i32, %arg1: i32) -> (i32, i32) {
    %c0_i32 = arith.constant 0 : i32
    %c0_i32_0 = arith.constant 0 : i32
    return %c0_i32, %arg0 : i32, i32
  }
}

</mosaic_0001>

<llo_original>
// kernel: linear_dropout_add.1
$region0: #{linear_dropout_add.1}
  #allocation0 [shape = 'u32[]', space=smem, size = 0x4, offset = 0x4, fixed_abs, tag = 'smem constant byte address 0x4 - core index']
  #allocation1 [shape = 'u32[144,128]{1,0:T(1,128)}', space=vmem, size = 0x12000, scoped, tag = 'internal scratch']
  #allocation2 [shape = 'f32[384,768]{1,0:T(8,128)}', space=vmem, size = 0x120000, scoped, tag = 'scratch operand']
  %s0 = inlined_call_operand.hbm [shape: f32[384,3072], index: 0, kind: input, shape index: {}]
  %s1 = inlined_call_operand.hbm [shape: bf16[3072,768], index: 1, kind: input, shape index: {}]
  %s2 = inlined_call_operand.vmem [shape: f32[1,768], index: 2, kind: input, shape index: {}]
  %s3 = inlined_call_operand.hbm [shape: f32[384,768], index: 3, kind: input, shape index: {}]
  %s4 = inlined_call_operand.hbm [shape: f32[384,768], index: 4, kind: output, shape index: {}]
  %s5 = sld [smem:[#allocation0]]
  $region69: #{linear_dropout_add.1} parent=0
    _
  %s7 = ssub.s32 1, %s5
  %s8 = scalar_select 0, %s7, %s5
  $region1: #{linear_dropout_add.1} parent=0
    #allocation3 [shape = 'u8[2359296]{0}', space=vmem, size = 0x240000, scoped, tag = 'input window, operand 0']
    #allocation4 [shape = 's32[2]{0}', space=sflag, size = 0x8, scoped, tag = 'scoped memory for linear_dropout_add.1']
    #allocation5 [shape = 's32[2]{0}', space=sflag, size = 0x8, scoped, tag = 'scoped memory for linear_dropout_add.1']
    #allocation6 [shape = 'u8[2359296]{0}', space=vmem, size = 0x240000, scoped, tag = 'input window, operand 1']
    #allocation7 [shape = 's32[2]{0}', space=sflag, size = 0x8, scoped, tag = 'scoped memory for linear_dropout_add.1']
    #allocation8 [shape = 'u8[1179648]{0}', space=vmem, size = 0x120000, scoped, tag = 'input window, operand 3, single buffered']
    #allocation9 [shape = 'u8[1179648]{0}', space=vmem, size = 0x120000, scoped, tag = 'output window, operand 0, single buffered']
    %9 = vsyncpa [#allocation4], 0
    %s10 = scalar_lea.sflag [#allocation4], 1
    %11 = vsyncpa %s10, 0
    %12 = vsyncpa [#allocation7], 0
    %s13 = scalar_lea.sflag [#allocation7], 1
    %14 = vsyncpa %s13, 0
    %15 = vsyncpa [#allocation5], 0
    loop: start=0, step=1, limit=6
    $region2: #{linear_dropout_add.1} parent=1 // loop_pre_header
      _
    $region3: #{linear_dropout_add.1} parent=1 // loop_header
      %s17 = sphi 0, %s21
      %p18 = scmp.ge.s32.totalorder %s17, 6
      %s24 = sphi 0, %s36
      %s25 = sphi 0, %s32
      %s26 = sphi 0, %s24
      %s27 = sphi 0, %s25
      %s28 = sphi 0, %s26
      %s29 = sphi 0, %s27
      %s39 = sphi 0, %s41
      %s42 = sphi 0, %s39
      %s43 = sphi 0, %s42
      %s59 = sphi 0, %s43
      %s67 = sphi 0, %s69
      %s70 = sphi 0, %s67
      %s71 = sphi 0, %s70
      %s87 = sphi 0, %s71
      %s93 = sphi 0, %s95
      %s96 = sphi 0, %s93
      %s97 = sphi 0, %s96
      %s113 = sphi 0, %s97
      %s119 = sphi 0, %s121
      %s122 = sphi 0, %s119
      %s123 = sphi 0, %s122
      %s139 = sphi 0, %s123
      %s145 = sphi 0, %s147
      %s148 = sphi 0, %s145
      %s149 = sphi 0, %s148
      %s165 = sphi 0, %s149
    $region4: #{linear_dropout_add.1} parent=1 // loop_header_branch
      %20 = sbr.rel (%p18) target = $region8
    $region5: #{linear_dropout_add.1} parent=1 // loop_body
      %s22 = ssub.s32 %s17, 1
      %s23 = ssub.s32 %s17, 2
      %s30 = sadd.s32 1, %s25
      %p31 = scmp.ge.s32.totalorder %s30, 4
      %s32 = scalar_select %p31, 0, %s30
      %s33 = sadd.s32 1, %s24
      %s34 = scalar_select %p31, %s33, %s24
      %p35 = scmp.ge.s32.totalorder %s34, 1
      %s36 = scalar_select %p35, 0, %s34
      %s37 = ssub.s32 %s25, %s32
      %p38 = scmp.eq.s32.totalorder %s37, 0
      %s40 = sadd.s32 %s39, 1
      %s41 = scalar_select %p38, %s39, %s40
      %p44 = pneg %p38
      %p45 = scmp.eq.s32.totalorder %s17, 3
      %p46 = por %p44, %p45
      %p47 = scmp.ne.s32.totalorder %s39, %s42
      %p48 = scmp.eq.s32.totalorder %s17, 0
      %p49 = por %p47, %p48
      %p50 = scmp.ne.s32.totalorder %s39, %s42
      %p51 = scmp.eq.s32.totalorder %s22, 3
      %p52 = por %p50, %p51
      %p53 = scmp.ne.s32.totalorder %s42, %s43
      %p54 = scmp.eq.s32.totalorder %s22, 0
      %p55 = por %p53, %p54
      %p56 = scmp.ne.s32.totalorder %s42, %s43
      %p57 = scmp.eq.s32.totalorder %s23, 3
      %p58 = por %p56, %p57
      %p60 = scmp.ne.s32.totalorder %s43, %s59
      %p61 = scmp.eq.s32.totalorder %s23, 0
      %p62 = por %p60, %p61
      %s63 = ssub.s32 %s25, %s32
      %s64 = ssub.s32 %s24, %s36
      %s65 = sor.u32 %s63, %s64
      %p66 = scmp.eq.s32.totalorder %s65, 0
      %s68 = sadd.s32 %s67, 1
      %s69 = scalar_select %p66, %s67, %s68
      %p72 = pneg %p66
      %p73 = scmp.eq.s32.totalorder %s17, 3
      %p74 = por %p72, %p73
      %p75 = scmp.ne.s32.totalorder %s67, %s70
      %p76 = scmp.eq.s32.totalorder %s17, 0
      %p77 = por %p75, %p76
      %p78 = scmp.ne.s32.totalorder %s67, %s70
      %p79 = scmp.eq.s32.totalorder %s22, 3
      %p80 = por %p78, %p79
      %p81 = scmp.ne.s32.totalorder %s70, %s71
      %p82 = scmp.eq.s32.totalorder %s22, 0
      %p83 = por %p81, %p82
      %p84 = scmp.ne.s32.totalorder %s70, %s71
      %p85 = scmp.eq.s32.totalorder %s23, 3
      %p86 = por %p84, %p85
      %p88 = scmp.ne.s32.totalorder %s71, %s87
      %p89 = scmp.eq.s32.totalorder %s23, 0
      %p90 = por %p88, %p89
      %s91 = ssub.s32 %s24, %s36
      %p92 = scmp.eq.s32.totalorder %s91, 0
      %s94 = sadd.s32 %s93, 1
      %s95 = scalar_select %p92, %s93, %s94
      %p98 = pneg %p92
      %p99 = scmp.eq.s32.totalorder %s17, 3
      %p100 = por %p98, %p99
      %p101 = scmp.ne.s32.totalorder %s93, %s96
      %p102 = scmp.eq.s32.totalorder %s17, 0
      %p103 = por %p101, %p102
      %p104 = scmp.ne.s32.totalorder %s93, %s96
      %p105 = scmp.eq.s32.totalorder %s22, 3
      %p106 = por %p104, %p105
      %p107 = scmp.ne.s32.totalorder %s96, %s97
      %p108 = scmp.eq.s32.totalorder %s22, 0
      %p109 = por %p107, %p108
      %p110 = scmp.ne.s32.totalorder %s96, %s97
      %p111 = scmp.eq.s32.totalorder %s23, 3
      %p112 = por %p110, %p111
      %p114 = scmp.ne.s32.totalorder %s97, %s113
      %p115 = scmp.eq.s32.totalorder %s23, 0
      %p116 = por %p114, %p115
      %s117 = ssub.s32 %s24, %s36
      %p118 = scmp.eq.s32.totalorder %s117, 0
      %s120 = sadd.s32 %s119, 1
      %s121 = scalar_select %p118, %s119, %s120
      %p124 = pneg %p118
      %p125 = scmp.eq.s32.totalorder %s17, 3
      %p126 = por %p124, %p125
      %p127 = scmp.ne.s32.totalorder %s119, %s122
      %p128 = scmp.eq.s32.totalorder %s17, 0
      %p129 = por %p127, %p128
      %p130 = scmp.ne.s32.totalorder %s119, %s122
      %p131 = scmp.eq.s32.totalorder %s22, 3
      %p132 = por %p130, %p131
      %p133 = scmp.ne.s32.totalorder %s122, %s123
      %p134 = scmp.eq.s32.totalorder %s22, 0
      %p135 = por %p133, %p134
      %p136 = scmp.ne.s32.totalorder %s122, %s123
      %p137 = scmp.eq.s32.totalorder %s23, 3
      %p138 = por %p136, %p137
      %p140 = scmp.ne.s32.totalorder %s123, %s139
      %p141 = scmp.eq.s32.totalorder %s23, 0
      %p142 = por %p140, %p141
      %s143 = ssub.s32 %s24, %s36
      %p144 = scmp.eq.s32.totalorder %s143, 0
      %s146 = sadd.s32 %s145, 1
      %s147 = scalar_select %p144, %s145, %s146
      %p150 = pneg %p144
      %p151 = scmp.eq.s32.totalorder %s17, 3
      %p152 = por %p150, %p151
      %p153 = scmp.ne.s32.totalorder %s145, %s148
      %p154 = scmp.eq.s32.totalorder %s17, 0
      %p155 = por %p153, %p154
      %p156 = scmp.ne.s32.totalorder %s145, %s148
      %p157 = scmp.eq.s32.totalorder %s22, 3
      %p158 = por %p156, %p157
      %p159 = scmp.ne.s32.totalorder %s148, %s149
      %p160 = scmp.eq.s32.totalorder %s22, 0
      %p161 = por %p159, %p160
      %p162 = scmp.ne.s32.totalorder %s148, %s149
      %p163 = scmp.eq.s32.totalorder %s23, 3
      %p164 = por %p162, %p163
      %p166 = scmp.ne.s32.totalorder %s149, %s165
      %p167 = scmp.eq.s32.totalorder %s23, 0
      %p168 = por %p166, %p167
      %p169 = scmp.le.s32.totalorder 1, %s17
      %p170 = scmp.lt.s32.totalorder %s17, 5
      %p171 = pnand %p169, %p170
      %p172 = pneg %p171
      // Predicated region
      $region9: #{linear_dropout_add.1} parent=5 // pred_check
        _
      $region10: #{linear_dropout_add.1} parent=5 // pred_check_branch
        %174 = sbr.rel (%p171) target = $region12
      $region11: #{linear_dropout_add.1} parent=5 // pred_region
        %s175 = ssub.s32 %s17, 1
        // Predicated region
        $region13: #{linear_dropout_add.1} parent=11 // pred_check
          %p176 = pneg %p109
        $region14: #{linear_dropout_add.1} parent=11 // pred_check_branch
          %178 = sbr.rel (%p176) target = $region16
        $region15: #{linear_dropout_add.1} parent=11 // pred_region
          %s179 = smul.u32 6, %s26
          %p180 = scmp.lt.s32.totalorder %s179, 5
          %s181 = scalar_select %p180, %s179, 5
          %s182 = scalar_lea.vmem %s2, %s181
          %s183 = smul.u32 6, %s26
        $region16: #{linear_dropout_add.1} parent=11 // pred_fallthru
          _
        // Predicated region
        $region17: #{linear_dropout_add.1} parent=11 // pred_check
          %p184 = pneg %p135
        $region18: #{linear_dropout_add.1} parent=11 // pred_check_branch
          %186 = sbr.rel (%p184) target = $region20
        $region19: #{linear_dropout_add.1} parent=11 // pred_region
          %s187 = smul.u32 6, %s26
          %s189 = ssub.s32 36864, 36864
          %190 = vsyncadd [#allocation7], %s189
          %s191 = smul.addr %s187, 128
          %s192 = scalar_lea.hbm %s3, %s191
          %s193 = sshll.u32 [#allocation8], 4
          %s194 = int_to_ptr.vmem [resolvable:$true] %s193
          %199 = dma.hbm_to_vmem [thread:$0]  %s192, 36864, %s194, [#allocation7], 768, 768, 48
        $region20: #{linear_dropout_add.1} parent=11 // pred_fallthru
          _
      $region12: #{linear_dropout_add.1} parent=5 // pred_fallthru
        _
      %p200 = scmp.lt.s32.totalorder %s17, 4
      // Predicated region
      $region21: #{linear_dropout_add.1} parent=5 // pred_check
        %p201 = pneg %p200
      $region22: #{linear_dropout_add.1} parent=5 // pred_check_branch
        %203 = sbr.rel (%p201) target = $region24
      $region23: #{linear_dropout_add.1} parent=5 // pred_region
        // Predicated region
        $region25: #{linear_dropout_add.1} parent=23 // pred_check
          %p204 = pneg %p49
        $region26: #{linear_dropout_add.1} parent=23 // pred_check_branch
          %206 = sbr.rel (%p204) target = $region28
        $region27: #{linear_dropout_add.1} parent=23 // pred_region
          %s207 = sand.u32 %s39, 1
          %s208 = scalar_lea.sflag [#allocation4], %s207
          %s209 = sand.u32 %s39, 1
          %s210 = smul.addr %s209, 2304
          %s211 = scalar_lea.vmem [#allocation3], %s210
          %s212 = smul.u32 6, %s25
          %s214 = ssub.s32 36864, 36864
          %215 = vsyncadd %s208, %s214
          %s216 = smul.addr %s212, 128
          %s217 = scalar_lea.hbm %s0, %s216
          %s218 = sshll.u32 %s211, 4
          %s219 = int_to_ptr.vmem [resolvable:$true] %s218
          %224 = dma.hbm_to_vmem [thread:$0]  %s217, 36864, %s219, %s208, 3072, 768, 48
        $region28: #{linear_dropout_add.1} parent=23 // pred_fallthru
          _
        // Predicated region
        $region29: #{linear_dropout_add.1} parent=23 // pred_check
          %p225 = pneg %p77
        $region30: #{linear_dropout_add.1} parent=23 // pred_check_branch
          %227 = sbr.rel (%p225) target = $region32
        $region31: #{linear_dropout_add.1} parent=23 // pred_region
          %s228 = sand.u32 %s17, 1
          %s229 = scalar_lea.sflag [#allocation7], %s228
          %s230 = sand.u32 %s67, 1
          %s231 = smul.addr %s230, 2304
          %s232 = scalar_lea.vmem [#allocation6], %s231
          %s233 = smul.u32 96, %s25
          %s234 = smul.u32 6, %s24
          %s236 = ssub.s32 36864, 36864
          %237 = vsyncadd %s229, %s236
          %s238 = smul.addr %s233, 6
          %s239 = sadd.s32 %s234, %s238
          %s240 = smul.addr %s239, 64
          %s241 = scalar_lea.hbm %s1, %s240
          %s242 = sshll.u32 %s232, 4
          %s243 = int_to_ptr.vmem [resolvable:$true] %s242
          %248 = dma.hbm_to_vmem [thread:$0]  %s241, 36864, %s243, %s229, 384, 384, 24
        $region32: #{linear_dropout_add.1} parent=23 // pred_fallthru
          _
      $region24: #{linear_dropout_add.1} parent=5 // pred_fallthru
        _
      %p249 = scmp.le.s32.totalorder 1, %s17
      %p250 = scmp.lt.s32.totalorder %s17, 5
      %p251 = pnand %p249, %p250
      %p252 = pneg %p251
      // Predicated region
      $region33: #{linear_dropout_add.1} parent=5 // pred_check
        _
      $region34: #{linear_dropout_add.1} parent=5 // pred_check_branch
        %254 = sbr.rel (%p251) target = $region36
      $region35: #{linear_dropout_add.1} parent=5 // pred_region
        %s255 = ssub.s32 %s17, 1
        %s256 = sand.u32 %s42, 1
        %s257 = scalar_lea.sflag [#allocation4], %s256
        %s258 = sand.u32 %s42, 1
        %s259 = smul.addr %s258, 2304
        %s260 = scalar_lea.vmem [#allocation3], %s259
        // Predicated region
        $region37: #{linear_dropout_add.1} parent=35 // pred_check
          %p261 = pneg %p55
        $region38: #{linear_dropout_add.1} parent=35 // pred_check_branch
          %263 = sbr.rel (%p261) target = $region40
        $region39: #{linear_dropout_add.1} parent=35 // pred_region
          %264 = dma.done %s257, 36864
        $region40: #{linear_dropout_add.1} parent=35 // pred_fallthru
          _
        %s265 = sand.u32 %s22, 1
        %s266 = scalar_lea.sflag [#allocation7], %s265
        %s267 = sand.u32 %s70, 1
        %s268 = smul.addr %s267, 2304
        %s269 = scalar_lea.vmem [#allocation6], %s268
        // Predicated region
        $region41: #{linear_dropout_add.1} parent=35 // pred_check
          %p270 = pneg %p83
        $region42: #{linear_dropout_add.1} parent=35 // pred_check_branch
          %272 = sbr.rel (%p270) target = $region44
        $region43: #{linear_dropout_add.1} parent=35 // pred_region
          %273 = dma.done %s266, 36864
        $region44: #{linear_dropout_add.1} parent=35 // pred_fallthru
          _
        // Predicated region
        $region45: #{linear_dropout_add.1} parent=35 // pred_check
          %p274 = pneg %p135
        $region46: #{linear_dropout_add.1} parent=35 // pred_check_branch
          %276 = sbr.rel (%p274) target = $region48
        $region47: #{linear_dropout_add.1} parent=35 // pred_region
          %277 = dma.done [#allocation7], 36864
        $region48: #{linear_dropout_add.1} parent=35 // pred_fallthru
          _
        %s278 = sand.u32 %s42, 1
        %s279 = scalar_lea.sflag [#allocation4], %s278
        %s280 = sand.u32 %s42, 1
        %s281 = smul.addr %s280, 2304
        %s282 = scalar_lea.vmem [#allocation3], %s281
        %p283 = pneg %p55
        %p284 = pneg %p52
        %s285 = sand.u32 %s22, 1
        %s286 = scalar_lea.sflag [#allocation7], %s285
        %s287 = sand.u32 %s70, 1
        %s288 = smul.addr %s287, 2304
        %s289 = scalar_lea.vmem [#allocation6], %s288
        %p290 = pneg %p83
        %p291 = pneg %p80
        %s292 = smul.u32 6, %s26
        %p293 = scmp.lt.s32.totalorder %s292, 5
        %s294 = scalar_select %p293, %s292, 5
        %s295 = scalar_lea.vmem %s2, %s294
        %p296 = pneg %p109
        %p297 = pneg %p106
        %p298 = pneg %p135
        %p299 = pneg %p132
        %p300 = pneg %p161
        %p301 = pneg %p158
        %s302 = smul.u32 6, %s27
        %s303 = smul.u32 96, %s27
        %s304 = smul.u32 6, %s26
        %s305 = smul.u32 6, %s26
        %p306 = scmp.lt.s32.totalorder %s305, 5
        %s307 = scalar_select %p306, %s305, 5
        %s308 = scalar_lea.vmem %s2, %s307
        %s309 = smul.u32 6, %s26
        %s310 = smul.u32 6, %s26
        %s311 = smul.u32 6, %s26
        %p312 = scmp.eq.s32.totalorder %s27, 0
        // Predicated region
        $region49: #{linear_dropout_add.1} parent=35 // pred_check
          %p313 = pneg %p312
        $region50: #{linear_dropout_add.1} parent=35 // pred_check_branch
          %315 = sbr.rel (%p313) target = $region52
        $region51: #{linear_dropout_add.1} parent=35 // pred_region
          %316 = vst [vmem:[#allocation2] sm:$0xff] 0.0
          %317 = vst [vmem:[#allocation2 + $0x8] sm:$0xff] 0.0
          %318 = vst [vmem:[#allocation2 + $0x10] sm:$0xff] 0.0
          %319 = vst [vmem:[#allocation2 + $0x18] sm:$0xff] 0.0
          %320 = vst [vmem:[#allocation2 + $0x20] sm:$0xff] 0.0
          %321 = vst [vmem:[#allocation2 + $0x28] sm:$0xff] 0.0
          %322 = vst [vmem:[#allocation2 + $0x30] sm:$0xff] 0.0
          %323 = vst [vmem:[#allocation2 + $0x38] sm:$0xff] 0.0
          %324 = vst [vmem:[#allocation2 + $0x40] sm:$0xff] 0.0
          %325 = vst [vmem:[#allocation2 + $0x48] sm:$0xff] 0.0
          %326 = vst [vmem:[#allocation2 + $0x50] sm:$0xff] 0.0
          %327 = vst [vmem:[#allocation2 + $0x58] sm:$0xff] 0.0
          %328 = vst [vmem:[#allocation2 + $0x60] sm:$0xff] 0.0
          %329 = vst [vmem:[#allocation2 + $0x68] sm:$0xff] 0.0
          %330 = vst [vmem:[#allocation2 + $0x70] sm:$0xff] 0.0
          %331 = vst [vmem:[#allocation2 + $0x78] sm:$0xff] 0.0
          %332 = vst [vmem:[#allocation2 + $0x80] sm:$0xff] 0.0
          %333 = vst [vmem:[#allocation2 + $0x88] sm:$0xff] 0.0
          %334 = vst [vmem:[#allocation2 + $0x90] sm:$0xff] 0.0
          %335 = vst [vmem:[#allocation2 + $0x98] sm:$0xff] 0.0
          %336 = vst [vmem:[#allocation2 + $0xa0] sm:$0xff] 0.0
          %337 = vst [vmem:[#allocation2 + $0xa8] sm:$0xff] 0.0
          %338 = vst [vmem:[#allocation2 + $0xb0] sm:$0xff] 0.0
          %339 = vst [vmem:[#allocation2 + $0xb8] sm:$0xff] 0.0
          %340 = vst [vmem:[#allocation2 + $0xc0] sm:$0xff] 0.0
          %341 = vst [vmem:[#allocation2 + $0xc8] sm:$0xff] 0.0
          %342 = vst [vmem:[#allocation2 + $0xd0] sm:$0xff] 0.0
          %343 = vst [vmem:[#allocation2 + $0xd8] sm:$0xff] 0.0
          %344 = vst [vmem:[#allocation2 + $0xe0] sm:$0xff] 0.0
          %345 = vst [vmem:[#allocation2 + $0xe8] sm:$0xff] 0.0
          %346 = vst [vmem:[#allocation2 + $0xf0] sm:$0xff] 0.0
          %347 = vst [vmem:[#allocation2 + $0xf8] sm:$0xff] 0.0
          %348 = vst [vmem:[#allocation2 + $0x100] sm:$0xff] 0.0
          %349 = vst [vmem:[#allocation2 + $0x108] sm:$0xff] 0.0
          %350 = vst [vmem:[#allocation2 + $0x110] sm:$0xff] 0.0
          %351 = vst [vmem:[#allocation2 + $0x118] sm:$0xff] 0.0
          %352 = vst [vmem:[#allocation2 + $0x120] sm:$0xff] 0.0
          %353 = vst [vmem:[#allocation2 + $0x128] sm:$0xff] 0.0
          %354 = vst [vmem:[#allocation2 + $0x130] sm:$0xff] 0.0
          %355 = vst [vmem:[#allocation2 + $0x138] sm:$0xff] 0.0
          %356 = vst [vmem:[#allocation2 + $0x140] sm:$0xff] 0.0
          %357 = vst [vmem:[#allocation2 + $0x148] sm:$0xff] 0.0
          %358 = vst [vmem:[#allocation2 + $0x150] sm:$0xff] 0.0
          %359 = vst [vmem:[#allocation2 + $0x158] sm:$0xff] 0.0
          %360 = vst [vmem:[#allocation2 + $0x160] sm:$0xff] 0.0
          %361 = vst [vmem:[#allocation2 + $0x168] sm:$0xff] 0.0
          %362 = vst [vmem:[#allocation2 + $0x170] sm:$0xff] 0.0
          %363 = vst [vmem:[#allocation2 + $0x178] sm:$0xff] 0.0
          %364 = vst [vmem:[#allocation2 + $0x180] sm:$0xff] 0.0
          %365 = vst [vmem:[#allocation2 + $0x188] sm:$0xff] 0.0
          %366 = vst [vmem:[#allocation2 + $0x190] sm:$0xff] 0.0
          %367 = vst [vmem:[#allocation2 + $0x198] sm:$0xff] 0.0
          %368 = vst [vmem:[#allocation2 + $0x1a0] sm:$0xff] 0.0
          %369 = vst [vmem:[#allocation2 + $0x1a8] sm:$0xff] 0.0
          %370 = vst [vmem:[#allocation2 + $0x1b0] sm:$0xff] 0.0
          %371 = vst [vmem:[#allocation2 + $0x1b8] sm:$0xff] 0.0
          %372 = vst [vmem:[#allocation2 + $0x1c0] sm:$0xff] 0.0
          %373 = vst [vmem:[#allocation2 + $0x1c8] sm:$0xff] 0.0
          %374 = vst [vmem:[#allocation2 + $0x1d0] sm:$0xff] 0.0
          %375 = vst [vmem:[#allocation2 + $0x1d8] sm:$0xff] 0.0
          %376 = vst [vmem:[#allocation2 + $0x1e0] sm:$0xff] 0.0
          %377 = vst [vmem:[#allocation2 + $0x1e8] sm:$0xff] 0.0
          %378 = vst [vmem:[#allocation2 + $0x1f0] sm:$0xff] 0.0
          %379 = vst [vmem:[#allocation2 + $0x1f8] sm:$0xff] 0.0
          %380 = vst [vmem:[#allocation2 + $0x200] sm:$0xff] 0.0
          %381 = vst [vmem:[#allocation2 + $0x208] sm:$0xff] 0.0
          %382 = vst [vmem:[#allocation2 + $0x210] sm:$0xff] 0.0
          %383 = vst [vmem:[#allocation2 + $0x218] sm:$0xff] 0.0
          %384 = vst [vmem:[#allocation2 + $0x220] sm:$0xff] 0.0
          %385 = vst [vmem:[#allocation2 + $0x228] sm:$0xff] 0.0
          %386 = vst [vmem:[#allocation2 + $0x230] sm:$0xff] 0.0
          %387 = vst [vmem:[#allocation2 + $0x238] sm:$0xff] 0.0
          %388 = vst [vmem:[#allocation2 + $0x240] sm:$0xff] 0.0
          %389 = vst [vmem:[#allocation2 + $0x248] sm:$0xff] 0.0
          %390 = vst [vmem:[#allocation2 + $0x250] sm:$0xff] 0.0
          %391 = vst [vmem:[#allocation2 + $0x258] sm:$0xff] 0.0
          %392 = vst [vmem:[#allocation2 + $0x260] sm:$0xff] 0.0
          %393 = vst [vmem:[#allocation2 + $0x268] sm:$0xff] 0.0
          %394 = vst [vmem:[#allocation2 + $0x270] sm:$0xff] 0.0
          %395 = vst [vmem:[#allocation2 + $0x278] sm:$0xff] 0.0
          %396 = vst [vmem:[#allocation2 + $0x280] sm:$0xff] 0.0
          %397 = vst [vmem:[#allocation2 + $0x288] sm:$0xff] 0.0
          %398 = vst [vmem:[#allocation2 + $0x290] sm:$0xff] 0.0
          %399 = vst [vmem:[#allocation2 + $0x298] sm:$0xff] 0.0
          %400 = vst [vmem:[#allocation2 + $0x2a0] sm:$0xff] 0.0
          %401 = vst [vmem:[#allocation2 + $0x2a8] sm:$0xff] 0.0
          %402 = vst [vmem:[#allocation2 + $0x2b0] sm:$0xff] 0.0
          %403 = vst [vmem:[#allocation2 + $0x2b8] sm:$0xff] 0.0
          %404 = vst [vmem:[#allocation2 + $0x2c0] sm:$0xff] 0.0
          %405 = vst [vmem:[#allocation2 + $0x2c8] sm:$0xff] 0.0
          %406 = vst [vmem:[#allocation2 + $0x2d0] sm:$0xff] 0.0
          %407 = vst [vmem:[#allocation2 + $0x2d8] sm:$0xff] 0.0
          %408 = vst [vmem:[#allocation2 + $0x2e0] sm:$0xff] 0.0
          %409 = vst [vmem:[#allocation2 + $0x2e8] sm:$0xff] 0.0
          %410 = vst [vmem:[#allocation2 + $0x2f0] sm:$0xff] 0.0
          %411 = vst [vmem:[#allocation2 + $0x2f8] sm:$0xff] 0.0
          %412 = vst [vmem:[#allocation2 + $0x300] sm:$0xff] 0.0
          %413 = vst [vmem:[#allocation2 + $0x308] sm:$0xff] 0.0
          %414 = vst [vmem:[#allocation2 + $0x310] sm:$0xff] 0.0
          %415 = vst [vmem:[#allocation2 + $0x318] sm:$0xff] 0.0
          %416 = vst [vmem:[#allocation2 + $0x320] sm:$0xff] 0.0
          %417 = vst [vmem:[#allocation2 + $0x328] sm:$0xff] 0.0
          %418 = vst [vmem:[#allocation2 + $0x330] sm:$0xff] 0.0
          %419 = vst [vmem:[#allocation2 + $0x338] sm:$0xff] 0.0
          %420 = vst [vmem:[#allocation2 + $0x340] sm:$0xff] 0.0
          %421 = vst [vmem:[#allocation2 + $0x348] sm:$0xff] 0.0
          %422 = vst [vmem:[#allocation2 + $0x350] sm:$0xff] 0.0
          %423 = vst [vmem:[#allocation2 + $0x358] sm:$0xff] 0.0
          %424 = vst [vmem:[#allocation2 + $0x360] sm:$0xff] 0.0
          %425 = vst [vmem:[#allocation2 + $0x368] sm:$0xff] 0.0
          %426 = vst [vmem:[#allocation2 + $0x370] sm:$0xff] 0.0
          %427 = vst [vmem:[#allocation2 + $0x378] sm:$0xff] 0.0
          %428 = vst [vmem:[#allocation2 + $0x380] sm:$0xff] 0.0
          %429 = vst [vmem:[#allocation2 + $0x388] sm:$0xff] 0.0
          %430 = vst [vmem:[#allocation2 + $0x390] sm:$0xff] 0.0
          %431 = vst [vmem:[#allocation2 + $0x398] sm:$0xff] 0.0
          %432 = vst [vmem:[#allocation2 + $0x3a0] sm:$0xff] 0.0
          %433 = vst [vmem:[#allocation2 + $0x3a8] sm:$0xff] 0.0
          %434 = vst [vmem:[#allocation2 + $0x3b0] sm:$0xff] 0.0
          %435 = vst [vmem:[#allocation2 + $0x3b8] sm:$0xff] 0.0
          %436 = vst [vmem:[#allocation2 + $0x3c0] sm:$0xff] 0.0
          %437 = vst [vmem:[#allocation2 + $0x3c8] sm:$0xff] 0.0
          %438 = vst [vmem:[#allocation2 + $0x3d0] sm:$0xff] 0.0
          %439 = vst [vmem:[#allocation2 + $0x3d8] sm:$0xff] 0.0
          %440 = vst [vmem:[#allocation2 + $0x3e0] sm:$0xff] 0.0
          %441 = vst [vmem:[#allocation2 + $0x3e8] sm:$0xff] 0.0
          %442 = vst [vmem:[#allocation2 + $0x3f0] sm:$0xff] 0.0
          %443 = vst [vmem:[#allocation2 + $0x3f8] sm:$0xff] 0.0
          %444 = vst [vmem:[#allocation2 + $0x400] sm:$0xff] 0.0
          %445 = vst [vmem:[#allocation2 + $0x408] sm:$0xff] 0.0
          %446 = vst [vmem:[#allocation2 + $0x410] sm:$0xff] 0.0
          %447 = vst [vmem:[#allocation2 + $0x418] sm:$0xff] 0.0
          %448 = vst [vmem:[#allocation2 + $0x420] sm:$0xff] 0.0
          %449 = vst [vmem:[#allocation2 + $0x428] sm:$0xff] 0.0
          %450 = vst [vmem:[#allocation2 + $0x430] sm:$0xff] 0.0
          %451 = vst [vmem:[#allocation2 + $0x438] sm:$0xff] 0.0
          %452 = vst [vmem:[#allocation2 + $0x440] sm:$0xff] 0.0
          %453 = vst [vmem:[#allocation2 + $0x448] sm:$0xff] 0.0
          %454 = vst [vmem:[#allocation2 + $0x450] sm:$0xff] 0.0
          %455 = vst [vmem:[#allocation2 + $0x458] sm:$0xff] 0.0
          %456 = vst [vmem:[#allocation2 + $0x460] sm:$0xff] 0.0
          %457 = vst [vmem:[#allocation2 + $0x468] sm:$0xff] 0.0
          %458 = vst [vmem:[#allocation2 + $0x470] sm:$0xff] 0.0
          %459 = vst [vmem:[#allocation2 + $0x478] sm:$0xff] 0.0
          %460 = vst [vmem:[#allocation2 + $0x480] sm:$0xff] 0.0
          %461 = vst [vmem:[#allocation2 + $0x488] sm:$0xff] 0.0
          %462 = vst [vmem:[#allocation2 + $0x490] sm:$0xff] 0.0
          %463 = vst [vmem:[#allocation2 + $0x498] sm:$0xff] 0.0
          %464 = vst [vmem:[#allocation2 + $0x4a0] sm:$0xff] 0.0
          %465 = vst [vmem:[#allocation2 + $0x4a8] sm:$0xff] 0.0
          %466 = vst [vmem:[#allocation2 + $0x4b0] sm:$0xff] 0.0
          %467 = vst [vmem:[#allocation2 + $0x4b8] sm:$0xff] 0.0
          %468 = vst [vmem:[#allocation2 + $0x4c0] sm:$0xff] 0.0
          %469 = vst [vmem:[#allocation2 + $0x4c8] sm:$0xff] 0.0
          %470 = vst [vmem:[#allocation2 + $0x4d0] sm:$0xff] 0.0
          %471 = vst [vmem:[#allocation2 + $0x4d8] sm:$0xff] 0.0
          %472 = vst [vmem:[#allocation2 + $0x4e0] sm:$0xff] 0.0
          %473 = vst [vmem:[#allocation2 + $0x4e8] sm:$0xff] 0.0
          %474 = vst [vmem:[#allocation2 + $0x4f0] sm:$0xff] 0.0
          %475 = vst [vmem:[#allocation2 + $0x4f8] sm:$0xff] 0.0
          %476 = vst [vmem:[#allocation2 + $0x500] sm:$0xff] 0.0
          %477 = vst [vmem:[#allocation2 + $0x508] sm:$0xff] 0.0
          %478 = vst [vmem:[#allocation2 + $0x510] sm:$0xff] 0.0
          %479 = vst [vmem:[#allocation2 + $0x518] sm:$0xff] 0.0
          %480 = vst [vmem:[#allocation2 + $0x520] sm:$0xff] 0.0
          %481 = vst [vmem:[#allocation2 + $0x528] sm:$0xff] 0.0
          %482 = vst [vmem:[#allocation2 + $0x530] sm:$0xff] 0.0
          %483 = vst [vmem:[#allocation2 + $0x538] sm:$0xff] 0.0
          %484 = vst [vmem:[#allocation2 + $0x540] sm:$0xff] 0.0
          %485 = vst [vmem:[#allocation2 + $0x548] sm:$0xff] 0.0
          %486 = vst [vmem:[#allocation2 + $0x550] sm:$0xff] 0.0
          %487 = vst [vmem:[#allocation2 + $0x558] sm:$0xff] 0.0
          %488 = vst [vmem:[#allocation2 + $0x560] sm:$0xff] 0.0
          %489 = vst [vmem:[#allocation2 + $0x568] sm:$0xff] 0.0
          %490 = vst [vmem:[#allocation2 + $0x570] sm:$0xff] 0.0
          %491 = vst [vmem:[#allocation2 + $0x578] sm:$0xff] 0.0
          %492 = vst [vmem:[#allocation2 + $0x580] sm:$0xff] 0.0
          %493 = vst [vmem:[#allocation2 + $0x588] sm:$0xff] 0.0
          %494 = vst [vmem:[#allocation2 + $0x590] sm:$0xff] 0.0
          %495 = vst [vmem:[#allocation2 + $0x598] sm:$0xff] 0.0
          %496 = vst [vmem:[#allocation2 + $0x5a0] sm:$0xff] 0.0
          %497 = vst [vmem:[#allocation2 + $0x5a8] sm:$0xff] 0.0
          %498 = vst [vmem:[#allocation2 + $0x5b0] sm:$0xff] 0.0
          %499 = vst [vmem:[#allocation2 + $0x5b8] sm:$0xff] 0.0
          %500 = vst [vmem:[#allocation2 + $0x5c0] sm:$0xff] 0.0
          %501 = vst [vmem:[#allocation2 + $0x5c8] sm:$0xff] 0.0
          %502 = vst [vmem:[#allocation2 + $0x5d0] sm:$0xff] 0.0
          %503 = vst [vmem:[#allocation2 + $0x5d8] sm:$0xff] 0.0
          %504 = vst [vmem:[#allocation2 + $0x5e0] sm:$0xff] 0.0
          %505 = vst [vmem:[#allocation2 + $0x5e8] sm:$0xff] 0.0
          %506 = vst [vmem:[#allocation2 + $0x5f0] sm:$0xff] 0.0
          %507 = vst [vmem:[#allocation2 + $0x5f8] sm:$0xff] 0.0
          %508 = vst [vmem:[#allocation2 + $0x600] sm:$0xff] 0.0
          %509 = vst [vmem:[#allocation2 + $0x608] sm:$0xff] 0.0
          %510 = vst [vmem:[#allocation2 + $0x610] sm:$0xff] 0.0
          %511 = vst [vmem:[#allocation2 + $0x618] sm:$0xff] 0.0
          %512 = vst [vmem:[#allocation2 + $0x620] sm:$0xff] 0.0
          %513 = vst [vmem:[#allocation2 + $0x628] sm:$0xff] 0.0
          %514 = vst [vmem:[#allocation2 + $0x630] sm:$0xff] 0.0
          %515 = vst [vmem:[#allocation2 + $0x638] sm:$0xff] 0.0
          %516 = vst [vmem:[#allocation2 + $0x640] sm:$0xff] 0.0
          %517 = vst [vmem:[#allocation2 + $0x648] sm:$0xff] 0.0
          %518 = vst [vmem:[#allocation2 + $0x650] sm:$0xff] 0.0
          %519 = vst [vmem:[#allocation2 + $0x658] sm:$0xff] 0.0
          %520 = vst [vmem:[#allocation2 + $0x660] sm:$0xff] 0.0
          %521 = vst [vmem:[#allocation2 + $0x668] sm:$0xff] 0.0
          %522 = vst [vmem:[#allocation2 + $0x670] sm:$0xff] 0.0
          %523 = vst [vmem:[#allocation2 + $0x678] sm:$0xff] 0.0
          %524 = vst [vmem:[#allocation2 + $0x680] sm:$0xff] 0.0
          %525 = vst [vmem:[#allocation2 + $0x688] sm:$0xff] 0.0
          %526 = vst [vmem:[#allocation2 + $0x690] sm:$0xff] 0.0
          %527 = vst [vmem:[#allocation2 + $0x698] sm:$0xff] 0.0
          %528 = vst [vmem:[#allocation2 + $0x6a0] sm:$0xff] 0.0
          %529 = vst [vmem:[#allocation2 + $0x6a8] sm:$0xff] 0.0
          %530 = vst [vmem:[#allocation2 + $0x6b0] sm:$0xff] 0.0
          %531 = vst [vmem:[#allocation2 + $0x6b8] sm:$0xff] 0.0
          %532 = vst [vmem:[#allocation2 + $0x6c0] sm:$0xff] 0.0
          %533 = vst [vmem:[#allocation2 + $0x6c8] sm:$0xff] 0.0
          %534 = vst [vmem:[#allocation2 + $0x6d0] sm:$0xff] 0.0
          %535 = vst [vmem:[#allocation2 + $0x6d8] sm:$0xff] 0.0
          %536 = vst [vmem:[#allocation2 + $0x6e0] sm:$0xff] 0.0
          %537 = vst [vmem:[#allocation2 + $0x6e8] sm:$0xff] 0.0
          %538 = vst [vmem:[#allocation2 + $0x6f0] sm:$0xff] 0.0
          %539 = vst [vmem:[#allocation2 + $0x6f8] sm:$0xff] 0.0
          %540 = vst [vmem:[#allocation2 + $0x700] sm:$0xff] 0.0
          %541 = vst [vmem:[#allocation2 + $0x708] sm:$0xff] 0.0
          %542 = vst [vmem:[#allocation2 + $0x710] sm:$0xff] 0.0
          %543 = vst [vmem:[#allocation2 + $0x718] sm:$0xff] 0.0
          %544 = vst [vmem:[#allocation2 + $0x720] sm:$0xff] 0.0
          %545 = vst [vmem:[#allocation2 + $0x728] sm:$0xff] 0.0
          %546 = vst [vmem:[#allocation2 + $0x730] sm:$0xff] 0.0
          %547 = vst [vmem:[#allocation2 + $0x738] sm:$0xff] 0.0
          %548 = vst [vmem:[#allocation2 + $0x740] sm:$0xff] 0.0
          %549 = vst [vmem:[#allocation2 + $0x748] sm:$0xff] 0.0
          %550 = vst [vmem:[#allocation2 + $0x750] sm:$0xff] 0.0
          %551 = vst [vmem:[#allocation2 + $0x758] sm:$0xff] 0.0
          %552 = vst [vmem:[#allocation2 + $0x760] sm:$0xff] 0.0
          %553 = vst [vmem:[#allocation2 + $0x768] sm:$0xff] 0.0
          %554 = vst [vmem:[#allocation2 + $0x770] sm:$0xff] 0.0
          %555 = vst [vmem:[#allocation2 + $0x778] sm:$0xff] 0.0
          %556 = vst [vmem:[#allocation2 + $0x780] sm:$0xff] 0.0
          %557 = vst [vmem:[#allocation2 + $0x788] sm:$0xff] 0.0
          %558 = vst [vmem:[#allocation2 + $0x790] sm:$0xff] 0.0
          %559 = vst [vmem:[#allocation2 + $0x798] sm:$0xff] 0.0
          %560 = vst [vmem:[#allocation2 + $0x7a0] sm:$0xff] 0.0
          %561 = vst [vmem:[#allocation2 + $0x7a8] sm:$0xff] 0.0
          %562 = vst [vmem:[#allocation2 + $0x7b0] sm:$0xff] 0.0
          %563 = vst [vmem:[#allocation2 + $0x7b8] sm:$0xff] 0.0
          %564 = vst [vmem:[#allocation2 + $0x7c0] sm:$0xff] 0.0
          %565 = vst [vmem:[#allocation2 + $0x7c8] sm:$0xff] 0.0
          %566 = vst [vmem:[#allocation2 + $0x7d0] sm:$0xff] 0.0
          %567 = vst [vmem:[#allocation2 + $0x7d8] sm:$0xff] 0.0
          %568 = vst [vmem:[#allocation2 + $0x7e0] sm:$0xff] 0.0
          %569 = vst [vmem:[#allocation2 + $0x7e8] sm:$0xff] 0.0
          %570 = vst [vmem:[#allocation2 + $0x7f0] sm:$0xff] 0.0
          %571 = vst [vmem:[#allocation2 + $0x7f8] sm:$0xff] 0.0
          %572 = vst [vmem:[#allocation2 + $0x800] sm:$0xff] 0.0
          %573 = vst [vmem:[#allocation2 + $0x808] sm:$0xff] 0.0
          %574 = vst [vmem:[#allocation2 + $0x810] sm:$0xff] 0.0
          %575 = vst [vmem:[#allocation2 + $0x818] sm:$0xff] 0.0
          %576 = vst [vmem:[#allocation2 + $0x820] sm:$0xff] 0.0
          %577 = vst [vmem:[#allocation2 + $0x828] sm:$0xff] 0.0
          %578 = vst [vmem:[#allocation2 + $0x830] sm:$0xff] 0.0
          %579 = vst [vmem:[#allocation2 + $0x838] sm:$0xff] 0.0
          %580 = vst [vmem:[#allocation2 + $0x840] sm:$0xff] 0.0
          %581 = vst [vmem:[#allocation2 + $0x848] sm:$0xff] 0.0
          %582 = vst [vmem:[#allocation2 + $0x850] sm:$0xff] 0.0
          %583 = vst [vmem:[#allocation2 + $0x858] sm:$0xff] 0.0
          %584 = vst [vmem:[#allocation2 + $0x860] sm:$0xff] 0.0
          %585 = vst [vmem:[#allocation2 + $0x868] sm:$0xff] 0.0
          %586 = vst [vmem:[#allocation2 + $0x870] sm:$0xff] 0.0
          %587 = vst [vmem:[#allocation2 + $0x878] sm:$0xff] 0.0
          %588 = vst [vmem:[#allocation2 + $0x880] sm:$0xff] 0.0
          %589 = vst [vmem:[#allocation2 + $0x888] sm:$0xff] 0.0
          %590 = vst [vmem:[#allocation2 + $0x890] sm:$0xff] 0.0
          %591 = vst [vmem:[#allocation2 + $0x898] sm:$0xff] 0.0
          %592 = vst [vmem:[#allocation2 + $0x8a0] sm:$0xff] 0.0
          %593 = vst [vmem:[#allocation2 + $0x8a8] sm:$0xff] 0.0
          %594 = vst [vmem:[#allocation2 + $0x8b0] sm:$0xff] 0.0
          %595 = vst [vmem:[#allocation2 + $0x8b8] sm:$0xff] 0.0
          %596 = vst [vmem:[#allocation2 + $0x8c0] sm:$0xff] 0.0
          %597 = vst [vmem:[#allocation2 + $0x8c8] sm:$0xff] 0.0
          %598 = vst [vmem:[#allocation2 + $0x8d0] sm:$0xff] 0.0
          %599 = vst [vmem:[#allocation2 + $0x8d8] sm:$0xff] 0.0
          %600 = vst [vmem:[#allocation2 + $0x8e0] sm:$0xff] 0.0
          %601 = vst [vmem:[#allocation2 + $0x8e8] sm:$0xff] 0.0
          %602 = vst [vmem:[#allocation2 + $0x8f0] sm:$0xff] 0.0
          %603 = vst [vmem:[#allocation2 + $0x8f8] sm:$0xff] 0.0
        $region52: #{linear_dropout_add.1} parent=35 // pred_fallthru
          _
        %v604 = vld [vmem:[#allocation2] sm:$0xff]
        %v605 = vld [vmem:[#allocation2 + $0x8] sm:$0xff]
        %v606 = vld [vmem:[#allocation2 + $0x10] sm:$0xff]
        %v607 = vld [vmem:[#allocation2 + $0x18] sm:$0xff]
        %v608 = vld [vmem:[#allocation2 + $0x20] sm:$0xff]
        %v609 = vld [vmem:[#allocation2 + $0x28] sm:$0xff]
        %v610 = vld [vmem:[#allocation2 + $0x30] sm:$0xff]
        %v611 = vld [vmem:[#allocation2 + $0x38] sm:$0xff]
        %v612 = vld [vmem:[#allocation2 + $0x40] sm:$0xff]
        %v613 = vld [vmem:[#allocation2 + $0x48] sm:$0xff]
        %v614 = vld [vmem:[#allocation2 + $0x50] sm:$0xff]
        %v615 = vld [vmem:[#allocation2 + $0x58] sm:$0xff]
        %v616 = vld [vmem:[#allocation2 + $0x60] sm:$0xff]
        %v617 = vld [vmem:[#allocation2 + $0x68] sm:$0xff]
        %v618 = vld [vmem:[#allocation2 + $0x70] sm:$0xff]
        %v619 = vld [vmem:[#allocation2 + $0x78] sm:$0xff]
        %v620 = vld [vmem:[#allocation2 + $0x80] sm:$0xff]
        %v621 = vld [vmem:[#allocation2 + $0x88] sm:$0xff]
        %v622 = vld [vmem:[#allocation2 + $0x90] sm:$0xff]
        %v623 = vld [vmem:[#allocation2 + $0x98] sm:$0xff]
        %v624 = vld [vmem:[#allocation2 + $0xa0] sm:$0xff]
        %v625 = vld [vmem:[#allocation2 + $0xa8] sm:$0xff]
        %v626 = vld [vmem:[#allocation2 + $0xb0] sm:$0xff]
        %v627 = vld [vmem:[#allocation2 + $0xb8] sm:$0xff]
        %v628 = vld [vmem:[#allocation2 + $0xc0] sm:$0xff]
        %v629 = vld [vmem:[#allocation2 + $0xc8] sm:$0xff]
        %v630 = vld [vmem:[#allocation2 + $0xd0] sm:$0xff]
        %v631 = vld [vmem:[#allocation2 + $0xd8] sm:$0xff]
        %v632 = vld [vmem:[#allocation2 + $0xe0] sm:$0xff]
        %v633 = vld [vmem:[#allocation2 + $0xe8] sm:$0xff]
        %v634 = vld [vmem:[#allocation2 + $0xf0] sm:$0xff]
        %v635 = vld [vmem:[#allocation2 + $0xf8] sm:$0xff]
        %v636 = vld [vmem:[#allocation2 + $0x100] sm:$0xff]
        %v637 = vld [vmem:[#allocation2 + $0x108] sm:$0xff]
        %v638 = vld [vmem:[#allocation2 + $0x110] sm:$0xff]
        %v639 = vld [vmem:[#allocation2 + $0x118] sm:$0xff]
        %v640 = vld [vmem:[#allocation2 + $0x120] sm:$0xff]
        %v641 = vld [vmem:[#allocation2 + $0x128] sm:$0xff]
        %v642 = vld [vmem:[#allocation2 + $0x130] sm:$0xff]
        %v643 = vld [vmem:[#allocation2 + $0x138] sm:$0xff]
        %v644 = vld [vmem:[#allocation2 + $0x140] sm:$0xff]
        %v645 = vld [vmem:[#allocation2 + $0x148] sm:$0xff]
        %v646 = vld [vmem:[#allocation2 + $0x150] sm:$0xff]
        %v647 = vld [vmem:[#allocation2 + $0x158] sm:$0xff]
        %v648 = vld [vmem:[#allocation2 + $0x160] sm:$0xff]
        %v649 = vld [vmem:[#allocation2 + $0x168] sm:$0xff]
        %v650 = vld [vmem:[#allocation2 + $0x170] sm:$0xff]
        %v651 = vld [vmem:[#allocation2 + $0x178] sm:$0xff]
        %v652 = vld [vmem:[#allocation2 + $0x180] sm:$0xff]
        %v653 = vld [vmem:[#allocation2 + $0x188] sm:$0xff]
        %v654 = vld [vmem:[#allocation2 + $0x190] sm:$0xff]
        %v655 = vld [vmem:[#allocation2 + $0x198] sm:$0xff]
        %v656 = vld [vmem:[#allocation2 + $0x1a0] sm:$0xff]
        %v657 = vld [vmem:[#allocation2 + $0x1a8] sm:$0xff]
        %v658 = vld [vmem:[#allocation2 + $0x1b0] sm:$0xff]
        %v659 = vld [vmem:[#allocation2 + $0x1b8] sm:$0xff]
        %v660 = vld [vmem:[#allocation2 + $0x1c0] sm:$0xff]
        %v661 = vld [vmem:[#allocation2 + $0x1c8] sm:$0xff]
        %v662 = vld [vmem:[#allocation2 + $0x1d0] sm:$0xff]
        %v663 = vld [vmem:[#allocation2 + $0x1d8] sm:$0xff]
        %v664 = vld [vmem:[#allocation2 + $0x1e0] sm:$0xff]
        %v665 = vld [vmem:[#allocation2 + $0x1e8] sm:$0xff]
        %v666 = vld [vmem:[#allocation2 + $0x1f0] sm:$0xff]
        %v667 = vld [vmem:[#allocation2 + $0x1f8] sm:$0xff]
        %v668 = vld [vmem:[#allocation2 + $0x200] sm:$0xff]
        %v669 = vld [vmem:[#allocation2 + $0x208] sm:$0xff]
        %v670 = vld [vmem:[#allocation2 + $0x210] sm:$0xff]
        %v671 = vld [vmem:[#allocation2 + $0x218] sm:$0xff]
        %v672 = vld [vmem:[#allocation2 + $0x220] sm:$0xff]
        %v673 = vld [vmem:[#allocation2 + $0x228] sm:$0xff]
        %v674 = vld [vmem:[#allocation2 + $0x230] sm:$0xff]
        %v675 = vld [vmem:[#allocation2 + $0x238] sm:$0xff]
        %v676 = vld [vmem:[#allocation2 + $0x240] sm:$0xff]
        %v677 = vld [vmem:[#allocation2 + $0x248] sm:$0xff]
        %v678 = vld [vmem:[#allocation2 + $0x250] sm:$0xff]
        %v679 = vld [vmem:[#allocation2 + $0x258] sm:$0xff]
        %v680 = vld [vmem:[#allocation2 + $0x260] sm:$0xff]
        %v681 = vld [vmem:[#allocation2 + $0x268] sm:$0xff]
        %v682 = vld [vmem:[#allocation2 + $0x270] sm:$0xff]
        %v683 = vld [vmem:[#allocation2 + $0x278] sm:$0xff]
        %v684 = vld [vmem:[#allocation2 + $0x280] sm:$0xff]
        %v685 = vld [vmem:[#allocation2 + $0x288] sm:$0xff]
        %v686 = vld [vmem:[#allocation2 + $0x290] sm:$0xff]
        %v687 = vld [vmem:[#allocation2 + $0x298] sm:$0xff]
        %v688 = vld [vmem:[#allocation2 + $0x2a0] sm:$0xff]
        %v689 = vld [vmem:[#allocation2 + $0x2a8] sm:$0xff]
        %v690 = vld [vmem:[#allocation2 + $0x2b0] sm:$0xff]
        %v691 = vld [vmem:[#allocation2 + $0x2b8] sm:$0xff]
        %v692 = vld [vmem:[#allocation2 + $0x2c0] sm:$0xff]
        %v693 = vld [vmem:[#allocation2 + $0x2c8] sm:$0xff]
        %v694 = vld [vmem:[#allocation2 + $0x2d0] sm:$0xff]
        %v695 = vld [vmem:[#allocation2 + $0x2d8] sm:$0xff]
        %v696 = vld [vmem:[#allocation2 + $0x2e0] sm:$0xff]
        %v697 = vld [vmem:[#allocation2 + $0x2e8] sm:$0xff]
        %v698 = vld [vmem:[#allocation2 + $0x2f0] sm:$0xff]
        %v699 = vld [vmem:[#allocation2 + $0x2f8] sm:$0xff]
        %v700 = vld [vmem:[#allocation2 + $0x300] sm:$0xff]
        %v701 = vld [vmem:[#allocation2 + $0x308] sm:$0xff]
        %v702 = vld [vmem:[#allocation2 + $0x310] sm:$0xff]
        %v703 = vld [vmem:[#allocation2 + $0x318] sm:$0xff]
        %v704 = vld [vmem:[#allocation2 + $0x320] sm:$0xff]
        %v705 = vld [vmem:[#allocation2 + $0x328] sm:$0xff]
        %v706 = vld [vmem:[#allocation2 + $0x330] sm:$0xff]
        %v707 = vld [vmem:[#allocation2 + $0x338] sm:$0xff]
        %v708 = vld [vmem:[#allocation2 + $0x340] sm:$0xff]
        %v709 = vld [vmem:[#allocation2 + $0x348] sm:$0xff]
        %v710 = vld [vmem:[#allocation2 + $0x350] sm:$0xff]
        %v711 = vld [vmem:[#allocation2 + $0x358] sm:$0xff]
        %v712 = vld [vmem:[#allocation2 + $0x360] sm:$0xff]
        %v713 = vld [vmem:[#allocation2 + $0x368] sm:$0xff]
        %v714 = vld [vmem:[#allocation2 + $0x370] sm:$0xff]
        %v715 = vld [vmem:[#allocation2 + $0x378] sm:$0xff]
        %v716 = vld [vmem:[#allocation2 + $0x380] sm:$0xff]
        %v717 = vld [vmem:[#allocation2 + $0x388] sm:$0xff]
        %v718 = vld [vmem:[#allocation2 + $0x390] sm:$0xff]
        %v719 = vld [vmem:[#allocation2 + $0x398] sm:$0xff]
        %v720 = vld [vmem:[#allocation2 + $0x3a0] sm:$0xff]
        %v721 = vld [vmem:[#allocation2 + $0x3a8] sm:$0xff]
        %v722 = vld [vmem:[#allocation2 + $0x3b0] sm:$0xff]
        %v723 = vld [vmem:[#allocation2 + $0x3b8] sm:$0xff]
        %v724 = vld [vmem:[#allocation2 + $0x3c0] sm:$0xff]
        %v725 = vld [vmem:[#allocation2 + $0x3c8] sm:$0xff]
        %v726 = vld [vmem:[#allocation2 + $0x3d0] sm:$0xff]
        %v727 = vld [vmem:[#allocation2 + $0x3d8] sm:$0xff]
        %v728 = vld [vmem:[#allocation2 + $0x3e0] sm:$0xff]
        %v729 = vld [vmem:[#allocation2 + $0x3e8] sm:$0xff]
        %v730 = vld [vmem:[#allocation2 + $0x3f0] sm:$0xff]
        %v731 = vld [vmem:[#allocation2 + $0x3f8] sm:$0xff]
        %v732 = vld [vmem:[#allocation2 + $0x400] sm:$0xff]
        %v733 = vld [vmem:[#allocation2 + $0x408] sm:$0xff]
        %v734 = vld [vmem:[#allocation2 + $0x410] sm:$0xff]
        %v735 = vld [vmem:[#allocation2 + $0x418] sm:$0xff]
        %v736 = vld [vmem:[#allocation2 + $0x420] sm:$0xff]
        %v737 = vld [vmem:[#allocation2 + $0x428] sm:$0xff]
        %v738 = vld [vmem:[#allocation2 + $0x430] sm:$0xff]
        %v739 = vld [vmem:[#allocation2 + $0x438] sm:$0xff]
        %v740 = vld [vmem:[#allocation2 + $0x440] sm:$0xff]
        %v741 = vld [vmem:[#allocation2 + $0x448] sm:$0xff]
        %v742 = vld [vmem:[#allocation2 + $0x450] sm:$0xff]
        %v743 = vld [vmem:[#allocation2 + $0x458] sm:$0xff]
        %v744 = vld [vmem:[#allocation2 + $0x460] sm:$0xff]
        %v745 = vld [vmem:[#allocation2 + $0x468] sm:$0xff]
        %v746 = vld [vmem:[#allocation2 + $0x470] sm:$0xff]
        %v747 = vld [vmem:[#allocation2 + $0x478] sm:$0xff]
        %v748 = vld [vmem:[#allocation2 + $0x480] sm:$0xff]
        %v749 = vld [vmem:[#allocation2 + $0x488] sm:$0xff]
        %v750 = vld [vmem:[#allocation2 + $0x490] sm:$0xff]
        %v751 = vld [vmem:[#allocation2 + $0x498] sm:$0xff]
        %v752 = vld [vmem:[#allocation2 + $0x4a0] sm:$0xff]
        %v753 = vld [vmem:[#allocation2 + $0x4a8] sm:$0xff]
        %v754 = vld [vmem:[#allocation2 + $0x4b0] sm:$0xff]
        %v755 = vld [vmem:[#allocation2 + $0x4b8] sm:$0xff]
        %v756 = vld [vmem:[#allocation2 + $0x4c0] sm:$0xff]
        %v757 = vld [vmem:[#allocation2 + $0x4c8] sm:$0xff]
        %v758 = vld [vmem:[#allocation2 + $0x4d0] sm:$0xff]
        %v759 = vld [vmem:[#allocation2 + $0x4d8] sm:$0xff]
        %v760 = vld [vmem:[#allocation2 + $0x4e0] sm:$0xff]
        %v761 = vld [vmem:[#allocation2 + $0x4e8] sm:$0xff]
        %v762 = vld [vmem:[#allocation2 + $0x4f0] sm:$0xff]
        %v763 = vld [vmem:[#allocation2 + $0x4f8] sm:$0xff]
        %v764 = vld [vmem:[#allocation2 + $0x500] sm:$0xff]
        %v765 = vld [vmem:[#allocation2 + $0x508] sm:$0xff]
        %v766 = vld [vmem:[#allocation2 + $0x510] sm:$0xff]
        %v767 = vld [vmem:[#allocation2 + $0x518] sm:$0xff]
        %v768 = vld [vmem:[#allocation2 + $0x520] sm:$0xff]
        %v769 = vld [vmem:[#allocation2 + $0x528] sm:$0xff]
        %v770 = vld [vmem:[#allocation2 + $0x530] sm:$0xff]
        %v771 = vld [vmem:[#allocation2 + $0x538] sm:$0xff]
        %v772 = vld [vmem:[#allocation2 + $0x540] sm:$0xff]
        %v773 = vld [vmem:[#allocation2 + $0x548] sm:$0xff]
        %v774 = vld [vmem:[#allocation2 + $0x550] sm:$0xff]
        %v775 = vld [vmem:[#allocation2 + $0x558] sm:$0xff]
        %v776 = vld [vmem:[#allocation2 + $0x560] sm:$0xff]
        %v777 = vld [vmem:[#allocation2 + $0x568] sm:$0xff]
        %v778 = vld [vmem:[#allocation2 + $0x570] sm:$0xff]
        %v779 = vld [vmem:[#allocation2 + $0x578] sm:$0xff]
        %v780 = vld [vmem:[#allocation2 + $0x580] sm:$0xff]
        %v781 = vld [vmem:[#allocation2 + $0x588] sm:$0xff]
        %v782 = vld [vmem:[#allocation2 + $0x590] sm:$0xff]
        %v783 = vld [vmem:[#allocation2 + $0x598] sm:$0xff]
        %v784 = vld [vmem:[#allocation2 + $0x5a0] sm:$0xff]
        %v785 = vld [vmem:[#allocation2 + $0x5a8] sm:$0xff]
        %v786 = vld [vmem:[#allocation2 + $0x5b0] sm:$0xff]
        %v787 = vld [vmem:[#allocation2 + $0x5b8] sm:$0xff]
        %v788 = vld [vmem:[#allocation2 + $0x5c0] sm:$0xff]
        %v789 = vld [vmem:[#allocation2 + $0x5c8] sm:$0xff]
        %v790 = vld [vmem:[#allocation2 + $0x5d0] sm:$0xff]
        %v791 = vld [vmem:[#allocation2 + $0x5d8] sm:$0xff]
        %v792 = vld [vmem:[#allocation2 + $0x5e0] sm:$0xff]
        %v793 = vld [vmem:[#allocation2 + $0x5e8] sm:$0xff]
        %v794 = vld [vmem:[#allocation2 + $0x5f0] sm:$0xff]
        %v795 = vld [vmem:[#allocation2 + $0x5f8] sm:$0xff]
        %v796 = vld [vmem:[#allocation2 + $0x600] sm:$0xff]
        %v797 = vld [vmem:[#allocation2 + $0x608] sm:$0xff]
        %v798 = vld [vmem:[#allocation2 + $0x610] sm:$0xff]
        %v799 = vld [vmem:[#allocation2 + $0x618] sm:$0xff]
        %v800 = vld [vmem:[#allocation2 + $0x620] sm:$0xff]
        %v801 = vld [vmem:[#allocation2 + $0x628] sm:$0xff]
        %v802 = vld [vmem:[#allocation2 + $0x630] sm:$0xff]
        %v803 = vld [vmem:[#allocation2 + $0x638] sm:$0xff]
        %v804 = vld [vmem:[#allocation2 + $0x640] sm:$0xff]
        %v805 = vld [vmem:[#allocation2 + $0x648] sm:$0xff]
        %v806 = vld [vmem:[#allocation2 + $0x650] sm:$0xff]
        %v807 = vld [vmem:[#allocation2 + $0x658] sm:$0xff]
        %v808 = vld [vmem:[#allocation2 + $0x660] sm:$0xff]
        %v809 = vld [vmem:[#allocation2 + $0x668] sm:$0xff]
        %v810 = vld [vmem:[#allocation2 + $0x670] sm:$0xff]
        %v811 = vld [vmem:[#allocation2 + $0x678] sm:$0xff]
        %v812 = vld [vmem:[#allocation2 + $0x680] sm:$0xff]
        %v813 = vld [vmem:[#allocation2 + $0x688] sm:$0xff]
        %v814 = vld [vmem:[#allocation2 + $0x690] sm:$0xff]
        %v815 = vld [vmem:[#allocation2 + $0x698] sm:$0xff]
        %v816 = vld [vmem:[#allocation2 + $0x6a0] sm:$0xff]
        %v817 = vld [vmem:[#allocation2 + $0x6a8] sm:$0xff]
        %v818 = vld [vmem:[#allocation2 + $0x6b0] sm:$0xff]
        %v819 = vld [vmem:[#allocation2 + $0x6b8] sm:$0xff]
        %v820 = vld [vmem:[#allocation2 + $0x6c0] sm:$0xff]
        %v821 = vld [vmem:[#allocation2 + $0x6c8] sm:$0xff]
        %v822 = vld [vmem:[#allocation2 + $0x6d0] sm:$0xff]
        %v823 = vld [vmem:[#allocation2 + $0x6d8] sm:$0xff]
        %v824 = vld [vmem:[#allocation2 + $0x6e0] sm:$0xff]
        %v825 = vld [vmem:[#allocation2 + $0x6e8] sm:$0xff]
        %v826 = vld [vmem:[#allocation2 + $0x6f0] sm:$0xff]
        %v827 = vld [vmem:[#allocation2 + $0x6f8] sm:$0xff]
        %v828 = vld [vmem:[#allocation2 + $0x700] sm:$0xff]
        %v829 = vld [vmem:[#allocation2 + $0x708] sm:$0xff]
        %v830 = vld [vmem:[#allocation2 + $0x710] sm:$0xff]
        %v831 = vld [vmem:[#allocation2 + $0x718] sm:$0xff]
        %v832 = vld [vmem:[#allocation2 + $0x720] sm:$0xff]
        %v833 = vld [vmem:[#allocation2 + $0x728] sm:$0xff]
        %v834 = vld [vmem:[#allocation2 + $0x730] sm:$0xff]
        %v835 = vld [vmem:[#allocation2 + $0x738] sm:$0xff]
        %v836 = vld [vmem:[#allocation2 + $0x740] sm:$0xff]
        %v837 = vld [vmem:[#allocation2 + $0x748] sm:$0xff]
        %v838 = vld [vmem:[#allocation2 + $0x750] sm:$0xff]
        %v839 = vld [vmem:[#allocation2 + $0x758] sm:$0xff]
        %v840 = vld [vmem:[#allocation2 + $0x760] sm:$0xff]
        %v841 = vld [vmem:[#allocation2 + $0x768] sm:$0xff]
        %v842 = vld [vmem:[#allocation2 + $0x770] sm:$0xff]
        %v843 = vld [vmem:[#allocation2 + $0x778] sm:$0xff]
        %v844 = vld [vmem:[#allocation2 + $0x780] sm:$0xff]
        %v845 = vld [vmem:[#allocation2 + $0x788] sm:$0xff]
        %v846 = vld [vmem:[#allocation2 + $0x790] sm:$0xff]
        %v847 = vld [vmem:[#allocation2 + $0x798] sm:$0xff]
        %v848 = vld [vmem:[#allocation2 + $0x7a0] sm:$0xff]
        %v849 = vld [vmem:[#allocation2 + $0x7a8] sm:$0xff]
        %v850 = vld [vmem:[#allocation2 + $0x7b0] sm:$0xff]
        %v851 = vld [vmem:[#allocation2 + $0x7b8] sm:$0xff]
        %v852 = vld [vmem:[#allocation2 + $0x7c0] sm:$0xff]
        %v853 = vld [vmem:[#allocation2 + $0x7c8] sm:$0xff]
        %v854 = vld [vmem:[#allocation2 + $0x7d0] sm:$0xff]
        %v855 = vld [vmem:[#allocation2 + $0x7d8] sm:$0xff]
        %v856 = vld [vmem:[#allocation2 + $0x7e0] sm:$0xff]
        %v857 = vld [vmem:[#allocation2 + $0x7e8] sm:$0xff]
        %v858 = vld [vmem:[#allocation2 + $0x7f0] sm:$0xff]
        %v859 = vld [vmem:[#allocation2 + $0x7f8] sm:$0xff]
        %v860 = vld [vmem:[#allocation2 + $0x800] sm:$0xff]
        %v861 = vld [vmem:[#allocation2 + $0x808] sm:$0xff]
        %v862 = vld [vmem:[#allocation2 + $0x810] sm:$0xff]
        %v863 = vld [vmem:[#allocation2 + $0x818] sm:$0xff]
        %v864 = vld [vmem:[#allocation2 + $0x820] sm:$0xff]
        %v865 = vld [vmem:[#allocation2 + $0x828] sm:$0xff]
        %v866 = vld [vmem:[#allocation2 + $0x830] sm:$0xff]
        %v867 = vld [vmem:[#allocation2 + $0x838] sm:$0xff]
        %v868 = vld [vmem:[#allocation2 + $0x840] sm:$0xff]
        %v869 = vld [vmem:[#allocation2 + $0x848] sm:$0xff]
        %v870 = vld [vmem:[#allocation2 + $0x850] sm:$0xff]
        %v871 = vld [vmem:[#allocation2 + $0x858] sm:$0xff]
        %v872 = vld [vmem:[#allocation2 + $0x860] sm:$0xff]
        %v873 = vld [vmem:[#allocation2 + $0x868] sm:$0xff]
        %v874 = vld [vmem:[#allocation2 + $0x870] sm:$0xff]
        %v875 = vld [vmem:[#allocation2 + $0x878] sm:$0xff]
        %v876 = vld [vmem:[#allocation2 + $0x880] sm:$0xff]
        %v877 = vld [vmem:[#allocation2 + $0x888] sm:$0xff]
        %v878 = vld [vmem:[#allocation2 + $0x890] sm:$0xff]
        %v879 = vld [vmem:[#allocation2 + $0x898] sm:$0xff]
        %v880 = vld [vmem:[#allocation2 + $0x8a0] sm:$0xff]
        %v881 = vld [vmem:[#allocation2 + $0x8a8] sm:$0xff]
        %v882 = vld [vmem:[#allocation2 + $0x8b0] sm:$0xff]
        %v883 = vld [vmem:[#allocation2 + $0x8b8] sm:$0xff]
        %v884 = vld [vmem:[#allocation2 + $0x8c0] sm:$0xff]
        %v885 = vld [vmem:[#allocation2 + $0x8c8] sm:$0xff]
        %v886 = vld [vmem:[#allocation2 + $0x8d0] sm:$0xff]
        %v887 = vld [vmem:[#allocation2 + $0x8d8] sm:$0xff]
        %v888 = vld [vmem:[#allocation2 + $0x8e0] sm:$0xff]
        %v889 = vld [vmem:[#allocation2 + $0x8e8] sm:$0xff]
        %v890 = vld [vmem:[#allocation2 + $0x8f0] sm:$0xff]
        %v891 = vld [vmem:[#allocation2 + $0x8f8] sm:$0xff]
        %v892 = vld [vmem:[%s260] sm:$0xff]
        %v893 = vld [vmem:[%s260 + $0x8] sm:$0xff]
        %v894 = vld [vmem:[%s260 + $0x10] sm:$0xff]
        %v895 = vld [vmem:[%s260 + $0x18] sm:$0xff]
        %v896 = vld [vmem:[%s260 + $0x20] sm:$0xff]
        %v897 = vld [vmem:[%s260 + $0x28] sm:$0xff]
        %v898 = vld [vmem:[%s260 + $0x30] sm:$0xff]
        %v899 = vld [vmem:[%s260 + $0x38] sm:$0xff]
        %v900 = vld [vmem:[%s260 + $0x40] sm:$0xff]
        %v901 = vld [vmem:[%s260 + $0x48] sm:$0xff]
        %v902 = vld [vmem:[%s260 + $0x50] sm:$0xff]
        %v903 = vld [vmem:[%s260 + $0x58] sm:$0xff]
        %v904 = vld [vmem:[%s260 + $0x60] sm:$0xff]
        %v905 = vld [vmem:[%s260 + $0x68] sm:$0xff]
        %v906 = vld [vmem:[%s260 + $0x70] sm:$0xff]
        %v907 = vld [vmem:[%s260 + $0x78] sm:$0xff]
        %v908 = vld [vmem:[%s260 + $0x80] sm:$0xff]
        %v909 = vld [vmem:[%s260 + $0x88] sm:$0xff]
        %v910 = vld [vmem:[%s260 + $0x90] sm:$0xff]
        %v911 = vld [vmem:[%s260 + $0x98] sm:$0xff]
        %v912 = vld [vmem:[%s260 + $0xa0] sm:$0xff]
        %v913 = vld [vmem:[%s260 + $0xa8] sm:$0xff]
        %v914 = vld [vmem:[%s260 + $0xb0] sm:$0xff]
        %v915 = vld [vmem:[%s260 + $0xb8] sm:$0xff]
        %v916 = vld [vmem:[%s260 + $0xc0] sm:$0xff]
        %v917 = vld [vmem:[%s260 + $0xc8] sm:$0xff]
        %v918 = vld [vmem:[%s260 + $0xd0] sm:$0xff]
        %v919 = vld [vmem:[%s260 + $0xd8] sm:$0xff]
        %v920 = vld [vmem:[%s260 + $0xe0] sm:$0xff]
        %v921 = vld [vmem:[%s260 + $0xe8] sm:$0xff]
        %v922 = vld [vmem:[%s260 + $0xf0] sm:$0xff]
        %v923 = vld [vmem:[%s260 + $0xf8] sm:$0xff]
        %v924 = vld [vmem:[%s260 + $0x100] sm:$0xff]
        %v925 = vld [vmem:[%s260 + $0x108] sm:$0xff]
        %v926 = vld [vmem:[%s260 + $0x110] sm:$0xff]
        %v927 = vld [vmem:[%s260 + $0x118] sm:$0xff]
        %v928 = vld [vmem:[%s260 + $0x120] sm:$0xff]
        %v929 = vld [vmem:[%s260 + $0x128] sm:$0xff]
        %v930 = vld [vmem:[%s260 + $0x130] sm:$0xff]
        %v931 = vld [vmem:[%s260 + $0x138] sm:$0xff]
        %v932 = vld [vmem:[%s260 + $0x140] sm:$0xff]
        %v933 = vld [vmem:[%s260 + $0x148] sm:$0xff]
        %v934 = vld [vmem:[%s260 + $0x150] sm:$0xff]
        %v935 = vld [vmem:[%s260 + $0x158] sm:$0xff]
        %v936 = vld [vmem:[%s260 + $0x160] sm:$0xff]
        %v937 = vld [vmem:[%s260 + $0x168] sm:$0xff]
        %v938 = vld [vmem:[%s260 + $0x170] sm:$0xff]
        %v939 = vld [vmem:[%s260 + $0x178] sm:$0xff]
        %v940 = vld [vmem:[%s260 + $0x180] sm:$0xff]
        %v941 = vld [vmem:[%s260 + $0x188] sm:$0xff]
        %v942 = vld [vmem:[%s260 + $0x190] sm:$0xff]
        %v943 = vld [vmem:[%s260 + $0x198] sm:$0xff]
        %v944 = vld [vmem:[%s260 + $0x1a0] sm:$0xff]
        %v945 = vld [vmem:[%s260 + $0x1a8] sm:$0xff]
        %v946 = vld [vmem:[%s260 + $0x1b0] sm:$0xff]
        %v947 = vld [vmem:[%s260 + $0x1b8] sm:$0xff]
        %v948 = vld [vmem:[%s260 + $0x1c0] sm:$0xff]
        %v949 = vld [vmem:[%s260 + $0x1c8] sm:$0xff]
        %v950 = vld [vmem:[%s260 + $0x1d0] sm:$0xff]
        %v951 = vld [vmem:[%s260 + $0x1d8] sm:$0xff]
        %v952 = vld [vmem:[%s260 + $0x1e0] sm:$0xff]
        %v953 = vld [vmem:[%s260 + $0x1e8] sm:$0xff]
        %v954 = vld [vmem:[%s260 + $0x1f0] sm:$0xff]
        %v955 = vld [vmem:[%s260 + $0x1f8] sm:$0xff]
        %v956 = vld [vmem:[%s260 + $0x200] sm:$0xff]
        %v957 = vld [vmem:[%s260 + $0x208] sm:$0xff]
        %v958 = vld [vmem:[%s260 + $0x210] sm:$0xff]
        %v959 = vld [vmem:[%s260 + $0x218] sm:$0xff]
        %v960 = vld [vmem:[%s260 + $0x220] sm:$0xff]
        %v961 = vld [vmem:[%s260 + $0x228] sm:$0xff]
        %v962 = vld [vmem:[%s260 + $0x230] sm:$0xff]
        %v963 = vld [vmem:[%s260 + $0x238] sm:$0xff]
        %v964 = vld [vmem:[%s260 + $0x240] sm:$0xff]
        %v965 = vld [vmem:[%s260 + $0x248] sm:$0xff]
        %v966 = vld [vmem:[%s260 + $0x250] sm:$0xff]
        %v967 = vld [vmem:[%s260 + $0x258] sm:$0xff]
        %v968 = vld [vmem:[%s260 + $0x260] sm:$0xff]
        %v969 = vld [vmem:[%s260 + $0x268] sm:$0xff]
        %v970 = vld [vmem:[%s260 + $0x270] sm:$0xff]
        %v971 = vld [vmem:[%s260 + $0x278] sm:$0xff]
        %v972 = vld [vmem:[%s260 + $0x280] sm:$0xff]
        %v973 = vld [vmem:[%s260 + $0x288] sm:$0xff]
        %v974 = vld [vmem:[%s260 + $0x290] sm:$0xff]
        %v975 = vld [vmem:[%s260 + $0x298] sm:$0xff]
        %v976 = vld [vmem:[%s260 + $0x2a0] sm:$0xff]
        %v977 = vld [vmem:[%s260 + $0x2a8] sm:$0xff]
        %v978 = vld [vmem:[%s260 + $0x2b0] sm:$0xff]
        %v979 = vld [vmem:[%s260 + $0x2b8] sm:$0xff]
        %v980 = vld [vmem:[%s260 + $0x2c0] sm:$0xff]
        %v981 = vld [vmem:[%s260 + $0x2c8] sm:$0xff]
        %v982 = vld [vmem:[%s260 + $0x2d0] sm:$0xff]
        %v983 = vld [vmem:[%s260 + $0x2d8] sm:$0xff]
        %v984 = vld [vmem:[%s260 + $0x2e0] sm:$0xff]
        %v985 = vld [vmem:[%s260 + $0x2e8] sm:$0xff]
        %v986 = vld [vmem:[%s260 + $0x2f0] sm:$0xff]
        %v987 = vld [vmem:[%s260 + $0x2f8] sm:$0xff]
        %v988 = vld [vmem:[%s260 + $0x300] sm:$0xff]
        %v989 = vld [vmem:[%s260 + $0x308] sm:$0xff]
        %v990 = vld [vmem:[%s260 + $0x310] sm:$0xff]
        %v991 = vld [vmem:[%s260 + $0x318] sm:$0xff]
        %v992 = vld [vmem:[%s260 + $0x320] sm:$0xff]
        %v993 = vld [vmem:[%s260 + $0x328] sm:$0xff]
        %v994 = vld [vmem:[%s260 + $0x330] sm:$0xff]
        %v995 = vld [vmem:[%s260 + $0x338] sm:$0xff]
        %v996 = vld [vmem:[%s260 + $0x340] sm:$0xff]
        %v997 = vld [vmem:[%s260 + $0x348] sm:$0xff]
        %v998 = vld [vmem:[%s260 + $0x350] sm:$0xff]
        %v999 = vld [vmem:[%s260 + $0x358] sm:$0xff]
        %v1000 = vld [vmem:[%s260 + $0x360] sm:$0xff]
        %v1001 = vld [vmem:[%s260 + $0x368] sm:$0xff]
        %v1002 = vld [vmem:[%s260 + $0x370] sm:$0xff]
        %v1003 = vld [vmem:[%s260 + $0x378] sm:$0xff]
        %v1004 = vld [vmem:[%s260 + $0x380] sm:$0xff]
        %v1005 = vld [vmem:[%s260 + $0x388] sm:$0xff]
        %v1006 = vld [vmem:[%s260 + $0x390] sm:$0xff]
        %v1007 = vld [vmem:[%s260 + $0x398] sm:$0xff]
        %v1008 = vld [vmem:[%s260 + $0x3a0] sm:$0xff]
        %v1009 = vld [vmem:[%s260 + $0x3a8] sm:$0xff]
        %v1010 = vld [vmem:[%s260 + $0x3b0] sm:$0xff]
        %v1011 = vld [vmem:[%s260 + $0x3b8] sm:$0xff]
        %v1012 = vld [vmem:[%s260 + $0x3c0] sm:$0xff]
        %v1013 = vld [vmem:[%s260 + $0x3c8] sm:$0xff]
        %v1014 = vld [vmem:[%s260 + $0x3d0] sm:$0xff]
        %v1015 = vld [vmem:[%s260 + $0x3d8] sm:$0xff]
        %v1016 = vld [vmem:[%s260 + $0x3e0] sm:$0xff]
        %v1017 = vld [vmem:[%s260 + $0x3e8] sm:$0xff]
        %v1018 = vld [vmem:[%s260 + $0x3f0] sm:$0xff]
        %v1019 = vld [vmem:[%s260 + $0x3f8] sm:$0xff]
        %v1020 = vld [vmem:[%s260 + $0x400] sm:$0xff]
        %v1021 = vld [vmem:[%s260 + $0x408] sm:$0xff]
        %v1022 = vld [vmem:[%s260 + $0x410] sm:$0xff]
        %v1023 = vld [vmem:[%s260 + $0x418] sm:$0xff]
        %v1024 = vld [vmem:[%s260 + $0x420] sm:$0xff]
        %v1025 = vld [vmem:[%s260 + $0x428] sm:$0xff]
        %v1026 = vld [vmem:[%s260 + $0x430] sm:$0xff]
        %v1027 = vld [vmem:[%s260 + $0x438] sm:$0xff]
        %v1028 = vld [vmem:[%s260 + $0x440] sm:$0xff]
        %v1029 = vld [vmem:[%s260 + $0x448] sm:$0xff]
        %v1030 = vld [vmem:[%s260 + $0x450] sm:$0xff]
        %v1031 = vld [vmem:[%s260 + $0x458] sm:$0xff]
        %v1032 = vld [vmem:[%s260 + $0x460] sm:$0xff]
        %v1033 = vld [vmem:[%s260 + $0x468] sm:$0xff]
        %v1034 = vld [vmem:[%s260 + $0x470] sm:$0xff]
        %v1035 = vld [vmem:[%s260 + $0x478] sm:$0xff]
        %v1036 = vld [vmem:[%s260 + $0x480] sm:$0xff]
        %v1037 = vld [vmem:[%s260 + $0x488] sm:$0xff]
        %v1038 = vld [vmem:[%s260 + $0x490] sm:$0xff]
        %v1039 = vld [vmem:[%s260 + $0x498] sm:$0xff]
        %v1040 = vld [vmem:[%s260 + $0x4a0] sm:$0xff]
        %v1041 = vld [vmem:[%s260 + $0x4a8] sm:$0xff]
        %v1042 = vld [vmem:[%s260 + $0x4b0] sm:$0xff]
        %v1043 = vld [vmem:[%s260 + $0x4b8] sm:$0xff]
        %v1044 = vld [vmem:[%s260 + $0x4c0] sm:$0xff]
        %v1045 = vld [vmem:[%s260 + $0x4c8] sm:$0xff]
        %v1046 = vld [vmem:[%s260 + $0x4d0] sm:$0xff]
        %v1047 = vld [vmem:[%s260 + $0x4d8] sm:$0xff]
        %v1048 = vld [vmem:[%s260 + $0x4e0] sm:$0xff]
        %v1049 = vld [vmem:[%s260 + $0x4e8] sm:$0xff]
        %v1050 = vld [vmem:[%s260 + $0x4f0] sm:$0xff]
        %v1051 = vld [vmem:[%s260 + $0x4f8] sm:$0xff]
        %v1052 = vld [vmem:[%s260 + $0x500] sm:$0xff]
        %v1053 = vld [vmem:[%s260 + $0x508] sm:$0xff]
        %v1054 = vld [vmem:[%s260 + $0x510] sm:$0xff]
        %v1055 = vld [vmem:[%s260 + $0x518] sm:$0xff]
        %v1056 = vld [vmem:[%s260 + $0x520] sm:$0xff]
        %v1057 = vld [vmem:[%s260 + $0x528] sm:$0xff]
        %v1058 = vld [vmem:[%s260 + $0x530] sm:$0xff]
        %v1059 = vld [vmem:[%s260 + $0x538] sm:$0xff]
        %v1060 = vld [vmem:[%s260 + $0x540] sm:$0xff]
        %v1061 = vld [vmem:[%s260 + $0x548] sm:$0xff]
        %v1062 = vld [vmem:[%s260 + $0x550] sm:$0xff]
        %v1063 = vld [vmem:[%s260 + $0x558] sm:$0xff]
        %v1064 = vld [vmem:[%s260 + $0x560] sm:$0xff]
        %v1065 = vld [vmem:[%s260 + $0x568] sm:$0xff]
        %v1066 = vld [vmem:[%s260 + $0x570] sm:$0xff]
        %v1067 = vld [vmem:[%s260 + $0x578] sm:$0xff]
        %v1068 = vld [vmem:[%s260 + $0x580] sm:$0xff]
        %v1069 = vld [vmem:[%s260 + $0x588] sm:$0xff]
        %v1070 = vld [vmem:[%s260 + $0x590] sm:$0xff]
        %v1071 = vld [vmem:[%s260 + $0x598] sm:$0xff]
        %v1072 = vld [vmem:[%s260 + $0x5a0] sm:$0xff]
        %v1073 = vld [vmem:[%s260 + $0x5a8] sm:$0xff]
        %v1074 = vld [vmem:[%s260 + $0x5b0] sm:$0xff]
        %v1075 = vld [vmem:[%s260 + $0x5b8] sm:$0xff]
        %v1076 = vld [vmem:[%s260 + $0x5c0] sm:$0xff]
        %v1077 = vld [vmem:[%s260 + $0x5c8] sm:$0xff]
        %v1078 = vld [vmem:[%s260 + $0x5d0] sm:$0xff]
        %v1079 = vld [vmem:[%s260 + $0x5d8] sm:$0xff]
        %v1080 = vld [vmem:[%s260 + $0x5e0] sm:$0xff]
        %v1081 = vld [vmem:[%s260 + $0x5e8] sm:$0xff]
        %v1082 = vld [vmem:[%s260 + $0x5f0] sm:$0xff]
        %v1083 = vld [vmem:[%s260 + $0x5f8] sm:$0xff]
        %v1084 = vld [vmem:[%s260 + $0x600] sm:$0xff]
        %v1085 = vld [vmem:[%s260 + $0x608] sm:$0xff]
        %v1086 = vld [vmem:[%s260 + $0x610] sm:$0xff]
        %v1087 = vld [vmem:[%s260 + $0x618] sm:$0xff]
        %v1088 = vld [vmem:[%s260 + $0x620] sm:$0xff]
        %v1089 = vld [vmem:[%s260 + $0x628] sm:$0xff]
        %v1090 = vld [vmem:[%s260 + $0x630] sm:$0xff]
        %v1091 = vld [vmem:[%s260 + $0x638] sm:$0xff]
        %v1092 = vld [vmem:[%s260 + $0x640] sm:$0xff]
        %v1093 = vld [vmem:[%s260 + $0x648] sm:$0xff]
        %v1094 = vld [vmem:[%s260 + $0x650] sm:$0xff]
        %v1095 = vld [vmem:[%s260 + $0x658] sm:$0xff]
        %v1096 = vld [vmem:[%s260 + $0x660] sm:$0xff]
        %v1097 = vld [vmem:[%s260 + $0x668] sm:$0xff]
        %v1098 = vld [vmem:[%s260 + $0x670] sm:$0xff]
        %v1099 = vld [vmem:[%s260 + $0x678] sm:$0xff]
        %v1100 = vld [vmem:[%s260 + $0x680] sm:$0xff]
        %v1101 = vld [vmem:[%s260 + $0x688] sm:$0xff]
        %v1102 = vld [vmem:[%s260 + $0x690] sm:$0xff]
        %v1103 = vld [vmem:[%s260 + $0x698] sm:$0xff]
        %v1104 = vld [vmem:[%s260 + $0x6a0] sm:$0xff]
        %v1105 = vld [vmem:[%s260 + $0x6a8] sm:$0xff]
        %v1106 = vld [vmem:[%s260 + $0x6b0] sm:$0xff]
        %v1107 = vld [vmem:[%s260 + $0x6b8] sm:$0xff]
        %v1108 = vld [vmem:[%s260 + $0x6c0] sm:$0xff]
        %v1109 = vld [vmem:[%s260 + $0x6c8] sm:$0xff]
        %v1110 = vld [vmem:[%s260 + $0x6d0] sm:$0xff]
        %v1111 = vld [vmem:[%s260 + $0x6d8] sm:$0xff]
        %v1112 = vld [vmem:[%s260 + $0x6e0] sm:$0xff]
        %v1113 = vld [vmem:[%s260 + $0x6e8] sm:$0xff]
        %v1114 = vld [vmem:[%s260 + $0x6f0] sm:$0xff]
        %v1115 = vld [vmem:[%s260 + $0x6f8] sm:$0xff]
        %v1116 = vld [vmem:[%s260 + $0x700] sm:$0xff]
        %v1117 = vld [vmem:[%s260 + $0x708] sm:$0xff]
        %v1118 = vld [vmem:[%s260 + $0x710] sm:$0xff]
        %v1119 = vld [vmem:[%s260 + $0x718] sm:$0xff]
        %v1120 = vld [vmem:[%s260 + $0x720] sm:$0xff]
        %v1121 = vld [vmem:[%s260 + $0x728] sm:$0xff]
        %v1122 = vld [vmem:[%s260 + $0x730] sm:$0xff]
        %v1123 = vld [vmem:[%s260 + $0x738] sm:$0xff]
        %v1124 = vld [vmem:[%s260 + $0x740] sm:$0xff]
        %v1125 = vld [vmem:[%s260 + $0x748] sm:$0xff]
        %v1126 = vld [vmem:[%s260 + $0x750] sm:$0xff]
        %v1127 = vld [vmem:[%s260 + $0x758] sm:$0xff]
        %v1128 = vld [vmem:[%s260 + $0x760] sm:$0xff]
        %v1129 = vld [vmem:[%s260 + $0x768] sm:$0xff]
        %v1130 = vld [vmem:[%s260 + $0x770] sm:$0xff]
        %v1131 = vld [vmem:[%s260 + $0x778] sm:$0xff]
        %v1132 = vld [vmem:[%s260 + $0x780] sm:$0xff]
        %v1133 = vld [vmem:[%s260 + $0x788] sm:$0xff]
        %v1134 = vld [vmem:[%s260 + $0x790] sm:$0xff]
        %v1135 = vld [vmem:[%s260 + $0x798] sm:$0xff]
        %v1136 = vld [vmem:[%s260 + $0x7a0] sm:$0xff]
        %v1137 = vld [vmem:[%s260 + $0x7a8] sm:$0xff]
        %v1138 = vld [vmem:[%s260 + $0x7b0] sm:$0xff]
        %v1139 = vld [vmem:[%s260 + $0x7b8] sm:$0xff]
        %v1140 = vld [vmem:[%s260 + $0x7c0] sm:$0xff]
        %v1141 = vld [vmem:[%s260 + $0x7c8] sm:$0xff]
        %v1142 = vld [vmem:[%s260 + $0x7d0] sm:$0xff]
        %v1143 = vld [vmem:[%s260 + $0x7d8] sm:$0xff]
        %v1144 = vld [vmem:[%s260 + $0x7e0] sm:$0xff]
        %v1145 = vld [vmem:[%s260 + $0x7e8] sm:$0xff]
        %v1146 = vld [vmem:[%s260 + $0x7f0] sm:$0xff]
        %v1147 = vld [vmem:[%s260 + $0x7f8] sm:$0xff]
        %v1148 = vld [vmem:[%s260 + $0x800] sm:$0xff]
        %v1149 = vld [vmem:[%s260 + $0x808] sm:$0xff]
        %v1150 = vld [vmem:[%s260 + $0x810] sm:$0xff]
        %v1151 = vld [vmem:[%s260 + $0x818] sm:$0xff]
        %v1152 = vld [vmem:[%s260 + $0x820] sm:$0xff]
        %v1153 = vld [vmem:[%s260 + $0x828] sm:$0xff]
        %v1154 = vld [vmem:[%s260 + $0x830] sm:$0xff]
        %v1155 = vld [vmem:[%s260 + $0x838] sm:$0xff]
        %v1156 = vld [vmem:[%s260 + $0x840] sm:$0xff]
        %v1157 = vld [vmem:[%s260 + $0x848] sm:$0xff]
        %v1158 = vld [vmem:[%s260 + $0x850] sm:$0xff]
        %v1159 = vld [vmem:[%s260 + $0x858] sm:$0xff]
        %v1160 = vld [vmem:[%s260 + $0x860] sm:$0xff]
        %v1161 = vld [vmem:[%s260 + $0x868] sm:$0xff]
        %v1162 = vld [vmem:[%s260 + $0x870] sm:$0xff]
        %v1163 = vld [vmem:[%s260 + $0x878] sm:$0xff]
        %v1164 = vld [vmem:[%s260 + $0x880] sm:$0xff]
        %v1165 = vld [vmem:[%s260 + $0x888] sm:$0xff]
        %v1166 = vld [vmem:[%s260 + $0x890] sm:$0xff]
        %v1167 = vld [vmem:[%s260 + $0x898] sm:$0xff]
        %v1168 = vld [vmem:[%s260 + $0x8a0] sm:$0xff]
        %v1169 = vld [vmem:[%s260 + $0x8a8] sm:$0xff]
        %v1170 = vld [vmem:[%s260 + $0x8b0] sm:$0xff]
        %v1171 = vld [vmem:[%s260 + $0x8b8] sm:$0xff]
        %v1172 = vld [vmem:[%s260 + $0x8c0] sm:$0xff]
        %v1173 = vld [vmem:[%s260 + $0x8c8] sm:$0xff]
        %v1174 = vld [vmem:[%s260 + $0x8d0] sm:$0xff]
        %v1175 = vld [vmem:[%s260 + $0x8d8] sm:$0xff]
        %v1176 = vld [vmem:[%s260 + $0x8e0] sm:$0xff]
        %v1177 = vld [vmem:[%s260 + $0x8e8] sm:$0xff]
        %v1178 = vld [vmem:[%s260 + $0x8f0] sm:$0xff]
        %v1179 = vld [vmem:[%s260 + $0x8f8] sm:$0xff]
        %v1180 = vpack.c.bf16 %v898, %v892
        %v1181 = vpack.c.bf16 %v899, %v893
        %v1182 = vpack.c.bf16 %v900, %v894
        %v1183 = vpack.c.bf16 %v901, %v895
        %v1184 = vpack.c.bf16 %v902, %v896
        %v1185 = vpack.c.bf16 %v903, %v897
        %v1186 = vpack.c.bf16 %v910, %v904
        %v1187 = vpack.c.bf16 %v911, %v905
        %v1188 = vpack.c.bf16 %v912, %v906
        %v1189 = vpack.c.bf16 %v913, %v907
        %v1190 = vpack.c.bf16 %v914, %v908
        %v1191 = vpack.c.bf16 %v915, %v909
        %v1192 = vpack.c.bf16 %v922, %v916
        %v1193 = vpack.c.bf16 %v923, %v917
        %v1194 = vpack.c.bf16 %v924, %v918
        %v1195 = vpack.c.bf16 %v925, %v919
        %v1196 = vpack.c.bf16 %v926, %v920
        %v1197 = vpack.c.bf16 %v927, %v921
        %v1198 = vpack.c.bf16 %v934, %v928
        %v1199 = vpack.c.bf16 %v935, %v929
        %v1200 = vpack.c.bf16 %v936, %v930
        %v1201 = vpack.c.bf16 %v937, %v931
        %v1202 = vpack.c.bf16 %v938, %v932
        %v1203 = vpack.c.bf16 %v939, %v933
        %v1204 = vpack.c.bf16 %v946, %v940
        %v1205 = vpack.c.bf16 %v947, %v941
        %v1206 = vpack.c.bf16 %v948, %v942
        %v1207 = vpack.c.bf16 %v949, %v943
        %v1208 = vpack.c.bf16 %v950, %v944
        %v1209 = vpack.c.bf16 %v951, %v945
        %v1210 = vpack.c.bf16 %v958, %v952
        %v1211 = vpack.c.bf16 %v959, %v953
        %v1212 = vpack.c.bf16 %v960, %v954
        %v1213 = vpack.c.bf16 %v961, %v955
        %v1214 = vpack.c.bf16 %v962, %v956
        %v1215 = vpack.c.bf16 %v963, %v957
        %v1216 = vpack.c.bf16 %v970, %v964
        %v1217 = vpack.c.bf16 %v971, %v965
        %v1218 = vpack.c.bf16 %v972, %v966
        %v1219 = vpack.c.bf16 %v973, %v967
        %v1220 = vpack.c.bf16 %v974, %v968
        %v1221 = vpack.c.bf16 %v975, %v969
        %v1222 = vpack.c.bf16 %v982, %v976
        %v1223 = vpack.c.bf16 %v983, %v977
        %v1224 = vpack.c.bf16 %v984, %v978
        %v1225 = vpack.c.bf16 %v985, %v979
        %v1226 = vpack.c.bf16 %v986, %v980
        %v1227 = vpack.c.bf16 %v987, %v981
        %v1228 = vpack.c.bf16 %v994, %v988
        %v1229 = vpack.c.bf16 %v995, %v989
        %v1230 = vpack.c.bf16 %v996, %v990
        %v1231 = vpack.c.bf16 %v997, %v991
        %v1232 = vpack.c.bf16 %v998, %v992
        %v1233 = vpack.c.bf16 %v999, %v993
        %v1234 = vpack.c.bf16 %v1006, %v1000
        %v1235 = vpack.c.bf16 %v1007, %v1001
        %v1236 = vpack.c.bf16 %v1008, %v1002
        %v1237 = vpack.c.bf16 %v1009, %v1003
        %v1238 = vpack.c.bf16 %v1010, %v1004
        %v1239 = vpack.c.bf16 %v1011, %v1005
        %v1240 = vpack.c.bf16 %v1018, %v1012
        %v1241 = vpack.c.bf16 %v1019, %v1013
        %v1242 = vpack.c.bf16 %v1020, %v1014
        %v1243 = vpack.c.bf16 %v1021, %v1015
        %v1244 = vpack.c.bf16 %v1022, %v1016
        %v1245 = vpack.c.bf16 %v1023, %v1017
        %v1246 = vpack.c.bf16 %v1030, %v1024
        %v1247 = vpack.c.bf16 %v1031, %v1025
        %v1248 = vpack.c.bf16 %v1032, %v1026
        %v1249 = vpack.c.bf16 %v1033, %v1027
        %v1250 = vpack.c.bf16 %v1034, %v1028
        %v1251 = vpack.c.bf16 %v1035, %v1029
        %v1252 = vpack.c.bf16 %v1042, %v1036
        %v1253 = vpack.c.bf16 %v1043, %v1037
        %v1254 = vpack.c.bf16 %v1044, %v1038
        %v1255 = vpack.c.bf16 %v1045, %v1039
        %v1256 = vpack.c.bf16 %v1046, %v1040
        %v1257 = vpack.c.bf16 %v1047, %v1041
        %v1258 = vpack.c.bf16 %v1054, %v1048
        %v1259 = vpack.c.bf16 %v1055, %v1049
        %v1260 = vpack.c.bf16 %v1056, %v1050
        %v1261 = vpack.c.bf16 %v1057, %v1051
        %v1262 = vpack.c.bf16 %v1058, %v1052
        %v1263 = vpack.c.bf16 %v1059, %v1053
        %v1264 = vpack.c.bf16 %v1066, %v1060
        %v1265 = vpack.c.bf16 %v1067, %v1061
        %v1266 = vpack.c.bf16 %v1068, %v1062
        %v1267 = vpack.c.bf16 %v1069, %v1063
        %v1268 = vpack.c.bf16 %v1070, %v1064
        %v1269 = vpack.c.bf16 %v1071, %v1065
        %v1270 = vpack.c.bf16 %v1078, %v1072
        %v1271 = vpack.c.bf16 %v1079, %v1073
        %v1272 = vpack.c.bf16 %v1080, %v1074
        %v1273 = vpack.c.bf16 %v1081, %v1075
        %v1274 = vpack.c.bf16 %v1082, %v1076
        %v1275 = vpack.c.bf16 %v1083, %v1077
        %v1276 = vpack.c.bf16 %v1090, %v1084
        %v1277 = vpack.c.bf16 %v1091, %v1085
        %v1278 = vpack.c.bf16 %v1092, %v1086
        %v1279 = vpack.c.bf16 %v1093, %v1087
        %v1280 = vpack.c.bf16 %v1094, %v1088
        %v1281 = vpack.c.bf16 %v1095, %v1089
        %v1282 = vpack.c.bf16 %v1102, %v1096
        %v1283 = vpack.c.bf16 %v1103, %v1097
        %v1284 = vpack.c.bf16 %v1104, %v1098
        %v1285 = vpack.c.bf16 %v1105, %v1099
        %v1286 = vpack.c.bf16 %v1106, %v1100
        %v1287 = vpack.c.bf16 %v1107, %v1101
        %v1288 = vpack.c.bf16 %v1114, %v1108
        %v1289 = vpack.c.bf16 %v1115, %v1109
        %v1290 = vpack.c.bf16 %v1116, %v1110
        %v1291 = vpack.c.bf16 %v1117, %v1111
        %v1292 = vpack.c.bf16 %v1118, %v1112
        %v1293 = vpack.c.bf16 %v1119, %v1113
        %v1294 = vpack.c.bf16 %v1126, %v1120
        %v1295 = vpack.c.bf16 %v1127, %v1121
        %v1296 = vpack.c.bf16 %v1128, %v1122
        %v1297 = vpack.c.bf16 %v1129, %v1123
        %v1298 = vpack.c.bf16 %v1130, %v1124
        %v1299 = vpack.c.bf16 %v1131, %v1125
        %v1300 = vpack.c.bf16 %v1138, %v1132
        %v1301 = vpack.c.bf16 %v1139, %v1133
        %v1302 = vpack.c.bf16 %v1140, %v1134
        %v1303 = vpack.c.bf16 %v1141, %v1135
        %v1304 = vpack.c.bf16 %v1142, %v1136
        %v1305 = vpack.c.bf16 %v1143, %v1137
        %v1306 = vpack.c.bf16 %v1150, %v1144
        %v1307 = vpack.c.bf16 %v1151, %v1145
        %v1308 = vpack.c.bf16 %v1152, %v1146
        %v1309 = vpack.c.bf16 %v1153, %v1147
        %v1310 = vpack.c.bf16 %v1154, %v1148
        %v1311 = vpack.c.bf16 %v1155, %v1149
        %v1312 = vpack.c.bf16 %v1162, %v1156
        %v1313 = vpack.c.bf16 %v1163, %v1157
        %v1314 = vpack.c.bf16 %v1164, %v1158
        %v1315 = vpack.c.bf16 %v1165, %v1159
        %v1316 = vpack.c.bf16 %v1166, %v1160
        %v1317 = vpack.c.bf16 %v1167, %v1161
        %v1318 = vpack.c.bf16 %v1174, %v1168
        %v1319 = vpack.c.bf16 %v1175, %v1169
        %v1320 = vpack.c.bf16 %v1176, %v1170
        %v1321 = vpack.c.bf16 %v1177, %v1171
        %v1322 = vpack.c.bf16 %v1178, %v1172
        %v1323 = vpack.c.bf16 %v1179, %v1173
        %v1324 = vld [vmem:[%s269] sm:$0xff]
        %v1325 = vld [vmem:[%s269 + $0x8] sm:$0xff]
        %v1326 = vld [vmem:[%s269 + $0x10] sm:$0xff]
        %v1327 = vld [vmem:[%s269 + $0x18] sm:$0xff]
        %v1328 = vld [vmem:[%s269 + $0x20] sm:$0xff]
        %v1329 = vld [vmem:[%s269 + $0x28] sm:$0xff]
        %v1330 = vld [vmem:[%s269 + $0x30] sm:$0xff]
        %v1331 = vld [vmem:[%s269 + $0x38] sm:$0xff]
        %v1332 = vld [vmem:[%s269 + $0x40] sm:$0xff]
        %v1333 = vld [vmem:[%s269 + $0x48] sm:$0xff]
        %v1334 = vld [vmem:[%s269 + $0x50] sm:$0xff]
        %v1335 = vld [vmem:[%s269 + $0x58] sm:$0xff]
        %v1336 = vld [vmem:[%s269 + $0x60] sm:$0xff]
        %v1337 = vld [vmem:[%s269 + $0x68] sm:$0xff]
        %v1338 = vld [vmem:[%s269 + $0x70] sm:$0xff]
        %v1339 = vld [vmem:[%s269 + $0x78] sm:$0xff]
        %v1340 = vld [vmem:[%s269 + $0x80] sm:$0xff]
        %v1341 = vld [vmem:[%s269 + $0x88] sm:$0xff]
        %v1342 = vld [vmem:[%s269 + $0x90] sm:$0xff]
        %v1343 = vld [vmem:[%s269 + $0x98] sm:$0xff]
        %v1344 = vld [vmem:[%s269 + $0xa0] sm:$0xff]
        %v1345 = vld [vmem:[%s269 + $0xa8] sm:$0xff]
        %v1346 = vld [vmem:[%s269 + $0xb0] sm:$0xff]
        %v1347 = vld [vmem:[%s269 + $0xb8] sm:$0xff]
        %v1348 = vld [vmem:[%s269 + $0xc0] sm:$0xff]
        %v1349 = vld [vmem:[%s269 + $0xc8] sm:$0xff]
        %v1350 = vld [vmem:[%s269 + $0xd0] sm:$0xff]
        %v1351 = vld [vmem:[%s269 + $0xd8] sm:$0xff]
        %v1352 = vld [vmem:[%s269 + $0xe0] sm:$0xff]
        %v1353 = vld [vmem:[%s269 + $0xe8] sm:$0xff]
        %v1354 = vld [vmem:[%s269 + $0xf0] sm:$0xff]
        %v1355 = vld [vmem:[%s269 + $0xf8] sm:$0xff]
        %v1356 = vld [vmem:[%s269 + $0x100] sm:$0xff]
        %v1357 = vld [vmem:[%s269 + $0x108] sm:$0xff]
        %v1358 = vld [vmem:[%s269 + $0x110] sm:$0xff]
        %v1359 = vld [vmem:[%s269 + $0x118] sm:$0xff]
        %v1360 = vld [vmem:[%s269 + $0x120] sm:$0xff]
        %v1361 = vld [vmem:[%s269 + $0x128] sm:$0xff]
        %v1362 = vld [vmem:[%s269 + $0x130] sm:$0xff]
        %v1363 = vld [vmem:[%s269 + $0x138] sm:$0xff]
        %v1364 = vld [vmem:[%s269 + $0x140] sm:$0xff]
        %v1365 = vld [vmem:[%s269 + $0x148] sm:$0xff]
        %v1366 = vld [vmem:[%s269 + $0x150] sm:$0xff]
        %v1367 = vld [vmem:[%s269 + $0x158] sm:$0xff]
        %v1368 = vld [vmem:[%s269 + $0x160] sm:$0xff]
        %v1369 = vld [vmem:[%s269 + $0x168] sm:$0xff]
        %v1370 = vld [vmem:[%s269 + $0x170] sm:$0xff]
        %v1371 = vld [vmem:[%s269 + $0x178] sm:$0xff]
        %v1372 = vld [vmem:[%s269 + $0x180] sm:$0xff]
        %v1373 = vld [vmem:[%s269 + $0x188] sm:$0xff]
        %v1374 = vld [vmem:[%s269 + $0x190] sm:$0xff]
        %v1375 = vld [vmem:[%s269 + $0x198] sm:$0xff]
        %v1376 = vld [vmem:[%s269 + $0x1a0] sm:$0xff]
        %v1377 = vld [vmem:[%s269 + $0x1a8] sm:$0xff]
        %v1378 = vld [vmem:[%s269 + $0x1b0] sm:$0xff]
        %v1379 = vld [vmem:[%s269 + $0x1b8] sm:$0xff]
        %v1380 = vld [vmem:[%s269 + $0x1c0] sm:$0xff]
        %v1381 = vld [vmem:[%s269 + $0x1c8] sm:$0xff]
        %v1382 = vld [vmem:[%s269 + $0x1d0] sm:$0xff]
        %v1383 = vld [vmem:[%s269 + $0x1d8] sm:$0xff]
        %v1384 = vld [vmem:[%s269 + $0x1e0] sm:$0xff]
        %v1385 = vld [vmem:[%s269 + $0x1e8] sm:$0xff]
        %v1386 = vld [vmem:[%s269 + $0x1f0] sm:$0xff]
        %v1387 = vld [vmem:[%s269 + $0x1f8] sm:$0xff]
        %v1388 = vld [vmem:[%s269 + $0x200] sm:$0xff]
        %v1389 = vld [vmem:[%s269 + $0x208] sm:$0xff]
        %v1390 = vld [vmem:[%s269 + $0x210] sm:$0xff]
        %v1391 = vld [vmem:[%s269 + $0x218] sm:$0xff]
        %v1392 = vld [vmem:[%s269 + $0x220] sm:$0xff]
        %v1393 = vld [vmem:[%s269 + $0x228] sm:$0xff]
        %v1394 = vld [vmem:[%s269 + $0x230] sm:$0xff]
        %v1395 = vld [vmem:[%s269 + $0x238] sm:$0xff]
        %v1396 = vld [vmem:[%s269 + $0x240] sm:$0xff]
        %v1397 = vld [vmem:[%s269 + $0x248] sm:$0xff]
        %v1398 = vld [vmem:[%s269 + $0x250] sm:$0xff]
        %v1399 = vld [vmem:[%s269 + $0x258] sm:$0xff]
        %v1400 = vld [vmem:[%s269 + $0x260] sm:$0xff]
        %v1401 = vld [vmem:[%s269 + $0x268] sm:$0xff]
        %v1402 = vld [vmem:[%s269 + $0x270] sm:$0xff]
        %v1403 = vld [vmem:[%s269 + $0x278] sm:$0xff]
        %v1404 = vld [vmem:[%s269 + $0x280] sm:$0xff]
        %v1405 = vld [vmem:[%s269 + $0x288] sm:$0xff]
        %v1406 = vld [vmem:[%s269 + $0x290] sm:$0xff]
        %v1407 = vld [vmem:[%s269 + $0x298] sm:$0xff]
        %v1408 = vld [vmem:[%s269 + $0x2a0] sm:$0xff]
        %v1409 = vld [vmem:[%s269 + $0x2a8] sm:$0xff]
        %v1410 = vld [vmem:[%s269 + $0x2b0] sm:$0xff]
        %v1411 = vld [vmem:[%s269 + $0x2b8] sm:$0xff]
        %v1412 = vld [vmem:[%s269 + $0x2c0] sm:$0xff]
        %v1413 = vld [vmem:[%s269 + $0x2c8] sm:$0xff]
        %v1414 = vld [vmem:[%s269 + $0x2d0] sm:$0xff]
        %v1415 = vld [vmem:[%s269 + $0x2d8] sm:$0xff]
        %v1416 = vld [vmem:[%s269 + $0x2e0] sm:$0xff]
        %v1417 = vld [vmem:[%s269 + $0x2e8] sm:$0xff]
        %v1418 = vld [vmem:[%s269 + $0x2f0] sm:$0xff]
        %v1419 = vld [vmem:[%s269 + $0x2f8] sm:$0xff]
        %v1420 = vld [vmem:[%s269 + $0x300] sm:$0xff]
        %v1421 = vld [vmem:[%s269 + $0x308] sm:$0xff]
        %v1422 = vld [vmem:[%s269 + $0x310] sm:$0xff]
        %v1423 = vld [vmem:[%s269 + $0x318] sm:$0xff]
        %v1424 = vld [vmem:[%s269 + $0x320] sm:$0xff]
        %v1425 = vld [vmem:[%s269 + $0x328] sm:$0xff]
        %v1426 = vld [vmem:[%s269 + $0x330] sm:$0xff]
        %v1427 = vld [vmem:[%s269 + $0x338] sm:$0xff]
        %v1428 = vld [vmem:[%s269 + $0x340] sm:$0xff]
        %v1429 = vld [vmem:[%s269 + $0x348] sm:$0xff]
        %v1430 = vld [vmem:[%s269 + $0x350] sm:$0xff]
        %v1431 = vld [vmem:[%s269 + $0x358] sm:$0xff]
        %v1432 = vld [vmem:[%s269 + $0x360] sm:$0xff]
        %v1433 = vld [vmem:[%s269 + $0x368] sm:$0xff]
        %v1434 = vld [vmem:[%s269 + $0x370] sm:$0xff]
        %v1435 = vld [vmem:[%s269 + $0x378] sm:$0xff]
        %v1436 = vld [vmem:[%s269 + $0x380] sm:$0xff]
        %v1437 = vld [vmem:[%s269 + $0x388] sm:$0xff]
        %v1438 = vld [vmem:[%s269 + $0x390] sm:$0xff]
        %v1439 = vld [vmem:[%s269 + $0x398] sm:$0xff]
        %v1440 = vld [vmem:[%s269 + $0x3a0] sm:$0xff]
        %v1441 = vld [vmem:[%s269 + $0x3a8] sm:$0xff]
        %v1442 = vld [vmem:[%s269 + $0x3b0] sm:$0xff]
        %v1443 = vld [vmem:[%s269 + $0x3b8] sm:$0xff]
        %v1444 = vld [vmem:[%s269 + $0x3c0] sm:$0xff]
        %v1445 = vld [vmem:[%s269 + $0x3c8] sm:$0xff]
        %v1446 = vld [vmem:[%s269 + $0x3d0] sm:$0xff]
        %v1447 = vld [vmem:[%s269 + $0x3d8] sm:$0xff]
        %v1448 = vld [vmem:[%s269 + $0x3e0] sm:$0xff]
        %v1449 = vld [vmem:[%s269 + $0x3e8] sm:$0xff]
        %v1450 = vld [vmem:[%s269 + $0x3f0] sm:$0xff]
        %v1451 = vld [vmem:[%s269 + $0x3f8] sm:$0xff]
        %v1452 = vld [vmem:[%s269 + $0x400] sm:$0xff]
        %v1453 = vld [vmem:[%s269 + $0x408] sm:$0xff]
        %v1454 = vld [vmem:[%s269 + $0x410] sm:$0xff]
        %v1455 = vld [vmem:[%s269 + $0x418] sm:$0xff]
        %v1456 = vld [vmem:[%s269 + $0x420] sm:$0xff]
        %v1457 = vld [vmem:[%s269 + $0x428] sm:$0xff]
        %v1458 = vld [vmem:[%s269 + $0x430] sm:$0xff]
        %v1459 = vld [vmem:[%s269 + $0x438] sm:$0xff]
        %v1460 = vld [vmem:[%s269 + $0x440] sm:$0xff]
        %v1461 = vld [vmem:[%s269 + $0x448] sm:$0xff]
        %v1462 = vld [vmem:[%s269 + $0x450] sm:$0xff]
        %v1463 = vld [vmem:[%s269 + $0x458] sm:$0xff]
        %v1464 = vld [vmem:[%s269 + $0x460] sm:$0xff]
        %v1465 = vld [vmem:[%s269 + $0x468] sm:$0xff]
        %v1466 = vld [vmem:[%s269 + $0x470] sm:$0xff]
        %v1467 = vld [vmem:[%s269 + $0x478] sm:$0xff]
        %v1468 = vld [vmem:[%s269 + $0x480] sm:$0xff]
        %v1469 = vld [vmem:[%s269 + $0x488] sm:$0xff]
        %v1470 = vld [vmem:[%s269 + $0x490] sm:$0xff]
        %v1471 = vld [vmem:[%s269 + $0x498] sm:$0xff]
        %v1472 = vld [vmem:[%s269 + $0x4a0] sm:$0xff]
        %v1473 = vld [vmem:[%s269 + $0x4a8] sm:$0xff]
        %v1474 = vld [vmem:[%s269 + $0x4b0] sm:$0xff]
        %v1475 = vld [vmem:[%s269 + $0x4b8] sm:$0xff]
        %v1476 = vld [vmem:[%s269 + $0x4c0] sm:$0xff]
        %v1477 = vld [vmem:[%s269 + $0x4c8] sm:$0xff]
        %v1478 = vld [vmem:[%s269 + $0x4d0] sm:$0xff]
        %v1479 = vld [vmem:[%s269 + $0x4d8] sm:$0xff]
        %v1480 = vld [vmem:[%s269 + $0x4e0] sm:$0xff]
        %v1481 = vld [vmem:[%s269 + $0x4e8] sm:$0xff]
        %v1482 = vld [vmem:[%s269 + $0x4f0] sm:$0xff]
        %v1483 = vld [vmem:[%s269 + $0x4f8] sm:$0xff]
        %v1484 = vld [vmem:[%s269 + $0x500] sm:$0xff]
        %v1485 = vld [vmem:[%s269 + $0x508] sm:$0xff]
        %v1486 = vld [vmem:[%s269 + $0x510] sm:$0xff]
        %v1487 = vld [vmem:[%s269 + $0x518] sm:$0xff]
        %v1488 = vld [vmem:[%s269 + $0x520] sm:$0xff]
        %v1489 = vld [vmem:[%s269 + $0x528] sm:$0xff]
        %v1490 = vld [vmem:[%s269 + $0x530] sm:$0xff]
        %v1491 = vld [vmem:[%s269 + $0x538] sm:$0xff]
        %v1492 = vld [vmem:[%s269 + $0x540] sm:$0xff]
        %v1493 = vld [vmem:[%s269 + $0x548] sm:$0xff]
        %v1494 = vld [vmem:[%s269 + $0x550] sm:$0xff]
        %v1495 = vld [vmem:[%s269 + $0x558] sm:$0xff]
        %v1496 = vld [vmem:[%s269 + $0x560] sm:$0xff]
        %v1497 = vld [vmem:[%s269 + $0x568] sm:$0xff]
        %v1498 = vld [vmem:[%s269 + $0x570] sm:$0xff]
        %v1499 = vld [vmem:[%s269 + $0x578] sm:$0xff]
        %v1500 = vld [vmem:[%s269 + $0x580] sm:$0xff]
        %v1501 = vld [vmem:[%s269 + $0x588] sm:$0xff]
        %v1502 = vld [vmem:[%s269 + $0x590] sm:$0xff]
        %v1503 = vld [vmem:[%s269 + $0x598] sm:$0xff]
        %v1504 = vld [vmem:[%s269 + $0x5a0] sm:$0xff]
        %v1505 = vld [vmem:[%s269 + $0x5a8] sm:$0xff]
        %v1506 = vld [vmem:[%s269 + $0x5b0] sm:$0xff]
        %v1507 = vld [vmem:[%s269 + $0x5b8] sm:$0xff]
        %v1508 = vld [vmem:[%s269 + $0x5c0] sm:$0xff]
        %v1509 = vld [vmem:[%s269 + $0x5c8] sm:$0xff]
        %v1510 = vld [vmem:[%s269 + $0x5d0] sm:$0xff]
        %v1511 = vld [vmem:[%s269 + $0x5d8] sm:$0xff]
        %v1512 = vld [vmem:[%s269 + $0x5e0] sm:$0xff]
        %v1513 = vld [vmem:[%s269 + $0x5e8] sm:$0xff]
        %v1514 = vld [vmem:[%s269 + $0x5f0] sm:$0xff]
        %v1515 = vld [vmem:[%s269 + $0x5f8] sm:$0xff]
        %v1516 = vld [vmem:[%s269 + $0x600] sm:$0xff]
        %v1517 = vld [vmem:[%s269 + $0x608] sm:$0xff]
        %v1518 = vld [vmem:[%s269 + $0x610] sm:$0xff]
        %v1519 = vld [vmem:[%s269 + $0x618] sm:$0xff]
        %v1520 = vld [vmem:[%s269 + $0x620] sm:$0xff]
        %v1521 = vld [vmem:[%s269 + $0x628] sm:$0xff]
        %v1522 = vld [vmem:[%s269 + $0x630] sm:$0xff]
        %v1523 = vld [vmem:[%s269 + $0x638] sm:$0xff]
        %v1524 = vld [vmem:[%s269 + $0x640] sm:$0xff]
        %v1525 = vld [vmem:[%s269 + $0x648] sm:$0xff]
        %v1526 = vld [vmem:[%s269 + $0x650] sm:$0xff]
        %v1527 = vld [vmem:[%s269 + $0x658] sm:$0xff]
        %v1528 = vld [vmem:[%s269 + $0x660] sm:$0xff]
        %v1529 = vld [vmem:[%s269 + $0x668] sm:$0xff]
        %v1530 = vld [vmem:[%s269 + $0x670] sm:$0xff]
        %v1531 = vld [vmem:[%s269 + $0x678] sm:$0xff]
        %v1532 = vld [vmem:[%s269 + $0x680] sm:$0xff]
        %v1533 = vld [vmem:[%s269 + $0x688] sm:$0xff]
        %v1534 = vld [vmem:[%s269 + $0x690] sm:$0xff]
        %v1535 = vld [vmem:[%s269 + $0x698] sm:$0xff]
        %v1536 = vld [vmem:[%s269 + $0x6a0] sm:$0xff]
        %v1537 = vld [vmem:[%s269 + $0x6a8] sm:$0xff]
        %v1538 = vld [vmem:[%s269 + $0x6b0] sm:$0xff]
        %v1539 = vld [vmem:[%s269 + $0x6b8] sm:$0xff]
        %v1540 = vld [vmem:[%s269 + $0x6c0] sm:$0xff]
        %v1541 = vld [vmem:[%s269 + $0x6c8] sm:$0xff]
        %v1542 = vld [vmem:[%s269 + $0x6d0] sm:$0xff]
        %v1543 = vld [vmem:[%s269 + $0x6d8] sm:$0xff]
        %v1544 = vld [vmem:[%s269 + $0x6e0] sm:$0xff]
        %v1545 = vld [vmem:[%s269 + $0x6e8] sm:$0xff]
        %v1546 = vld [vmem:[%s269 + $0x6f0] sm:$0xff]
        %v1547 = vld [vmem:[%s269 + $0x6f8] sm:$0xff]
        %v1548 = vld [vmem:[%s269 + $0x700] sm:$0xff]
        %v1549 = vld [vmem:[%s269 + $0x708] sm:$0xff]
        %v1550 = vld [vmem:[%s269 + $0x710] sm:$0xff]
        %v1551 = vld [vmem:[%s269 + $0x718] sm:$0xff]
        %v1552 = vld [vmem:[%s269 + $0x720] sm:$0xff]
        %v1553 = vld [vmem:[%s269 + $0x728] sm:$0xff]
        %v1554 = vld [vmem:[%s269 + $0x730] sm:$0xff]
        %v1555 = vld [vmem:[%s269 + $0x738] sm:$0xff]
        %v1556 = vld [vmem:[%s269 + $0x740] sm:$0xff]
        %v1557 = vld [vmem:[%s269 + $0x748] sm:$0xff]
        %v1558 = vld [vmem:[%s269 + $0x750] sm:$0xff]
        %v1559 = vld [vmem:[%s269 + $0x758] sm:$0xff]
        %v1560 = vld [vmem:[%s269 + $0x760] sm:$0xff]
        %v1561 = vld [vmem:[%s269 + $0x768] sm:$0xff]
        %v1562 = vld [vmem:[%s269 + $0x770] sm:$0xff]
        %v1563 = vld [vmem:[%s269 + $0x778] sm:$0xff]
        %v1564 = vld [vmem:[%s269 + $0x780] sm:$0xff]
        %v1565 = vld [vmem:[%s269 + $0x788] sm:$0xff]
        %v1566 = vld [vmem:[%s269 + $0x790] sm:$0xff]
        %v1567 = vld [vmem:[%s269 + $0x798] sm:$0xff]
        %v1568 = vld [vmem:[%s269 + $0x7a0] sm:$0xff]
        %v1569 = vld [vmem:[%s269 + $0x7a8] sm:$0xff]
        %v1570 = vld [vmem:[%s269 + $0x7b0] sm:$0xff]
        %v1571 = vld [vmem:[%s269 + $0x7b8] sm:$0xff]
        %v1572 = vld [vmem:[%s269 + $0x7c0] sm:$0xff]
        %v1573 = vld [vmem:[%s269 + $0x7c8] sm:$0xff]
        %v1574 = vld [vmem:[%s269 + $0x7d0] sm:$0xff]
        %v1575 = vld [vmem:[%s269 + $0x7d8] sm:$0xff]
        %v1576 = vld [vmem:[%s269 + $0x7e0] sm:$0xff]
        %v1577 = vld [vmem:[%s269 + $0x7e8] sm:$0xff]
        %v1578 = vld [vmem:[%s269 + $0x7f0] sm:$0xff]
        %v1579 = vld [vmem:[%s269 + $0x7f8] sm:$0xff]
        %v1580 = vld [vmem:[%s269 + $0x800] sm:$0xff]
        %v1581 = vld [vmem:[%s269 + $0x808] sm:$0xff]
        %v1582 = vld [vmem:[%s269 + $0x810] sm:$0xff]
        %v1583 = vld [vmem:[%s269 + $0x818] sm:$0xff]
        %v1584 = vld [vmem:[%s269 + $0x820] sm:$0xff]
        %v1585 = vld [vmem:[%s269 + $0x828] sm:$0xff]
        %v1586 = vld [vmem:[%s269 + $0x830] sm:$0xff]
        %v1587 = vld [vmem:[%s269 + $0x838] sm:$0xff]
        %v1588 = vld [vmem:[%s269 + $0x840] sm:$0xff]
        %v1589 = vld [vmem:[%s269 + $0x848] sm:$0xff]
        %v1590 = vld [vmem:[%s269 + $0x850] sm:$0xff]
        %v1591 = vld [vmem:[%s269 + $0x858] sm:$0xff]
        %v1592 = vld [vmem:[%s269 + $0x860] sm:$0xff]
        %v1593 = vld [vmem:[%s269 + $0x868] sm:$0xff]
        %v1594 = vld [vmem:[%s269 + $0x870] sm:$0xff]
        %v1595 = vld [vmem:[%s269 + $0x878] sm:$0xff]
        %v1596 = vld [vmem:[%s269 + $0x880] sm:$0xff]
        %v1597 = vld [vmem:[%s269 + $0x888] sm:$0xff]
        %v1598 = vld [vmem:[%s269 + $0x890] sm:$0xff]
        %v1599 = vld [vmem:[%s269 + $0x898] sm:$0xff]
        %v1600 = vld [vmem:[%s269 + $0x8a0] sm:$0xff]
        %v1601 = vld [vmem:[%s269 + $0x8a8] sm:$0xff]
        %v1602 = vld [vmem:[%s269 + $0x8b0] sm:$0xff]
        %v1603 = vld [vmem:[%s269 + $0x8b8] sm:$0xff]
        %v1604 = vld [vmem:[%s269 + $0x8c0] sm:$0xff]
        %v1605 = vld [vmem:[%s269 + $0x8c8] sm:$0xff]
        %v1606 = vld [vmem:[%s269 + $0x8d0] sm:$0xff]
        %v1607 = vld [vmem:[%s269 + $0x8d8] sm:$0xff]
        %v1608 = vld [vmem:[%s269 + $0x8e0] sm:$0xff]
        %v1609 = vld [vmem:[%s269 + $0x8e8] sm:$0xff]
        %v1610 = vld [vmem:[%s269 + $0x8f0] sm:$0xff]
        %v1611 = vld [vmem:[%s269 + $0x8f8] sm:$0xff]
        %v1900 = vunpack.c.l.b16 %v1324
        %v1901 = vunpack.c.h.b16 %v1324
        %v1902 = vunpack.c.l.b16 %v1325
        %v1903 = vunpack.c.h.b16 %v1325
        %v1904 = vunpack.c.l.b16 %v1326
        %v1905 = vunpack.c.h.b16 %v1326
        %v1906 = vunpack.c.l.b16 %v1327
        %v1907 = vunpack.c.h.b16 %v1327
        %v1908 = vunpack.c.l.b16 %v1328
        %v1909 = vunpack.c.h.b16 %v1328
        %v1910 = vunpack.c.l.b16 %v1329
        %v1911 = vunpack.c.h.b16 %v1329
        %v1912 = vunpack.c.l.b16 %v1330
        %v1913 = vunpack.c.h.b16 %v1330
        %v1914 = vunpack.c.l.b16 %v1331
        %v1915 = vunpack.c.h.b16 %v1331
        %v1916 = vunpack.c.l.b16 %v1332
        %v1917 = vunpack.c.h.b16 %v1332
        %v1918 = vunpack.c.l.b16 %v1333
        %v1919 = vunpack.c.h.b16 %v1333
        %v1920 = vunpack.c.l.b16 %v1334
        %v1921 = vunpack.c.h.b16 %v1334
        %v1922 = vunpack.c.l.b16 %v1335
        %v1923 = vunpack.c.h.b16 %v1335
        %v1924 = vunpack.c.l.b16 %v1336
        %v1925 = vunpack.c.h.b16 %v1336
        %v1926 = vunpack.c.l.b16 %v1337
        %v1927 = vunpack.c.h.b16 %v1337
        %v1928 = vunpack.c.l.b16 %v1338
        %v1929 = vunpack.c.h.b16 %v1338
        %v1930 = vunpack.c.l.b16 %v1339
        %v1931 = vunpack.c.h.b16 %v1339
        %v1932 = vunpack.c.l.b16 %v1340
        %v1933 = vunpack.c.h.b16 %v1340
        %v1934 = vunpack.c.l.b16 %v1341
        %v1935 = vunpack.c.h.b16 %v1341
        %v1936 = vunpack.c.l.b16 %v1342
        %v1937 = vunpack.c.h.b16 %v1342
        %v1938 = vunpack.c.l.b16 %v1343
        %v1939 = vunpack.c.h.b16 %v1343
        %v1940 = vunpack.c.l.b16 %v1344
        %v1941 = vunpack.c.h.b16 %v1344
        %v1942 = vunpack.c.l.b16 %v1345
        %v1943 = vunpack.c.h.b16 %v1345
        %v1944 = vunpack.c.l.b16 %v1346
        %v1945 = vunpack.c.h.b16 %v1346
        %v1946 = vunpack.c.l.b16 %v1347
        %v1947 = vunpack.c.h.b16 %v1347
        %v1948 = vunpack.c.l.b16 %v1348
        %v1949 = vunpack.c.h.b16 %v1348
        %v1950 = vunpack.c.l.b16 %v1349
        %v1951 = vunpack.c.h.b16 %v1349
        %v1952 = vunpack.c.l.b16 %v1350
        %v1953 = vunpack.c.h.b16 %v1350
        %v1954 = vunpack.c.l.b16 %v1351
        %v1955 = vunpack.c.h.b16 %v1351
        %v1956 = vunpack.c.l.b16 %v1352
        %v1957 = vunpack.c.h.b16 %v1352
        %v1958 = vunpack.c.l.b16 %v1353
        %v1959 = vunpack.c.h.b16 %v1353
        %v1960 = vunpack.c.l.b16 %v1354
        %v1961 = vunpack.c.h.b16 %v1354
        %v1962 = vunpack.c.l.b16 %v1355
        %v1963 = vunpack.c.h.b16 %v1355
        %v1964 = vunpack.c.l.b16 %v1356
        %v1965 = vunpack.c.h.b16 %v1356
        %v1966 = vunpack.c.l.b16 %v1357
        %v1967 = vunpack.c.h.b16 %v1357
        %v1968 = vunpack.c.l.b16 %v1358
        %v1969 = vunpack.c.h.b16 %v1358
        %v1970 = vunpack.c.l.b16 %v1359
        %v1971 = vunpack.c.h.b16 %v1359
        %v1972 = vunpack.c.l.b16 %v1360
        %v1973 = vunpack.c.h.b16 %v1360
        %v1974 = vunpack.c.l.b16 %v1361
        %v1975 = vunpack.c.h.b16 %v1361
        %v1976 = vunpack.c.l.b16 %v1362
        %v1977 = vunpack.c.h.b16 %v1362
        %v1978 = vunpack.c.l.b16 %v1363
        %v1979 = vunpack.c.h.b16 %v1363
        %v1980 = vunpack.c.l.b16 %v1364
        %v1981 = vunpack.c.h.b16 %v1364
        %v1982 = vunpack.c.l.b16 %v1365
        %v1983 = vunpack.c.h.b16 %v1365
        %v1984 = vunpack.c.l.b16 %v1366
        %v1985 = vunpack.c.h.b16 %v1366
        %v1986 = vunpack.c.l.b16 %v1367
        %v1987 = vunpack.c.h.b16 %v1367
        %v1988 = vunpack.c.l.b16 %v1368
        %v1989 = vunpack.c.h.b16 %v1368
        %v1990 = vunpack.c.l.b16 %v1369
        %v1991 = vunpack.c.h.b16 %v1369
        %v1992 = vunpack.c.l.b16 %v1370
        %v1993 = vunpack.c.h.b16 %v1370
        %v1994 = vunpack.c.l.b16 %v1371
        %v1995 = vunpack.c.h.b16 %v1371
        %v1996 = vunpack.c.l.b16 %v1372
        %v1997 = vunpack.c.h.b16 %v1372
        %v1998 = vunpack.c.l.b16 %v1373
        %v1999 = vunpack.c.h.b16 %v1373
        %v2000 = vunpack.c.l.b16 %v1374
        %v2001 = vunpack.c.h.b16 %v1374
        %v2002 = vunpack.c.l.b16 %v1375
        %v2003 = vunpack.c.h.b16 %v1375
        %v2004 = vunpack.c.l.b16 %v1376
        %v2005 = vunpack.c.h.b16 %v1376
        %v2006 = vunpack.c.l.b16 %v1377
        %v2007 = vunpack.c.h.b16 %v1377
        %v2008 = vunpack.c.l.b16 %v1378
        %v2009 = vunpack.c.h.b16 %v1378
        %v2010 = vunpack.c.l.b16 %v1379
        %v2011 = vunpack.c.h.b16 %v1379
        %v2012 = vunpack.c.l.b16 %v1380
        %v2013 = vunpack.c.h.b16 %v1380
        %v2014 = vunpack.c.l.b16 %v1381
        %v2015 = vunpack.c.h.b16 %v1381
        %v2016 = vunpack.c.l.b16 %v1382
        %v2017 = vunpack.c.h.b16 %v1382
        %v2018 = vunpack.c.l.b16 %v1383
        %v2019 = vunpack.c.h.b16 %v1383
        %v2020 = vunpack.c.l.b16 %v1384
        %v2021 = vunpack.c.h.b16 %v1384
        %v2022 = vunpack.c.l.b16 %v1385
        %v2023 = vunpack.c.h.b16 %v1385
        %v2024 = vunpack.c.l.b16 %v1386
        %v2025 = vunpack.c.h.b16 %v1386
        %v2026 = vunpack.c.l.b16 %v1387
        %v2027 = vunpack.c.h.b16 %v1387
        %v2028 = vunpack.c.l.b16 %v1388
        %v2029 = vunpack.c.h.b16 %v1388
        %v2030 = vunpack.c.l.b16 %v1389
        %v2031 = vunpack.c.h.b16 %v1389
        %v2032 = vunpack.c.l.b16 %v1390
        %v2033 = vunpack.c.h.b16 %v1390
        %v2034 = vunpack.c.l.b16 %v1391
        %v2035 = vunpack.c.h.b16 %v1391
        %v2036 = vunpack.c.l.b16 %v1392
        %v2037 = vunpack.c.h.b16 %v1392
        %v2038 = vunpack.c.l.b16 %v1393
        %v2039 = vunpack.c.h.b16 %v1393
        %v2040 = vunpack.c.l.b16 %v1394
        %v2041 = vunpack.c.h.b16 %v1394
        %v2042 = vunpack.c.l.b16 %v1395
        %v2043 = vunpack.c.h.b16 %v1395
        %v2044 = vunpack.c.l.b16 %v1396
        %v2045 = vunpack.c.h.b16 %v1396
        %v2046 = vunpack.c.l.b16 %v1397
        %v2047 = vunpack.c.h.b16 %v1397
        %v2048 = vunpack.c.l.b16 %v1398
        %v2049 = vunpack.c.h.b16 %v1398
        %v2050 = vunpack.c.l.b16 %v1399
        %v2051 = vunpack.c.h.b16 %v1399
        %v2052 = vunpack.c.l.b16 %v1400
        %v2053 = vunpack.c.h.b16 %v1400
        %v2054 = vunpack.c.l.b16 %v1401
        %v2055 = vunpack.c.h.b16 %v1401
        %v2056 = vunpack.c.l.b16 %v1402
        %v2057 = vunpack.c.h.b16 %v1402
        %v2058 = vunpack.c.l.b16 %v1403
        %v2059 = vunpack.c.h.b16 %v1403
        %v2060 = vunpack.c.l.b16 %v1404
        %v2061 = vunpack.c.h.b16 %v1404
        %v2062 = vunpack.c.l.b16 %v1405
        %v2063 = vunpack.c.h.b16 %v1405
        %v2064 = vunpack.c.l.b16 %v1406
        %v2065 = vunpack.c.h.b16 %v1406
        %v2066 = vunpack.c.l.b16 %v1407
        %v2067 = vunpack.c.h.b16 %v1407
        %v2068 = vunpack.c.l.b16 %v1408
        %v2069 = vunpack.c.h.b16 %v1408
        %v2070 = vunpack.c.l.b16 %v1409
        %v2071 = vunpack.c.h.b16 %v1409
        %v2072 = vunpack.c.l.b16 %v1410
        %v2073 = vunpack.c.h.b16 %v1410
        %v2074 = vunpack.c.l.b16 %v1411
        %v2075 = vunpack.c.h.b16 %v1411
        %v2076 = vunpack.c.l.b16 %v1412
        %v2077 = vunpack.c.h.b16 %v1412
        %v2078 = vunpack.c.l.b16 %v1413
        %v2079 = vunpack.c.h.b16 %v1413
        %v2080 = vunpack.c.l.b16 %v1414
        %v2081 = vunpack.c.h.b16 %v1414
        %v2082 = vunpack.c.l.b16 %v1415
        %v2083 = vunpack.c.h.b16 %v1415
        %v2084 = vunpack.c.l.b16 %v1416
        %v2085 = vunpack.c.h.b16 %v1416
        %v2086 = vunpack.c.l.b16 %v1417
        %v2087 = vunpack.c.h.b16 %v1417
        %v2088 = vunpack.c.l.b16 %v1418
        %v2089 = vunpack.c.h.b16 %v1418
        %v2090 = vunpack.c.l.b16 %v1419
        %v2091 = vunpack.c.h.b16 %v1419
        %v2092 = vunpack.c.l.b16 %v1420
        %v2093 = vunpack.c.h.b16 %v1420
        %v2094 = vunpack.c.l.b16 %v1421
        %v2095 = vunpack.c.h.b16 %v1421
        %v2096 = vunpack.c.l.b16 %v1422
        %v2097 = vunpack.c.h.b16 %v1422
        %v2098 = vunpack.c.l.b16 %v1423
        %v2099 = vunpack.c.h.b16 %v1423
        %v2100 = vunpack.c.l.b16 %v1424
        %v2101 = vunpack.c.h.b16 %v1424
        %v2102 = vunpack.c.l.b16 %v1425
        %v2103 = vunpack.c.h.b16 %v1425
        %v2104 = vunpack.c.l.b16 %v1426
        %v2105 = vunpack.c.h.b16 %v1426
        %v2106 = vunpack.c.l.b16 %v1427
        %v2107 = vunpack.c.h.b16 %v1427
        %v2108 = vunpack.c.l.b16 %v1428
        %v2109 = vunpack.c.h.b16 %v1428
        %v2110 = vunpack.c.l.b16 %v1429
        %v2111 = vunpack.c.h.b16 %v1429
        %v2112 = vunpack.c.l.b16 %v1430
        %v2113 = vunpack.c.h.b16 %v1430
        %v2114 = vunpack.c.l.b16 %v1431
        %v2115 = vunpack.c.h.b16 %v1431
        %v2116 = vunpack.c.l.b16 %v1432
        %v2117 = vunpack.c.h.b16 %v1432
        %v2118 = vunpack.c.l.b16 %v1433
        %v2119 = vunpack.c.h.b16 %v1433
        %v2120 = vunpack.c.l.b16 %v1434
        %v2121 = vunpack.c.h.b16 %v1434
        %v2122 = vunpack.c.l.b16 %v1435
        %v2123 = vunpack.c.h.b16 %v1435
        %v2124 = vunpack.c.l.b16 %v1436
        %v2125 = vunpack.c.h.b16 %v1436
        %v2126 = vunpack.c.l.b16 %v1437
        %v2127 = vunpack.c.h.b16 %v1437
        %v2128 = vunpack.c.l.b16 %v1438
        %v2129 = vunpack.c.h.b16 %v1438
        %v2130 = vunpack.c.l.b16 %v1439
        %v2131 = vunpack.c.h.b16 %v1439
        %v2132 = vunpack.c.l.b16 %v1440
        %v2133 = vunpack.c.h.b16 %v1440
        %v2134 = vunpack.c.l.b16 %v1441
        %v2135 = vunpack.c.h.b16 %v1441
        %v2136 = vunpack.c.l.b16 %v1442
        %v2137 = vunpack.c.h.b16 %v1442
        %v2138 = vunpack.c.l.b16 %v1443
        %v2139 = vunpack.c.h.b16 %v1443
        %v2140 = vunpack.c.l.b16 %v1444
        %v2141 = vunpack.c.h.b16 %v1444
        %v2142 = vunpack.c.l.b16 %v1445
        %v2143 = vunpack.c.h.b16 %v1445
        %v2144 = vunpack.c.l.b16 %v1446
        %v2145 = vunpack.c.h.b16 %v1446
        %v2146 = vunpack.c.l.b16 %v1447
        %v2147 = vunpack.c.h.b16 %v1447
        %v2148 = vunpack.c.l.b16 %v1448
        %v2149 = vunpack.c.h.b16 %v1448
        %v2150 = vunpack.c.l.b16 %v1449
        %v2151 = vunpack.c.h.b16 %v1449
        %v2152 = vunpack.c.l.b16 %v1450
        %v2153 = vunpack.c.h.b16 %v1450
        %v2154 = vunpack.c.l.b16 %v1451
        %v2155 = vunpack.c.h.b16 %v1451
        %v2156 = vunpack.c.l.b16 %v1452
        %v2157 = vunpack.c.h.b16 %v1452
        %v2158 = vunpack.c.l.b16 %v1453
        %v2159 = vunpack.c.h.b16 %v1453
        %v2160 = vunpack.c.l.b16 %v1454
        %v2161 = vunpack.c.h.b16 %v1454
        %v2162 = vunpack.c.l.b16 %v1455
        %v2163 = vunpack.c.h.b16 %v1455
        %v2164 = vunpack.c.l.b16 %v1456
        %v2165 = vunpack.c.h.b16 %v1456
        %v2166 = vunpack.c.l.b16 %v1457
        %v2167 = vunpack.c.h.b16 %v1457
        %v2168 = vunpack.c.l.b16 %v1458
        %v2169 = vunpack.c.h.b16 %v1458
        %v2170 = vunpack.c.l.b16 %v1459
        %v2171 = vunpack.c.h.b16 %v1459
        %v2172 = vunpack.c.l.b16 %v1460
        %v2173 = vunpack.c.h.b16 %v1460
        %v2174 = vunpack.c.l.b16 %v1461
        %v2175 = vunpack.c.h.b16 %v1461
        %v2176 = vunpack.c.l.b16 %v1462
        %v2177 = vunpack.c.h.b16 %v1462
        %v2178 = vunpack.c.l.b16 %v1463
        %v2179 = vunpack.c.h.b16 %v1463
        %v2180 = vunpack.c.l.b16 %v1464
        %v2181 = vunpack.c.h.b16 %v1464
        %v2182 = vunpack.c.l.b16 %v1465
        %v2183 = vunpack.c.h.b16 %v1465
        %v2184 = vunpack.c.l.b16 %v1466
        %v2185 = vunpack.c.h.b16 %v1466
        %v2186 = vunpack.c.l.b16 %v1467
        %v2187 = vunpack.c.h.b16 %v1467
        %v2188 = vunpack.c.l.b16 %v1468
        %v2189 = vunpack.c.h.b16 %v1468
        %v2190 = vunpack.c.l.b16 %v1469
        %v2191 = vunpack.c.h.b16 %v1469
        %v2192 = vunpack.c.l.b16 %v1470
        %v2193 = vunpack.c.h.b16 %v1470
        %v2194 = vunpack.c.l.b16 %v1471
        %v2195 = vunpack.c.h.b16 %v1471
        %v2196 = vunpack.c.l.b16 %v1472
        %v2197 = vunpack.c.h.b16 %v1472
        %v2198 = vunpack.c.l.b16 %v1473
        %v2199 = vunpack.c.h.b16 %v1473
        %v2200 = vunpack.c.l.b16 %v1474
        %v2201 = vunpack.c.h.b16 %v1474
        %v2202 = vunpack.c.l.b16 %v1475
        %v2203 = vunpack.c.h.b16 %v1475
        %v2204 = vunpack.c.l.b16 %v1476
        %v2205 = vunpack.c.h.b16 %v1476
        %v2206 = vunpack.c.l.b16 %v1477
        %v2207 = vunpack.c.h.b16 %v1477
        %v2208 = vunpack.c.l.b16 %v1478
        %v2209 = vunpack.c.h.b16 %v1478
        %v2210 = vunpack.c.l.b16 %v1479
        %v2211 = vunpack.c.h.b16 %v1479
        %v2212 = vunpack.c.l.b16 %v1480
        %v2213 = vunpack.c.h.b16 %v1480
        %v2214 = vunpack.c.l.b16 %v1481
        %v2215 = vunpack.c.h.b16 %v1481
        %v2216 = vunpack.c.l.b16 %v1482
        %v2217 = vunpack.c.h.b16 %v1482
        %v2218 = vunpack.c.l.b16 %v1483
        %v2219 = vunpack.c.h.b16 %v1483
        %v2220 = vunpack.c.l.b16 %v1484
        %v2221 = vunpack.c.h.b16 %v1484
        %v2222 = vunpack.c.l.b16 %v1485
        %v2223 = vunpack.c.h.b16 %v1485
        %v2224 = vunpack.c.l.b16 %v1486
        %v2225 = vunpack.c.h.b16 %v1486
        %v2226 = vunpack.c.l.b16 %v1487
        %v2227 = vunpack.c.h.b16 %v1487
        %v2228 = vunpack.c.l.b16 %v1488
        %v2229 = vunpack.c.h.b16 %v1488
        %v2230 = vunpack.c.l.b16 %v1489
        %v2231 = vunpack.c.h.b16 %v1489
        %v2232 = vunpack.c.l.b16 %v1490
        %v2233 = vunpack.c.h.b16 %v1490
        %v2234 = vunpack.c.l.b16 %v1491
        %v2235 = vunpack.c.h.b16 %v1491
        %v2236 = vunpack.c.l.b16 %v1492
        %v2237 = vunpack.c.h.b16 %v1492
        %v2238 = vunpack.c.l.b16 %v1493
        %v2239 = vunpack.c.h.b16 %v1493
        %v2240 = vunpack.c.l.b16 %v1494
        %v2241 = vunpack.c.h.b16 %v1494
        %v2242 = vunpack.c.l.b16 %v1495
        %v2243 = vunpack.c.h.b16 %v1495
        %v2244 = vunpack.c.l.b16 %v1496
        %v2245 = vunpack.c.h.b16 %v1496
        %v2246 = vunpack.c.l.b16 %v1497
        %v2247 = vunpack.c.h.b16 %v1497
        %v2248 = vunpack.c.l.b16 %v1498
        %v2249 = vunpack.c.h.b16 %v1498
        %v2250 = vunpack.c.l.b16 %v1499
        %v2251 = vunpack.c.h.b16 %v1499
        %v2252 = vunpack.c.l.b16 %v1500
        %v2253 = vunpack.c.h.b16 %v1500
        %v2254 = vunpack.c.l.b16 %v1501
        %v2255 = vunpack.c.h.b16 %v1501
        %v2256 = vunpack.c.l.b16 %v1502
        %v2257 = vunpack.c.h.b16 %v1502
        %v2258 = vunpack.c.l.b16 %v1503
        %v2259 = vunpack.c.h.b16 %v1503
        %v2260 = vunpack.c.l.b16 %v1504
        %v2261 = vunpack.c.h.b16 %v1504
        %v2262 = vunpack.c.l.b16 %v1505
        %v2263 = vunpack.c.h.b16 %v1505
        %v2264 = vunpack.c.l.b16 %v1506
        %v2265 = vunpack.c.h.b16 %v1506
        %v2266 = vunpack.c.l.b16 %v1507
        %v2267 = vunpack.c.h.b16 %v1507
        %v2268 = vunpack.c.l.b16 %v1508
        %v2269 = vunpack.c.h.b16 %v1508
        %v2270 = vunpack.c.l.b16 %v1509
        %v2271 = vunpack.c.h.b16 %v1509
        %v2272 = vunpack.c.l.b16 %v1510
        %v2273 = vunpack.c.h.b16 %v1510
        %v2274 = vunpack.c.l.b16 %v1511
        %v2275 = vunpack.c.h.b16 %v1511
        %v2276 = vunpack.c.l.b16 %v1512
        %v2277 = vunpack.c.h.b16 %v1512
        %v2278 = vunpack.c.l.b16 %v1513
        %v2279 = vunpack.c.h.b16 %v1513
        %v2280 = vunpack.c.l.b16 %v1514
        %v2281 = vunpack.c.h.b16 %v1514
        %v2282 = vunpack.c.l.b16 %v1515
        %v2283 = vunpack.c.h.b16 %v1515
        %v2284 = vunpack.c.l.b16 %v1516
        %v2285 = vunpack.c.h.b16 %v1516
        %v2286 = vunpack.c.l.b16 %v1517
        %v2287 = vunpack.c.h.b16 %v1517
        %v2288 = vunpack.c.l.b16 %v1518
        %v2289 = vunpack.c.h.b16 %v1518
        %v2290 = vunpack.c.l.b16 %v1519
        %v2291 = vunpack.c.h.b16 %v1519
        %v2292 = vunpack.c.l.b16 %v1520
        %v2293 = vunpack.c.h.b16 %v1520
        %v2294 = vunpack.c.l.b16 %v1521
        %v2295 = vunpack.c.h.b16 %v1521
        %v2296 = vunpack.c.l.b16 %v1522
        %v2297 = vunpack.c.h.b16 %v1522
        %v2298 = vunpack.c.l.b16 %v1523
        %v2299 = vunpack.c.h.b16 %v1523
        %v2300 = vunpack.c.l.b16 %v1524
        %v2301 = vunpack.c.h.b16 %v1524
        %v2302 = vunpack.c.l.b16 %v1525
        %v2303 = vunpack.c.h.b16 %v1525
        %v2304 = vunpack.c.l.b16 %v1526
        %v2305 = vunpack.c.h.b16 %v1526
        %v2306 = vunpack.c.l.b16 %v1527
        %v2307 = vunpack.c.h.b16 %v1527
        %v2308 = vunpack.c.l.b16 %v1528
        %v2309 = vunpack.c.h.b16 %v1528
        %v2310 = vunpack.c.l.b16 %v1529
        %v2311 = vunpack.c.h.b16 %v1529
        %v2312 = vunpack.c.l.b16 %v1530
        %v2313 = vunpack.c.h.b16 %v1530
        %v2314 = vunpack.c.l.b16 %v1531
        %v2315 = vunpack.c.h.b16 %v1531
        %v2316 = vunpack.c.l.b16 %v1532
        %v2317 = vunpack.c.h.b16 %v1532
        %v2318 = vunpack.c.l.b16 %v1533
        %v2319 = vunpack.c.h.b16 %v1533
        %v2320 = vunpack.c.l.b16 %v1534
        %v2321 = vunpack.c.h.b16 %v1534
        %v2322 = vunpack.c.l.b16 %v1535
        %v2323 = vunpack.c.h.b16 %v1535
        %v2324 = vunpack.c.l.b16 %v1536
        %v2325 = vunpack.c.h.b16 %v1536
        %v2326 = vunpack.c.l.b16 %v1537
        %v2327 = vunpack.c.h.b16 %v1537
        %v2328 = vunpack.c.l.b16 %v1538
        %v2329 = vunpack.c.h.b16 %v1538
        %v2330 = vunpack.c.l.b16 %v1539
        %v2331 = vunpack.c.h.b16 %v1539
        %v2332 = vunpack.c.l.b16 %v1540
        %v2333 = vunpack.c.h.b16 %v1540
        %v2334 = vunpack.c.l.b16 %v1541
        %v2335 = vunpack.c.h.b16 %v1541
        %v2336 = vunpack.c.l.b16 %v1542
        %v2337 = vunpack.c.h.b16 %v1542
        %v2338 = vunpack.c.l.b16 %v1543
        %v2339 = vunpack.c.h.b16 %v1543
        %v2340 = vunpack.c.l.b16 %v1544
        %v2341 = vunpack.c.h.b16 %v1544
        %v2342 = vunpack.c.l.b16 %v1545
        %v2343 = vunpack.c.h.b16 %v1545
        %v2344 = vunpack.c.l.b16 %v1546
        %v2345 = vunpack.c.h.b16 %v1546
        %v2346 = vunpack.c.l.b16 %v1547
        %v2347 = vunpack.c.h.b16 %v1547
        %v2348 = vunpack.c.l.b16 %v1548
        %v2349 = vunpack.c.h.b16 %v1548
        %v2350 = vunpack.c.l.b16 %v1549
        %v2351 = vunpack.c.h.b16 %v1549
        %v2352 = vunpack.c.l.b16 %v1550
        %v2353 = vunpack.c.h.b16 %v1550
        %v2354 = vunpack.c.l.b16 %v1551
        %v2355 = vunpack.c.h.b16 %v1551
        %v2356 = vunpack.c.l.b16 %v1552
        %v2357 = vunpack.c.h.b16 %v1552
        %v2358 = vunpack.c.l.b16 %v1553
        %v2359 = vunpack.c.h.b16 %v1553
        %v2360 = vunpack.c.l.b16 %v1554
        %v2361 = vunpack.c.h.b16 %v1554
        %v2362 = vunpack.c.l.b16 %v1555
        %v2363 = vunpack.c.h.b16 %v1555
        %v2364 = vunpack.c.l.b16 %v1556
        %v2365 = vunpack.c.h.b16 %v1556
        %v2366 = vunpack.c.l.b16 %v1557
        %v2367 = vunpack.c.h.b16 %v1557
        %v2368 = vunpack.c.l.b16 %v1558
        %v2369 = vunpack.c.h.b16 %v1558
        %v2370 = vunpack.c.l.b16 %v1559
        %v2371 = vunpack.c.h.b16 %v1559
        %v2372 = vunpack.c.l.b16 %v1560
        %v2373 = vunpack.c.h.b16 %v1560
        %v2374 = vunpack.c.l.b16 %v1561
        %v2375 = vunpack.c.h.b16 %v1561
        %v2376 = vunpack.c.l.b16 %v1562
        %v2377 = vunpack.c.h.b16 %v1562
        %v2378 = vunpack.c.l.b16 %v1563
        %v2379 = vunpack.c.h.b16 %v1563
        %v2380 = vunpack.c.l.b16 %v1564
        %v2381 = vunpack.c.h.b16 %v1564
        %v2382 = vunpack.c.l.b16 %v1565
        %v2383 = vunpack.c.h.b16 %v1565
        %v2384 = vunpack.c.l.b16 %v1566
        %v2385 = vunpack.c.h.b16 %v1566
        %v2386 = vunpack.c.l.b16 %v1567
        %v2387 = vunpack.c.h.b16 %v1567
        %v2388 = vunpack.c.l.b16 %v1568
        %v2389 = vunpack.c.h.b16 %v1568
        %v2390 = vunpack.c.l.b16 %v1569
        %v2391 = vunpack.c.h.b16 %v1569
        %v2392 = vunpack.c.l.b16 %v1570
        %v2393 = vunpack.c.h.b16 %v1570
        %v2394 = vunpack.c.l.b16 %v1571
        %v2395 = vunpack.c.h.b16 %v1571
        %v2396 = vunpack.c.l.b16 %v1572
        %v2397 = vunpack.c.h.b16 %v1572
        %v2398 = vunpack.c.l.b16 %v1573
        %v2399 = vunpack.c.h.b16 %v1573
        %v2400 = vunpack.c.l.b16 %v1574
        %v2401 = vunpack.c.h.b16 %v1574
        %v2402 = vunpack.c.l.b16 %v1575
        %v2403 = vunpack.c.h.b16 %v1575
        %v2404 = vunpack.c.l.b16 %v1576
        %v2405 = vunpack.c.h.b16 %v1576
        %v2406 = vunpack.c.l.b16 %v1577
        %v2407 = vunpack.c.h.b16 %v1577
        %v2408 = vunpack.c.l.b16 %v1578
        %v2409 = vunpack.c.h.b16 %v1578
        %v2410 = vunpack.c.l.b16 %v1579
        %v2411 = vunpack.c.h.b16 %v1579
        %v2412 = vunpack.c.l.b16 %v1580
        %v2413 = vunpack.c.h.b16 %v1580
        %v2414 = vunpack.c.l.b16 %v1581
        %v2415 = vunpack.c.h.b16 %v1581
        %v2416 = vunpack.c.l.b16 %v1582
        %v2417 = vunpack.c.h.b16 %v1582
        %v2418 = vunpack.c.l.b16 %v1583
        %v2419 = vunpack.c.h.b16 %v1583
        %v2420 = vunpack.c.l.b16 %v1584
        %v2421 = vunpack.c.h.b16 %v1584
        %v2422 = vunpack.c.l.b16 %v1585
        %v2423 = vunpack.c.h.b16 %v1585
        %v2424 = vunpack.c.l.b16 %v1586
        %v2425 = vunpack.c.h.b16 %v1586
        %v2426 = vunpack.c.l.b16 %v1587
        %v2427 = vunpack.c.h.b16 %v1587
        %v2428 = vunpack.c.l.b16 %v1588
        %v2429 = vunpack.c.h.b16 %v1588
        %v2430 = vunpack.c.l.b16 %v1589
        %v2431 = vunpack.c.h.b16 %v1589
        %v2432 = vunpack.c.l.b16 %v1590
        %v2433 = vunpack.c.h.b16 %v1590
        %v2434 = vunpack.c.l.b16 %v1591
        %v2435 = vunpack.c.h.b16 %v1591
        %v2436 = vunpack.c.l.b16 %v1592
        %v2437 = vunpack.c.h.b16 %v1592
        %v2438 = vunpack.c.l.b16 %v1593
        %v2439 = vunpack.c.h.b16 %v1593
        %v2440 = vunpack.c.l.b16 %v1594
        %v2441 = vunpack.c.h.b16 %v1594
        %v2442 = vunpack.c.l.b16 %v1595
        %v2443 = vunpack.c.h.b16 %v1595
        %v2444 = vunpack.c.l.b16 %v1596
        %v2445 = vunpack.c.h.b16 %v1596
        %v2446 = vunpack.c.l.b16 %v1597
        %v2447 = vunpack.c.h.b16 %v1597
        %v2448 = vunpack.c.l.b16 %v1598
        %v2449 = vunpack.c.h.b16 %v1598
        %v2450 = vunpack.c.l.b16 %v1599
        %v2451 = vunpack.c.h.b16 %v1599
        %v2452 = vunpack.c.l.b16 %v1600
        %v2453 = vunpack.c.h.b16 %v1600
        %v2454 = vunpack.c.l.b16 %v1601
        %v2455 = vunpack.c.h.b16 %v1601
        %v2456 = vunpack.c.l.b16 %v1602
        %v2457 = vunpack.c.h.b16 %v1602
        %v2458 = vunpack.c.l.b16 %v1603
        %v2459 = vunpack.c.h.b16 %v1603
        %v2460 = vunpack.c.l.b16 %v1604
        %v2461 = vunpack.c.h.b16 %v1604
        %v2462 = vunpack.c.l.b16 %v1605
        %v2463 = vunpack.c.h.b16 %v1605
        %v2464 = vunpack.c.l.b16 %v1606
        %v2465 = vunpack.c.h.b16 %v1606
        %v2466 = vunpack.c.l.b16 %v1607
        %v2467 = vunpack.c.h.b16 %v1607
        %v2468 = vunpack.c.l.b16 %v1608
        %v2469 = vunpack.c.h.b16 %v1608
        %v2470 = vunpack.c.l.b16 %v1609
        %v2471 = vunpack.c.h.b16 %v1609
        %v2472 = vunpack.c.l.b16 %v1610
        %v2473 = vunpack.c.h.b16 %v1610
        %v2474 = vunpack.c.l.b16 %v1611
        %v2475 = vunpack.c.h.b16 %v1611
        %v2476 = vpack.c.b16 %v1906, %v1900
        %v2477 = vpack.c.b16 %v1907, %v1901
        %v2478 = vpack.c.b16 %v1908, %v1902
        %v2479 = vpack.c.b16 %v1909, %v1903
        %v2480 = vpack.c.b16 %v1910, %v1904
        %v2481 = vpack.c.b16 %v1911, %v1905
        %v2482 = vpack.c.b16 %v1918, %v1912
        %v2483 = vpack.c.b16 %v1919, %v1913
        %v2484 = vpack.c.b16 %v1920, %v1914
        %v2485 = vpack.c.b16 %v1921, %v1915
        %v2486 = vpack.c.b16 %v1922, %v1916
        %v2487 = vpack.c.b16 %v1923, %v1917
        %v2488 = vpack.c.b16 %v1930, %v1924
        %v2489 = vpack.c.b16 %v1931, %v1925
        %v2490 = vpack.c.b16 %v1932, %v1926
        %v2491 = vpack.c.b16 %v1933, %v1927
        %v2492 = vpack.c.b16 %v1934, %v1928
        %v2493 = vpack.c.b16 %v1935, %v1929
        %v2494 = vpack.c.b16 %v1942, %v1936
        %v2495 = vpack.c.b16 %v1943, %v1937
        %v2496 = vpack.c.b16 %v1944, %v1938
        %v2497 = vpack.c.b16 %v1945, %v1939
        %v2498 = vpack.c.b16 %v1946, %v1940
        %v2499 = vpack.c.b16 %v1947, %v1941
        %v2500 = vpack.c.b16 %v1954, %v1948
        %v2501 = vpack.c.b16 %v1955, %v1949
        %v2502 = vpack.c.b16 %v1956, %v1950
        %v2503 = vpack.c.b16 %v1957, %v1951
        %v2504 = vpack.c.b16 %v1958, %v1952
        %v2505 = vpack.c.b16 %v1959, %v1953
        %v2506 = vpack.c.b16 %v1966, %v1960
        %v2507 = vpack.c.b16 %v1967, %v1961
        %v2508 = vpack.c.b16 %v1968, %v1962
        %v2509 = vpack.c.b16 %v1969, %v1963
        %v2510 = vpack.c.b16 %v1970, %v1964
        %v2511 = vpack.c.b16 %v1971, %v1965
        %v2512 = vpack.c.b16 %v1978, %v1972
        %v2513 = vpack.c.b16 %v1979, %v1973
        %v2514 = vpack.c.b16 %v1980, %v1974
        %v2515 = vpack.c.b16 %v1981, %v1975
        %v2516 = vpack.c.b16 %v1982, %v1976
        %v2517 = vpack.c.b16 %v1983, %v1977
        %v2518 = vpack.c.b16 %v1990, %v1984
        %v2519 = vpack.c.b16 %v1991, %v1985
        %v2520 = vpack.c.b16 %v1992, %v1986
        %v2521 = vpack.c.b16 %v1993, %v1987
        %v2522 = vpack.c.b16 %v1994, %v1988
        %v2523 = vpack.c.b16 %v1995, %v1989
        %v2524 = vpack.c.b16 %v2002, %v1996
        %v2525 = vpack.c.b16 %v2003, %v1997
        %v2526 = vpack.c.b16 %v2004, %v1998
        %v2527 = vpack.c.b16 %v2005, %v1999
        %v2528 = vpack.c.b16 %v2006, %v2000
        %v2529 = vpack.c.b16 %v2007, %v2001
        %v2530 = vpack.c.b16 %v2014, %v2008
        %v2531 = vpack.c.b16 %v2015, %v2009
        %v2532 = vpack.c.b16 %v2016, %v2010
        %v2533 = vpack.c.b16 %v2017, %v2011
        %v2534 = vpack.c.b16 %v2018, %v2012
        %v2535 = vpack.c.b16 %v2019, %v2013
        %v2536 = vpack.c.b16 %v2026, %v2020
        %v2537 = vpack.c.b16 %v2027, %v2021
        %v2538 = vpack.c.b16 %v2028, %v2022
        %v2539 = vpack.c.b16 %v2029, %v2023
        %v2540 = vpack.c.b16 %v2030, %v2024
        %v2541 = vpack.c.b16 %v2031, %v2025
        %v2542 = vpack.c.b16 %v2038, %v2032
        %v2543 = vpack.c.b16 %v2039, %v2033
        %v2544 = vpack.c.b16 %v2040, %v2034
        %v2545 = vpack.c.b16 %v2041, %v2035
        %v2546 = vpack.c.b16 %v2042, %v2036
        %v2547 = vpack.c.b16 %v2043, %v2037
        %v2548 = vpack.c.b16 %v2050, %v2044
        %v2549 = vpack.c.b16 %v2051, %v2045
        %v2550 = vpack.c.b16 %v2052, %v2046
        %v2551 = vpack.c.b16 %v2053, %v2047
        %v2552 = vpack.c.b16 %v2054, %v2048
        %v2553 = vpack.c.b16 %v2055, %v2049
        %v2554 = vpack.c.b16 %v2062, %v2056
        %v2555 = vpack.c.b16 %v2063, %v2057
        %v2556 = vpack.c.b16 %v2064, %v2058
        %v2557 = vpack.c.b16 %v2065, %v2059
        %v2558 = vpack.c.b16 %v2066, %v2060
        %v2559 = vpack.c.b16 %v2067, %v2061
        %v2560 = vpack.c.b16 %v2074, %v2068
        %v2561 = vpack.c.b16 %v2075, %v2069
        %v2562 = vpack.c.b16 %v2076, %v2070
        %v2563 = vpack.c.b16 %v2077, %v2071
        %v2564 = vpack.c.b16 %v2078, %v2072
        %v2565 = vpack.c.b16 %v2079, %v2073
        %v2566 = vpack.c.b16 %v2086, %v2080
        %v2567 = vpack.c.b16 %v2087, %v2081
        %v2568 = vpack.c.b16 %v2088, %v2082
        %v2569 = vpack.c.b16 %v2089, %v2083
        %v2570 = vpack.c.b16 %v2090, %v2084
        %v2571 = vpack.c.b16 %v2091, %v2085
        %v2572 = vpack.c.b16 %v2098, %v2092
        %v2573 = vpack.c.b16 %v2099, %v2093
        %v2574 = vpack.c.b16 %v2100, %v2094
        %v2575 = vpack.c.b16 %v2101, %v2095
        %v2576 = vpack.c.b16 %v2102, %v2096
        %v2577 = vpack.c.b16 %v2103, %v2097
        %v2578 = vpack.c.b16 %v2110, %v2104
        %v2579 = vpack.c.b16 %v2111, %v2105
        %v2580 = vpack.c.b16 %v2112, %v2106
        %v2581 = vpack.c.b16 %v2113, %v2107
        %v2582 = vpack.c.b16 %v2114, %v2108
        %v2583 = vpack.c.b16 %v2115, %v2109
        %v2584 = vpack.c.b16 %v2122, %v2116
        %v2585 = vpack.c.b16 %v2123, %v2117
        %v2586 = vpack.c.b16 %v2124, %v2118
        %v2587 = vpack.c.b16 %v2125, %v2119
        %v2588 = vpack.c.b16 %v2126, %v2120
        %v2589 = vpack.c.b16 %v2127, %v2121
        %v2590 = vpack.c.b16 %v2134, %v2128
        %v2591 = vpack.c.b16 %v2135, %v2129
        %v2592 = vpack.c.b16 %v2136, %v2130
        %v2593 = vpack.c.b16 %v2137, %v2131
        %v2594 = vpack.c.b16 %v2138, %v2132
        %v2595 = vpack.c.b16 %v2139, %v2133
        %v2596 = vpack.c.b16 %v2146, %v2140
        %v2597 = vpack.c.b16 %v2147, %v2141
        %v2598 = vpack.c.b16 %v2148, %v2142
        %v2599 = vpack.c.b16 %v2149, %v2143
        %v2600 = vpack.c.b16 %v2150, %v2144
        %v2601 = vpack.c.b16 %v2151, %v2145
        %v2602 = vpack.c.b16 %v2158, %v2152
        %v2603 = vpack.c.b16 %v2159, %v2153
        %v2604 = vpack.c.b16 %v2160, %v2154
        %v2605 = vpack.c.b16 %v2161, %v2155
        %v2606 = vpack.c.b16 %v2162, %v2156
        %v2607 = vpack.c.b16 %v2163, %v2157
        %v2608 = vpack.c.b16 %v2170, %v2164
        %v2609 = vpack.c.b16 %v2171, %v2165
        %v2610 = vpack.c.b16 %v2172, %v2166
        %v2611 = vpack.c.b16 %v2173, %v2167
        %v2612 = vpack.c.b16 %v2174, %v2168
        %v2613 = vpack.c.b16 %v2175, %v2169
        %v2614 = vpack.c.b16 %v2182, %v2176
        %v2615 = vpack.c.b16 %v2183, %v2177
        %v2616 = vpack.c.b16 %v2184, %v2178
        %v2617 = vpack.c.b16 %v2185, %v2179
        %v2618 = vpack.c.b16 %v2186, %v2180
        %v2619 = vpack.c.b16 %v2187, %v2181
        %v2620 = vpack.c.b16 %v2194, %v2188
        %v2621 = vpack.c.b16 %v2195, %v2189
        %v2622 = vpack.c.b16 %v2196, %v2190
        %v2623 = vpack.c.b16 %v2197, %v2191
        %v2624 = vpack.c.b16 %v2198, %v2192
        %v2625 = vpack.c.b16 %v2199, %v2193
        %v2626 = vpack.c.b16 %v2206, %v2200
        %v2627 = vpack.c.b16 %v2207, %v2201
        %v2628 = vpack.c.b16 %v2208, %v2202
        %v2629 = vpack.c.b16 %v2209, %v2203
        %v2630 = vpack.c.b16 %v2210, %v2204
        %v2631 = vpack.c.b16 %v2211, %v2205
        %v2632 = vpack.c.b16 %v2218, %v2212
        %v2633 = vpack.c.b16 %v2219, %v2213
        %v2634 = vpack.c.b16 %v2220, %v2214
        %v2635 = vpack.c.b16 %v2221, %v2215
        %v2636 = vpack.c.b16 %v2222, %v2216
        %v2637 = vpack.c.b16 %v2223, %v2217
        %v2638 = vpack.c.b16 %v2230, %v2224
        %v2639 = vpack.c.b16 %v2231, %v2225
        %v2640 = vpack.c.b16 %v2232, %v2226
        %v2641 = vpack.c.b16 %v2233, %v2227
        %v2642 = vpack.c.b16 %v2234, %v2228
        %v2643 = vpack.c.b16 %v2235, %v2229
        %v2644 = vpack.c.b16 %v2242, %v2236
        %v2645 = vpack.c.b16 %v2243, %v2237
        %v2646 = vpack.c.b16 %v2244, %v2238
        %v2647 = vpack.c.b16 %v2245, %v2239
        %v2648 = vpack.c.b16 %v2246, %v2240
        %v2649 = vpack.c.b16 %v2247, %v2241
        %v2650 = vpack.c.b16 %v2254, %v2248
        %v2651 = vpack.c.b16 %v2255, %v2249
        %v2652 = vpack.c.b16 %v2256, %v2250
        %v2653 = vpack.c.b16 %v2257, %v2251
        %v2654 = vpack.c.b16 %v2258, %v2252
        %v2655 = vpack.c.b16 %v2259, %v2253
        %v2656 = vpack.c.b16 %v2266, %v2260
        %v2657 = vpack.c.b16 %v2267, %v2261
        %v2658 = vpack.c.b16 %v2268, %v2262
        %v2659 = vpack.c.b16 %v2269, %v2263
        %v2660 = vpack.c.b16 %v2270, %v2264
        %v2661 = vpack.c.b16 %v2271, %v2265
        %v2662 = vpack.c.b16 %v2278, %v2272
        %v2663 = vpack.c.b16 %v2279, %v2273
        %v2664 = vpack.c.b16 %v2280, %v2274
        %v2665 = vpack.c.b16 %v2281, %v2275
        %v2666 = vpack.c.b16 %v2282, %v2276
        %v2667 = vpack.c.b16 %v2283, %v2277
        %v2668 = vpack.c.b16 %v2290, %v2284
        %v2669 = vpack.c.b16 %v2291, %v2285
        %v2670 = vpack.c.b16 %v2292, %v2286
        %v2671 = vpack.c.b16 %v2293, %v2287
        %v2672 = vpack.c.b16 %v2294, %v2288
        %v2673 = vpack.c.b16 %v2295, %v2289
        %v2674 = vpack.c.b16 %v2302, %v2296
        %v2675 = vpack.c.b16 %v2303, %v2297
        %v2676 = vpack.c.b16 %v2304, %v2298
        %v2677 = vpack.c.b16 %v2305, %v2299
        %v2678 = vpack.c.b16 %v2306, %v2300
        %v2679 = vpack.c.b16 %v2307, %v2301
        %v2680 = vpack.c.b16 %v2314, %v2308
        %v2681 = vpack.c.b16 %v2315, %v2309
        %v2682 = vpack.c.b16 %v2316, %v2310
        %v2683 = vpack.c.b16 %v2317, %v2311
        %v2684 = vpack.c.b16 %v2318, %v2312
        %v2685 = vpack.c.b16 %v2319, %v2313
        %v2686 = vpack.c.b16 %v2326, %v2320
        %v2687 = vpack.c.b16 %v2327, %v2321
        %v2688 = vpack.c.b16 %v2328, %v2322
        %v2689 = vpack.c.b16 %v2329, %v2323
        %v2690 = vpack.c.b16 %v2330, %v2324
        %v2691 = vpack.c.b16 %v2331, %v2325
        %v2692 = vpack.c.b16 %v2338, %v2332
        %v2693 = vpack.c.b16 %v2339, %v2333
        %v2694 = vpack.c.b16 %v2340, %v2334
        %v2695 = vpack.c.b16 %v2341, %v2335
        %v2696 = vpack.c.b16 %v2342, %v2336
        %v2697 = vpack.c.b16 %v2343, %v2337
        %v2698 = vpack.c.b16 %v2350, %v2344
        %v2699 = vpack.c.b16 %v2351, %v2345
        %v2700 = vpack.c.b16 %v2352, %v2346
        %v2701 = vpack.c.b16 %v2353, %v2347
        %v2702 = vpack.c.b16 %v2354, %v2348
        %v2703 = vpack.c.b16 %v2355, %v2349
        %v2704 = vpack.c.b16 %v2362, %v2356
        %v2705 = vpack.c.b16 %v2363, %v2357
        %v2706 = vpack.c.b16 %v2364, %v2358
        %v2707 = vpack.c.b16 %v2365, %v2359
        %v2708 = vpack.c.b16 %v2366, %v2360
        %v2709 = vpack.c.b16 %v2367, %v2361
        %v2710 = vpack.c.b16 %v2374, %v2368
        %v2711 = vpack.c.b16 %v2375, %v2369
        %v2712 = vpack.c.b16 %v2376, %v2370
        %v2713 = vpack.c.b16 %v2377, %v2371
        %v2714 = vpack.c.b16 %v2378, %v2372
        %v2715 = vpack.c.b16 %v2379, %v2373
        %v2716 = vpack.c.b16 %v2386, %v2380
        %v2717 = vpack.c.b16 %v2387, %v2381
        %v2718 = vpack.c.b16 %v2388, %v2382
        %v2719 = vpack.c.b16 %v2389, %v2383
        %v2720 = vpack.c.b16 %v2390, %v2384
        %v2721 = vpack.c.b16 %v2391, %v2385
        %v2722 = vpack.c.b16 %v2398, %v2392
        %v2723 = vpack.c.b16 %v2399, %v2393
        %v2724 = vpack.c.b16 %v2400, %v2394
        %v2725 = vpack.c.b16 %v2401, %v2395
        %v2726 = vpack.c.b16 %v2402, %v2396
        %v2727 = vpack.c.b16 %v2403, %v2397
        %v2728 = vpack.c.b16 %v2410, %v2404
        %v2729 = vpack.c.b16 %v2411, %v2405
        %v2730 = vpack.c.b16 %v2412, %v2406
        %v2731 = vpack.c.b16 %v2413, %v2407
        %v2732 = vpack.c.b16 %v2414, %v2408
        %v2733 = vpack.c.b16 %v2415, %v2409
        %v2734 = vpack.c.b16 %v2422, %v2416
        %v2735 = vpack.c.b16 %v2423, %v2417
        %v2736 = vpack.c.b16 %v2424, %v2418
        %v2737 = vpack.c.b16 %v2425, %v2419
        %v2738 = vpack.c.b16 %v2426, %v2420
        %v2739 = vpack.c.b16 %v2427, %v2421
        %v2740 = vpack.c.b16 %v2434, %v2428
        %v2741 = vpack.c.b16 %v2435, %v2429
        %v2742 = vpack.c.b16 %v2436, %v2430
        %v2743 = vpack.c.b16 %v2437, %v2431
        %v2744 = vpack.c.b16 %v2438, %v2432
        %v2745 = vpack.c.b16 %v2439, %v2433
        %v2746 = vpack.c.b16 %v2446, %v2440
        %v2747 = vpack.c.b16 %v2447, %v2441
        %v2748 = vpack.c.b16 %v2448, %v2442
        %v2749 = vpack.c.b16 %v2449, %v2443
        %v2750 = vpack.c.b16 %v2450, %v2444
        %v2751 = vpack.c.b16 %v2451, %v2445
        %v2752 = vpack.c.b16 %v2458, %v2452
        %v2753 = vpack.c.b16 %v2459, %v2453
        %v2754 = vpack.c.b16 %v2460, %v2454
        %v2755 = vpack.c.b16 %v2461, %v2455
        %v2756 = vpack.c.b16 %v2462, %v2456
        %v2757 = vpack.c.b16 %v2463, %v2457
        %v2758 = vpack.c.b16 %v2470, %v2464
        %v2759 = vpack.c.b16 %v2471, %v2465
        %v2760 = vpack.c.b16 %v2472, %v2466
        %v2761 = vpack.c.b16 %v2473, %v2467
        %v2762 = vpack.c.b16 %v2474, %v2468
        %v2763 = vpack.c.b16 %v2475, %v2469
        %3052 = vmatprep.subr.bf16.mxu0 %v2477
        %3053 = vmatpush1.bf16.msra.mxu0 %v2476
        %3054 = vmatprep.subr.bf16.mxu0 %v2483
        %3055 = vmatpush1.bf16.msra.mxu0 %v2482
        %3056 = vmatprep.subr.bf16.mxu0 %v2489
        %3057 = vmatpush1.bf16.msra.mxu0 %v2488
        %3058 = vmatprep.subr.bf16.mxu0 %v2495
        %3059 = vmatpush1.bf16.msra.mxu0 %v2494
        %3060 = vmatprep.subr.bf16.mxu0 %v2501
        %3061 = vmatpush1.bf16.msra.mxu0 %v2500
        %3062 = vmatprep.subr.bf16.mxu0 %v2507
        %3063 = vmatpush1.bf16.msra.mxu0 %v2506
        %3064 = vmatprep.subr.bf16.mxu0 %v2513
        %3065 = vmatpush1.bf16.msra.mxu0 %v2512
        %3066 = vmatprep.subr.bf16.mxu0 %v2519
        %3067 = vmatpush1.bf16.msra.mxu0 %v2518
        %3068 = vmatprep.subr.bf16.mxu0 %v2525
        %3069 = vmatpush1.bf16.msra.mxu0 %v2524
        %3070 = vmatprep.subr.bf16.mxu0 %v2531
        %3071 = vmatpush1.bf16.msra.mxu0 %v2530
        %3072 = vmatprep.subr.bf16.mxu0 %v2537
        %3073 = vmatpush1.bf16.msra.mxu0 %v2536
        %3074 = vmatprep.subr.bf16.mxu0 %v2543
        %3075 = vmatpush1.bf16.msra.mxu0 %v2542
        %3076 = vmatprep.subr.bf16.mxu0 %v2549
        %3077 = vmatpush1.bf16.msra.mxu0 %v2548
        %3078 = vmatprep.subr.bf16.mxu0 %v2555
        %3079 = vmatpush1.bf16.msra.mxu0 %v2554
        %3080 = vmatprep.subr.bf16.mxu0 %v2561
        %3081 = vmatpush1.bf16.msra.mxu0 %v2560
        %3082 = vmatprep.subr.bf16.mxu0 %v2567
        %3083 = vmatpush1.bf16.msra.mxu0 %v2566
        %3084 = vmatprep.mubr.bf16.mxu0 %v1181
        %3085 = vmatmul.mubr.bf16.gmra.mrb[0].mxu0 %v1180
        %v3086 = vpop.f32.mrb[0].mxu0
        %v3087 = vadd.f32 0.0, %v3086
        %v3088 = vpop.f32.mrb[0].mxu0
        %v3089 = vadd.f32 0.0, %v3088
        %v3090 = vpop.f32.mrb[0].mxu0
        %v3091 = vadd.f32 0.0, %v3090
        %v3092 = vpop.f32.mrb[0].mxu0
        %v3093 = vadd.f32 0.0, %v3092
        %3094 = vmatprep.mubr.bf16.mxu0 %v1187
        %3095 = vmatmul.mubr.bf16.gmra.mrb[0].mxu0 %v1186
        %v3096 = vpop.f32.mrb[0].mxu0
        %v3097 = vadd.f32 0.0, %v3096
        %v3098 = vpop.f32.mrb[0].mxu0
        %v3099 = vadd.f32 0.0, %v3098
        %v3100 = vpop.f32.mrb[0].mxu0
        %v3101 = vadd.f32 0.0, %v3100
        %v3102 = vpop.f32.mrb[0].mxu0
        %v3103 = vadd.f32 0.0, %v3102
        %3104 = vmatprep.mubr.bf16.mxu0 %v1193
        %3105 = vmatmul.mubr.bf16.gmra.mrb[0].mxu0 %v1192
        %v3106 = vpop.f32.mrb[0].mxu0
        %v3107 = vadd.f32 0.0, %v3106
        %v3108 = vpop.f32.mrb[0].mxu0
        %v3109 = vadd.f32 0.0, %v3108
        %v3110 = vpop.f32.mrb[0].mxu0
        %v3111 = vadd.f32 0.0, %v3110
        %v3112 = vpop.f32.mrb[0].mxu0
        %v3113 = vadd.f32 0.0, %v3112
        %3114 = vmatprep.mubr.bf16.mxu0 %v1199
        %3115 = vmatmul.mubr.bf16.gmra.mrb[0].mxu0 %v1198
        %v3116 = vpop.f32.mrb[0].mxu0
        %v3117 = vadd.f32 0.0, %v3116
        %v3118 = vpop.f32.mrb[0].mxu0
        %v3119 = vadd.f32 0.0, %v3118
        %v3120 = vpop.f32.mrb[0].mxu0
        %v3121 = vadd.f32 0.0, %v3120
        %v3122 = vpop.f32.mrb[0].mxu0
        %v3123 = vadd.f32 0.0, %v3122
        %3124 = vmatprep.mubr.bf16.mxu0 %v1205
        %3125 = vmatmul.mubr.bf16.gmra.mrb[0].mxu0 %v1204
        %v3126 = vpop.f32.mrb[0].mxu0
        %v3127 = vadd.f32 0.0, %v3126
        %v3128 = vpop.f32.mrb[0].mxu0
        %v3129 = vadd.f32 0.0, %v3128
        %v3130 = vpop.f32.mrb[0].mxu0
        %v3131 = vadd.f32 0.0, %v3130
        %v3132 = vpop.f32.mrb[0].mxu0
        %v3133 = vadd.f32 0.0, %v3132
        %3134 = vmatprep.mubr.bf16.mxu0 %v1211
        %3135 = vmatmul.mubr.bf16.gmra.mrb[0].mxu0 %v1210
        %v3136 = vpop.f32.mrb[0].mxu0
        %v3137 = vadd.f32 0.0, %v3136
        %v3138 = vpop.f32.mrb[0].mxu0
        %v3139 = vadd.f32 0.0, %v3138
        %v3140 = vpop.f32.mrb[0].mxu0
        %v3141 = vadd.f32 0.0, %v3140
        %v3142 = vpop.f32.mrb[0].mxu0
        %v3143 = vadd.f32 0.0, %v3142
        %3144 = vmatprep.mubr.bf16.mxu0 %v1217
        %3145 = vmatmul.mubr.bf16.gmra.mrb[0].mxu0 %v1216
        %v3146 = vpop.f32.mrb[0].mxu0
        %v3147 = vadd.f32 0.0, %v3146
        %v3148 = vpop.f32.mrb[0].mxu0
        %v3149 = vadd.f32 0.0, %v3148
        %v3150 = vpop.f32.mrb[0].mxu0
        %v3151 = vadd.f32 0.0, %v3150
        %v3152 = vpop.f32.mrb[0].mxu0
        %v3153 = vadd.f32 0.0, %v3152
        %3154 = vmatprep.mubr.bf16.mxu0 %v1223
        %3155 = vmatmul.mubr.bf16.gmra.mrb[0].mxu0 %v1222
        %v3156 = vpop.f32.mrb[0].mxu0
        %v3157 = vadd.f32 0.0, %v3156
        %v3158 = vpop.f32.mrb[0].mxu0
        %v3159 = vadd.f32 0.0, %v3158
        %v3160 = vpop.f32.mrb[0].mxu0
        %v3161 = vadd.f32 0.0, %v3160
        %v3162 = vpop.f32.mrb[0].mxu0
        %v3163 = vadd.f32 0.0, %v3162
        %3164 = vmatprep.mubr.bf16.mxu0 %v1229
        %3165 = vmatmul.mubr.bf16.gmra.mrb[0].mxu0 %v1228
        %v3166 = vpop.f32.mrb[0].mxu0
        %v3167 = vadd.f32 0.0, %v3166
        %v3168 = vpop.f32.mrb[0].mxu0
        %v3169 = vadd.f32 0.0, %v3168
        %v3170 = vpop.f32.mrb[0].mxu0
        %v3171 = vadd.f32 0.0, %v3170
        %v3172 = vpop.f32.mrb[0].mxu0
        %v3173 = vadd.f32 0.0, %v3172
        %3174 = vmatprep.mubr.bf16.mxu0 %v1235
        %3175 = vmatmul.mubr.bf16.gmra.mrb[0].mxu0 %v1234
        %v3176 = vpop.f32.mrb[0].mxu0
        %v3177 = vadd.f32 0.0, %v3176
        %v3178 = vpop.f32.mrb[0].mxu0
        %v3179 = vadd.f32 0.0, %v3178
        %v3180 = vpop.f32.mrb[0].mxu0
        %v3181 = vadd.f32 0.0, %v3180
        %v3182 = vpop.f32.mrb[0].mxu0
        %v3183 = vadd.f32 0.0, %v3182
        %3184 = vmatprep.mubr.bf16.mxu0 %v1241
        %3185 = vmatmul.mubr.bf16.gmra.mrb[0].mxu0 %v1240
        %v3186 = vpop.f32.mrb[0].mxu0
        %v3187 = vadd.f32 0.0, %v3186
        %v3188 = vpop.f32.mrb[0].mxu0
        %v3189 = vadd.f32 0.0, %v3188
        %v3190 = vpop.f32.mrb[0].mxu0
        %v3191 = vadd.f32 0.0, %v3190
        %v3192 = vpop.f32.mrb[0].mxu0
        %v3193 = vadd.f32 0.0, %v3192
        %3194 = vmatprep.mubr.bf16.mxu0 %v1247
        %3195 = vmatmul.mubr.bf16.gmra.mrb[0].mxu0 %v1246
        %v3196 = vpop.f32.mrb[0].mxu0
        %v3197 = vadd.f32 0.0, %v3196
        %v3198 = vpop.f32.mrb[0].mxu0
        %v3199 = vadd.f32 0.0, %v3198
        %v3200 = vpop.f32.mrb[0].mxu0
        %v3201 = vadd.f32 0.0, %v3200
        %v3202 = vpop.f32.mrb[0].mxu0
        %v3203 = vadd.f32 0.0, %v3202
        %3204 = vmatprep.mubr.bf16.mxu0 %v1253
        %3205 = vmatmul.mubr.bf16.gmra.mrb[0].mxu0 %v1252
        %v3206 = vpop.f32.mrb[0].mxu0
        %v3207 = vadd.f32 0.0, %v3206
        %v3208 = vpop.f32.mrb[0].mxu0
        %v3209 = vadd.f32 0.0, %v3208
        %v3210 = vpop.f32.mrb[0].mxu0
        %v3211 = vadd.f32 0.0, %v3210
        %v3212 = vpop.f32.mrb[0].mxu0
        %v3213 = vadd.f32 0.0, %v3212
        %3214 = vmatprep.mubr.bf16.mxu0 %v1259
        %3215 = vmatmul.mubr.bf16.gmra.mrb[0].mxu0 %v1258
        %v3216 = vpop.f32.mrb[0].mxu0
        %v3217 = vadd.f32 0.0, %v3216
        %v3218 = vpop.f32.mrb[0].mxu0
        %v3219 = vadd.f32 0.0, %v3218
        %v3220 = vpop.f32.mrb[0].mxu0
        %v3221 = vadd.f32 0.0, %v3220
        %v3222 = vpop.f32.mrb[0].mxu0
        %v3223 = vadd.f32 0.0, %v3222
        %3224 = vmatprep.mubr.bf16.mxu0 %v1265
        %3225 = vmatmul.mubr.bf16.gmra.mrb[0].mxu0 %v1264
        %v3226 = vpop.f32.mrb[0].mxu0
        %v3227 = vadd.f32 0.0, %v3226
        %v3228 = vpop.f32.mrb[0].mxu0
        %v3229 = vadd.f32 0.0, %v3228
        %v3230 = vpop.f32.mrb[0].mxu0
        %v3231 = vadd.f32 0.0, %v3230
        %v3232 = vpop.f32.mrb[0].mxu0
        %v3233 = vadd.f32 0.0, %v3232
        %3234 = vmatprep.mubr.bf16.mxu0 %v1271
        %3235 = vmatmul.mubr.bf16.gmra.mrb[0].mxu0 %v1270
        %v3236 = vpop.f32.mrb[0].mxu0
        %v3237 = vadd.f32 0.0, %v3236
        %v3238 = vpop.f32.mrb[0].mxu0
        %v3239 = vadd.f32 0.0, %v3238
        %v3240 = vpop.f32.mrb[0].mxu0
        %v3241 = vadd.f32 0.0, %v3240
        %v3242 = vpop.f32.mrb[0].mxu0
        %v3243 = vadd.f32 0.0, %v3242
        %3244 = vmatprep.mubr.bf16.mxu0 %v1277
        %3245 = vmatmul.mubr.bf16.gmra.mrb[0].mxu0 %v1276
        %v3246 = vpop.f32.mrb[0].mxu0
        %v3247 = vadd.f32 0.0, %v3246
        %v3248 = vpop.f32.mrb[0].mxu0
        %v3249 = vadd.f32 0.0, %v3248
        %v3250 = vpop.f32.mrb[0].mxu0
        %v3251 = vadd.f32 0.0, %v3250
        %v3252 = vpop.f32.mrb[0].mxu0
        %v3253 = vadd.f32 0.0, %v3252
        %3254 = vmatprep.mubr.bf16.mxu0 %v1283
        %3255 = vmatmul.mubr.bf16.gmra.mrb[0].mxu0 %v1282
        %v3256 = vpop.f32.mrb[0].mxu0
        %v3257 = vadd.f32 0.0, %v3256
        %v3258 = vpop.f32.mrb[0].mxu0
        %v3259 = vadd.f32 0.0, %v3258
        %v3260 = vpop.f32.mrb[0].mxu0
        %v3261 = vadd.f32 0.0, %v3260
        %v3262 = vpop.f32.mrb[0].mxu0
        %v3263 = vadd.f32 0.0, %v3262
        %3264 = vmatprep.mubr.bf16.mxu0 %v1289
        %3265 = vmatmul.mubr.bf16.gmra.mrb[0].mxu0 %v1288
        %v3266 = vpop.f32.mrb[0].mxu0
        %v3267 = vadd.f32 0.0, %v3266
        %v3268 = vpop.f32.mrb[0].mxu0
        %v3269 = vadd.f32 0.0, %v3268
        %v3270 = vpop.f32.mrb[0].mxu0
        %v3271 = vadd.f32 0.0, %v3270
        %v3272 = vpop.f32.mrb[0].mxu0
        %v3273 = vadd.f32 0.0, %v3272
        %3274 = vmatprep.mubr.bf16.mxu0 %v1295
        %3275 = vmatmul.mubr.bf16.gmra.mrb[0].mxu0 %v1294
        %v3276 = vpop.f32.mrb[0].mxu0
        %v3277 = vadd.f32 0.0, %v3276
        %v3278 = vpop.f32.mrb[0].mxu0
        %v3279 = vadd.f32 0.0, %v3278
        %v3280 = vpop.f32.mrb[0].mxu0
        %v3281 = vadd.f32 0.0, %v3280
        %v3282 = vpop.f32.mrb[0].mxu0
        %v3283 = vadd.f32 0.0, %v3282
        %3284 = vmatprep.mubr.bf16.mxu0 %v1301
        %3285 = vmatmul.mubr.bf16.gmra.mrb[0].mxu0 %v1300
        %v3286 = vpop.f32.mrb[0].mxu0
        %v3287 = vadd.f32 0.0, %v3286
        %v3288 = vpop.f32.mrb[0].mxu0
        %v3289 = vadd.f32 0.0, %v3288
        %v3290 = vpop.f32.mrb[0].mxu0
        %v3291 = vadd.f32 0.0, %v3290
        %v3292 = vpop.f32.mrb[0].mxu0
        %v3293 = vadd.f32 0.0, %v3292
        %3294 = vmatprep.mubr.bf16.mxu0 %v1307
        %3295 = vmatmul.mubr.bf16.gmra.mrb[0].mxu0 %v1306
        %v3296 = vpop.f32.mrb[0].mxu0
        %v3297 = vadd.f32 0.0, %v3296
        %v3298 = vpop.f32.mrb[0].mxu0
        %v3299 = vadd.f32 0.0, %v3298
        %v3300 = vpop.f32.mrb[0].mxu0
        %v3301 = vadd.f32 0.0, %v3300
        %v3302 = vpop.f32.mrb[0].mxu0
        %v3303 = vadd.f32 0.0, %v3302
        %3304 = vmatprep.mubr.bf16.mxu0 %v1313
        %3305 = vmatmul.mubr.bf16.gmra.mrb[0].mxu0 %v1312
        %v3306 = vpop.f32.mrb[0].mxu0
        %v3307 = vadd.f32 0.0, %v3306
        %v3308 = vpop.f32.mrb[0].mxu0
        %v3309 = vadd.f32 0.0, %v3308
        %v3310 = vpop.f32.mrb[0].mxu0
        %v3311 = vadd.f32 0.0, %v3310
        %v3312 = vpop.f32.mrb[0].mxu0
        %v3313 = vadd.f32 0.0, %v3312
        %3314 = vmatprep.mubr.bf16.mxu0 %v1319
        %3315 = vmatmul.mubr.bf16.gmra.mrb[0].mxu0 %v1318
        %v3316 = vpop.f32.mrb[0].mxu0
        %v3317 = vadd.f32 0.0, %v3316
        %v3318 = vpop.f32.mrb[0].mxu0
        %v3319 = vadd.f32 0.0, %v3318
        %v3320 = vpop.f32.mrb[0].mxu0
        %v3321 = vadd.f32 0.0, %v3320
        %v3322 = vpop.f32.mrb[0].mxu0
        %v3323 = vadd.f32 0.0, %v3322
        %3324 = vdwg.mxu0
        %3325 = vmatprep.subr.bf16.mxu0 %v2573
        %3326 = vmatpush1.bf16.msra.mxu0 %v2572
        %3327 = vmatprep.subr.bf16.mxu0 %v2579
        %3328 = vmatpush1.bf16.msra.mxu0 %v2578
        %3329 = vmatprep.subr.bf16.mxu0 %v2585
        %3330 = vmatpush1.bf16.msra.mxu0 %v2584
        %3331 = vmatprep.subr.bf16.mxu0 %v2591
        %3332 = vmatpush1.bf16.msra.mxu0 %v2590
        %3333 = vmatprep.subr.bf16.mxu0 %v2597
        %3334 = vmatpush1.bf16.msra.mxu0 %v2596
        %3335 = vmatprep.subr.bf16.mxu0 %v2603
        %3336 = vmatpush1.bf16.msra.mxu0 %v2602
        %3337 = vmatprep.subr.bf16.mxu0 %v2609
        %3338 = vmatpush1.bf16.msra.mxu0 %v2608
        %3339 = vmatprep.subr.bf16.mxu0 %v2615
        %3340 = vmatpush1.bf16.msra.mxu0 %v2614
        %3341 = vmatprep.subr.bf16.mxu0 %v2621
        %3342 = vmatpush1.bf16.msra.mxu0 %v2620
        %3343 = vmatprep.subr.bf16.mxu0 %v2627
        %3344 = vmatpush1.bf16.msra.mxu0 %v2626
        %3345 = vmatprep.subr.bf16.mxu0 %v2633
        %3346 = vmatpush1.bf16.msra.mxu0 %v2632
        %3347 = vmatprep.subr.bf16.mxu0 %v2639
        %3348 = vmatpush1.bf16.msra.mxu0 %v2638
        %3349 = vmatprep.subr.bf16.mxu0 %v2645
        %3350 = vmatpush1.bf16.msra.mxu0 %v2644
        %3351 = vmatprep.subr.bf16.mxu0 %v2651
        %3352 = vmatpush1.bf16.msra.mxu0 %v2650
        %3353 = vmatprep.subr.bf16.mxu0 %v2657
        %3354 = vmatpush1.bf16.msra.mxu0 %v2656
        %3355 = vmatprep.subr.bf16.mxu0 %v2663
        %3356 = vmatpush1.bf16.msra.mxu0 %v2662
        %3357 = vmatprep.mubr.bf16.mxu0 %v1183
        %3358 = vmatmul.mubr.bf16.gmra.mrb[0].mxu0 %v1182
        %v3359 = vpop.f32.mrb[0].mxu0
        %v3360 = vadd.f32 %v3087, %v3359
        %v3361 = vpop.f32.mrb[0].mxu0
        %v3362 = vadd.f32 %v3089, %v3361
        %v3363 = vpop.f32.mrb[0].mxu0
        %v3364 = vadd.f32 %v3091, %v3363
        %v3365 = vpop.f32.mrb[0].mxu0
        %v3366 = vadd.f32 %v3093, %v3365
        %3367 = vmatprep.mubr.bf16.mxu0 %v1189
        %3368 = vmatmul.mubr.bf16.gmra.mrb[0].mxu0 %v1188
        %v3369 = vpop.f32.mrb[0].mxu0
        %v3370 = vadd.f32 %v3097, %v3369
        %v3371 = vpop.f32.mrb[0].mxu0
        %v3372 = vadd.f32 %v3099, %v3371
        %v3373 = vpop.f32.mrb[0].mxu0
        %v3374 = vadd.f32 %v3101, %v3373
        %v3375 = vpop.f32.mrb[0].mxu0
        %v3376 = vadd.f32 %v3103, %v3375
        %3377 = vmatprep.mubr.bf16.mxu0 %v1195
        %3378 = vmatmul.mubr.bf16.gmra.mrb[0].mxu0 %v1194
        %v3379 = vpop.f32.mrb[0].mxu0
        %v3380 = vadd.f32 %v3107, %v3379
        %v3381 = vpop.f32.mrb[0].mxu0
        %v3382 = vadd.f32 %v3109, %v3381
        %v3383 = vpop.f32.mrb[0].mxu0
        %v3384 = vadd.f32 %v3111, %v3383
        %v3385 = vpop.f32.mrb[0].mxu0
        %v3386 = vadd.f32 %v3113, %v3385
        %3387 = vmatprep.mubr.bf16.mxu0 %v1201
        %3388 = vmatmul.mubr.bf16.gmra.mrb[0].mxu0 %v1200
        %v3389 = vpop.f32.mrb[0].mxu0
        %v3390 = vadd.f32 %v3117, %v3389
        %v3391 = vpop.f32.mrb[0].mxu0
        %v3392 = vadd.f32 %v3119, %v3391
        %v3393 = vpop.f32.mrb[0].mxu0
        %v3394 = vadd.f32 %v3121, %v3393
        %v3395 = vpop.f32.mrb[0].mxu0
        %v3396 = vadd.f32 %v3123, %v3395
        %3397 = vmatprep.mubr.bf16.mxu0 %v1207
        %3398 = vmatmul.mubr.bf16.gmra.mrb[0].mxu0 %v1206
        %v3399 = vpop.f32.mrb[0].mxu0
        %v3400 = vadd.f32 %v3127, %v3399
        %v3401 = vpop.f32.mrb[0].mxu0
        %v3402 = vadd.f32 %v3129, %v3401
        %v3403 = vpop.f32.mrb[0].mxu0
        %v3404 = vadd.f32 %v3131, %v3403
        %v3405 = vpop.f32.mrb[0].mxu0
        %v3406 = vadd.f32 %v3133, %v3405
        %3407 = vmatprep.mubr.bf16.mxu0 %v1213
        %3408 = vmatmul.mubr.bf16.gmra.mrb[0].mxu0 %v1212
        %v3409 = vpop.f32.mrb[0].mxu0
        %v3410 = vadd.f32 %v3137, %v3409
        %v3411 = vpop.f32.mrb[0].mxu0
        %v3412 = vadd.f32 %v3139, %v3411
        %v3413 = vpop.f32.mrb[0].mxu0
        %v3414 = vadd.f32 %v3141, %v3413
        %v3415 = vpop.f32.mrb[0].mxu0
        %v3416 = vadd.f32 %v3143, %v3415
        %3417 = vmatprep.mubr.bf16.mxu0 %v1219
        %3418 = vmatmul.mubr.bf16.gmra.mrb[0].mxu0 %v1218
        %v3419 = vpop.f32.mrb[0].mxu0
        %v3420 = vadd.f32 %v3147, %v3419
        %v3421 = vpop.f32.mrb[0].mxu0
        %v3422 = vadd.f32 %v3149, %v3421
        %v3423 = vpop.f32.mrb[0].mxu0
        %v3424 = vadd.f32 %v3151, %v3423
        %v3425 = vpop.f32.mrb[0].mxu0
        %v3426 = vadd.f32 %v3153, %v3425
        %3427 = vmatprep.mubr.bf16.mxu0 %v1225
        %3428 = vmatmul.mubr.bf16.gmra.mrb[0].mxu0 %v1224
        %v3429 = vpop.f32.mrb[0].mxu0
        %v3430 = vadd.f32 %v3157, %v3429
        %v3431 = vpop.f32.mrb[0].mxu0
        %v3432 = vadd.f32 %v3159, %v3431
        %v3433 = vpop.f32.mrb[0].mxu0
        %v3434 = vadd.f32 %v3161, %v3433
        %v3435 = vpop.f32.mrb[0].mxu0
        %v3436 = vadd.f32 %v3163, %v3435
        %3437 = vmatprep.mubr.bf16.mxu0 %v1231
        %3438 = vmatmul.mubr.bf16.gmra.mrb[0].mxu0 %v1230
        %v3439 = vpop.f32.mrb[0].mxu0
        %v3440 = vadd.f32 %v3167, %v3439
        %v3441 = vpop.f32.mrb[0].mxu0
        %v3442 = vadd.f32 %v3169, %v3441
        %v3443 = vpop.f32.mrb[0].mxu0
        %v3444 = vadd.f32 %v3171, %v3443
        %v3445 = vpop.f32.mrb[0].mxu0
        %v3446 = vadd.f32 %v3173, %v3445
        %3447 = vmatprep.mubr.bf16.mxu0 %v1237
        %3448 = vmatmul.mubr.bf16.gmra.mrb[0].mxu0 %v1236
        %v3449 = vpop.f32.mrb[0].mxu0
        %v3450 = vadd.f32 %v3177, %v3449
        %v3451 = vpop.f32.mrb[0].mxu0
        %v3452 = vadd.f32 %v3179, %v3451
        %v3453 = vpop.f32.mrb[0].mxu0
        %v3454 = vadd.f32 %v3181, %v3453
        %v3455 = vpop.f32.mrb[0].mxu0
        %v3456 = vadd.f32 %v3183, %v3455
        %3457 = vmatprep.mubr.bf16.mxu0 %v1243
        %3458 = vmatmul.mubr.bf16.gmra.mrb[0].mxu0 %v1242
        %v3459 = vpop.f32.mrb[0].mxu0
        %v3460 = vadd.f32 %v3187, %v3459
        %v3461 = vpop.f32.mrb[0].mxu0
        %v3462 = vadd.f32 %v3189, %v3461
        %v3463 = vpop.f32.mrb[0].mxu0
        %v3464 = vadd.f32 %v3191, %v3463
        %v3465 = vpop.f32.mrb[0].mxu0
        %v3466 = vadd.f32 %v3193, %v3465
        %3467 = vmatprep.mubr.bf16.mxu0 %v1249
        %3468 = vmatmul.mubr.bf16.gmra.mrb[0].mxu0 %v1248
        %v3469 = vpop.f32.mrb[0].mxu0
        %v3470 = vadd.f32 %v3197, %v3469
        %v3471 = vpop.f32.mrb[0].mxu0
        %v3472 = vadd.f32 %v3199, %v3471
        %v3473 = vpop.f32.mrb[0].mxu0
        %v3474 = vadd.f32 %v3201, %v3473
        %v3475 = vpop.f32.mrb[0].mxu0
        %v3476 = vadd.f32 %v3203, %v3475
        %3477 = vmatprep.mubr.bf16.mxu0 %v1255
        %3478 = vmatmul.mubr.bf16.gmra.mrb[0].mxu0 %v1254
        %v3479 = vpop.f32.mrb[0].mxu0
        %v3480 = vadd.f32 %v3207, %v3479
        %v3481 = vpop.f32.mrb[0].mxu0
        %v3482 = vadd.f32 %v3209, %v3481
        %v3483 = vpop.f32.mrb[0].mxu0
        %v3484 = vadd.f32 %v3211, %v3483
        %v3485 = vpop.f32.mrb[0].mxu0
        %v3486 = vadd.f32 %v3213, %v3485
        %3487 = vmatprep.mubr.bf16.mxu0 %v1261
        %3488 = vmatmul.mubr.bf16.gmra.mrb[0].mxu0 %v1260
        %v3489 = vpop.f32.mrb[0].mxu0
        %v3490 = vadd.f32 %v3217, %v3489
        %v3491 = vpop.f32.mrb[0].mxu0
        %v3492 = vadd.f32 %v3219, %v3491
        %v3493 = vpop.f32.mrb[0].mxu0
        %v3494 = vadd.f32 %v3221, %v3493
        %v3495 = vpop.f32.mrb[0].mxu0
        %v3496 = vadd.f32 %v3223, %v3495
        %3497 = vmatprep.mubr.bf16.mxu0 %v1267
        %3498 = vmatmul.mubr.bf16.gmra.mrb[0].mxu0 %v1266
        %v3499 = vpop.f32.mrb[0].mxu0
        %v3500 = vadd.f32 %v3227, %v3499
        %v3501 = vpop.f32.mrb[0].mxu0
        %v3502 = vadd.f32 %v3229, %v3501
        %v3503 = vpop.f32.mrb[0].mxu0
        %v3504 = vadd.f32 %v3231, %v3503
        %v3505 = vpop.f32.mrb[0].mxu0
        %v3506 = vadd.f32 %v3233, %v3505
        %3507 = vmatprep.mubr.bf16.mxu0 %v1273
        %3508 = vmatmul.mubr.bf16.gmra.mrb[0].mxu0 %v1272
        %v3509 = vpop.f32.mrb[0].mxu0
        %v3510 = vadd.f32 %v3237, %v3509
        %v3511 = vpop.f32.mrb[0].mxu0
        %v3512 = vadd.f32 %v3239, %v3511
        %v3513 = vpop.f32.mrb[0].mxu0
        %v3514 = vadd.f32 %v3241, %v3513
        %v3515 = vpop.f32.mrb[0].mxu0
        %v3516 = vadd.f32 %v3243, %v3515
        %3517 = vmatprep.mubr.bf16.mxu0 %v1279
        %3518 = vmatmul.mubr.bf16.gmra.mrb[0].mxu0 %v1278
        %v3519 = vpop.f32.mrb[0].mxu0
        %v3520 = vadd.f32 %v3247, %v3519
        %v3521 = vpop.f32.mrb[0].mxu0
        %v3522 = vadd.f32 %v3249, %v3521
        %v3523 = vpop.f32.mrb[0].mxu0
        %v3524 = vadd.f32 %v3251, %v3523
        %v3525 = vpop.f32.mrb[0].mxu0
        %v3526 = vadd.f32 %v3253, %v3525
        %3527 = vmatprep.mubr.bf16.mxu0 %v1285
        %3528 = vmatmul.mubr.bf16.gmra.mrb[0].mxu0 %v1284
        %v3529 = vpop.f32.mrb[0].mxu0
        %v3530 = vadd.f32 %v3257, %v3529
        %v3531 = vpop.f32.mrb[0].mxu0
        %v3532 = vadd.f32 %v3259, %v3531
        %v3533 = vpop.f32.mrb[0].mxu0
        %v3534 = vadd.f32 %v3261, %v3533
        %v3535 = vpop.f32.mrb[0].mxu0
        %v3536 = vadd.f32 %v3263, %v3535
        %3537 = vmatprep.mubr.bf16.mxu0 %v1291
        %3538 = vmatmul.mubr.bf16.gmra.mrb[0].mxu0 %v1290
        %v3539 = vpop.f32.mrb[0].mxu0
        %v3540 = vadd.f32 %v3267, %v3539
        %v3541 = vpop.f32.mrb[0].mxu0
        %v3542 = vadd.f32 %v3269, %v3541
        %v3543 = vpop.f32.mrb[0].mxu0
        %v3544 = vadd.f32 %v3271, %v3543
        %v3545 = vpop.f32.mrb[0].mxu0
        %v3546 = vadd.f32 %v3273, %v3545
        %3547 = vmatprep.mubr.bf16.mxu0 %v1297
        %3548 = vmatmul.mubr.bf16.gmra.mrb[0].mxu0 %v1296
        %v3549 = vpop.f32.mrb[0].mxu0
        %v3550 = vadd.f32 %v3277, %v3549
        %v3551 = vpop.f32.mrb[0].mxu0
        %v3552 = vadd.f32 %v3279, %v3551
        %v3553 = vpop.f32.mrb[0].mxu0
        %v3554 = vadd.f32 %v3281, %v3553
        %v3555 = vpop.f32.mrb[0].mxu0
        %v3556 = vadd.f32 %v3283, %v3555
        %3557 = vmatprep.mubr.bf16.mxu0 %v1303
        %3558 = vmatmul.mubr.bf16.gmra.mrb[0].mxu0 %v1302
        %v3559 = vpop.f32.mrb[0].mxu0
        %v3560 = vadd.f32 %v3287, %v3559
        %v3561 = vpop.f32.mrb[0].mxu0
        %v3562 = vadd.f32 %v3289, %v3561
        %v3563 = vpop.f32.mrb[0].mxu0
        %v3564 = vadd.f32 %v3291, %v3563
        %v3565 = vpop.f32.mrb[0].mxu0
        %v3566 = vadd.f32 %v3293, %v3565
        %3567 = vmatprep.mubr.bf16.mxu0 %v1309
        %3568 = vmatmul.mubr.bf16.gmra.mrb[0].mxu0 %v1308
        %v3569 = vpop.f32.mrb[0].mxu0
        %v3570 = vadd.f32 %v3297, %v3569
        %v3571 = vpop.f32.mrb[0].mxu0
        %v3572 = vadd.f32 %v3299, %v3571
        %v3573 = vpop.f32.mrb[0].mxu0
        %v3574 = vadd.f32 %v3301, %v3573
        %v3575 = vpop.f32.mrb[0].mxu0
        %v3576 = vadd.f32 %v3303, %v3575
        %3577 = vmatprep.mubr.bf16.mxu0 %v1315
        %3578 = vmatmul.mubr.bf16.gmra.mrb[0].mxu0 %v1314
        %v3579 = vpop.f32.mrb[0].mxu0
        %v3580 = vadd.f32 %v3307, %v3579
        %v3581 = vpop.f32.mrb[0].mxu0
        %v3582 = vadd.f32 %v3309, %v3581
        %v3583 = vpop.f32.mrb[0].mxu0
        %v3584 = vadd.f32 %v3311, %v3583
        %v3585 = vpop.f32.mrb[0].mxu0
        %v3586 = vadd.f32 %v3313, %v3585
        %3587 = vmatprep.mubr.bf16.mxu0 %v1321
        %3588 = vmatmul.mubr.bf16.gmra.mrb[0].mxu0 %v1320
        %v3589 = vpop.f32.mrb[0].mxu0
        %v3590 = vadd.f32 %v3317, %v3589
        %v3591 = vpop.f32.mrb[0].mxu0
        %v3592 = vadd.f32 %v3319, %v3591
        %v3593 = vpop.f32.mrb[0].mxu0
        %v3594 = vadd.f32 %v3321, %v3593
        %v3595 = vpop.f32.mrb[0].mxu0
        %v3596 = vadd.f32 %v3323, %v3595
        %3597 = vdwg.mxu0
        %3598 = vmatprep.subr.bf16.mxu0 %v2669
        %3599 = vmatpush1.bf16.msra.mxu0 %v2668
        %3600 = vmatprep.subr.bf16.mxu0 %v2675
        %3601 = vmatpush1.bf16.msra.mxu0 %v2674
        %3602 = vmatprep.subr.bf16.mxu0 %v2681
        %3603 = vmatpush1.bf16.msra.mxu0 %v2680
        %3604 = vmatprep.subr.bf16.mxu0 %v2687
        %3605 = vmatpush1.bf16.msra.mxu0 %v2686
        %3606 = vmatprep.subr.bf16.mxu0 %v2693
        %3607 = vmatpush1.bf16.msra.mxu0 %v2692
        %3608 = vmatprep.subr.bf16.mxu0 %v2699
        %3609 = vmatpush1.bf16.msra.mxu0 %v2698
        %3610 = vmatprep.subr.bf16.mxu0 %v2705
        %3611 = vmatpush1.bf16.msra.mxu0 %v2704
        %3612 = vmatprep.subr.bf16.mxu0 %v2711
        %3613 = vmatpush1.bf16.msra.mxu0 %v2710
        %3614 = vmatprep.subr.bf16.mxu0 %v2717
        %3615 = vmatpush1.bf16.msra.mxu0 %v2716
        %3616 = vmatprep.subr.bf16.mxu0 %v2723
        %3617 = vmatpush1.bf16.msra.mxu0 %v2722
        %3618 = vmatprep.subr.bf16.mxu0 %v2729
        %3619 = vmatpush1.bf16.msra.mxu0 %v2728
        %3620 = vmatprep.subr.bf16.mxu0 %v2735
        %3621 = vmatpush1.bf16.msra.mxu0 %v2734
        %3622 = vmatprep.subr.bf16.mxu0 %v2741
        %3623 = vmatpush1.bf16.msra.mxu0 %v2740
        %3624 = vmatprep.subr.bf16.mxu0 %v2747
        %3625 = vmatpush1.bf16.msra.mxu0 %v2746
        %3626 = vmatprep.subr.bf16.mxu0 %v2753
        %3627 = vmatpush1.bf16.msra.mxu0 %v2752
        %3628 = vmatprep.subr.bf16.mxu0 %v2759
        %3629 = vmatpush1.bf16.msra.mxu0 %v2758
        %3630 = vmatprep.mubr.bf16.mxu0 %v1185
        %3631 = vmatmul.mubr.bf16.gmra.mrb[0].mxu0 %v1184
        %v3632 = vpop.f32.mrb[0].mxu0
        %v3633 = vadd.f32 %v3360, %v3632
        %v3634 = vpop.f32.mrb[0].mxu0
        %v3635 = vadd.f32 %v3362, %v3634
        %v3636 = vpop.f32.mrb[0].mxu0
        %v3637 = vadd.f32 %v3364, %v3636
        %v3638 = vpop.f32.mrb[0].mxu0
        %v3639 = vadd.f32 %v3366, %v3638
        %3640 = vmatprep.mubr.bf16.mxu0 %v1191
        %3641 = vmatmul.mubr.bf16.gmra.mrb[0].mxu0 %v1190
        %v3642 = vpop.f32.mrb[0].mxu0
        %v3643 = vadd.f32 %v3370, %v3642
        %v3644 = vpop.f32.mrb[0].mxu0
        %v3645 = vadd.f32 %v3372, %v3644
        %v3646 = vpop.f32.mrb[0].mxu0
        %v3647 = vadd.f32 %v3374, %v3646
        %v3648 = vpop.f32.mrb[0].mxu0
        %v3649 = vadd.f32 %v3376, %v3648
        %3650 = vmatprep.mubr.bf16.mxu0 %v1197
        %3651 = vmatmul.mubr.bf16.gmra.mrb[0].mxu0 %v1196
        %v3652 = vpop.f32.mrb[0].mxu0
        %v3653 = vadd.f32 %v3380, %v3652
        %v3654 = vpop.f32.mrb[0].mxu0
        %v3655 = vadd.f32 %v3382, %v3654
        %v3656 = vpop.f32.mrb[0].mxu0
        %v3657 = vadd.f32 %v3384, %v3656
        %v3658 = vpop.f32.mrb[0].mxu0
        %v3659 = vadd.f32 %v3386, %v3658
        %3660 = vmatprep.mubr.bf16.mxu0 %v1203
        %3661 = vmatmul.mubr.bf16.gmra.mrb[0].mxu0 %v1202
        %v3662 = vpop.f32.mrb[0].mxu0
        %v3663 = vadd.f32 %v3390, %v3662
        %v3664 = vpop.f32.mrb[0].mxu0
        %v3665 = vadd.f32 %v3392, %v3664
        %v3666 = vpop.f32.mrb[0].mxu0
        %v3667 = vadd.f32 %v3394, %v3666
        %v3668 = vpop.f32.mrb[0].mxu0
        %v3669 = vadd.f32 %v3396, %v3668
        %3670 = vmatprep.mubr.bf16.mxu0 %v1209
        %3671 = vmatmul.mubr.bf16.gmra.mrb[0].mxu0 %v1208
        %v3672 = vpop.f32.mrb[0].mxu0
        %v3673 = vadd.f32 %v3400, %v3672
        %v3674 = vpop.f32.mrb[0].mxu0
        %v3675 = vadd.f32 %v3402, %v3674
        %v3676 = vpop.f32.mrb[0].mxu0
        %v3677 = vadd.f32 %v3404, %v3676
        %v3678 = vpop.f32.mrb[0].mxu0
        %v3679 = vadd.f32 %v3406, %v3678
        %3680 = vmatprep.mubr.bf16.mxu0 %v1215
        %3681 = vmatmul.mubr.bf16.gmra.mrb[0].mxu0 %v1214
        %v3682 = vpop.f32.mrb[0].mxu0
        %v3683 = vadd.f32 %v3410, %v3682
        %v3684 = vpop.f32.mrb[0].mxu0
        %v3685 = vadd.f32 %v3412, %v3684
        %v3686 = vpop.f32.mrb[0].mxu0
        %v3687 = vadd.f32 %v3414, %v3686
        %v3688 = vpop.f32.mrb[0].mxu0
        %v3689 = vadd.f32 %v3416, %v3688
        %3690 = vmatprep.mubr.bf16.mxu0 %v1221
        %3691 = vmatmul.mubr.bf16.gmra.mrb[0].mxu0 %v1220
        %v3692 = vpop.f32.mrb[0].mxu0
        %v3693 = vadd.f32 %v3420, %v3692
        %v3694 = vpop.f32.mrb[0].mxu0
        %v3695 = vadd.f32 %v3422, %v3694
        %v3696 = vpop.f32.mrb[0].mxu0
        %v3697 = vadd.f32 %v3424, %v3696
        %v3698 = vpop.f32.mrb[0].mxu0
        %v3699 = vadd.f32 %v3426, %v3698
        %3700 = vmatprep.mubr.bf16.mxu0 %v1227
        %3701 = vmatmul.mubr.bf16.gmra.mrb[0].mxu0 %v1226
        %v3702 = vpop.f32.mrb[0].mxu0
        %v3703 = vadd.f32 %v3430, %v3702
        %v3704 = vpop.f32.mrb[0].mxu0
        %v3705 = vadd.f32 %v3432, %v3704
        %v3706 = vpop.f32.mrb[0].mxu0
        %v3707 = vadd.f32 %v3434, %v3706
        %v3708 = vpop.f32.mrb[0].mxu0
        %v3709 = vadd.f32 %v3436, %v3708
        %3710 = vmatprep.mubr.bf16.mxu0 %v1233
        %3711 = vmatmul.mubr.bf16.gmra.mrb[0].mxu0 %v1232
        %v3712 = vpop.f32.mrb[0].mxu0
        %v3713 = vadd.f32 %v3440, %v3712
        %v3714 = vpop.f32.mrb[0].mxu0
        %v3715 = vadd.f32 %v3442, %v3714
        %v3716 = vpop.f32.mrb[0].mxu0
        %v3717 = vadd.f32 %v3444, %v3716
        %v3718 = vpop.f32.mrb[0].mxu0
        %v3719 = vadd.f32 %v3446, %v3718
        %3720 = vmatprep.mubr.bf16.mxu0 %v1239
        %3721 = vmatmul.mubr.bf16.gmra.mrb[0].mxu0 %v1238
        %v3722 = vpop.f32.mrb[0].mxu0
        %v3723 = vadd.f32 %v3450, %v3722
        %v3724 = vpop.f32.mrb[0].mxu0
        %v3725 = vadd.f32 %v3452, %v3724
        %v3726 = vpop.f32.mrb[0].mxu0
        %v3727 = vadd.f32 %v3454, %v3726
        %v3728 = vpop.f32.mrb[0].mxu0
        %v3729 = vadd.f32 %v3456, %v3728
        %3730 = vmatprep.mubr.bf16.mxu0 %v1245
        %3731 = vmatmul.mubr.bf16.gmra.mrb[0].mxu0 %v1244
        %v3732 = vpop.f32.mrb[0].mxu0
        %v3733 = vadd.f32 %v3460, %v3732
        %v3734 = vpop.f32.mrb[0].mxu0
        %v3735 = vadd.f32 %v3462, %v3734
        %v3736 = vpop.f32.mrb[0].mxu0
        %v3737 = vadd.f32 %v3464, %v3736
        %v3738 = vpop.f32.mrb[0].mxu0
        %v3739 = vadd.f32 %v3466, %v3738
        %3740 = vmatprep.mubr.bf16.mxu0 %v1251
        %3741 = vmatmul.mubr.bf16.gmra.mrb[0].mxu0 %v1250
        %v3742 = vpop.f32.mrb[0].mxu0
        %v3743 = vadd.f32 %v3470, %v3742
        %v3744 = vpop.f32.mrb[0].mxu0
        %v3745 = vadd.f32 %v3472, %v3744
        %v3746 = vpop.f32.mrb[0].mxu0
        %v3747 = vadd.f32 %v3474, %v3746
        %v3748 = vpop.f32.mrb[0].mxu0
        %v3749 = vadd.f32 %v3476, %v3748
        %3750 = vmatprep.mubr.bf16.mxu0 %v1257
        %3751 = vmatmul.mubr.bf16.gmra.mrb[0].mxu0 %v1256
        %v3752 = vpop.f32.mrb[0].mxu0
        %v3753 = vadd.f32 %v3480, %v3752
        %v3754 = vpop.f32.mrb[0].mxu0
        %v3755 = vadd.f32 %v3482, %v3754
        %v3756 = vpop.f32.mrb[0].mxu0
        %v3757 = vadd.f32 %v3484, %v3756
        %v3758 = vpop.f32.mrb[0].mxu0
        %v3759 = vadd.f32 %v3486, %v3758
        %3760 = vmatprep.mubr.bf16.mxu0 %v1263
        %3761 = vmatmul.mubr.bf16.gmra.mrb[0].mxu0 %v1262
        %v3762 = vpop.f32.mrb[0].mxu0
        %v3763 = vadd.f32 %v3490, %v3762
        %v3764 = vpop.f32.mrb[0].mxu0
        %v3765 = vadd.f32 %v3492, %v3764
        %v3766 = vpop.f32.mrb[0].mxu0
        %v3767 = vadd.f32 %v3494, %v3766
        %v3768 = vpop.f32.mrb[0].mxu0
        %v3769 = vadd.f32 %v3496, %v3768
        %3770 = vmatprep.mubr.bf16.mxu0 %v1269
        %3771 = vmatmul.mubr.bf16.gmra.mrb[0].mxu0 %v1268
        %v3772 = vpop.f32.mrb[0].mxu0
        %v3773 = vadd.f32 %v3500, %v3772
        %v3774 = vpop.f32.mrb[0].mxu0
        %v3775 = vadd.f32 %v3502, %v3774
        %v3776 = vpop.f32.mrb[0].mxu0
        %v3777 = vadd.f32 %v3504, %v3776
        %v3778 = vpop.f32.mrb[0].mxu0
        %v3779 = vadd.f32 %v3506, %v3778
        %3780 = vmatprep.mubr.bf16.mxu0 %v1275
        %3781 = vmatmul.mubr.bf16.gmra.mrb[0].mxu0 %v1274
        %v3782 = vpop.f32.mrb[0].mxu0
        %v3783 = vadd.f32 %v3510, %v3782
        %v3784 = vpop.f32.mrb[0].mxu0
        %v3785 = vadd.f32 %v3512, %v3784
        %v3786 = vpop.f32.mrb[0].mxu0
        %v3787 = vadd.f32 %v3514, %v3786
        %v3788 = vpop.f32.mrb[0].mxu0
        %v3789 = vadd.f32 %v3516, %v3788
        %3790 = vmatprep.mubr.bf16.mxu0 %v1281
        %3791 = vmatmul.mubr.bf16.gmra.mrb[0].mxu0 %v1280
        %v3792 = vpop.f32.mrb[0].mxu0
        %v3793 = vadd.f32 %v3520, %v3792
        %v3794 = vpop.f32.mrb[0].mxu0
        %v3795 = vadd.f32 %v3522, %v3794
        %v3796 = vpop.f32.mrb[0].mxu0
        %v3797 = vadd.f32 %v3524, %v3796
        %v3798 = vpop.f32.mrb[0].mxu0
        %v3799 = vadd.f32 %v3526, %v3798
        %3800 = vmatprep.mubr.bf16.mxu0 %v1287
        %3801 = vmatmul.mubr.bf16.gmra.mrb[0].mxu0 %v1286
        %v3802 = vpop.f32.mrb[0].mxu0
        %v3803 = vadd.f32 %v3530, %v3802
        %v3804 = vpop.f32.mrb[0].mxu0
        %v3805 = vadd.f32 %v3532, %v3804
        %v3806 = vpop.f32.mrb[0].mxu0
        %v3807 = vadd.f32 %v3534, %v3806
        %v3808 = vpop.f32.mrb[0].mxu0
        %v3809 = vadd.f32 %v3536, %v3808
        %3810 = vmatprep.mubr.bf16.mxu0 %v1293
        %3811 = vmatmul.mubr.bf16.gmra.mrb[0].mxu0 %v1292
        %v3812 = vpop.f32.mrb[0].mxu0
        %v3813 = vadd.f32 %v3540, %v3812
        %v3814 = vpop.f32.mrb[0].mxu0
        %v3815 = vadd.f32 %v3542, %v3814
        %v3816 = vpop.f32.mrb[0].mxu0
        %v3817 = vadd.f32 %v3544, %v3816
        %v3818 = vpop.f32.mrb[0].mxu0
        %v3819 = vadd.f32 %v3546, %v3818
        %3820 = vmatprep.mubr.bf16.mxu0 %v1299
        %3821 = vmatmul.mubr.bf16.gmra.mrb[0].mxu0 %v1298
        %v3822 = vpop.f32.mrb[0].mxu0
        %v3823 = vadd.f32 %v3550, %v3822
        %v3824 = vpop.f32.mrb[0].mxu0
        %v3825 = vadd.f32 %v3552, %v3824
        %v3826 = vpop.f32.mrb[0].mxu0
        %v3827 = vadd.f32 %v3554, %v3826
        %v3828 = vpop.f32.mrb[0].mxu0
        %v3829 = vadd.f32 %v3556, %v3828
        %3830 = vmatprep.mubr.bf16.mxu0 %v1305
        %3831 = vmatmul.mubr.bf16.gmra.mrb[0].mxu0 %v1304
        %v3832 = vpop.f32.mrb[0].mxu0
        %v3833 = vadd.f32 %v3560, %v3832
        %v3834 = vpop.f32.mrb[0].mxu0
        %v3835 = vadd.f32 %v3562, %v3834
        %v3836 = vpop.f32.mrb[0].mxu0
        %v3837 = vadd.f32 %v3564, %v3836
        %v3838 = vpop.f32.mrb[0].mxu0
        %v3839 = vadd.f32 %v3566, %v3838
        %3840 = vmatprep.mubr.bf16.mxu0 %v1311
        %3841 = vmatmul.mubr.bf16.gmra.mrb[0].mxu0 %v1310
        %v3842 = vpop.f32.mrb[0].mxu0
        %v3843 = vadd.f32 %v3570, %v3842
        %v3844 = vpop.f32.mrb[0].mxu0
        %v3845 = vadd.f32 %v3572, %v3844
        %v3846 = vpop.f32.mrb[0].mxu0
        %v3847 = vadd.f32 %v3574, %v3846
        %v3848 = vpop.f32.mrb[0].mxu0
        %v3849 = vadd.f32 %v3576, %v3848
        %3850 = vmatprep.mubr.bf16.mxu0 %v1317
        %3851 = vmatmul.mubr.bf16.gmra.mrb[0].mxu0 %v1316
        %v3852 = vpop.f32.mrb[0].mxu0
        %v3853 = vadd.f32 %v3580, %v3852
        %v3854 = vpop.f32.mrb[0].mxu0
        %v3855 = vadd.f32 %v3582, %v3854
        %v3856 = vpop.f32.mrb[0].mxu0
        %v3857 = vadd.f32 %v3584, %v3856
        %v3858 = vpop.f32.mrb[0].mxu0
        %v3859 = vadd.f32 %v3586, %v3858
        %3860 = vmatprep.mubr.bf16.mxu0 %v1323
        %3861 = vmatmul.mubr.bf16.gmra.mrb[0].mxu0 %v1322
        %v3862 = vpop.f32.mrb[0].mxu0
        %v3863 = vadd.f32 %v3590, %v3862
        %v3864 = vpop.f32.mrb[0].mxu0
        %v3865 = vadd.f32 %v3592, %v3864
        %v3866 = vpop.f32.mrb[0].mxu0
        %v3867 = vadd.f32 %v3594, %v3866
        %v3868 = vpop.f32.mrb[0].mxu0
        %v3869 = vadd.f32 %v3596, %v3868
        %3870 = vdwg.mxu0
        %3871 = vmatprep.subr.bf16.mxu0 %v2479
        %3872 = vmatpush1.bf16.msra.mxu0 %v2478
        %3873 = vmatprep.subr.bf16.mxu0 %v2485
        %3874 = vmatpush1.bf16.msra.mxu0 %v2484
        %3875 = vmatprep.subr.bf16.mxu0 %v2491
        %3876 = vmatpush1.bf16.msra.mxu0 %v2490
        %3877 = vmatprep.subr.bf16.mxu0 %v2497
        %3878 = vmatpush1.bf16.msra.mxu0 %v2496
        %3879 = vmatprep.subr.bf16.mxu0 %v2503
        %3880 = vmatpush1.bf16.msra.mxu0 %v2502
        %3881 = vmatprep.subr.bf16.mxu0 %v2509
        %3882 = vmatpush1.bf16.msra.mxu0 %v2508
        %3883 = vmatprep.subr.bf16.mxu0 %v2515
        %3884 = vmatpush1.bf16.msra.mxu0 %v2514
        %3885 = vmatprep.subr.bf16.mxu0 %v2521
        %3886 = vmatpush1.bf16.msra.mxu0 %v2520
        %3887 = vmatprep.subr.bf16.mxu0 %v2527
        %3888 = vmatpush1.bf16.msra.mxu0 %v2526
        %3889 = vmatprep.subr.bf16.mxu0 %v2533
        %3890 = vmatpush1.bf16.msra.mxu0 %v2532
        %3891 = vmatprep.subr.bf16.mxu0 %v2539
        %3892 = vmatpush1.bf16.msra.mxu0 %v2538
        %3893 = vmatprep.subr.bf16.mxu0 %v2545
        %3894 = vmatpush1.bf16.msra.mxu0 %v2544
        %3895 = vmatprep.subr.bf16.mxu0 %v2551
        %3896 = vmatpush1.bf16.msra.mxu0 %v2550
        %3897 = vmatprep.subr.bf16.mxu0 %v2557
        %3898 = vmatpush1.bf16.msra.mxu0 %v2556
        %3899 = vmatprep.subr.bf16.mxu0 %v2563
        %3900 = vmatpush1.bf16.msra.mxu0 %v2562
        %3901 = vmatprep.subr.bf16.mxu0 %v2569
        %3902 = vmatpush1.bf16.msra.mxu0 %v2568
        %3903 = vmatprep.mubr.bf16.mxu0 %v1181
        %3904 = vmatmul.mubr.bf16.gmra.mrb[0].mxu0 %v1180
        %v3905 = vpop.f32.mrb[0].mxu0
        %v3906 = vadd.f32 0.0, %v3905
        %v3907 = vpop.f32.mrb[0].mxu0
        %v3908 = vadd.f32 0.0, %v3907
        %v3909 = vpop.f32.mrb[0].mxu0
        %v3910 = vadd.f32 0.0, %v3909
        %v3911 = vpop.f32.mrb[0].mxu0
        %v3912 = vadd.f32 0.0, %v3911
        %3913 = vmatprep.mubr.bf16.mxu0 %v1187
        %3914 = vmatmul.mubr.bf16.gmra.mrb[0].mxu0 %v1186
        %v3915 = vpop.f32.mrb[0].mxu0
        %v3916 = vadd.f32 0.0, %v3915
        %v3917 = vpop.f32.mrb[0].mxu0
        %v3918 = vadd.f32 0.0, %v3917
        %v3919 = vpop.f32.mrb[0].mxu0
        %v3920 = vadd.f32 0.0, %v3919
        %v3921 = vpop.f32.mrb[0].mxu0
        %v3922 = vadd.f32 0.0, %v3921
        %3923 = vmatprep.mubr.bf16.mxu0 %v1193
        %3924 = vmatmul.mubr.bf16.gmra.mrb[0].mxu0 %v1192
        %v3925 = vpop.f32.mrb[0].mxu0
        %v3926 = vadd.f32 0.0, %v3925
        %v3927 = vpop.f32.mrb[0].mxu0
        %v3928 = vadd.f32 0.0, %v3927
        %v3929 = vpop.f32.mrb[0].mxu0
        %v3930 = vadd.f32 0.0, %v3929
        %v3931 = vpop.f32.mrb[0].mxu0
        %v3932 = vadd.f32 0.0, %v3931
        %3933 = vmatprep.mubr.bf16.mxu0 %v1199
        %3934 = vmatmul.mubr.bf16.gmra.mrb[0].mxu0 %v1198
        %v3935 = vpop.f32.mrb[0].mxu0
        %v3936 = vadd.f32 0.0, %v3935
        %v3937 = vpop.f32.mrb[0].mxu0
        %v3938 = vadd.f32 0.0, %v3937
        %v3939 = vpop.f32.mrb[0].mxu0
        %v3940 = vadd.f32 0.0, %v3939
        %v3941 = vpop.f32.mrb[0].mxu0
        %v3942 = vadd.f32 0.0, %v3941
        %3943 = vmatprep.mubr.bf16.mxu0 %v1205
        %3944 = vmatmul.mubr.bf16.gmra.mrb[0].mxu0 %v1204
        %v3945 = vpop.f32.mrb[0].mxu0
        %v3946 = vadd.f32 0.0, %v3945
        %v3947 = vpop.f32.mrb[0].mxu0
        %v3948 = vadd.f32 0.0, %v3947
        %v3949 = vpop.f32.mrb[0].mxu0
        %v3950 = vadd.f32 0.0, %v3949
        %v3951 = vpop.f32.mrb[0].mxu0
        %v3952 = vadd.f32 0.0, %v3951
        %3953 = vmatprep.mubr.bf16.mxu0 %v1211
        %3954 = vmatmul.mubr.bf16.gmra.mrb[0].mxu0 %v1210
        %v3955 = vpop.f32.mrb[0].mxu0
        %v3956 = vadd.f32 0.0, %v3955
        %v3957 = vpop.f32.mrb[0].mxu0
        %v3958 = vadd.f32 0.0, %v3957
        %v3959 = vpop.f32.mrb[0].mxu0
        %v3960 = vadd.f32 0.0, %v3959
        %v3961 = vpop.f32.mrb[0].mxu0
        %v3962 = vadd.f32 0.0, %v3961
        %3963 = vmatprep.mubr.bf16.mxu0 %v1217
        %3964 = vmatmul.mubr.bf16.gmra.mrb[0].mxu0 %v1216
        %v3965 = vpop.f32.mrb[0].mxu0
        %v3966 = vadd.f32 0.0, %v3965
        %v3967 = vpop.f32.mrb[0].mxu0
        %v3968 = vadd.f32 0.0, %v3967
        %v3969 = vpop.f32.mrb[0].mxu0
        %v3970 = vadd.f32 0.0, %v3969
        %v3971 = vpop.f32.mrb[0].mxu0
        %v3972 = vadd.f32 0.0, %v3971
        %3973 = vmatprep.mubr.bf16.mxu0 %v1223
        %3974 = vmatmul.mubr.bf16.gmra.mrb[0].mxu0 %v1222
        %v3975 = vpop.f32.mrb[0].mxu0
        %v3976 = vadd.f32 0.0, %v3975
        %v3977 = vpop.f32.mrb[0].mxu0
        %v3978 = vadd.f32 0.0, %v3977
        %v3979 = vpop.f32.mrb[0].mxu0
        %v3980 = vadd.f32 0.0, %v3979
        %v3981 = vpop.f32.mrb[0].mxu0
        %v3982 = vadd.f32 0.0, %v3981
        %3983 = vmatprep.mubr.bf16.mxu0 %v1229
        %3984 = vmatmul.mubr.bf16.gmra.mrb[0].mxu0 %v1228
        %v3985 = vpop.f32.mrb[0].mxu0
        %v3986 = vadd.f32 0.0, %v3985
        %v3987 = vpop.f32.mrb[0].mxu0
        %v3988 = vadd.f32 0.0, %v3987
        %v3989 = vpop.f32.mrb[0].mxu0
        %v3990 = vadd.f32 0.0, %v3989
        %v3991 = vpop.f32.mrb[0].mxu0
        %v3992 = vadd.f32 0.0, %v3991
        %3993 = vmatprep.mubr.bf16.mxu0 %v1235
        %3994 = vmatmul.mubr.bf16.gmra.mrb[0].mxu0 %v1234
        %v3995 = vpop.f32.mrb[0].mxu0
        %v3996 = vadd.f32 0.0, %v3995
        %v3997 = vpop.f32.mrb[0].mxu0
        %v3998 = vadd.f32 0.0, %v3997
        %v3999 = vpop.f32.mrb[0].mxu0
        %v4000 = vadd.f32 0.0, %v3999
        %v4001 = vpop.f32.mrb[0].mxu0
        %v4002 = vadd.f32 0.0, %v4001
        %4003 = vmatprep.mubr.bf16.mxu0 %v1241
        %4004 = vmatmul.mubr.bf16.gmra.mrb[0].mxu0 %v1240
        %v4005 = vpop.f32.mrb[0].mxu0
        %v4006 = vadd.f32 0.0, %v4005
        %v4007 = vpop.f32.mrb[0].mxu0
        %v4008 = vadd.f32 0.0, %v4007
        %v4009 = vpop.f32.mrb[0].mxu0
        %v4010 = vadd.f32 0.0, %v4009
        %v4011 = vpop.f32.mrb[0].mxu0
        %v4012 = vadd.f32 0.0, %v4011
        %4013 = vmatprep.mubr.bf16.mxu0 %v1247
        %4014 = vmatmul.mubr.bf16.gmra.mrb[0].mxu0 %v1246
        %v4015 = vpop.f32.mrb[0].mxu0
        %v4016 = vadd.f32 0.0, %v4015
        %v4017 = vpop.f32.mrb[0].mxu0
        %v4018 = vadd.f32 0.0, %v4017
        %v4019 = vpop.f32.mrb[0].mxu0
        %v4020 = vadd.f32 0.0, %v4019
        %v4021 = vpop.f32.mrb[0].mxu0
        %v4022 = vadd.f32 0.0, %v4021
        %4023 = vmatprep.mubr.bf16.mxu0 %v1253
        %4024 = vmatmul.mubr.bf16.gmra.mrb[0].mxu0 %v1252
        %v4025 = vpop.f32.mrb[0].mxu0
        %v4026 = vadd.f32 0.0, %v4025
        %v4027 = vpop.f32.mrb[0].mxu0
        %v4028 = vadd.f32 0.0, %v4027
        %v4029 = vpop.f32.mrb[0].mxu0
        %v4030 = vadd.f32 0.0, %v4029
        %v4031 = vpop.f32.mrb[0].mxu0
        %v4032 = vadd.f32 0.0, %v4031
        %4033 = vmatprep.mubr.bf16.mxu0 %v1259
        %4034 = vmatmul.mubr.bf16.gmra.mrb[0].mxu0 %v1258
        %v4035 = vpop.f32.mrb[0].mxu0
        %v4036 = vadd.f32 0.0, %v4035
        %v4037 = vpop.f32.mrb[0].mxu0
        %v4038 = vadd.f32 0.0, %v4037
        %v4039 = vpop.f32.mrb[0].mxu0
        %v4040 = vadd.f32 0.0, %v4039
        %v4041 = vpop.f32.mrb[0].mxu0
        %v4042 = vadd.f32 0.0, %v4041
        %4043 = vmatprep.mubr.bf16.mxu0 %v1265
        %4044 = vmatmul.mubr.bf16.gmra.mrb[0].mxu0 %v1264
        %v4045 = vpop.f32.mrb[0].mxu0
        %v4046 = vadd.f32 0.0, %v4045
        %v4047 = vpop.f32.mrb[0].mxu0
        %v4048 = vadd.f32 0.0, %v4047
        %v4049 = vpop.f32.mrb[0].mxu0
        %v4050 = vadd.f32 0.0, %v4049
        %v4051 = vpop.f32.mrb[0].mxu0
        %v4052 = vadd.f32 0.0, %v4051
        %4053 = vmatprep.mubr.bf16.mxu0 %v1271
        %4054 = vmatmul.mubr.bf16.gmra.mrb[0].mxu0 %v1270
        %v4055 = vpop.f32.mrb[0].mxu0
        %v4056 = vadd.f32 0.0, %v4055
        %v4057 = vpop.f32.mrb[0].mxu0
        %v4058 = vadd.f32 0.0, %v4057
        %v4059 = vpop.f32.mrb[0].mxu0
        %v4060 = vadd.f32 0.0, %v4059
        %v4061 = vpop.f32.mrb[0].mxu0
        %v4062 = vadd.f32 0.0, %v4061
        %4063 = vmatprep.mubr.bf16.mxu0 %v1277
        %4064 = vmatmul.mubr.bf16.gmra.mrb[0].mxu0 %v1276
        %v4065 = vpop.f32.mrb[0].mxu0
        %v4066 = vadd.f32 0.0, %v4065
        %v4067 = vpop.f32.mrb[0].mxu0
        %v4068 = vadd.f32 0.0, %v4067
        %v4069 = vpop.f32.mrb[0].mxu0
        %v4070 = vadd.f32 0.0, %v4069
        %v4071 = vpop.f32.mrb[0].mxu0
        %v4072 = vadd.f32 0.0, %v4071
        %4073 = vmatprep.mubr.bf16.mxu0 %v1283
        %4074 = vmatmul.mubr.bf16.gmra.mrb[0].mxu0 %v1282
        %v4075 = vpop.f32.mrb[0].mxu0
        %v4076 = vadd.f32 0.0, %v4075
        %v4077 = vpop.f32.mrb[0].mxu0
        %v4078 = vadd.f32 0.0, %v4077
        %v4079 = vpop.f32.mrb[0].mxu0
        %v4080 = vadd.f32 0.0, %v4079
        %v4081 = vpop.f32.mrb[0].mxu0
        %v4082 = vadd.f32 0.0, %v4081
        %4083 = vmatprep.mubr.bf16.mxu0 %v1289
        %4084 = vmatmul.mubr.bf16.gmra.mrb[0].mxu0 %v1288
        %v4085 = vpop.f32.mrb[0].mxu0
        %v4086 = vadd.f32 0.0, %v4085
        %v4087 = vpop.f32.mrb[0].mxu0
        %v4088 = vadd.f32 0.0, %v4087
        %v4089 = vpop.f32.mrb[0].mxu0
        %v4090 = vadd.f32 0.0, %v4089
        %v4091 = vpop.f32.mrb[0].mxu0
        %v4092 = vadd.f32 0.0, %v4091
        %4093 = vmatprep.mubr.bf16.mxu0 %v1295
        %4094 = vmatmul.mubr.bf16.gmra.mrb[0].mxu0 %v1294
        %v4095 = vpop.f32.mrb[0].mxu0
        %v4096 = vadd.f32 0.0, %v4095
        %v4097 = vpop.f32.mrb[0].mxu0
        %v4098 = vadd.f32 0.0, %v4097
        %v4099 = vpop.f32.mrb[0].mxu0
        %v4100 = vadd.f32 0.0, %v4099
        %v4101 = vpop.f32.mrb[0].mxu0
        %v4102 = vadd.f32 0.0, %v4101
        %4103 = vmatprep.mubr.bf16.mxu0 %v1301
        %4104 = vmatmul.mubr.bf16.gmra.mrb[0].mxu0 %v1300
        %v4105 = vpop.f32.mrb[0].mxu0
        %v4106 = vadd.f32 0.0, %v4105
        %v4107 = vpop.f32.mrb[0].mxu0
        %v4108 = vadd.f32 0.0, %v4107
        %v4109 = vpop.f32.mrb[0].mxu0
        %v4110 = vadd.f32 0.0, %v4109
        %v4111 = vpop.f32.mrb[0].mxu0
        %v4112 = vadd.f32 0.0, %v4111
        %4113 = vmatprep.mubr.bf16.mxu0 %v1307
        %4114 = vmatmul.mubr.bf16.gmra.mrb[0].mxu0 %v1306
        %v4115 = vpop.f32.mrb[0].mxu0
        %v4116 = vadd.f32 0.0, %v4115
        %v4117 = vpop.f32.mrb[0].mxu0
        %v4118 = vadd.f32 0.0, %v4117
        %v4119 = vpop.f32.mrb[0].mxu0
        %v4120 = vadd.f32 0.0, %v4119
        %v4121 = vpop.f32.mrb[0].mxu0
        %v4122 = vadd.f32 0.0, %v4121
        %4123 = vmatprep.mubr.bf16.mxu0 %v1313
        %4124 = vmatmul.mubr.bf16.gmra.mrb[0].mxu0 %v1312
        %v4125 = vpop.f32.mrb[0].mxu0
        %v4126 = vadd.f32 0.0, %v4125
        %v4127 = vpop.f32.mrb[0].mxu0
        %v4128 = vadd.f32 0.0, %v4127
        %v4129 = vpop.f32.mrb[0].mxu0
        %v4130 = vadd.f32 0.0, %v4129
        %v4131 = vpop.f32.mrb[0].mxu0
        %v4132 = vadd.f32 0.0, %v4131
        %4133 = vmatprep.mubr.bf16.mxu0 %v1319
        %4134 = vmatmul.mubr.bf16.gmra.mrb[0].mxu0 %v1318
        %v4135 = vpop.f32.mrb[0].mxu0
        %v4136 = vadd.f32 0.0, %v4135
        %v4137 = vpop.f32.mrb[0].mxu0
        %v4138 = vadd.f32 0.0, %v4137
        %v4139 = vpop.f32.mrb[0].mxu0
        %v4140 = vadd.f32 0.0, %v4139
        %v4141 = vpop.f32.mrb[0].mxu0
        %v4142 = vadd.f32 0.0, %v4141
        %4143 = vdwg.mxu0
        %4144 = vmatprep.subr.bf16.mxu0 %v2575
        %4145 = vmatpush1.bf16.msra.mxu0 %v2574
        %4146 = vmatprep.subr.bf16.mxu0 %v2581
        %4147 = vmatpush1.bf16.msra.mxu0 %v2580
        %4148 = vmatprep.subr.bf16.mxu0 %v2587
        %4149 = vmatpush1.bf16.msra.mxu0 %v2586
        %4150 = vmatprep.subr.bf16.mxu0 %v2593
        %4151 = vmatpush1.bf16.msra.mxu0 %v2592
        %4152 = vmatprep.subr.bf16.mxu0 %v2599
        %4153 = vmatpush1.bf16.msra.mxu0 %v2598
        %4154 = vmatprep.subr.bf16.mxu0 %v2605
        %4155 = vmatpush1.bf16.msra.mxu0 %v2604
        %4156 = vmatprep.subr.bf16.mxu0 %v2611
        %4157 = vmatpush1.bf16.msra.mxu0 %v2610
        %4158 = vmatprep.subr.bf16.mxu0 %v2617
        %4159 = vmatpush1.bf16.msra.mxu0 %v2616
        %4160 = vmatprep.subr.bf16.mxu0 %v2623
        %4161 = vmatpush1.bf16.msra.mxu0 %v2622
        %4162 = vmatprep.subr.bf16.mxu0 %v2629
        %4163 = vmatpush1.bf16.msra.mxu0 %v2628
        %4164 = vmatprep.subr.bf16.mxu0 %v2635
        %4165 = vmatpush1.bf16.msra.mxu0 %v2634
        %4166 = vmatprep.subr.bf16.mxu0 %v2641
        %4167 = vmatpush1.bf16.msra.mxu0 %v2640
        %4168 = vmatprep.subr.bf16.mxu0 %v2647
        %4169 = vmatpush1.bf16.msra.mxu0 %v2646
        %4170 = vmatprep.subr.bf16.mxu0 %v2653
        %4171 = vmatpush1.bf16.msra.mxu0 %v2652
        %4172 = vmatprep.subr.bf16.mxu0 %v2659
        %4173 = vmatpush1.bf16.msra.mxu0 %v2658
        %4174 = vmatprep.subr.bf16.mxu0 %v2665
        %4175 = vmatpush1.bf16.msra.mxu0 %v2664
        %4176 = vmatprep.mubr.bf16.mxu0 %v1183
        %4177 = vmatmul.mubr.bf16.gmra.mrb[0].mxu0 %v1182
        %v4178 = vpop.f32.mrb[0].mxu0
        %v4179 = vadd.f32 %v3906, %v4178
        %v4180 = vpop.f32.mrb[0].mxu0
        %v4181 = vadd.f32 %v3908, %v4180
        %v4182 = vpop.f32.mrb[0].mxu0
        %v4183 = vadd.f32 %v3910, %v4182
        %v4184 = vpop.f32.mrb[0].mxu0
        %v4185 = vadd.f32 %v3912, %v4184
        %4186 = vmatprep.mubr.bf16.mxu0 %v1189
        %4187 = vmatmul.mubr.bf16.gmra.mrb[0].mxu0 %v1188
        %v4188 = vpop.f32.mrb[0].mxu0
        %v4189 = vadd.f32 %v3916, %v4188
        %v4190 = vpop.f32.mrb[0].mxu0
        %v4191 = vadd.f32 %v3918, %v4190
        %v4192 = vpop.f32.mrb[0].mxu0
        %v4193 = vadd.f32 %v3920, %v4192
        %v4194 = vpop.f32.mrb[0].mxu0
        %v4195 = vadd.f32 %v3922, %v4194
        %4196 = vmatprep.mubr.bf16.mxu0 %v1195
        %4197 = vmatmul.mubr.bf16.gmra.mrb[0].mxu0 %v1194
        %v4198 = vpop.f32.mrb[0].mxu0
        %v4199 = vadd.f32 %v3926, %v4198
        %v4200 = vpop.f32.mrb[0].mxu0
        %v4201 = vadd.f32 %v3928, %v4200
        %v4202 = vpop.f32.mrb[0].mxu0
        %v4203 = vadd.f32 %v3930, %v4202
        %v4204 = vpop.f32.mrb[0].mxu0
        %v4205 = vadd.f32 %v3932, %v4204
        %4206 = vmatprep.mubr.bf16.mxu0 %v1201
        %4207 = vmatmul.mubr.bf16.gmra.mrb[0].mxu0 %v1200
        %v4208 = vpop.f32.mrb[0].mxu0
        %v4209 = vadd.f32 %v3936, %v4208
        %v4210 = vpop.f32.mrb[0].mxu0
        %v4211 = vadd.f32 %v3938, %v4210
        %v4212 = vpop.f32.mrb[0].mxu0
        %v4213 = vadd.f32 %v3940, %v4212
        %v4214 = vpop.f32.mrb[0].mxu0
        %v4215 = vadd.f32 %v3942, %v4214
        %4216 = vmatprep.mubr.bf16.mxu0 %v1207
        %4217 = vmatmul.mubr.bf16.gmra.mrb[0].mxu0 %v1206
        %v4218 = vpop.f32.mrb[0].mxu0
        %v4219 = vadd.f32 %v3946, %v4218
        %v4220 = vpop.f32.mrb[0].mxu0
        %v4221 = vadd.f32 %v3948, %v4220
        %v4222 = vpop.f32.mrb[0].mxu0
        %v4223 = vadd.f32 %v3950, %v4222
        %v4224 = vpop.f32.mrb[0].mxu0
        %v4225 = vadd.f32 %v3952, %v4224
        %4226 = vmatprep.mubr.bf16.mxu0 %v1213
        %4227 = vmatmul.mubr.bf16.gmra.mrb[0].mxu0 %v1212
        %v4228 = vpop.f32.mrb[0].mxu0
        %v4229 = vadd.f32 %v3956, %v4228
        %v4230 = vpop.f32.mrb[0].mxu0
        %v4231 = vadd.f32 %v3958, %v4230
        %v4232 = vpop.f32.mrb[0].mxu0
        %v4233 = vadd.f32 %v3960, %v4232
        %v4234 = vpop.f32.mrb[0].mxu0
        %v4235 = vadd.f32 %v3962, %v4234
        %4236 = vmatprep.mubr.bf16.mxu0 %v1219
        %4237 = vmatmul.mubr.bf16.gmra.mrb[0].mxu0 %v1218
        %v4238 = vpop.f32.mrb[0].mxu0
        %v4239 = vadd.f32 %v3966, %v4238
        %v4240 = vpop.f32.mrb[0].mxu0
        %v4241 = vadd.f32 %v3968, %v4240
        %v4242 = vpop.f32.mrb[0].mxu0
        %v4243 = vadd.f32 %v3970, %v4242
        %v4244 = vpop.f32.mrb[0].mxu0
        %v4245 = vadd.f32 %v3972, %v4244
        %4246 = vmatprep.mubr.bf16.mxu0 %v1225
        %4247 = vmatmul.mubr.bf16.gmra.mrb[0].mxu0 %v1224
        %v4248 = vpop.f32.mrb[0].mxu0
        %v4249 = vadd.f32 %v3976, %v4248
        %v4250 = vpop.f32.mrb[0].mxu0
        %v4251 = vadd.f32 %v3978, %v4250
        %v4252 = vpop.f32.mrb[0].mxu0
        %v4253 = vadd.f32 %v3980, %v4252
        %v4254 = vpop.f32.mrb[0].mxu0
        %v4255 = vadd.f32 %v3982, %v4254
        %4256 = vmatprep.mubr.bf16.mxu0 %v1231
        %4257 = vmatmul.mubr.bf16.gmra.mrb[0].mxu0 %v1230
        %v4258 = vpop.f32.mrb[0].mxu0
        %v4259 = vadd.f32 %v3986, %v4258
        %v4260 = vpop.f32.mrb[0].mxu0
        %v4261 = vadd.f32 %v3988, %v4260
        %v4262 = vpop.f32.mrb[0].mxu0
        %v4263 = vadd.f32 %v3990, %v4262
        %v4264 = vpop.f32.mrb[0].mxu0
        %v4265 = vadd.f32 %v3992, %v4264
        %4266 = vmatprep.mubr.bf16.mxu0 %v1237
        %4267 = vmatmul.mubr.bf16.gmra.mrb[0].mxu0 %v1236
        %v4268 = vpop.f32.mrb[0].mxu0
        %v4269 = vadd.f32 %v3996, %v4268
        %v4270 = vpop.f32.mrb[0].mxu0
        %v4271 = vadd.f32 %v3998, %v4270
        %v4272 = vpop.f32.mrb[0].mxu0
        %v4273 = vadd.f32 %v4000, %v4272
        %v4274 = vpop.f32.mrb[0].mxu0
        %v4275 = vadd.f32 %v4002, %v4274
        %4276 = vmatprep.mubr.bf16.mxu0 %v1243
        %4277 = vmatmul.mubr.bf16.gmra.mrb[0].mxu0 %v1242
        %v4278 = vpop.f32.mrb[0].mxu0
        %v4279 = vadd.f32 %v4006, %v4278
        %v4280 = vpop.f32.mrb[0].mxu0
        %v4281 = vadd.f32 %v4008, %v4280
        %v4282 = vpop.f32.mrb[0].mxu0
        %v4283 = vadd.f32 %v4010, %v4282
        %v4284 = vpop.f32.mrb[0].mxu0
        %v4285 = vadd.f32 %v4012, %v4284
        %4286 = vmatprep.mubr.bf16.mxu0 %v1249
        %4287 = vmatmul.mubr.bf16.gmra.mrb[0].mxu0 %v1248
        %v4288 = vpop.f32.mrb[0].mxu0
        %v4289 = vadd.f32 %v4016, %v4288
        %v4290 = vpop.f32.mrb[0].mxu0
        %v4291 = vadd.f32 %v4018, %v4290
        %v4292 = vpop.f32.mrb[0].mxu0
        %v4293 = vadd.f32 %v4020, %v4292
        %v4294 = vpop.f32.mrb[0].mxu0
        %v4295 = vadd.f32 %v4022, %v4294
        %4296 = vmatprep.mubr.bf16.mxu0 %v1255
        %4297 = vmatmul.mubr.bf16.gmra.mrb[0].mxu0 %v1254
        %v4298 = vpop.f32.mrb[0].mxu0
        %v4299 = vadd.f32 %v4026, %v4298
        %v4300 = vpop.f32.mrb[0].mxu0
        %v4301 = vadd.f32 %v4028, %v4300
        %v4302 = vpop.f32.mrb[0].mxu0
        %v4303 = vadd.f32 %v4030, %v4302
        %v4304 = vpop.f32.mrb[0].mxu0
        %v4305 = vadd.f32 %v4032, %v4304
        %4306 = vmatprep.mubr.bf16.mxu0 %v1261
        %4307 = vmatmul.mubr.bf16.gmra.mrb[0].mxu0 %v1260
        %v4308 = vpop.f32.mrb[0].mxu0
        %v4309 = vadd.f32 %v4036, %v4308
        %v4310 = vpop.f32.mrb[0].mxu0
        %v4311 = vadd.f32 %v4038, %v4310
        %v4312 = vpop.f32.mrb[0].mxu0
        %v4313 = vadd.f32 %v4040, %v4312
        %v4314 = vpop.f32.mrb[0].mxu0
        %v4315 = vadd.f32 %v4042, %v4314
        %4316 = vmatprep.mubr.bf16.mxu0 %v1267
        %4317 = vmatmul.mubr.bf16.gmra.mrb[0].mxu0 %v1266
        %v4318 = vpop.f32.mrb[0].mxu0
        %v4319 = vadd.f32 %v4046, %v4318
        %v4320 = vpop.f32.mrb[0].mxu0
        %v4321 = vadd.f32 %v4048, %v4320
        %v4322 = vpop.f32.mrb[0].mxu0
        %v4323 = vadd.f32 %v4050, %v4322
        %v4324 = vpop.f32.mrb[0].mxu0
        %v4325 = vadd.f32 %v4052, %v4324
        %4326 = vmatprep.mubr.bf16.mxu0 %v1273
        %4327 = vmatmul.mubr.bf16.gmra.mrb[0].mxu0 %v1272
        %v4328 = vpop.f32.mrb[0].mxu0
        %v4329 = vadd.f32 %v4056, %v4328
        %v4330 = vpop.f32.mrb[0].mxu0
        %v4331 = vadd.f32 %v4058, %v4330
        %v4332 = vpop.f32.mrb[0].mxu0
        %v4333 = vadd.f32 %v4060, %v4332
        %v4334 = vpop.f32.mrb[0].mxu0
        %v4335 = vadd.f32 %v4062, %v4334
        %4336 = vmatprep.mubr.bf16.mxu0 %v1279
        %4337 = vmatmul.mubr.bf16.gmra.mrb[0].mxu0 %v1278
        %v4338 = vpop.f32.mrb[0].mxu0
        %v4339 = vadd.f32 %v4066, %v4338
        %v4340 = vpop.f32.mrb[0].mxu0
        %v4341 = vadd.f32 %v4068, %v4340
        %v4342 = vpop.f32.mrb[0].mxu0
        %v4343 = vadd.f32 %v4070, %v4342
        %v4344 = vpop.f32.mrb[0].mxu0
        %v4345 = vadd.f32 %v4072, %v4344
        %4346 = vmatprep.mubr.bf16.mxu0 %v1285
        %4347 = vmatmul.mubr.bf16.gmra.mrb[0].mxu0 %v1284
        %v4348 = vpop.f32.mrb[0].mxu0
        %v4349 = vadd.f32 %v4076, %v4348
        %v4350 = vpop.f32.mrb[0].mxu0
        %v4351 = vadd.f32 %v4078, %v4350
        %v4352 = vpop.f32.mrb[0].mxu0
        %v4353 = vadd.f32 %v4080, %v4352
        %v4354 = vpop.f32.mrb[0].mxu0
        %v4355 = vadd.f32 %v4082, %v4354
        %4356 = vmatprep.mubr.bf16.mxu0 %v1291
        %4357 = vmatmul.mubr.bf16.gmra.mrb[0].mxu0 %v1290
        %v4358 = vpop.f32.mrb[0].mxu0
        %v4359 = vadd.f32 %v4086, %v4358
        %v4360 = vpop.f32.mrb[0].mxu0
        %v4361 = vadd.f32 %v4088, %v4360
        %v4362 = vpop.f32.mrb[0].mxu0
        %v4363 = vadd.f32 %v4090, %v4362
        %v4364 = vpop.f32.mrb[0].mxu0
        %v4365 = vadd.f32 %v4092, %v4364
        %4366 = vmatprep.mubr.bf16.mxu0 %v1297
        %4367 = vmatmul.mubr.bf16.gmra.mrb[0].mxu0 %v1296
        %v4368 = vpop.f32.mrb[0].mxu0
        %v4369 = vadd.f32 %v4096, %v4368
        %v4370 = vpop.f32.mrb[0].mxu0
        %v4371 = vadd.f32 %v4098, %v4370
        %v4372 = vpop.f32.mrb[0].mxu0
        %v4373 = vadd.f32 %v4100, %v4372
        %v4374 = vpop.f32.mrb[0].mxu0
        %v4375 = vadd.f32 %v4102, %v4374
        %4376 = vmatprep.mubr.bf16.mxu0 %v1303
        %4377 = vmatmul.mubr.bf16.gmra.mrb[0].mxu0 %v1302
        %v4378 = vpop.f32.mrb[0].mxu0
        %v4379 = vadd.f32 %v4106, %v4378
        %v4380 = vpop.f32.mrb[0].mxu0
        %v4381 = vadd.f32 %v4108, %v4380
        %v4382 = vpop.f32.mrb[0].mxu0
        %v4383 = vadd.f32 %v4110, %v4382
        %v4384 = vpop.f32.mrb[0].mxu0
        %v4385 = vadd.f32 %v4112, %v4384
        %4386 = vmatprep.mubr.bf16.mxu0 %v1309
        %4387 = vmatmul.mubr.bf16.gmra.mrb[0].mxu0 %v1308
        %v4388 = vpop.f32.mrb[0].mxu0
        %v4389 = vadd.f32 %v4116, %v4388
        %v4390 = vpop.f32.mrb[0].mxu0
        %v4391 = vadd.f32 %v4118, %v4390
        %v4392 = vpop.f32.mrb[0].mxu0
        %v4393 = vadd.f32 %v4120, %v4392
        %v4394 = vpop.f32.mrb[0].mxu0
        %v4395 = vadd.f32 %v4122, %v4394
        %4396 = vmatprep.mubr.bf16.mxu0 %v1315
        %4397 = vmatmul.mubr.bf16.gmra.mrb[0].mxu0 %v1314
        %v4398 = vpop.f32.mrb[0].mxu0
        %v4399 = vadd.f32 %v4126, %v4398
        %v4400 = vpop.f32.mrb[0].mxu0
        %v4401 = vadd.f32 %v4128, %v4400
        %v4402 = vpop.f32.mrb[0].mxu0
        %v4403 = vadd.f32 %v4130, %v4402
        %v4404 = vpop.f32.mrb[0].mxu0
        %v4405 = vadd.f32 %v4132, %v4404
        %4406 = vmatprep.mubr.bf16.mxu0 %v1321
        %4407 = vmatmul.mubr.bf16.gmra.mrb[0].mxu0 %v1320
        %v4408 = vpop.f32.mrb[0].mxu0
        %v4409 = vadd.f32 %v4136, %v4408
        %v4410 = vpop.f32.mrb[0].mxu0
        %v4411 = vadd.f32 %v4138, %v4410
        %v4412 = vpop.f32.mrb[0].mxu0
        %v4413 = vadd.f32 %v4140, %v4412
        %v4414 = vpop.f32.mrb[0].mxu0
        %v4415 = vadd.f32 %v4142, %v4414
        %4416 = vdwg.mxu0
        %4417 = vmatprep.subr.bf16.mxu0 %v2671
        %4418 = vmatpush1.bf16.msra.mxu0 %v2670
        %4419 = vmatprep.subr.bf16.mxu0 %v2677
        %4420 = vmatpush1.bf16.msra.mxu0 %v2676
        %4421 = vmatprep.subr.bf16.mxu0 %v2683
        %4422 = vmatpush1.bf16.msra.mxu0 %v2682
        %4423 = vmatprep.subr.bf16.mxu0 %v2689
        %4424 = vmatpush1.bf16.msra.mxu0 %v2688
        %4425 = vmatprep.subr.bf16.mxu0 %v2695
        %4426 = vmatpush1.bf16.msra.mxu0 %v2694
        %4427 = vmatprep.subr.bf16.mxu0 %v2701
        %4428 = vmatpush1.bf16.msra.mxu0 %v2700
        %4429 = vmatprep.subr.bf16.mxu0 %v2707
        %4430 = vmatpush1.bf16.msra.mxu0 %v2706
        %4431 = vmatprep.subr.bf16.mxu0 %v2713
        %4432 = vmatpush1.bf16.msra.mxu0 %v2712
        %4433 = vmatprep.subr.bf16.mxu0 %v2719
        %4434 = vmatpush1.bf16.msra.mxu0 %v2718
        %4435 = vmatprep.subr.bf16.mxu0 %v2725
        %4436 = vmatpush1.bf16.msra.mxu0 %v2724
        %4437 = vmatprep.subr.bf16.mxu0 %v2731
        %4438 = vmatpush1.bf16.msra.mxu0 %v2730
        %4439 = vmatprep.subr.bf16.mxu0 %v2737
        %4440 = vmatpush1.bf16.msra.mxu0 %v2736
        %4441 = vmatprep.subr.bf16.mxu0 %v2743
        %4442 = vmatpush1.bf16.msra.mxu0 %v2742
        %4443 = vmatprep.subr.bf16.mxu0 %v2749
        %4444 = vmatpush1.bf16.msra.mxu0 %v2748
        %4445 = vmatprep.subr.bf16.mxu0 %v2755
        %4446 = vmatpush1.bf16.msra.mxu0 %v2754
        %4447 = vmatprep.subr.bf16.mxu0 %v2761
        %4448 = vmatpush1.bf16.msra.mxu0 %v2760
        %4449 = vmatprep.mubr.bf16.mxu0 %v1185
        %4450 = vmatmul.mubr.bf16.gmra.mrb[0].mxu0 %v1184
        %v4451 = vpop.f32.mrb[0].mxu0
        %v4452 = vadd.f32 %v4179, %v4451
        %v4453 = vpop.f32.mrb[0].mxu0
        %v4454 = vadd.f32 %v4181, %v4453
        %v4455 = vpop.f32.mrb[0].mxu0
        %v4456 = vadd.f32 %v4183, %v4455
        %v4457 = vpop.f32.mrb[0].mxu0
        %v4458 = vadd.f32 %v4185, %v4457
        %4459 = vmatprep.mubr.bf16.mxu0 %v1191
        %4460 = vmatmul.mubr.bf16.gmra.mrb[0].mxu0 %v1190
        %v4461 = vpop.f32.mrb[0].mxu0
        %v4462 = vadd.f32 %v4189, %v4461
        %v4463 = vpop.f32.mrb[0].mxu0
        %v4464 = vadd.f32 %v4191, %v4463
        %v4465 = vpop.f32.mrb[0].mxu0
        %v4466 = vadd.f32 %v4193, %v4465
        %v4467 = vpop.f32.mrb[0].mxu0
        %v4468 = vadd.f32 %v4195, %v4467
        %4469 = vmatprep.mubr.bf16.mxu0 %v1197
        %4470 = vmatmul.mubr.bf16.gmra.mrb[0].mxu0 %v1196
        %v4471 = vpop.f32.mrb[0].mxu0
        %v4472 = vadd.f32 %v4199, %v4471
        %v4473 = vpop.f32.mrb[0].mxu0
        %v4474 = vadd.f32 %v4201, %v4473
        %v4475 = vpop.f32.mrb[0].mxu0
        %v4476 = vadd.f32 %v4203, %v4475
        %v4477 = vpop.f32.mrb[0].mxu0
        %v4478 = vadd.f32 %v4205, %v4477
        %4479 = vmatprep.mubr.bf16.mxu0 %v1203
        %4480 = vmatmul.mubr.bf16.gmra.mrb[0].mxu0 %v1202
        %v4481 = vpop.f32.mrb[0].mxu0
        %v4482 = vadd.f32 %v4209, %v4481
        %v4483 = vpop.f32.mrb[0].mxu0
        %v4484 = vadd.f32 %v4211, %v4483
        %v4485 = vpop.f32.mrb[0].mxu0
        %v4486 = vadd.f32 %v4213, %v4485
        %v4487 = vpop.f32.mrb[0].mxu0
        %v4488 = vadd.f32 %v4215, %v4487
        %4489 = vmatprep.mubr.bf16.mxu0 %v1209
        %4490 = vmatmul.mubr.bf16.gmra.mrb[0].mxu0 %v1208
        %v4491 = vpop.f32.mrb[0].mxu0
        %v4492 = vadd.f32 %v4219, %v4491
        %v4493 = vpop.f32.mrb[0].mxu0
        %v4494 = vadd.f32 %v4221, %v4493
        %v4495 = vpop.f32.mrb[0].mxu0
        %v4496 = vadd.f32 %v4223, %v4495
        %v4497 = vpop.f32.mrb[0].mxu0
        %v4498 = vadd.f32 %v4225, %v4497
        %4499 = vmatprep.mubr.bf16.mxu0 %v1215
        %4500 = vmatmul.mubr.bf16.gmra.mrb[0].mxu0 %v1214
        %v4501 = vpop.f32.mrb[0].mxu0
        %v4502 = vadd.f32 %v4229, %v4501
        %v4503 = vpop.f32.mrb[0].mxu0
        %v4504 = vadd.f32 %v4231, %v4503
        %v4505 = vpop.f32.mrb[0].mxu0
        %v4506 = vadd.f32 %v4233, %v4505
        %v4507 = vpop.f32.mrb[0].mxu0
        %v4508 = vadd.f32 %v4235, %v4507
        %4509 = vmatprep.mubr.bf16.mxu0 %v1221
        %4510 = vmatmul.mubr.bf16.gmra.mrb[0].mxu0 %v1220
        %v4511 = vpop.f32.mrb[0].mxu0
        %v4512 = vadd.f32 %v4239, %v4511
        %v4513 = vpop.f32.mrb[0].mxu0
        %v4514 = vadd.f32 %v4241, %v4513
        %v4515 = vpop.f32.mrb[0].mxu0
        %v4516 = vadd.f32 %v4243, %v4515
        %v4517 = vpop.f32.mrb[0].mxu0
        %v4518 = vadd.f32 %v4245, %v4517
        %4519 = vmatprep.mubr.bf16.mxu0 %v1227
        %4520 = vmatmul.mubr.bf16.gmra.mrb[0].mxu0 %v1226
        %v4521 = vpop.f32.mrb[0].mxu0
        %v4522 = vadd.f32 %v4249, %v4521
        %v4523 = vpop.f32.mrb[0].mxu0
        %v4524 = vadd.f32 %v4251, %v4523
        %v4525 = vpop.f32.mrb[0].mxu0
        %v4526 = vadd.f32 %v4253, %v4525
        %v4527 = vpop.f32.mrb[0].mxu0
        %v4528 = vadd.f32 %v4255, %v4527
        %4529 = vmatprep.mubr.bf16.mxu0 %v1233
        %4530 = vmatmul.mubr.bf16.gmra.mrb[0].mxu0 %v1232
        %v4531 = vpop.f32.mrb[0].mxu0
        %v4532 = vadd.f32 %v4259, %v4531
        %v4533 = vpop.f32.mrb[0].mxu0
        %v4534 = vadd.f32 %v4261, %v4533
        %v4535 = vpop.f32.mrb[0].mxu0
        %v4536 = vadd.f32 %v4263, %v4535
        %v4537 = vpop.f32.mrb[0].mxu0
        %v4538 = vadd.f32 %v4265, %v4537
        %4539 = vmatprep.mubr.bf16.mxu0 %v1239
        %4540 = vmatmul.mubr.bf16.gmra.mrb[0].mxu0 %v1238
        %v4541 = vpop.f32.mrb[0].mxu0
        %v4542 = vadd.f32 %v4269, %v4541
        %v4543 = vpop.f32.mrb[0].mxu0
        %v4544 = vadd.f32 %v4271, %v4543
        %v4545 = vpop.f32.mrb[0].mxu0
        %v4546 = vadd.f32 %v4273, %v4545
        %v4547 = vpop.f32.mrb[0].mxu0
        %v4548 = vadd.f32 %v4275, %v4547
        %4549 = vmatprep.mubr.bf16.mxu0 %v1245
        %4550 = vmatmul.mubr.bf16.gmra.mrb[0].mxu0 %v1244
        %v4551 = vpop.f32.mrb[0].mxu0
        %v4552 = vadd.f32 %v4279, %v4551
        %v4553 = vpop.f32.mrb[0].mxu0
        %v4554 = vadd.f32 %v4281, %v4553
        %v4555 = vpop.f32.mrb[0].mxu0
        %v4556 = vadd.f32 %v4283, %v4555
        %v4557 = vpop.f32.mrb[0].mxu0
        %v4558 = vadd.f32 %v4285, %v4557
        %4559 = vmatprep.mubr.bf16.mxu0 %v1251
        %4560 = vmatmul.mubr.bf16.gmra.mrb[0].mxu0 %v1250
        %v4561 = vpop.f32.mrb[0].mxu0
        %v4562 = vadd.f32 %v4289, %v4561
        %v4563 = vpop.f32.mrb[0].mxu0
        %v4564 = vadd.f32 %v4291, %v4563
        %v4565 = vpop.f32.mrb[0].mxu0
        %v4566 = vadd.f32 %v4293, %v4565
        %v4567 = vpop.f32.mrb[0].mxu0
        %v4568 = vadd.f32 %v4295, %v4567
        %4569 = vmatprep.mubr.bf16.mxu0 %v1257
        %4570 = vmatmul.mubr.bf16.gmra.mrb[0].mxu0 %v1256
        %v4571 = vpop.f32.mrb[0].mxu0
        %v4572 = vadd.f32 %v4299, %v4571
        %v4573 = vpop.f32.mrb[0].mxu0
        %v4574 = vadd.f32 %v4301, %v4573
        %v4575 = vpop.f32.mrb[0].mxu0
        %v4576 = vadd.f32 %v4303, %v4575
        %v4577 = vpop.f32.mrb[0].mxu0
        %v4578 = vadd.f32 %v4305, %v4577
        %4579 = vmatprep.mubr.bf16.mxu0 %v1263
        %4580 = vmatmul.mubr.bf16.gmra.mrb[0].mxu0 %v1262
        %v4581 = vpop.f32.mrb[0].mxu0
        %v4582 = vadd.f32 %v4309, %v4581
        %v4583 = vpop.f32.mrb[0].mxu0
        %v4584 = vadd.f32 %v4311, %v4583
        %v4585 = vpop.f32.mrb[0].mxu0
        %v4586 = vadd.f32 %v4313, %v4585
        %v4587 = vpop.f32.mrb[0].mxu0
        %v4588 = vadd.f32 %v4315, %v4587
        %4589 = vmatprep.mubr.bf16.mxu0 %v1269
        %4590 = vmatmul.mubr.bf16.gmra.mrb[0].mxu0 %v1268
        %v4591 = vpop.f32.mrb[0].mxu0
        %v4592 = vadd.f32 %v4319, %v4591
        %v4593 = vpop.f32.mrb[0].mxu0
        %v4594 = vadd.f32 %v4321, %v4593
        %v4595 = vpop.f32.mrb[0].mxu0
        %v4596 = vadd.f32 %v4323, %v4595
        %v4597 = vpop.f32.mrb[0].mxu0
        %v4598 = vadd.f32 %v4325, %v4597
        %4599 = vmatprep.mubr.bf16.mxu0 %v1275
        %4600 = vmatmul.mubr.bf16.gmra.mrb[0].mxu0 %v1274
        %v4601 = vpop.f32.mrb[0].mxu0
        %v4602 = vadd.f32 %v4329, %v4601
        %v4603 = vpop.f32.mrb[0].mxu0
        %v4604 = vadd.f32 %v4331, %v4603
        %v4605 = vpop.f32.mrb[0].mxu0
        %v4606 = vadd.f32 %v4333, %v4605
        %v4607 = vpop.f32.mrb[0].mxu0
        %v4608 = vadd.f32 %v4335, %v4607
        %4609 = vmatprep.mubr.bf16.mxu0 %v1281
        %4610 = vmatmul.mubr.bf16.gmra.mrb[0].mxu0 %v1280
        %v4611 = vpop.f32.mrb[0].mxu0
        %v4612 = vadd.f32 %v4339, %v4611
        %v4613 = vpop.f32.mrb[0].mxu0
        %v4614 = vadd.f32 %v4341, %v4613
        %v4615 = vpop.f32.mrb[0].mxu0
        %v4616 = vadd.f32 %v4343, %v4615
        %v4617 = vpop.f32.mrb[0].mxu0
        %v4618 = vadd.f32 %v4345, %v4617
        %4619 = vmatprep.mubr.bf16.mxu0 %v1287
        %4620 = vmatmul.mubr.bf16.gmra.mrb[0].mxu0 %v1286
        %v4621 = vpop.f32.mrb[0].mxu0
        %v4622 = vadd.f32 %v4349, %v4621
        %v4623 = vpop.f32.mrb[0].mxu0
        %v4624 = vadd.f32 %v4351, %v4623
        %v4625 = vpop.f32.mrb[0].mxu0
        %v4626 = vadd.f32 %v4353, %v4625
        %v4627 = vpop.f32.mrb[0].mxu0
        %v4628 = vadd.f32 %v4355, %v4627
        %4629 = vmatprep.mubr.bf16.mxu0 %v1293
        %4630 = vmatmul.mubr.bf16.gmra.mrb[0].mxu0 %v1292
        %v4631 = vpop.f32.mrb[0].mxu0
        %v4632 = vadd.f32 %v4359, %v4631
        %v4633 = vpop.f32.mrb[0].mxu0
        %v4634 = vadd.f32 %v4361, %v4633
        %v4635 = vpop.f32.mrb[0].mxu0
        %v4636 = vadd.f32 %v4363, %v4635
        %v4637 = vpop.f32.mrb[0].mxu0
        %v4638 = vadd.f32 %v4365, %v4637
        %4639 = vmatprep.mubr.bf16.mxu0 %v1299
        %4640 = vmatmul.mubr.bf16.gmra.mrb[0].mxu0 %v1298
        %v4641 = vpop.f32.mrb[0].mxu0
        %v4642 = vadd.f32 %v4369, %v4641
        %v4643 = vpop.f32.mrb[0].mxu0
        %v4644 = vadd.f32 %v4371, %v4643
        %v4645 = vpop.f32.mrb[0].mxu0
        %v4646 = vadd.f32 %v4373, %v4645
        %v4647 = vpop.f32.mrb[0].mxu0
        %v4648 = vadd.f32 %v4375, %v4647
        %4649 = vmatprep.mubr.bf16.mxu0 %v1305
        %4650 = vmatmul.mubr.bf16.gmra.mrb[0].mxu0 %v1304
        %v4651 = vpop.f32.mrb[0].mxu0
        %v4652 = vadd.f32 %v4379, %v4651
        %v4653 = vpop.f32.mrb[0].mxu0
        %v4654 = vadd.f32 %v4381, %v4653
        %v4655 = vpop.f32.mrb[0].mxu0
        %v4656 = vadd.f32 %v4383, %v4655
        %v4657 = vpop.f32.mrb[0].mxu0
        %v4658 = vadd.f32 %v4385, %v4657
        %4659 = vmatprep.mubr.bf16.mxu0 %v1311
        %4660 = vmatmul.mubr.bf16.gmra.mrb[0].mxu0 %v1310
        %v4661 = vpop.f32.mrb[0].mxu0
        %v4662 = vadd.f32 %v4389, %v4661
        %v4663 = vpop.f32.mrb[0].mxu0
        %v4664 = vadd.f32 %v4391, %v4663
        %v4665 = vpop.f32.mrb[0].mxu0
        %v4666 = vadd.f32 %v4393, %v4665
        %v4667 = vpop.f32.mrb[0].mxu0
        %v4668 = vadd.f32 %v4395, %v4667
        %4669 = vmatprep.mubr.bf16.mxu0 %v1317
        %4670 = vmatmul.mubr.bf16.gmra.mrb[0].mxu0 %v1316
        %v4671 = vpop.f32.mrb[0].mxu0
        %v4672 = vadd.f32 %v4399, %v4671
        %v4673 = vpop.f32.mrb[0].mxu0
        %v4674 = vadd.f32 %v4401, %v4673
        %v4675 = vpop.f32.mrb[0].mxu0
        %v4676 = vadd.f32 %v4403, %v4675
        %v4677 = vpop.f32.mrb[0].mxu0
        %v4678 = vadd.f32 %v4405, %v4677
        %4679 = vmatprep.mubr.bf16.mxu0 %v1323
        %4680 = vmatmul.mubr.bf16.gmra.mrb[0].mxu0 %v1322
        %v4681 = vpop.f32.mrb[0].mxu0
        %v4682 = vadd.f32 %v4409, %v4681
        %v4683 = vpop.f32.mrb[0].mxu0
        %v4684 = vadd.f32 %v4411, %v4683
        %v4685 = vpop.f32.mrb[0].mxu0
        %v4686 = vadd.f32 %v4413, %v4685
        %v4687 = vpop.f32.mrb[0].mxu0
        %v4688 = vadd.f32 %v4415, %v4687
        %4689 = vdwg.mxu0
        %4690 = vmatprep.subr.bf16.mxu0 %v2481
        %4691 = vmatpush1.bf16.msra.mxu0 %v2480
        %4692 = vmatprep.subr.bf16.mxu0 %v2487
        %4693 = vmatpush1.bf16.msra.mxu0 %v2486
        %4694 = vmatprep.subr.bf16.mxu0 %v2493
        %4695 = vmatpush1.bf16.msra.mxu0 %v2492
        %4696 = vmatprep.subr.bf16.mxu0 %v2499
        %4697 = vmatpush1.bf16.msra.mxu0 %v2498
        %4698 = vmatprep.subr.bf16.mxu0 %v2505
        %4699 = vmatpush1.bf16.msra.mxu0 %v2504
        %4700 = vmatprep.subr.bf16.mxu0 %v2511
        %4701 = vmatpush1.bf16.msra.mxu0 %v2510
        %4702 = vmatprep.subr.bf16.mxu0 %v2517
        %4703 = vmatpush1.bf16.msra.mxu0 %v2516
        %4704 = vmatprep.subr.bf16.mxu0 %v2523
        %4705 = vmatpush1.bf16.msra.mxu0 %v2522
        %4706 = vmatprep.subr.bf16.mxu0 %v2529
        %4707 = vmatpush1.bf16.msra.mxu0 %v2528
        %4708 = vmatprep.subr.bf16.mxu0 %v2535
        %4709 = vmatpush1.bf16.msra.mxu0 %v2534
        %4710 = vmatprep.subr.bf16.mxu0 %v2541
        %4711 = vmatpush1.bf16.msra.mxu0 %v2540
        %4712 = vmatprep.subr.bf16.mxu0 %v2547
        %4713 = vmatpush1.bf16.msra.mxu0 %v2546
        %4714 = vmatprep.subr.bf16.mxu0 %v2553
        %4715 = vmatpush1.bf16.msra.mxu0 %v2552
        %4716 = vmatprep.subr.bf16.mxu0 %v2559
        %4717 = vmatpush1.bf16.msra.mxu0 %v2558
        %4718 = vmatprep.subr.bf16.mxu0 %v2565
        %4719 = vmatpush1.bf16.msra.mxu0 %v2564
        %4720 = vmatprep.subr.bf16.mxu0 %v2571
        %4721 = vmatpush1.bf16.msra.mxu0 %v2570
        %4722 = vmatprep.mubr.bf16.mxu0 %v1181
        %4723 = vmatmul.mubr.bf16.gmra.mrb[0].mxu0 %v1180
        %v4724 = vpop.f32.mrb[0].mxu0
        %v4725 = vadd.f32 0.0, %v4724
        %v4726 = vpop.f32.mrb[0].mxu0
        %v4727 = vadd.f32 0.0, %v4726
        %v4728 = vpop.f32.mrb[0].mxu0
        %v4729 = vadd.f32 0.0, %v4728
        %v4730 = vpop.f32.mrb[0].mxu0
        %v4731 = vadd.f32 0.0, %v4730
        %4732 = vmatprep.mubr.bf16.mxu0 %v1187
        %4733 = vmatmul.mubr.bf16.gmra.mrb[0].mxu0 %v1186
        %v4734 = vpop.f32.mrb[0].mxu0
        %v4735 = vadd.f32 0.0, %v4734
        %v4736 = vpop.f32.mrb[0].mxu0
        %v4737 = vadd.f32 0.0, %v4736
        %v4738 = vpop.f32.mrb[0].mxu0
        %v4739 = vadd.f32 0.0, %v4738
        %v4740 = vpop.f32.mrb[0].mxu0
        %v4741 = vadd.f32 0.0, %v4740
        %4742 = vmatprep.mubr.bf16.mxu0 %v1193
        %4743 = vmatmul.mubr.bf16.gmra.mrb[0].mxu0 %v1192
        %v4744 = vpop.f32.mrb[0].mxu0
        %v4745 = vadd.f32 0.0, %v4744
        %v4746 = vpop.f32.mrb[0].mxu0
        %v4747 = vadd.f32 0.0, %v4746
        %v4748 = vpop.f32.mrb[0].mxu0
        %v4749 = vadd.f32 0.0, %v4748
        %v4750 = vpop.f32.mrb[0].mxu0
        %v4751 = vadd.f32 0.0, %v4750
        %4752 = vmatprep.mubr.bf16.mxu0 %v1199
        %4753 = vmatmul.mubr.bf16.gmra.mrb[0].mxu0 %v1198
        %v4754 = vpop.f32.mrb[0].mxu0
        %v4755 = vadd.f32 0.0, %v4754
        %v4756 = vpop.f32.mrb[0].mxu0
        %v4757 = vadd.f32 0.0, %v4756
        %v4758 = vpop.f32.mrb[0].mxu0
        %v4759 = vadd.f32 0.0, %v4758
        %v4760 = vpop.f32.mrb[0].mxu0
        %v4761 = vadd.f32 0.0, %v4760
        %4762 = vmatprep.mubr.bf16.mxu0 %v1205
        %4763 = vmatmul.mubr.bf16.gmra.mrb[0].mxu0 %v1204
        %v4764 = vpop.f32.mrb[0].mxu0
        %v4765 = vadd.f32 0.0, %v4764
        %v4766 = vpop.f32.mrb[0].mxu0
        %v4767 = vadd.f32 0.0, %v4766
        %v4768 = vpop.f32.mrb[0].mxu0
        %v4769 = vadd.f32 0.0, %v4768
        %v4770 = vpop.f32.mrb[0].mxu0
        %v4771 = vadd.f32 0.0, %v4770
        %4772 = vmatprep.mubr.bf16.mxu0 %v1211
        %4773 = vmatmul.mubr.bf16.gmra.mrb[0].mxu0 %v1210
        %v4774 = vpop.f32.mrb[0].mxu0
        %v4775 = vadd.f32 0.0, %v4774
        %v4776 = vpop.f32.mrb[0].mxu0
        %v4777 = vadd.f32 0.0, %v4776
        %v4778 = vpop.f32.mrb[0].mxu0
        %v4779 = vadd.f32 0.0, %v4778
        %v4780 = vpop.f32.mrb[0].mxu0
        %v4781 = vadd.f32 0.0, %v4780
        %4782 = vmatprep.mubr.bf16.mxu0 %v1217
        %4783 = vmatmul.mubr.bf16.gmra.mrb[0].mxu0 %v1216
        %v4784 = vpop.f32.mrb[0].mxu0
        %v4785 = vadd.f32 0.0, %v4784
        %v4786 = vpop.f32.mrb[0].mxu0
        %v4787 = vadd.f32 0.0, %v4786
        %v4788 = vpop.f32.mrb[0].mxu0
        %v4789 = vadd.f32 0.0, %v4788
        %v4790 = vpop.f32.mrb[0].mxu0
        %v4791 = vadd.f32 0.0, %v4790
        %4792 = vmatprep.mubr.bf16.mxu0 %v1223
        %4793 = vmatmul.mubr.bf16.gmra.mrb[0].mxu0 %v1222
        %v4794 = vpop.f32.mrb[0].mxu0
        %v4795 = vadd.f32 0.0, %v4794
        %v4796 = vpop.f32.mrb[0].mxu0
        %v4797 = vadd.f32 0.0, %v4796
        %v4798 = vpop.f32.mrb[0].mxu0
        %v4799 = vadd.f32 0.0, %v4798
        %v4800 = vpop.f32.mrb[0].mxu0
        %v4801 = vadd.f32 0.0, %v4800
        %4802 = vmatprep.mubr.bf16.mxu0 %v1229
        %4803 = vmatmul.mubr.bf16.gmra.mrb[0].mxu0 %v1228
        %v4804 = vpop.f32.mrb[0].mxu0
        %v4805 = vadd.f32 0.0, %v4804
        %v4806 = vpop.f32.mrb[0].mxu0
        %v4807 = vadd.f32 0.0, %v4806
        %v4808 = vpop.f32.mrb[0].mxu0
        %v4809 = vadd.f32 0.0, %v4808
        %v4810 = vpop.f32.mrb[0].mxu0
        %v4811 = vadd.f32 0.0, %v4810
        %4812 = vmatprep.mubr.bf16.mxu0 %v1235
        %4813 = vmatmul.mubr.bf16.gmra.mrb[0].mxu0 %v1234
        %v4814 = vpop.f32.mrb[0].mxu0
        %v4815 = vadd.f32 0.0, %v4814
        %v4816 = vpop.f32.mrb[0].mxu0
        %v4817 = vadd.f32 0.0, %v4816
        %v4818 = vpop.f32.mrb[0].mxu0
        %v4819 = vadd.f32 0.0, %v4818
        %v4820 = vpop.f32.mrb[0].mxu0
        %v4821 = vadd.f32 0.0, %v4820
        %4822 = vmatprep.mubr.bf16.mxu0 %v1241
        %4823 = vmatmul.mubr.bf16.gmra.mrb[0].mxu0 %v1240
        %v4824 = vpop.f32.mrb[0].mxu0
        %v4825 = vadd.f32 0.0, %v4824
        %v4826 = vpop.f32.mrb[0].mxu0
        %v4827 = vadd.f32 0.0, %v4826
        %v4828 = vpop.f32.mrb[0].mxu0
        %v4829 = vadd.f32 0.0, %v4828
        %v4830 = vpop.f32.mrb[0].mxu0
        %v4831 = vadd.f32 0.0, %v4830
        %4832 = vmatprep.mubr.bf16.mxu0 %v1247
        %4833 = vmatmul.mubr.bf16.gmra.mrb[0].mxu0 %v1246
        %v4834 = vpop.f32.mrb[0].mxu0
        %v4835 = vadd.f32 0.0, %v4834
        %v4836 = vpop.f32.mrb[0].mxu0
        %v4837 = vadd.f32 0.0, %v4836
        %v4838 = vpop.f32.mrb[0].mxu0
        %v4839 = vadd.f32 0.0, %v4838
        %v4840 = vpop.f32.mrb[0].mxu0
        %v4841 = vadd.f32 0.0, %v4840
        %4842 = vmatprep.mubr.bf16.mxu0 %v1253
        %4843 = vmatmul.mubr.bf16.gmra.mrb[0].mxu0 %v1252
        %v4844 = vpop.f32.mrb[0].mxu0
        %v4845 = vadd.f32 0.0, %v4844
        %v4846 = vpop.f32.mrb[0].mxu0
        %v4847 = vadd.f32 0.0, %v4846
        %v4848 = vpop.f32.mrb[0].mxu0
        %v4849 = vadd.f32 0.0, %v4848
        %v4850 = vpop.f32.mrb[0].mxu0
        %v4851 = vadd.f32 0.0, %v4850
        %4852 = vmatprep.mubr.bf16.mxu0 %v1259
        %4853 = vmatmul.mubr.bf16.gmra.mrb[0].mxu0 %v1258
        %v4854 = vpop.f32.mrb[0].mxu0
        %v4855 = vadd.f32 0.0, %v4854
        %v4856 = vpop.f32.mrb[0].mxu0
        %v4857 = vadd.f32 0.0, %v4856
        %v4858 = vpop.f32.mrb[0].mxu0
        %v4859 = vadd.f32 0.0, %v4858
        %v4860 = vpop.f32.mrb[0].mxu0
        %v4861 = vadd.f32 0.0, %v4860
        %4862 = vmatprep.mubr.bf16.mxu0 %v1265
        %4863 = vmatmul.mubr.bf16.gmra.mrb[0].mxu0 %v1264
        %v4864 = vpop.f32.mrb[0].mxu0
        %v4865 = vadd.f32 0.0, %v4864
        %v4866 = vpop.f32.mrb[0].mxu0
        %v4867 = vadd.f32 0.0, %v4866
        %v4868 = vpop.f32.mrb[0].mxu0
        %v4869 = vadd.f32 0.0, %v4868
        %v4870 = vpop.f32.mrb[0].mxu0
        %v4871 = vadd.f32 0.0, %v4870
        %4872 = vmatprep.mubr.bf16.mxu0 %v1271
        %4873 = vmatmul.mubr.bf16.gmra.mrb[0].mxu0 %v1270
        %v4874 = vpop.f32.mrb[0].mxu0
        %v4875 = vadd.f32 0.0, %v4874
        %v4876 = vpop.f32.mrb[0].mxu0
        %v4877 = vadd.f32 0.0, %v4876
        %v4878 = vpop.f32.mrb[0].mxu0
        %v4879 = vadd.f32 0.0, %v4878
        %v4880 = vpop.f32.mrb[0].mxu0
        %v4881 = vadd.f32 0.0, %v4880
        %4882 = vmatprep.mubr.bf16.mxu0 %v1277
        %4883 = vmatmul.mubr.bf16.gmra.mrb[0].mxu0 %v1276
        %v4884 = vpop.f32.mrb[0].mxu0
        %v4885 = vadd.f32 0.0, %v4884
        %v4886 = vpop.f32.mrb[0].mxu0
        %v4887 = vadd.f32 0.0, %v4886
        %v4888 = vpop.f32.mrb[0].mxu0
        %v4889 = vadd.f32 0.0, %v4888
        %v4890 = vpop.f32.mrb[0].mxu0
        %v4891 = vadd.f32 0.0, %v4890
        %4892 = vmatprep.mubr.bf16.mxu0 %v1283
        %4893 = vmatmul.mubr.bf16.gmra.mrb[0].mxu0 %v1282
        %v4894 = vpop.f32.mrb[0].mxu0
        %v4895 = vadd.f32 0.0, %v4894
        %v4896 = vpop.f32.mrb[0].mxu0
        %v4897 = vadd.f32 0.0, %v4896
        %v4898 = vpop.f32.mrb[0].mxu0
        %v4899 = vadd.f32 0.0, %v4898
        %v4900 = vpop.f32.mrb[0].mxu0
        %v4901 = vadd.f32 0.0, %v4900
        %4902 = vmatprep.mubr.bf16.mxu0 %v1289
        %4903 = vmatmul.mubr.bf16.gmra.mrb[0].mxu0 %v1288
        %v4904 = vpop.f32.mrb[0].mxu0
        %v4905 = vadd.f32 0.0, %v4904
        %v4906 = vpop.f32.mrb[0].mxu0
        %v4907 = vadd.f32 0.0, %v4906
        %v4908 = vpop.f32.mrb[0].mxu0
        %v4909 = vadd.f32 0.0, %v4908
        %v4910 = vpop.f32.mrb[0].mxu0
        %v4911 = vadd.f32 0.0, %v4910
        %4912 = vmatprep.mubr.bf16.mxu0 %v1295
        %4913 = vmatmul.mubr.bf16.gmra.mrb[0].mxu0 %v1294
        %v4914 = vpop.f32.mrb[0].mxu0
        %v4915 = vadd.f32 0.0, %v4914
        %v4916 = vpop.f32.mrb[0].mxu0
        %v4917 = vadd.f32 0.0, %v4916
        %v4918 = vpop.f32.mrb[0].mxu0
        %v4919 = vadd.f32 0.0, %v4918
        %v4920 = vpop.f32.mrb[0].mxu0
        %v4921 = vadd.f32 0.0, %v4920
        %4922 = vmatprep.mubr.bf16.mxu0 %v1301
        %4923 = vmatmul.mubr.bf16.gmra.mrb[0].mxu0 %v1300
        %v4924 = vpop.f32.mrb[0].mxu0
        %v4925 = vadd.f32 0.0, %v4924
        %v4926 = vpop.f32.mrb[0].mxu0
        %v4927 = vadd.f32 0.0, %v4926
        %v4928 = vpop.f32.mrb[0].mxu0
        %v4929 = vadd.f32 0.0, %v4928
        %v4930 = vpop.f32.mrb[0].mxu0
        %v4931 = vadd.f32 0.0, %v4930
        %4932 = vmatprep.mubr.bf16.mxu0 %v1307
        %4933 = vmatmul.mubr.bf16.gmra.mrb[0].mxu0 %v1306
        %v4934 = vpop.f32.mrb[0].mxu0
        %v4935 = vadd.f32 0.0, %v4934
        %v4936 = vpop.f32.mrb[0].mxu0
        %v4937 = vadd.f32 0.0, %v4936
        %v4938 = vpop.f32.mrb[0].mxu0
        %v4939 = vadd.f32 0.0, %v4938
        %v4940 = vpop.f32.mrb[0].mxu0
        %v4941 = vadd.f32 0.0, %v4940
        %4942 = vmatprep.mubr.bf16.mxu0 %v1313
        %4943 = vmatmul.mubr.bf16.gmra.mrb[0].mxu0 %v1312
        %v4944 = vpop.f32.mrb[0].mxu0
        %v4945 = vadd.f32 0.0, %v4944
        %v4946 = vpop.f32.mrb[0].mxu0
        %v4947 = vadd.f32 0.0, %v4946
        %v4948 = vpop.f32.mrb[0].mxu0
        %v4949 = vadd.f32 0.0, %v4948
        %v4950 = vpop.f32.mrb[0].mxu0
        %v4951 = vadd.f32 0.0, %v4950
        %4952 = vmatprep.mubr.bf16.mxu0 %v1319
        %4953 = vmatmul.mubr.bf16.gmra.mrb[0].mxu0 %v1318
        %v4954 = vpop.f32.mrb[0].mxu0
        %v4955 = vadd.f32 0.0, %v4954
        %v4956 = vpop.f32.mrb[0].mxu0
        %v4957 = vadd.f32 0.0, %v4956
        %v4958 = vpop.f32.mrb[0].mxu0
        %v4959 = vadd.f32 0.0, %v4958
        %v4960 = vpop.f32.mrb[0].mxu0
        %v4961 = vadd.f32 0.0, %v4960
        %4962 = vdwg.mxu0
        %4963 = vmatprep.subr.bf16.mxu0 %v2577
        %4964 = vmatpush1.bf16.msra.mxu0 %v2576
        %4965 = vmatprep.subr.bf16.mxu0 %v2583
        %4966 = vmatpush1.bf16.msra.mxu0 %v2582
        %4967 = vmatprep.subr.bf16.mxu0 %v2589
        %4968 = vmatpush1.bf16.msra.mxu0 %v2588
        %4969 = vmatprep.subr.bf16.mxu0 %v2595
        %4970 = vmatpush1.bf16.msra.mxu0 %v2594
        %4971 = vmatprep.subr.bf16.mxu0 %v2601
        %4972 = vmatpush1.bf16.msra.mxu0 %v2600
        %4973 = vmatprep.subr.bf16.mxu0 %v2607
        %4974 = vmatpush1.bf16.msra.mxu0 %v2606
        %4975 = vmatprep.subr.bf16.mxu0 %v2613
        %4976 = vmatpush1.bf16.msra.mxu0 %v2612
        %4977 = vmatprep.subr.bf16.mxu0 %v2619
        %4978 = vmatpush1.bf16.msra.mxu0 %v2618
        %4979 = vmatprep.subr.bf16.mxu0 %v2625
        %4980 = vmatpush1.bf16.msra.mxu0 %v2624
        %4981 = vmatprep.subr.bf16.mxu0 %v2631
        %4982 = vmatpush1.bf16.msra.mxu0 %v2630
        %4983 = vmatprep.subr.bf16.mxu0 %v2637
        %4984 = vmatpush1.bf16.msra.mxu0 %v2636
        %4985 = vmatprep.subr.bf16.mxu0 %v2643
        %4986 = vmatpush1.bf16.msra.mxu0 %v2642
        %4987 = vmatprep.subr.bf16.mxu0 %v2649
        %4988 = vmatpush1.bf16.msra.mxu0 %v2648
        %4989 = vmatprep.subr.bf16.mxu0 %v2655
        %4990 = vmatpush1.bf16.msra.mxu0 %v2654
        %4991 = vmatprep.subr.bf16.mxu0 %v2661
        %4992 = vmatpush1.bf16.msra.mxu0 %v2660
        %4993 = vmatprep.subr.bf16.mxu0 %v2667
        %4994 = vmatpush1.bf16.msra.mxu0 %v2666
        %4995 = vmatprep.mubr.bf16.mxu0 %v1183
        %4996 = vmatmul.mubr.bf16.gmra.mrb[0].mxu0 %v1182
        %v4997 = vpop.f32.mrb[0].mxu0
        %v4998 = vadd.f32 %v4725, %v4997
        %v4999 = vpop.f32.mrb[0].mxu0
        %v5000 = vadd.f32 %v4727, %v4999
        %v5001 = vpop.f32.mrb[0].mxu0
        %v5002 = vadd.f32 %v4729, %v5001
        %v5003 = vpop.f32.mrb[0].mxu0
        %v5004 = vadd.f32 %v4731, %v5003
        %5005 = vmatprep.mubr.bf16.mxu0 %v1189
        %5006 = vmatmul.mubr.bf16.gmra.mrb[0].mxu0 %v1188
        %v5007 = vpop.f32.mrb[0].mxu0
        %v5008 = vadd.f32 %v4735, %v5007
        %v5009 = vpop.f32.mrb[0].mxu0
        %v5010 = vadd.f32 %v4737, %v5009
        %v5011 = vpop.f32.mrb[0].mxu0
        %v5012 = vadd.f32 %v4739, %v5011
        %v5013 = vpop.f32.mrb[0].mxu0
        %v5014 = vadd.f32 %v4741, %v5013
        %5015 = vmatprep.mubr.bf16.mxu0 %v1195
        %5016 = vmatmul.mubr.bf16.gmra.mrb[0].mxu0 %v1194
        %v5017 = vpop.f32.mrb[0].mxu0
        %v5018 = vadd.f32 %v4745, %v5017
        %v5019 = vpop.f32.mrb[0].mxu0
        %v5020 = vadd.f32 %v4747, %v5019
        %v5021 = vpop.f32.mrb[0].mxu0
        %v5022 = vadd.f32 %v4749, %v5021
        %v5023 = vpop.f32.mrb[0].mxu0
        %v5024 = vadd.f32 %v4751, %v5023
        %5025 = vmatprep.mubr.bf16.mxu0 %v1201
        %5026 = vmatmul.mubr.bf16.gmra.mrb[0].mxu0 %v1200
        %v5027 = vpop.f32.mrb[0].mxu0
        %v5028 = vadd.f32 %v4755, %v5027
        %v5029 = vpop.f32.mrb[0].mxu0
        %v5030 = vadd.f32 %v4757, %v5029
        %v5031 = vpop.f32.mrb[0].mxu0
        %v5032 = vadd.f32 %v4759, %v5031
        %v5033 = vpop.f32.mrb[0].mxu0
        %v5034 = vadd.f32 %v4761, %v5033
        %5035 = vmatprep.mubr.bf16.mxu0 %v1207
        %5036 = vmatmul.mubr.bf16.gmra.mrb[0].mxu0 %v1206
        %v5037 = vpop.f32.mrb[0].mxu0
        %v5038 = vadd.f32 %v4765, %v5037
        %v5039 = vpop.f32.mrb[0].mxu0
        %v5040 = vadd.f32 %v4767, %v5039
        %v5041 = vpop.f32.mrb[0].mxu0
        %v5042 = vadd.f32 %v4769, %v5041
        %v5043 = vpop.f32.mrb[0].mxu0
        %v5044 = vadd.f32 %v4771, %v5043
        %5045 = vmatprep.mubr.bf16.mxu0 %v1213
        %5046 = vmatmul.mubr.bf16.gmra.mrb[0].mxu0 %v1212
        %v5047 = vpop.f32.mrb[0].mxu0
        %v5048 = vadd.f32 %v4775, %v5047
        %v5049 = vpop.f32.mrb[0].mxu0
        %v5050 = vadd.f32 %v4777, %v5049
        %v5051 = vpop.f32.mrb[0].mxu0
        %v5052 = vadd.f32 %v4779, %v5051
        %v5053 = vpop.f32.mrb[0].mxu0
        %v5054 = vadd.f32 %v4781, %v5053
        %5055 = vmatprep.mubr.bf16.mxu0 %v1219
        %5056 = vmatmul.mubr.bf16.gmra.mrb[0].mxu0 %v1218
        %v5057 = vpop.f32.mrb[0].mxu0
        %v5058 = vadd.f32 %v4785, %v5057
        %v5059 = vpop.f32.mrb[0].mxu0
        %v5060 = vadd.f32 %v4787, %v5059
        %v5061 = vpop.f32.mrb[0].mxu0
        %v5062 = vadd.f32 %v4789, %v5061
        %v5063 = vpop.f32.mrb[0].mxu0
        %v5064 = vadd.f32 %v4791, %v5063
        %5065 = vmatprep.mubr.bf16.mxu0 %v1225
        %5066 = vmatmul.mubr.bf16.gmra.mrb[0].mxu0 %v1224
        %v5067 = vpop.f32.mrb[0].mxu0
        %v5068 = vadd.f32 %v4795, %v5067
        %v5069 = vpop.f32.mrb[0].mxu0
        %v5070 = vadd.f32 %v4797, %v5069
        %v5071 = vpop.f32.mrb[0].mxu0
        %v5072 = vadd.f32 %v4799, %v5071
        %v5073 = vpop.f32.mrb[0].mxu0
        %v5074 = vadd.f32 %v4801, %v5073
        %5075 = vmatprep.mubr.bf16.mxu0 %v1231
        %5076 = vmatmul.mubr.bf16.gmra.mrb[0].mxu0 %v1230
        %v5077 = vpop.f32.mrb[0].mxu0
        %v5078 = vadd.f32 %v4805, %v5077
        %v5079 = vpop.f32.mrb[0].mxu0
        %v5080 = vadd.f32 %v4807, %v5079
        %v5081 = vpop.f32.mrb[0].mxu0
        %v5082 = vadd.f32 %v4809, %v5081
        %v5083 = vpop.f32.mrb[0].mxu0
        %v5084 = vadd.f32 %v4811, %v5083
        %5085 = vmatprep.mubr.bf16.mxu0 %v1237
        %5086 = vmatmul.mubr.bf16.gmra.mrb[0].mxu0 %v1236
        %v5087 = vpop.f32.mrb[0].mxu0
        %v5088 = vadd.f32 %v4815, %v5087
        %v5089 = vpop.f32.mrb[0].mxu0
        %v5090 = vadd.f32 %v4817, %v5089
        %v5091 = vpop.f32.mrb[0].mxu0
        %v5092 = vadd.f32 %v4819, %v5091
        %v5093 = vpop.f32.mrb[0].mxu0
        %v5094 = vadd.f32 %v4821, %v5093
        %5095 = vmatprep.mubr.bf16.mxu0 %v1243
        %5096 = vmatmul.mubr.bf16.gmra.mrb[0].mxu0 %v1242
        %v5097 = vpop.f32.mrb[0].mxu0
        %v5098 = vadd.f32 %v4825, %v5097
        %v5099 = vpop.f32.mrb[0].mxu0
        %v5100 = vadd.f32 %v4827, %v5099
        %v5101 = vpop.f32.mrb[0].mxu0
        %v5102 = vadd.f32 %v4829, %v5101
        %v5103 = vpop.f32.mrb[0].mxu0
        %v5104 = vadd.f32 %v4831, %v5103
        %5105 = vmatprep.mubr.bf16.mxu0 %v1249
        %5106 = vmatmul.mubr.bf16.gmra.mrb[0].mxu0 %v1248
        %v5107 = vpop.f32.mrb[0].mxu0
        %v5108 = vadd.f32 %v4835, %v5107
        %v5109 = vpop.f32.mrb[0].mxu0
        %v5110 = vadd.f32 %v4837, %v5109
        %v5111 = vpop.f32.mrb[0].mxu0
        %v5112 = vadd.f32 %v4839, %v5111
        %v5113 = vpop.f32.mrb[0].mxu0
        %v5114 = vadd.f32 %v4841, %v5113
        %5115 = vmatprep.mubr.bf16.mxu0 %v1255
        %5116 = vmatmul.mubr.bf16.gmra.mrb[0].mxu0 %v1254
        %v5117 = vpop.f32.mrb[0].mxu0
        %v5118 = vadd.f32 %v4845, %v5117
        %v5119 = vpop.f32.mrb[0].mxu0
        %v5120 = vadd.f32 %v4847, %v5119
        %v5121 = vpop.f32.mrb[0].mxu0
        %v5122 = vadd.f32 %v4849, %v5121
        %v5123 = vpop.f32.mrb[0].mxu0
        %v5124 = vadd.f32 %v4851, %v5123
        %5125 = vmatprep.mubr.bf16.mxu0 %v1261
        %5126 = vmatmul.mubr.bf16.gmra.mrb[0].mxu0 %v1260
        %v5127 = vpop.f32.mrb[0].mxu0
        %v5128 = vadd.f32 %v4855, %v5127
        %v5129 = vpop.f32.mrb[0].mxu0
        %v5130 = vadd.f32 %v4857, %v5129
        %v5131 = vpop.f32.mrb[0].mxu0
        %v5132 = vadd.f32 %v4859, %v5131
        %v5133 = vpop.f32.mrb[0].mxu0
        %v5134 = vadd.f32 %v4861, %v5133
        %5135 = vmatprep.mubr.bf16.mxu0 %v1267
        %5136 = vmatmul.mubr.bf16.gmra.mrb[0].mxu0 %v1266
        %v5137 = vpop.f32.mrb[0].mxu0
        %v5138 = vadd.f32 %v4865, %v5137
        %v5139 = vpop.f32.mrb[0].mxu0
        %v5140 = vadd.f32 %v4867, %v5139
        %v5141 = vpop.f32.mrb[0].mxu0
        %v5142 = vadd.f32 %v4869, %v5141
        %v5143 = vpop.f32.mrb[0].mxu0
        %v5144 = vadd.f32 %v4871, %v5143
        %5145 = vmatprep.mubr.bf16.mxu0 %v1273
        %5146 = vmatmul.mubr.bf16.gmra.mrb[0].mxu0 %v1272
        %v5147 = vpop.f32.mrb[0].mxu0
        %v5148 = vadd.f32 %v4875, %v5147
        %v5149 = vpop.f32.mrb[0].mxu0
        %v5150 = vadd.f32 %v4877, %v5149
        %v5151 = vpop.f32.mrb[0].mxu0
        %v5152 = vadd.f32 %v4879, %v5151
        %v5153 = vpop.f32.mrb[0].mxu0
        %v5154 = vadd.f32 %v4881, %v5153
        %5155 = vmatprep.mubr.bf16.mxu0 %v1279
        %5156 = vmatmul.mubr.bf16.gmra.mrb[0].mxu0 %v1278
        %v5157 = vpop.f32.mrb[0].mxu0
        %v5158 = vadd.f32 %v4885, %v5157
        %v5159 = vpop.f32.mrb[0].mxu0
        %v5160 = vadd.f32 %v4887, %v5159
        %v5161 = vpop.f32.mrb[0].mxu0
        %v5162 = vadd.f32 %v4889, %v5161
        %v5163 = vpop.f32.mrb[0].mxu0
        %v5164 = vadd.f32 %v4891, %v5163
        %5165 = vmatprep.mubr.bf16.mxu0 %v1285
        %5166 = vmatmul.mubr.bf16.gmra.mrb[0].mxu0 %v1284
        %v5167 = vpop.f32.mrb[0].mxu0
        %v5168 = vadd.f32 %v4895, %v5167
        %v5169 = vpop.f32.mrb[0].mxu0
        %v5170 = vadd.f32 %v4897, %v5169
        %v5171 = vpop.f32.mrb[0].mxu0
        %v5172 = vadd.f32 %v4899, %v5171
        %v5173 = vpop.f32.mrb[0].mxu0
        %v5174 = vadd.f32 %v4901, %v5173
        %5175 = vmatprep.mubr.bf16.mxu0 %v1291
        %5176 = vmatmul.mubr.bf16.gmra.mrb[0].mxu0 %v1290
        %v5177 = vpop.f32.mrb[0].mxu0
        %v5178 = vadd.f32 %v4905, %v5177
        %v5179 = vpop.f32.mrb[0].mxu0
        %v5180 = vadd.f32 %v4907, %v5179
        %v5181 = vpop.f32.mrb[0].mxu0
        %v5182 = vadd.f32 %v4909, %v5181
        %v5183 = vpop.f32.mrb[0].mxu0
        %v5184 = vadd.f32 %v4911, %v5183
        %5185 = vmatprep.mubr.bf16.mxu0 %v1297
        %5186 = vmatmul.mubr.bf16.gmra.mrb[0].mxu0 %v1296
        %v5187 = vpop.f32.mrb[0].mxu0
        %v5188 = vadd.f32 %v4915, %v5187
        %v5189 = vpop.f32.mrb[0].mxu0
        %v5190 = vadd.f32 %v4917, %v5189
        %v5191 = vpop.f32.mrb[0].mxu0
        %v5192 = vadd.f32 %v4919, %v5191
        %v5193 = vpop.f32.mrb[0].mxu0
        %v5194 = vadd.f32 %v4921, %v5193
        %5195 = vmatprep.mubr.bf16.mxu0 %v1303
        %5196 = vmatmul.mubr.bf16.gmra.mrb[0].mxu0 %v1302
        %v5197 = vpop.f32.mrb[0].mxu0
        %v5198 = vadd.f32 %v4925, %v5197
        %v5199 = vpop.f32.mrb[0].mxu0
        %v5200 = vadd.f32 %v4927, %v5199
        %v5201 = vpop.f32.mrb[0].mxu0
        %v5202 = vadd.f32 %v4929, %v5201
        %v5203 = vpop.f32.mrb[0].mxu0
        %v5204 = vadd.f32 %v4931, %v5203
        %5205 = vmatprep.mubr.bf16.mxu0 %v1309
        %5206 = vmatmul.mubr.bf16.gmra.mrb[0].mxu0 %v1308
        %v5207 = vpop.f32.mrb[0].mxu0
        %v5208 = vadd.f32 %v4935, %v5207
        %v5209 = vpop.f32.mrb[0].mxu0
        %v5210 = vadd.f32 %v4937, %v5209
        %v5211 = vpop.f32.mrb[0].mxu0
        %v5212 = vadd.f32 %v4939, %v5211
        %v5213 = vpop.f32.mrb[0].mxu0
        %v5214 = vadd.f32 %v4941, %v5213
        %5215 = vmatprep.mubr.bf16.mxu0 %v1315
        %5216 = vmatmul.mubr.bf16.gmra.mrb[0].mxu0 %v1314
        %v5217 = vpop.f32.mrb[0].mxu0
        %v5218 = vadd.f32 %v4945, %v5217
        %v5219 = vpop.f32.mrb[0].mxu0
        %v5220 = vadd.f32 %v4947, %v5219
        %v5221 = vpop.f32.mrb[0].mxu0
        %v5222 = vadd.f32 %v4949, %v5221
        %v5223 = vpop.f32.mrb[0].mxu0
        %v5224 = vadd.f32 %v4951, %v5223
        %5225 = vmatprep.mubr.bf16.mxu0 %v1321
        %5226 = vmatmul.mubr.bf16.gmra.mrb[0].mxu0 %v1320
        %v5227 = vpop.f32.mrb[0].mxu0
        %v5228 = vadd.f32 %v4955, %v5227
        %v5229 = vpop.f32.mrb[0].mxu0
        %v5230 = vadd.f32 %v4957, %v5229
        %v5231 = vpop.f32.mrb[0].mxu0
        %v5232 = vadd.f32 %v4959, %v5231
        %v5233 = vpop.f32.mrb[0].mxu0
        %v5234 = vadd.f32 %v4961, %v5233
        %5235 = vdwg.mxu0
        %5236 = vmatprep.subr.bf16.mxu0 %v2673
        %5237 = vmatpush1.bf16.msra.mxu0 %v2672
        %5238 = vmatprep.subr.bf16.mxu0 %v2679
        %5239 = vmatpush1.bf16.msra.mxu0 %v2678
        %5240 = vmatprep.subr.bf16.mxu0 %v2685
        %5241 = vmatpush1.bf16.msra.mxu0 %v2684
        %5242 = vmatprep.subr.bf16.mxu0 %v2691
        %5243 = vmatpush1.bf16.msra.mxu0 %v2690
        %5244 = vmatprep.subr.bf16.mxu0 %v2697
        %5245 = vmatpush1.bf16.msra.mxu0 %v2696
        %5246 = vmatprep.subr.bf16.mxu0 %v2703
        %5247 = vmatpush1.bf16.msra.mxu0 %v2702
        %5248 = vmatprep.subr.bf16.mxu0 %v2709
        %5249 = vmatpush1.bf16.msra.mxu0 %v2708
        %5250 = vmatprep.subr.bf16.mxu0 %v2715
        %5251 = vmatpush1.bf16.msra.mxu0 %v2714
        %5252 = vmatprep.subr.bf16.mxu0 %v2721
        %5253 = vmatpush1.bf16.msra.mxu0 %v2720
        %5254 = vmatprep.subr.bf16.mxu0 %v2727
        %5255 = vmatpush1.bf16.msra.mxu0 %v2726
        %5256 = vmatprep.subr.bf16.mxu0 %v2733
        %5257 = vmatpush1.bf16.msra.mxu0 %v2732
        %5258 = vmatprep.subr.bf16.mxu0 %v2739
        %5259 = vmatpush1.bf16.msra.mxu0 %v2738
        %5260 = vmatprep.subr.bf16.mxu0 %v2745
        %5261 = vmatpush1.bf16.msra.mxu0 %v2744
        %5262 = vmatprep.subr.bf16.mxu0 %v2751
        %5263 = vmatpush1.bf16.msra.mxu0 %v2750
        %5264 = vmatprep.subr.bf16.mxu0 %v2757
        %5265 = vmatpush1.bf16.msra.mxu0 %v2756
        %5266 = vmatprep.subr.bf16.mxu0 %v2763
        %5267 = vmatpush1.bf16.msra.mxu0 %v2762
        %5268 = vmatprep.mubr.bf16.mxu0 %v1185
        %5269 = vmatmul.mubr.bf16.gmra.mrb[0].mxu0 %v1184
        %v5270 = vpop.f32.mrb[0].mxu0
        %v5271 = vadd.f32 %v4998, %v5270
        %v5272 = vpop.f32.mrb[0].mxu0
        %v5273 = vadd.f32 %v5000, %v5272
        %v5274 = vpop.f32.mrb[0].mxu0
        %v5275 = vadd.f32 %v5002, %v5274
        %v5276 = vpop.f32.mrb[0].mxu0
        %v5277 = vadd.f32 %v5004, %v5276
        %5278 = vmatprep.mubr.bf16.mxu0 %v1191
        %5279 = vmatmul.mubr.bf16.gmra.mrb[0].mxu0 %v1190
        %v5280 = vpop.f32.mrb[0].mxu0
        %v5281 = vadd.f32 %v5008, %v5280
        %v5282 = vpop.f32.mrb[0].mxu0
        %v5283 = vadd.f32 %v5010, %v5282
        %v5284 = vpop.f32.mrb[0].mxu0
        %v5285 = vadd.f32 %v5012, %v5284
        %v5286 = vpop.f32.mrb[0].mxu0
        %v5287 = vadd.f32 %v5014, %v5286
        %5288 = vmatprep.mubr.bf16.mxu0 %v1197
        %5289 = vmatmul.mubr.bf16.gmra.mrb[0].mxu0 %v1196
        %v5290 = vpop.f32.mrb[0].mxu0
        %v5291 = vadd.f32 %v5018, %v5290
        %v5292 = vpop.f32.mrb[0].mxu0
        %v5293 = vadd.f32 %v5020, %v5292
        %v5294 = vpop.f32.mrb[0].mxu0
        %v5295 = vadd.f32 %v5022, %v5294
        %v5296 = vpop.f32.mrb[0].mxu0
        %v5297 = vadd.f32 %v5024, %v5296
        %5298 = vmatprep.mubr.bf16.mxu0 %v1203
        %5299 = vmatmul.mubr.bf16.gmra.mrb[0].mxu0 %v1202
        %v5300 = vpop.f32.mrb[0].mxu0
        %v5301 = vadd.f32 %v5028, %v5300
        %v5302 = vpop.f32.mrb[0].mxu0
        %v5303 = vadd.f32 %v5030, %v5302
        %v5304 = vpop.f32.mrb[0].mxu0
        %v5305 = vadd.f32 %v5032, %v5304
        %v5306 = vpop.f32.mrb[0].mxu0
        %v5307 = vadd.f32 %v5034, %v5306
        %5308 = vmatprep.mubr.bf16.mxu0 %v1209
        %5309 = vmatmul.mubr.bf16.gmra.mrb[0].mxu0 %v1208
        %v5310 = vpop.f32.mrb[0].mxu0
        %v5311 = vadd.f32 %v5038, %v5310
        %v5312 = vpop.f32.mrb[0].mxu0
        %v5313 = vadd.f32 %v5040, %v5312
        %v5314 = vpop.f32.mrb[0].mxu0
        %v5315 = vadd.f32 %v5042, %v5314
        %v5316 = vpop.f32.mrb[0].mxu0
        %v5317 = vadd.f32 %v5044, %v5316
        %5318 = vmatprep.mubr.bf16.mxu0 %v1215
        %5319 = vmatmul.mubr.bf16.gmra.mrb[0].mxu0 %v1214
        %v5320 = vpop.f32.mrb[0].mxu0
        %v5321 = vadd.f32 %v5048, %v5320
        %v5322 = vpop.f32.mrb[0].mxu0
        %v5323 = vadd.f32 %v5050, %v5322
        %v5324 = vpop.f32.mrb[0].mxu0
        %v5325 = vadd.f32 %v5052, %v5324
        %v5326 = vpop.f32.mrb[0].mxu0
        %v5327 = vadd.f32 %v5054, %v5326
        %5328 = vmatprep.mubr.bf16.mxu0 %v1221
        %5329 = vmatmul.mubr.bf16.gmra.mrb[0].mxu0 %v1220
        %v5330 = vpop.f32.mrb[0].mxu0
        %v5331 = vadd.f32 %v5058, %v5330
        %v5332 = vpop.f32.mrb[0].mxu0
        %v5333 = vadd.f32 %v5060, %v5332
        %v5334 = vpop.f32.mrb[0].mxu0
        %v5335 = vadd.f32 %v5062, %v5334
        %v5336 = vpop.f32.mrb[0].mxu0
        %v5337 = vadd.f32 %v5064, %v5336
        %5338 = vmatprep.mubr.bf16.mxu0 %v1227
        %5339 = vmatmul.mubr.bf16.gmra.mrb[0].mxu0 %v1226
        %v5340 = vpop.f32.mrb[0].mxu0
        %v5341 = vadd.f32 %v5068, %v5340
        %v5342 = vpop.f32.mrb[0].mxu0
        %v5343 = vadd.f32 %v5070, %v5342
        %v5344 = vpop.f32.mrb[0].mxu0
        %v5345 = vadd.f32 %v5072, %v5344
        %v5346 = vpop.f32.mrb[0].mxu0
        %v5347 = vadd.f32 %v5074, %v5346
        %5348 = vmatprep.mubr.bf16.mxu0 %v1233
        %5349 = vmatmul.mubr.bf16.gmra.mrb[0].mxu0 %v1232
        %v5350 = vpop.f32.mrb[0].mxu0
        %v5351 = vadd.f32 %v5078, %v5350
        %v5352 = vpop.f32.mrb[0].mxu0
        %v5353 = vadd.f32 %v5080, %v5352
        %v5354 = vpop.f32.mrb[0].mxu0
        %v5355 = vadd.f32 %v5082, %v5354
        %v5356 = vpop.f32.mrb[0].mxu0
        %v5357 = vadd.f32 %v5084, %v5356
        %5358 = vmatprep.mubr.bf16.mxu0 %v1239
        %5359 = vmatmul.mubr.bf16.gmra.mrb[0].mxu0 %v1238
        %v5360 = vpop.f32.mrb[0].mxu0
        %v5361 = vadd.f32 %v5088, %v5360
        %v5362 = vpop.f32.mrb[0].mxu0
        %v5363 = vadd.f32 %v5090, %v5362
        %v5364 = vpop.f32.mrb[0].mxu0
        %v5365 = vadd.f32 %v5092, %v5364
        %v5366 = vpop.f32.mrb[0].mxu0
        %v5367 = vadd.f32 %v5094, %v5366
        %5368 = vmatprep.mubr.bf16.mxu0 %v1245
        %5369 = vmatmul.mubr.bf16.gmra.mrb[0].mxu0 %v1244
        %v5370 = vpop.f32.mrb[0].mxu0
        %v5371 = vadd.f32 %v5098, %v5370
        %v5372 = vpop.f32.mrb[0].mxu0
        %v5373 = vadd.f32 %v5100, %v5372
        %v5374 = vpop.f32.mrb[0].mxu0
        %v5375 = vadd.f32 %v5102, %v5374
        %v5376 = vpop.f32.mrb[0].mxu0
        %v5377 = vadd.f32 %v5104, %v5376
        %5378 = vmatprep.mubr.bf16.mxu0 %v1251
        %5379 = vmatmul.mubr.bf16.gmra.mrb[0].mxu0 %v1250
        %v5380 = vpop.f32.mrb[0].mxu0
        %v5381 = vadd.f32 %v5108, %v5380
        %v5382 = vpop.f32.mrb[0].mxu0
        %v5383 = vadd.f32 %v5110, %v5382
        %v5384 = vpop.f32.mrb[0].mxu0
        %v5385 = vadd.f32 %v5112, %v5384
        %v5386 = vpop.f32.mrb[0].mxu0
        %v5387 = vadd.f32 %v5114, %v5386
        %5388 = vmatprep.mubr.bf16.mxu0 %v1257
        %5389 = vmatmul.mubr.bf16.gmra.mrb[0].mxu0 %v1256
        %v5390 = vpop.f32.mrb[0].mxu0
        %v5391 = vadd.f32 %v5118, %v5390
        %v5392 = vpop.f32.mrb[0].mxu0
        %v5393 = vadd.f32 %v5120, %v5392
        %v5394 = vpop.f32.mrb[0].mxu0
        %v5395 = vadd.f32 %v5122, %v5394
        %v5396 = vpop.f32.mrb[0].mxu0
        %v5397 = vadd.f32 %v5124, %v5396
        %5398 = vmatprep.mubr.bf16.mxu0 %v1263
        %5399 = vmatmul.mubr.bf16.gmra.mrb[0].mxu0 %v1262
        %v5400 = vpop.f32.mrb[0].mxu0
        %v5401 = vadd.f32 %v5128, %v5400
        %v5402 = vpop.f32.mrb[0].mxu0
        %v5403 = vadd.f32 %v5130, %v5402
        %v5404 = vpop.f32.mrb[0].mxu0
        %v5405 = vadd.f32 %v5132, %v5404
        %v5406 = vpop.f32.mrb[0].mxu0
        %v5407 = vadd.f32 %v5134, %v5406
        %5408 = vmatprep.mubr.bf16.mxu0 %v1269
        %5409 = vmatmul.mubr.bf16.gmra.mrb[0].mxu0 %v1268
        %v5410 = vpop.f32.mrb[0].mxu0
        %v5411 = vadd.f32 %v5138, %v5410
        %v5412 = vpop.f32.mrb[0].mxu0
        %v5413 = vadd.f32 %v5140, %v5412
        %v5414 = vpop.f32.mrb[0].mxu0
        %v5415 = vadd.f32 %v5142, %v5414
        %v5416 = vpop.f32.mrb[0].mxu0
        %v5417 = vadd.f32 %v5144, %v5416
        %5418 = vmatprep.mubr.bf16.mxu0 %v1275
        %5419 = vmatmul.mubr.bf16.gmra.mrb[0].mxu0 %v1274
        %v5420 = vpop.f32.mrb[0].mxu0
        %v5421 = vadd.f32 %v5148, %v5420
        %v5422 = vpop.f32.mrb[0].mxu0
        %v5423 = vadd.f32 %v5150, %v5422
        %v5424 = vpop.f32.mrb[0].mxu0
        %v5425 = vadd.f32 %v5152, %v5424
        %v5426 = vpop.f32.mrb[0].mxu0
        %v5427 = vadd.f32 %v5154, %v5426
        %5428 = vmatprep.mubr.bf16.mxu0 %v1281
        %5429 = vmatmul.mubr.bf16.gmra.mrb[0].mxu0 %v1280
        %v5430 = vpop.f32.mrb[0].mxu0
        %v5431 = vadd.f32 %v5158, %v5430
        %v5432 = vpop.f32.mrb[0].mxu0
        %v5433 = vadd.f32 %v5160, %v5432
        %v5434 = vpop.f32.mrb[0].mxu0
        %v5435 = vadd.f32 %v5162, %v5434
        %v5436 = vpop.f32.mrb[0].mxu0
        %v5437 = vadd.f32 %v5164, %v5436
        %5438 = vmatprep.mubr.bf16.mxu0 %v1287
        %5439 = vmatmul.mubr.bf16.gmra.mrb[0].mxu0 %v1286
        %v5440 = vpop.f32.mrb[0].mxu0
        %v5441 = vadd.f32 %v5168, %v5440
        %v5442 = vpop.f32.mrb[0].mxu0
        %v5443 = vadd.f32 %v5170, %v5442
        %v5444 = vpop.f32.mrb[0].mxu0
        %v5445 = vadd.f32 %v5172, %v5444
        %v5446 = vpop.f32.mrb[0].mxu0
        %v5447 = vadd.f32 %v5174, %v5446
        %5448 = vmatprep.mubr.bf16.mxu0 %v1293
        %5449 = vmatmul.mubr.bf16.gmra.mrb[0].mxu0 %v1292
        %v5450 = vpop.f32.mrb[0].mxu0
        %v5451 = vadd.f32 %v5178, %v5450
        %v5452 = vpop.f32.mrb[0].mxu0
        %v5453 = vadd.f32 %v5180, %v5452
        %v5454 = vpop.f32.mrb[0].mxu0
        %v5455 = vadd.f32 %v5182, %v5454
        %v5456 = vpop.f32.mrb[0].mxu0
        %v5457 = vadd.f32 %v5184, %v5456
        %5458 = vmatprep.mubr.bf16.mxu0 %v1299
        %5459 = vmatmul.mubr.bf16.gmra.mrb[0].mxu0 %v1298
        %v5460 = vpop.f32.mrb[0].mxu0
        %v5461 = vadd.f32 %v5188, %v5460
        %v5462 = vpop.f32.mrb[0].mxu0
        %v5463 = vadd.f32 %v5190, %v5462
        %v5464 = vpop.f32.mrb[0].mxu0
        %v5465 = vadd.f32 %v5192, %v5464
        %v5466 = vpop.f32.mrb[0].mxu0
        %v5467 = vadd.f32 %v5194, %v5466
        %5468 = vmatprep.mubr.bf16.mxu0 %v1305
        %5469 = vmatmul.mubr.bf16.gmra.mrb[0].mxu0 %v1304
        %v5470 = vpop.f32.mrb[0].mxu0
        %v5471 = vadd.f32 %v5198, %v5470
        %v5472 = vpop.f32.mrb[0].mxu0
        %v5473 = vadd.f32 %v5200, %v5472
        %v5474 = vpop.f32.mrb[0].mxu0
        %v5475 = vadd.f32 %v5202, %v5474
        %v5476 = vpop.f32.mrb[0].mxu0
        %v5477 = vadd.f32 %v5204, %v5476
        %5478 = vmatprep.mubr.bf16.mxu0 %v1311
        %5479 = vmatmul.mubr.bf16.gmra.mrb[0].mxu0 %v1310
        %v5480 = vpop.f32.mrb[0].mxu0
        %v5481 = vadd.f32 %v5208, %v5480
        %v5482 = vpop.f32.mrb[0].mxu0
        %v5483 = vadd.f32 %v5210, %v5482
        %v5484 = vpop.f32.mrb[0].mxu0
        %v5485 = vadd.f32 %v5212, %v5484
        %v5486 = vpop.f32.mrb[0].mxu0
        %v5487 = vadd.f32 %v5214, %v5486
        %5488 = vmatprep.mubr.bf16.mxu0 %v1317
        %5489 = vmatmul.mubr.bf16.gmra.mrb[0].mxu0 %v1316
        %v5490 = vpop.f32.mrb[0].mxu0
        %v5491 = vadd.f32 %v5218, %v5490
        %v5492 = vpop.f32.mrb[0].mxu0
        %v5493 = vadd.f32 %v5220, %v5492
        %v5494 = vpop.f32.mrb[0].mxu0
        %v5495 = vadd.f32 %v5222, %v5494
        %v5496 = vpop.f32.mrb[0].mxu0
        %v5497 = vadd.f32 %v5224, %v5496
        %5498 = vmatprep.mubr.bf16.mxu0 %v1323
        %5499 = vmatmul.mubr.bf16.gmra.mrb[0].mxu0 %v1322
        %v5500 = vpop.f32.mrb[0].mxu0
        %v5501 = vadd.f32 %v5228, %v5500
        %v5502 = vpop.f32.mrb[0].mxu0
        %v5503 = vadd.f32 %v5230, %v5502
        %v5504 = vpop.f32.mrb[0].mxu0
        %v5505 = vadd.f32 %v5232, %v5504
        %v5506 = vpop.f32.mrb[0].mxu0
        %v5507 = vadd.f32 %v5234, %v5506
        %5508 = vdwg.mxu0
        %v5509 = vadd.f32 %v604, %v3633
        %v5510 = vadd.f32 %v605, %v3635
        %v5511 = vadd.f32 %v606, %v4452
        %v5512 = vadd.f32 %v607, %v4454
        %v5513 = vadd.f32 %v608, %v5271
        %v5514 = vadd.f32 %v609, %v5273
        %v5515 = vadd.f32 %v610, %v3637
        %v5516 = vadd.f32 %v611, %v3639
        %v5517 = vadd.f32 %v612, %v4456
        %v5518 = vadd.f32 %v613, %v4458
        %v5519 = vadd.f32 %v614, %v5275
        %v5520 = vadd.f32 %v615, %v5277
        %v5521 = vadd.f32 %v616, %v3643
        %v5522 = vadd.f32 %v617, %v3645
        %v5523 = vadd.f32 %v618, %v4462
        %v5524 = vadd.f32 %v619, %v4464
        %v5525 = vadd.f32 %v620, %v5281
        %v5526 = vadd.f32 %v621, %v5283
        %v5527 = vadd.f32 %v622, %v3647
        %v5528 = vadd.f32 %v623, %v3649
        %v5529 = vadd.f32 %v624, %v4466
        %v5530 = vadd.f32 %v625, %v4468
        %v5531 = vadd.f32 %v626, %v5285
        %v5532 = vadd.f32 %v627, %v5287
        %v5533 = vadd.f32 %v628, %v3653
        %v5534 = vadd.f32 %v629, %v3655
        %v5535 = vadd.f32 %v630, %v4472
        %v5536 = vadd.f32 %v631, %v4474
        %v5537 = vadd.f32 %v632, %v5291
        %v5538 = vadd.f32 %v633, %v5293
        %v5539 = vadd.f32 %v634, %v3657
        %v5540 = vadd.f32 %v635, %v3659
        %v5541 = vadd.f32 %v636, %v4476
        %v5542 = vadd.f32 %v637, %v4478
        %v5543 = vadd.f32 %v638, %v5295
        %v5544 = vadd.f32 %v639, %v5297
        %v5545 = vadd.f32 %v640, %v3663
        %v5546 = vadd.f32 %v641, %v3665
        %v5547 = vadd.f32 %v642, %v4482
        %v5548 = vadd.f32 %v643, %v4484
        %v5549 = vadd.f32 %v644, %v5301
        %v5550 = vadd.f32 %v645, %v5303
        %v5551 = vadd.f32 %v646, %v3667
        %v5552 = vadd.f32 %v647, %v3669
        %v5553 = vadd.f32 %v648, %v4486
        %v5554 = vadd.f32 %v649, %v4488
        %v5555 = vadd.f32 %v650, %v5305
        %v5556 = vadd.f32 %v651, %v5307
        %v5557 = vadd.f32 %v652, %v3673
        %v5558 = vadd.f32 %v653, %v3675
        %v5559 = vadd.f32 %v654, %v4492
        %v5560 = vadd.f32 %v655, %v4494
        %v5561 = vadd.f32 %v656, %v5311
        %v5562 = vadd.f32 %v657, %v5313
        %v5563 = vadd.f32 %v658, %v3677
        %v5564 = vadd.f32 %v659, %v3679
        %v5565 = vadd.f32 %v660, %v4496
        %v5566 = vadd.f32 %v661, %v4498
        %v5567 = vadd.f32 %v662, %v5315
        %v5568 = vadd.f32 %v663, %v5317
        %v5569 = vadd.f32 %v664, %v3683
        %v5570 = vadd.f32 %v665, %v3685
        %v5571 = vadd.f32 %v666, %v4502
        %v5572 = vadd.f32 %v667, %v4504
        %v5573 = vadd.f32 %v668, %v5321
        %v5574 = vadd.f32 %v669, %v5323
        %v5575 = vadd.f32 %v670, %v3687
        %v5576 = vadd.f32 %v671, %v3689
        %v5577 = vadd.f32 %v672, %v4506
        %v5578 = vadd.f32 %v673, %v4508
        %v5579 = vadd.f32 %v674, %v5325
        %v5580 = vadd.f32 %v675, %v5327
        %v5581 = vadd.f32 %v676, %v3693
        %v5582 = vadd.f32 %v677, %v3695
        %v5583 = vadd.f32 %v678, %v4512
        %v5584 = vadd.f32 %v679, %v4514
        %v5585 = vadd.f32 %v680, %v5331
        %v5586 = vadd.f32 %v681, %v5333
        %v5587 = vadd.f32 %v682, %v3697
        %v5588 = vadd.f32 %v683, %v3699
        %v5589 = vadd.f32 %v684, %v4516
        %v5590 = vadd.f32 %v685, %v4518
        %v5591 = vadd.f32 %v686, %v5335
        %v5592 = vadd.f32 %v687, %v5337
        %v5593 = vadd.f32 %v688, %v3703
        %v5594 = vadd.f32 %v689, %v3705
        %v5595 = vadd.f32 %v690, %v4522
        %v5596 = vadd.f32 %v691, %v4524
        %v5597 = vadd.f32 %v692, %v5341
        %v5598 = vadd.f32 %v693, %v5343
        %v5599 = vadd.f32 %v694, %v3707
        %v5600 = vadd.f32 %v695, %v3709
        %v5601 = vadd.f32 %v696, %v4526
        %v5602 = vadd.f32 %v697, %v4528
        %v5603 = vadd.f32 %v698, %v5345
        %v5604 = vadd.f32 %v699, %v5347
        %v5605 = vadd.f32 %v700, %v3713
        %v5606 = vadd.f32 %v701, %v3715
        %v5607 = vadd.f32 %v702, %v4532
        %v5608 = vadd.f32 %v703, %v4534
        %v5609 = vadd.f32 %v704, %v5351
        %v5610 = vadd.f32 %v705, %v5353
        %v5611 = vadd.f32 %v706, %v3717
        %v5612 = vadd.f32 %v707, %v3719
        %v5613 = vadd.f32 %v708, %v4536
        %v5614 = vadd.f32 %v709, %v4538
        %v5615 = vadd.f32 %v710, %v5355
        %v5616 = vadd.f32 %v711, %v5357
        %v5617 = vadd.f32 %v712, %v3723
        %v5618 = vadd.f32 %v713, %v3725
        %v5619 = vadd.f32 %v714, %v4542
        %v5620 = vadd.f32 %v715, %v4544
        %v5621 = vadd.f32 %v716, %v5361
        %v5622 = vadd.f32 %v717, %v5363
        %v5623 = vadd.f32 %v718, %v3727
        %v5624 = vadd.f32 %v719, %v3729
        %v5625 = vadd.f32 %v720, %v4546
        %v5626 = vadd.f32 %v721, %v4548
        %v5627 = vadd.f32 %v722, %v5365
        %v5628 = vadd.f32 %v723, %v5367
        %v5629 = vadd.f32 %v724, %v3733
        %v5630 = vadd.f32 %v725, %v3735
        %v5631 = vadd.f32 %v726, %v4552
        %v5632 = vadd.f32 %v727, %v4554
        %v5633 = vadd.f32 %v728, %v5371
        %v5634 = vadd.f32 %v729, %v5373
        %v5635 = vadd.f32 %v730, %v3737
        %v5636 = vadd.f32 %v731, %v3739
        %v5637 = vadd.f32 %v732, %v4556
        %v5638 = vadd.f32 %v733, %v4558
        %v5639 = vadd.f32 %v734, %v5375
        %v5640 = vadd.f32 %v735, %v5377
        %v5641 = vadd.f32 %v736, %v3743
        %v5642 = vadd.f32 %v737, %v3745
        %v5643 = vadd.f32 %v738, %v4562
        %v5644 = vadd.f32 %v739, %v4564
        %v5645 = vadd.f32 %v740, %v5381
        %v5646 = vadd.f32 %v741, %v5383
        %v5647 = vadd.f32 %v742, %v3747
        %v5648 = vadd.f32 %v743, %v3749
        %v5649 = vadd.f32 %v744, %v4566
        %v5650 = vadd.f32 %v745, %v4568
        %v5651 = vadd.f32 %v746, %v5385
        %v5652 = vadd.f32 %v747, %v5387
        %v5653 = vadd.f32 %v748, %v3753
        %v5654 = vadd.f32 %v749, %v3755
        %v5655 = vadd.f32 %v750, %v4572
        %v5656 = vadd.f32 %v751, %v4574
        %v5657 = vadd.f32 %v752, %v5391
        %v5658 = vadd.f32 %v753, %v5393
        %v5659 = vadd.f32 %v754, %v3757
        %v5660 = vadd.f32 %v755, %v3759
        %v5661 = vadd.f32 %v756, %v4576
        %v5662 = vadd.f32 %v757, %v4578
        %v5663 = vadd.f32 %v758, %v5395
        %v5664 = vadd.f32 %v759, %v5397
        %v5665 = vadd.f32 %v760, %v3763
        %v5666 = vadd.f32 %v761, %v3765
        %v5667 = vadd.f32 %v762, %v4582
        %v5668 = vadd.f32 %v763, %v4584
        %v5669 = vadd.f32 %v764, %v5401
        %v5670 = vadd.f32 %v765, %v5403
        %v5671 = vadd.f32 %v766, %v3767
        %v5672 = vadd.f32 %v767, %v3769
        %v5673 = vadd.f32 %v768, %v4586
        %v5674 = vadd.f32 %v769, %v4588
        %v5675 = vadd.f32 %v770, %v5405
        %v5676 = vadd.f32 %v771, %v5407
        %v5677 = vadd.f32 %v772, %v3773
        %v5678 = vadd.f32 %v773, %v3775
        %v5679 = vadd.f32 %v774, %v4592
        %v5680 = vadd.f32 %v775, %v4594
        %v5681 = vadd.f32 %v776, %v5411
        %v5682 = vadd.f32 %v777, %v5413
        %v5683 = vadd.f32 %v778, %v3777
        %v5684 = vadd.f32 %v779, %v3779
        %v5685 = vadd.f32 %v780, %v4596
        %v5686 = vadd.f32 %v781, %v4598
        %v5687 = vadd.f32 %v782, %v5415
        %v5688 = vadd.f32 %v783, %v5417
        %v5689 = vadd.f32 %v784, %v3783
        %v5690 = vadd.f32 %v785, %v3785
        %v5691 = vadd.f32 %v786, %v4602
        %v5692 = vadd.f32 %v787, %v4604
        %v5693 = vadd.f32 %v788, %v5421
        %v5694 = vadd.f32 %v789, %v5423
        %v5695 = vadd.f32 %v790, %v3787
        %v5696 = vadd.f32 %v791, %v3789
        %v5697 = vadd.f32 %v792, %v4606
        %v5698 = vadd.f32 %v793, %v4608
        %v5699 = vadd.f32 %v794, %v5425
        %v5700 = vadd.f32 %v795, %v5427
        %v5701 = vadd.f32 %v796, %v3793
        %v5702 = vadd.f32 %v797, %v3795
        %v5703 = vadd.f32 %v798, %v4612
        %v5704 = vadd.f32 %v799, %v4614
        %v5705 = vadd.f32 %v800, %v5431
        %v5706 = vadd.f32 %v801, %v5433
        %v5707 = vadd.f32 %v802, %v3797
        %v5708 = vadd.f32 %v803, %v3799
        %v5709 = vadd.f32 %v804, %v4616
        %v5710 = vadd.f32 %v805, %v4618
        %v5711 = vadd.f32 %v806, %v5435
        %v5712 = vadd.f32 %v807, %v5437
        %v5713 = vadd.f32 %v808, %v3803
        %v5714 = vadd.f32 %v809, %v3805
        %v5715 = vadd.f32 %v810, %v4622
        %v5716 = vadd.f32 %v811, %v4624
        %v5717 = vadd.f32 %v812, %v5441
        %v5718 = vadd.f32 %v813, %v5443
        %v5719 = vadd.f32 %v814, %v3807
        %v5720 = vadd.f32 %v815, %v3809
        %v5721 = vadd.f32 %v816, %v4626
        %v5722 = vadd.f32 %v817, %v4628
        %v5723 = vadd.f32 %v818, %v5445
        %v5724 = vadd.f32 %v819, %v5447
        %v5725 = vadd.f32 %v820, %v3813
        %v5726 = vadd.f32 %v821, %v3815
        %v5727 = vadd.f32 %v822, %v4632
        %v5728 = vadd.f32 %v823, %v4634
        %v5729 = vadd.f32 %v824, %v5451
        %v5730 = vadd.f32 %v825, %v5453
        %v5731 = vadd.f32 %v826, %v3817
        %v5732 = vadd.f32 %v827, %v3819
        %v5733 = vadd.f32 %v828, %v4636
        %v5734 = vadd.f32 %v829, %v4638
        %v5735 = vadd.f32 %v830, %v5455
        %v5736 = vadd.f32 %v831, %v5457
        %v5737 = vadd.f32 %v832, %v3823
        %v5738 = vadd.f32 %v833, %v3825
        %v5739 = vadd.f32 %v834, %v4642
        %v5740 = vadd.f32 %v835, %v4644
        %v5741 = vadd.f32 %v836, %v5461
        %v5742 = vadd.f32 %v837, %v5463
        %v5743 = vadd.f32 %v838, %v3827
        %v5744 = vadd.f32 %v839, %v3829
        %v5745 = vadd.f32 %v840, %v4646
        %v5746 = vadd.f32 %v841, %v4648
        %v5747 = vadd.f32 %v842, %v5465
        %v5748 = vadd.f32 %v843, %v5467
        %v5749 = vadd.f32 %v844, %v3833
        %v5750 = vadd.f32 %v845, %v3835
        %v5751 = vadd.f32 %v846, %v4652
        %v5752 = vadd.f32 %v847, %v4654
        %v5753 = vadd.f32 %v848, %v5471
        %v5754 = vadd.f32 %v849, %v5473
        %v5755 = vadd.f32 %v850, %v3837
        %v5756 = vadd.f32 %v851, %v3839
        %v5757 = vadd.f32 %v852, %v4656
        %v5758 = vadd.f32 %v853, %v4658
        %v5759 = vadd.f32 %v854, %v5475
        %v5760 = vadd.f32 %v855, %v5477
        %v5761 = vadd.f32 %v856, %v3843
        %v5762 = vadd.f32 %v857, %v3845
        %v5763 = vadd.f32 %v858, %v4662
        %v5764 = vadd.f32 %v859, %v4664
        %v5765 = vadd.f32 %v860, %v5481
        %v5766 = vadd.f32 %v861, %v5483
        %v5767 = vadd.f32 %v862, %v3847
        %v5768 = vadd.f32 %v863, %v3849
        %v5769 = vadd.f32 %v864, %v4666
        %v5770 = vadd.f32 %v865, %v4668
        %v5771 = vadd.f32 %v866, %v5485
        %v5772 = vadd.f32 %v867, %v5487
        %v5773 = vadd.f32 %v868, %v3853
        %v5774 = vadd.f32 %v869, %v3855
        %v5775 = vadd.f32 %v870, %v4672
        %v5776 = vadd.f32 %v871, %v4674
        %v5777 = vadd.f32 %v872, %v5491
        %v5778 = vadd.f32 %v873, %v5493
        %v5779 = vadd.f32 %v874, %v3857
        %v5780 = vadd.f32 %v875, %v3859
        %v5781 = vadd.f32 %v876, %v4676
        %v5782 = vadd.f32 %v877, %v4678
        %v5783 = vadd.f32 %v878, %v5495
        %v5784 = vadd.f32 %v879, %v5497
        %v5785 = vadd.f32 %v880, %v3863
        %v5786 = vadd.f32 %v881, %v3865
        %v5787 = vadd.f32 %v882, %v4682
        %v5788 = vadd.f32 %v883, %v4684
        %v5789 = vadd.f32 %v884, %v5501
        %v5790 = vadd.f32 %v885, %v5503
        %v5791 = vadd.f32 %v886, %v3867
        %v5792 = vadd.f32 %v887, %v3869
        %v5793 = vadd.f32 %v888, %v4686
        %v5794 = vadd.f32 %v889, %v4688
        %v5795 = vadd.f32 %v890, %v5505
        %v5796 = vadd.f32 %v891, %v5507
        %5797 = vst [vmem:[#allocation2] sm:$0xff] %v5509
        %5798 = vst [vmem:[#allocation2 + $0x8] sm:$0xff] %v5510
        %5799 = vst [vmem:[#allocation2 + $0x10] sm:$0xff] %v5511
        %5800 = vst [vmem:[#allocation2 + $0x18] sm:$0xff] %v5512
        %5801 = vst [vmem:[#allocation2 + $0x20] sm:$0xff] %v5513
        %5802 = vst [vmem:[#allocation2 + $0x28] sm:$0xff] %v5514
        %5803 = vst [vmem:[#allocation2 + $0x30] sm:$0xff] %v5515
        %5804 = vst [vmem:[#allocation2 + $0x38] sm:$0xff] %v5516
        %5805 = vst [vmem:[#allocation2 + $0x40] sm:$0xff] %v5517
        %5806 = vst [vmem:[#allocation2 + $0x48] sm:$0xff] %v5518
        %5807 = vst [vmem:[#allocation2 + $0x50] sm:$0xff] %v5519
        %5808 = vst [vmem:[#allocation2 + $0x58] sm:$0xff] %v5520
        %5809 = vst [vmem:[#allocation2 + $0x60] sm:$0xff] %v5521
        %5810 = vst [vmem:[#allocation2 + $0x68] sm:$0xff] %v5522
        %5811 = vst [vmem:[#allocation2 + $0x70] sm:$0xff] %v5523
        %5812 = vst [vmem:[#allocation2 + $0x78] sm:$0xff] %v5524
        %5813 = vst [vmem:[#allocation2 + $0x80] sm:$0xff] %v5525
        %5814 = vst [vmem:[#allocation2 + $0x88] sm:$0xff] %v5526
        %5815 = vst [vmem:[#allocation2 + $0x90] sm:$0xff] %v5527
        %5816 = vst [vmem:[#allocation2 + $0x98] sm:$0xff] %v5528
        %5817 = vst [vmem:[#allocation2 + $0xa0] sm:$0xff] %v5529
        %5818 = vst [vmem:[#allocation2 + $0xa8] sm:$0xff] %v5530
        %5819 = vst [vmem:[#allocation2 + $0xb0] sm:$0xff] %v5531
        %5820 = vst [vmem:[#allocation2 + $0xb8] sm:$0xff] %v5532
        %5821 = vst [vmem:[#allocation2 + $0xc0] sm:$0xff] %v5533
        %5822 = vst [vmem:[#allocation2 + $0xc8] sm:$0xff] %v5534
        %5823 = vst [vmem:[#allocation2 + $0xd0] sm:$0xff] %v5535
        %5824 = vst [vmem:[#allocation2 + $0xd8] sm:$0xff] %v5536
        %5825 = vst [vmem:[#allocation2 + $0xe0] sm:$0xff] %v5537
        %5826 = vst [vmem:[#allocation2 + $0xe8] sm:$0xff] %v5538
        %5827 = vst [vmem:[#allocation2 + $0xf0] sm:$0xff] %v5539
        %5828 = vst [vmem:[#allocation2 + $0xf8] sm:$0xff] %v5540
        %5829 = vst [vmem:[#allocation2 + $0x100] sm:$0xff] %v5541
        %5830 = vst [vmem:[#allocation2 + $0x108] sm:$0xff] %v5542
        %5831 = vst [vmem:[#allocation2 + $0x110] sm:$0xff] %v5543
        %5832 = vst [vmem:[#allocation2 + $0x118] sm:$0xff] %v5544
        %5833 = vst [vmem:[#allocation2 + $0x120] sm:$0xff] %v5545
        %5834 = vst [vmem:[#allocation2 + $0x128] sm:$0xff] %v5546
        %5835 = vst [vmem:[#allocation2 + $0x130] sm:$0xff] %v5547
        %5836 = vst [vmem:[#allocation2 + $0x138] sm:$0xff] %v5548
        %5837 = vst [vmem:[#allocation2 + $0x140] sm:$0xff] %v5549
        %5838 = vst [vmem:[#allocation2 + $0x148] sm:$0xff] %v5550
        %5839 = vst [vmem:[#allocation2 + $0x150] sm:$0xff] %v5551
        %5840 = vst [vmem:[#allocation2 + $0x158] sm:$0xff] %v5552
        %5841 = vst [vmem:[#allocation2 + $0x160] sm:$0xff] %v5553
        %5842 = vst [vmem:[#allocation2 + $0x168] sm:$0xff] %v5554
        %5843 = vst [vmem:[#allocation2 + $0x170] sm:$0xff] %v5555
        %5844 = vst [vmem:[#allocation2 + $0x178] sm:$0xff] %v5556
        %5845 = vst [vmem:[#allocation2 + $0x180] sm:$0xff] %v5557
        %5846 = vst [vmem:[#allocation2 + $0x188] sm:$0xff] %v5558
        %5847 = vst [vmem:[#allocation2 + $0x190] sm:$0xff] %v5559
        %5848 = vst [vmem:[#allocation2 + $0x198] sm:$0xff] %v5560
        %5849 = vst [vmem:[#allocation2 + $0x1a0] sm:$0xff] %v5561
        %5850 = vst [vmem:[#allocation2 + $0x1a8] sm:$0xff] %v5562
        %5851 = vst [vmem:[#allocation2 + $0x1b0] sm:$0xff] %v5563
        %5852 = vst [vmem:[#allocation2 + $0x1b8] sm:$0xff] %v5564
        %5853 = vst [vmem:[#allocation2 + $0x1c0] sm:$0xff] %v5565
        %5854 = vst [vmem:[#allocation2 + $0x1c8] sm:$0xff] %v5566
        %5855 = vst [vmem:[#allocation2 + $0x1d0] sm:$0xff] %v5567
        %5856 = vst [vmem:[#allocation2 + $0x1d8] sm:$0xff] %v5568
        %5857 = vst [vmem:[#allocation2 + $0x1e0] sm:$0xff] %v5569
        %5858 = vst [vmem:[#allocation2 + $0x1e8] sm:$0xff] %v5570
        %5859 = vst [vmem:[#allocation2 + $0x1f0] sm:$0xff] %v5571
        %5860 = vst [vmem:[#allocation2 + $0x1f8] sm:$0xff] %v5572
        %5861 = vst [vmem:[#allocation2 + $0x200] sm:$0xff] %v5573
        %5862 = vst [vmem:[#allocation2 + $0x208] sm:$0xff] %v5574
        %5863 = vst [vmem:[#allocation2 + $0x210] sm:$0xff] %v5575
        %5864 = vst [vmem:[#allocation2 + $0x218] sm:$0xff] %v5576
        %5865 = vst [vmem:[#allocation2 + $0x220] sm:$0xff] %v5577
        %5866 = vst [vmem:[#allocation2 + $0x228] sm:$0xff] %v5578
        %5867 = vst [vmem:[#allocation2 + $0x230] sm:$0xff] %v5579
        %5868 = vst [vmem:[#allocation2 + $0x238] sm:$0xff] %v5580
        %5869 = vst [vmem:[#allocation2 + $0x240] sm:$0xff] %v5581
        %5870 = vst [vmem:[#allocation2 + $0x248] sm:$0xff] %v5582
        %5871 = vst [vmem:[#allocation2 + $0x250] sm:$0xff] %v5583
        %5872 = vst [vmem:[#allocation2 + $0x258] sm:$0xff] %v5584
        %5873 = vst [vmem:[#allocation2 + $0x260] sm:$0xff] %v5585
        %5874 = vst [vmem:[#allocation2 + $0x268] sm:$0xff] %v5586
        %5875 = vst [vmem:[#allocation2 + $0x270] sm:$0xff] %v5587
        %5876 = vst [vmem:[#allocation2 + $0x278] sm:$0xff] %v5588
        %5877 = vst [vmem:[#allocation2 + $0x280] sm:$0xff] %v5589
        %5878 = vst [vmem:[#allocation2 + $0x288] sm:$0xff] %v5590
        %5879 = vst [vmem:[#allocation2 + $0x290] sm:$0xff] %v5591
        %5880 = vst [vmem:[#allocation2 + $0x298] sm:$0xff] %v5592
        %5881 = vst [vmem:[#allocation2 + $0x2a0] sm:$0xff] %v5593
        %5882 = vst [vmem:[#allocation2 + $0x2a8] sm:$0xff] %v5594
        %5883 = vst [vmem:[#allocation2 + $0x2b0] sm:$0xff] %v5595
        %5884 = vst [vmem:[#allocation2 + $0x2b8] sm:$0xff] %v5596
        %5885 = vst [vmem:[#allocation2 + $0x2c0] sm:$0xff] %v5597
        %5886 = vst [vmem:[#allocation2 + $0x2c8] sm:$0xff] %v5598
        %5887 = vst [vmem:[#allocation2 + $0x2d0] sm:$0xff] %v5599
        %5888 = vst [vmem:[#allocation2 + $0x2d8] sm:$0xff] %v5600
        %5889 = vst [vmem:[#allocation2 + $0x2e0] sm:$0xff] %v5601
        %5890 = vst [vmem:[#allocation2 + $0x2e8] sm:$0xff] %v5602
        %5891 = vst [vmem:[#allocation2 + $0x2f0] sm:$0xff] %v5603
        %5892 = vst [vmem:[#allocation2 + $0x2f8] sm:$0xff] %v5604
        %5893 = vst [vmem:[#allocation2 + $0x300] sm:$0xff] %v5605
        %5894 = vst [vmem:[#allocation2 + $0x308] sm:$0xff] %v5606
        %5895 = vst [vmem:[#allocation2 + $0x310] sm:$0xff] %v5607
        %5896 = vst [vmem:[#allocation2 + $0x318] sm:$0xff] %v5608
        %5897 = vst [vmem:[#allocation2 + $0x320] sm:$0xff] %v5609
        %5898 = vst [vmem:[#allocation2 + $0x328] sm:$0xff] %v5610
        %5899 = vst [vmem:[#allocation2 + $0x330] sm:$0xff] %v5611
        %5900 = vst [vmem:[#allocation2 + $0x338] sm:$0xff] %v5612
        %5901 = vst [vmem:[#allocation2 + $0x340] sm:$0xff] %v5613
        %5902 = vst [vmem:[#allocation2 + $0x348] sm:$0xff] %v5614
        %5903 = vst [vmem:[#allocation2 + $0x350] sm:$0xff] %v5615
        %5904 = vst [vmem:[#allocation2 + $0x358] sm:$0xff] %v5616
        %5905 = vst [vmem:[#allocation2 + $0x360] sm:$0xff] %v5617
        %5906 = vst [vmem:[#allocation2 + $0x368] sm:$0xff] %v5618
        %5907 = vst [vmem:[#allocation2 + $0x370] sm:$0xff] %v5619
        %5908 = vst [vmem:[#allocation2 + $0x378] sm:$0xff] %v5620
        %5909 = vst [vmem:[#allocation2 + $0x380] sm:$0xff] %v5621
        %5910 = vst [vmem:[#allocation2 + $0x388] sm:$0xff] %v5622
        %5911 = vst [vmem:[#allocation2 + $0x390] sm:$0xff] %v5623
        %5912 = vst [vmem:[#allocation2 + $0x398] sm:$0xff] %v5624
        %5913 = vst [vmem:[#allocation2 + $0x3a0] sm:$0xff] %v5625
        %5914 = vst [vmem:[#allocation2 + $0x3a8] sm:$0xff] %v5626
        %5915 = vst [vmem:[#allocation2 + $0x3b0] sm:$0xff] %v5627
        %5916 = vst [vmem:[#allocation2 + $0x3b8] sm:$0xff] %v5628
        %5917 = vst [vmem:[#allocation2 + $0x3c0] sm:$0xff] %v5629
        %5918 = vst [vmem:[#allocation2 + $0x3c8] sm:$0xff] %v5630
        %5919 = vst [vmem:[#allocation2 + $0x3d0] sm:$0xff] %v5631
        %5920 = vst [vmem:[#allocation2 + $0x3d8] sm:$0xff] %v5632
        %5921 = vst [vmem:[#allocation2 + $0x3e0] sm:$0xff] %v5633
        %5922 = vst [vmem:[#allocation2 + $0x3e8] sm:$0xff] %v5634
        %5923 = vst [vmem:[#allocation2 + $0x3f0] sm:$0xff] %v5635
        %5924 = vst [vmem:[#allocation2 + $0x3f8] sm:$0xff] %v5636
        %5925 = vst [vmem:[#allocation2 + $0x400] sm:$0xff] %v5637
        %5926 = vst [vmem:[#allocation2 + $0x408] sm:$0xff] %v5638
        %5927 = vst [vmem:[#allocation2 + $0x410] sm:$0xff] %v5639
        %5928 = vst [vmem:[#allocation2 + $0x418] sm:$0xff] %v5640
        %5929 = vst [vmem:[#allocation2 + $0x420] sm:$0xff] %v5641
        %5930 = vst [vmem:[#allocation2 + $0x428] sm:$0xff] %v5642
        %5931 = vst [vmem:[#allocation2 + $0x430] sm:$0xff] %v5643
        %5932 = vst [vmem:[#allocation2 + $0x438] sm:$0xff] %v5644
        %5933 = vst [vmem:[#allocation2 + $0x440] sm:$0xff] %v5645
        %5934 = vst [vmem:[#allocation2 + $0x448] sm:$0xff] %v5646
        %5935 = vst [vmem:[#allocation2 + $0x450] sm:$0xff] %v5647
        %5936 = vst [vmem:[#allocation2 + $0x458] sm:$0xff] %v5648
        %5937 = vst [vmem:[#allocation2 + $0x460] sm:$0xff] %v5649
        %5938 = vst [vmem:[#allocation2 + $0x468] sm:$0xff] %v5650
        %5939 = vst [vmem:[#allocation2 + $0x470] sm:$0xff] %v5651
        %5940 = vst [vmem:[#allocation2 + $0x478] sm:$0xff] %v5652
        %5941 = vst [vmem:[#allocation2 + $0x480] sm:$0xff] %v5653
        %5942 = vst [vmem:[#allocation2 + $0x488] sm:$0xff] %v5654
        %5943 = vst [vmem:[#allocation2 + $0x490] sm:$0xff] %v5655
        %5944 = vst [vmem:[#allocation2 + $0x498] sm:$0xff] %v5656
        %5945 = vst [vmem:[#allocation2 + $0x4a0] sm:$0xff] %v5657
        %5946 = vst [vmem:[#allocation2 + $0x4a8] sm:$0xff] %v5658
        %5947 = vst [vmem:[#allocation2 + $0x4b0] sm:$0xff] %v5659
        %5948 = vst [vmem:[#allocation2 + $0x4b8] sm:$0xff] %v5660
        %5949 = vst [vmem:[#allocation2 + $0x4c0] sm:$0xff] %v5661
        %5950 = vst [vmem:[#allocation2 + $0x4c8] sm:$0xff] %v5662
        %5951 = vst [vmem:[#allocation2 + $0x4d0] sm:$0xff] %v5663
        %5952 = vst [vmem:[#allocation2 + $0x4d8] sm:$0xff] %v5664
        %5953 = vst [vmem:[#allocation2 + $0x4e0] sm:$0xff] %v5665
        %5954 = vst [vmem:[#allocation2 + $0x4e8] sm:$0xff] %v5666
        %5955 = vst [vmem:[#allocation2 + $0x4f0] sm:$0xff] %v5667
        %5956 = vst [vmem:[#allocation2 + $0x4f8] sm:$0xff] %v5668
        %5957 = vst [vmem:[#allocation2 + $0x500] sm:$0xff] %v5669
        %5958 = vst [vmem:[#allocation2 + $0x508] sm:$0xff] %v5670
        %5959 = vst [vmem:[#allocation2 + $0x510] sm:$0xff] %v5671
        %5960 = vst [vmem:[#allocation2 + $0x518] sm:$0xff] %v5672
        %5961 = vst [vmem:[#allocation2 + $0x520] sm:$0xff] %v5673
        %5962 = vst [vmem:[#allocation2 + $0x528] sm:$0xff] %v5674
        %5963 = vst [vmem:[#allocation2 + $0x530] sm:$0xff] %v5675
        %5964 = vst [vmem:[#allocation2 + $0x538] sm:$0xff] %v5676
        %5965 = vst [vmem:[#allocation2 + $0x540] sm:$0xff] %v5677
        %5966 = vst [vmem:[#allocation2 + $0x548] sm:$0xff] %v5678
        %5967 = vst [vmem:[#allocation2 + $0x550] sm:$0xff] %v5679
        %5968 = vst [vmem:[#allocation2 + $0x558] sm:$0xff] %v5680
        %5969 = vst [vmem:[#allocation2 + $0x560] sm:$0xff] %v5681
        %5970 = vst [vmem:[#allocation2 + $0x568] sm:$0xff] %v5682
        %5971 = vst [vmem:[#allocation2 + $0x570] sm:$0xff] %v5683
        %5972 = vst [vmem:[#allocation2 + $0x578] sm:$0xff] %v5684
        %5973 = vst [vmem:[#allocation2 + $0x580] sm:$0xff] %v5685
        %5974 = vst [vmem:[#allocation2 + $0x588] sm:$0xff] %v5686
        %5975 = vst [vmem:[#allocation2 + $0x590] sm:$0xff] %v5687
        %5976 = vst [vmem:[#allocation2 + $0x598] sm:$0xff] %v5688
        %5977 = vst [vmem:[#allocation2 + $0x5a0] sm:$0xff] %v5689
        %5978 = vst [vmem:[#allocation2 + $0x5a8] sm:$0xff] %v5690
        %5979 = vst [vmem:[#allocation2 + $0x5b0] sm:$0xff] %v5691
        %5980 = vst [vmem:[#allocation2 + $0x5b8] sm:$0xff] %v5692
        %5981 = vst [vmem:[#allocation2 + $0x5c0] sm:$0xff] %v5693
        %5982 = vst [vmem:[#allocation2 + $0x5c8] sm:$0xff] %v5694
        %5983 = vst [vmem:[#allocation2 + $0x5d0] sm:$0xff] %v5695
        %5984 = vst [vmem:[#allocation2 + $0x5d8] sm:$0xff] %v5696
        %5985 = vst [vmem:[#allocation2 + $0x5e0] sm:$0xff] %v5697
        %5986 = vst [vmem:[#allocation2 + $0x5e8] sm:$0xff] %v5698
        %5987 = vst [vmem:[#allocation2 + $0x5f0] sm:$0xff] %v5699
        %5988 = vst [vmem:[#allocation2 + $0x5f8] sm:$0xff] %v5700
        %5989 = vst [vmem:[#allocation2 + $0x600] sm:$0xff] %v5701
        %5990 = vst [vmem:[#allocation2 + $0x608] sm:$0xff] %v5702
        %5991 = vst [vmem:[#allocation2 + $0x610] sm:$0xff] %v5703
        %5992 = vst [vmem:[#allocation2 + $0x618] sm:$0xff] %v5704
        %5993 = vst [vmem:[#allocation2 + $0x620] sm:$0xff] %v5705
        %5994 = vst [vmem:[#allocation2 + $0x628] sm:$0xff] %v5706
        %5995 = vst [vmem:[#allocation2 + $0x630] sm:$0xff] %v5707
        %5996 = vst [vmem:[#allocation2 + $0x638] sm:$0xff] %v5708
        %5997 = vst [vmem:[#allocation2 + $0x640] sm:$0xff] %v5709
        %5998 = vst [vmem:[#allocation2 + $0x648] sm:$0xff] %v5710
        %5999 = vst [vmem:[#allocation2 + $0x650] sm:$0xff] %v5711
        %6000 = vst [vmem:[#allocation2 + $0x658] sm:$0xff] %v5712
        %6001 = vst [vmem:[#allocation2 + $0x660] sm:$0xff] %v5713
        %6002 = vst [vmem:[#allocation2 + $0x668] sm:$0xff] %v5714
        %6003 = vst [vmem:[#allocation2 + $0x670] sm:$0xff] %v5715
        %6004 = vst [vmem:[#allocation2 + $0x678] sm:$0xff] %v5716
        %6005 = vst [vmem:[#allocation2 + $0x680] sm:$0xff] %v5717
        %6006 = vst [vmem:[#allocation2 + $0x688] sm:$0xff] %v5718
        %6007 = vst [vmem:[#allocation2 + $0x690] sm:$0xff] %v5719
        %6008 = vst [vmem:[#allocation2 + $0x698] sm:$0xff] %v5720
        %6009 = vst [vmem:[#allocation2 + $0x6a0] sm:$0xff] %v5721
        %6010 = vst [vmem:[#allocation2 + $0x6a8] sm:$0xff] %v5722
        %6011 = vst [vmem:[#allocation2 + $0x6b0] sm:$0xff] %v5723
        %6012 = vst [vmem:[#allocation2 + $0x6b8] sm:$0xff] %v5724
        %6013 = vst [vmem:[#allocation2 + $0x6c0] sm:$0xff] %v5725
        %6014 = vst [vmem:[#allocation2 + $0x6c8] sm:$0xff] %v5726
        %6015 = vst [vmem:[#allocation2 + $0x6d0] sm:$0xff] %v5727
        %6016 = vst [vmem:[#allocation2 + $0x6d8] sm:$0xff] %v5728
        %6017 = vst [vmem:[#allocation2 + $0x6e0] sm:$0xff] %v5729
        %6018 = vst [vmem:[#allocation2 + $0x6e8] sm:$0xff] %v5730
        %6019 = vst [vmem:[#allocation2 + $0x6f0] sm:$0xff] %v5731
        %6020 = vst [vmem:[#allocation2 + $0x6f8] sm:$0xff] %v5732
        %6021 = vst [vmem:[#allocation2 + $0x700] sm:$0xff] %v5733
        %6022 = vst [vmem:[#allocation2 + $0x708] sm:$0xff] %v5734
        %6023 = vst [vmem:[#allocation2 + $0x710] sm:$0xff] %v5735
        %6024 = vst [vmem:[#allocation2 + $0x718] sm:$0xff] %v5736
        %6025 = vst [vmem:[#allocation2 + $0x720] sm:$0xff] %v5737
        %6026 = vst [vmem:[#allocation2 + $0x728] sm:$0xff] %v5738
        %6027 = vst [vmem:[#allocation2 + $0x730] sm:$0xff] %v5739
        %6028 = vst [vmem:[#allocation2 + $0x738] sm:$0xff] %v5740
        %6029 = vst [vmem:[#allocation2 + $0x740] sm:$0xff] %v5741
        %6030 = vst [vmem:[#allocation2 + $0x748] sm:$0xff] %v5742
        %6031 = vst [vmem:[#allocation2 + $0x750] sm:$0xff] %v5743
        %6032 = vst [vmem:[#allocation2 + $0x758] sm:$0xff] %v5744
        %6033 = vst [vmem:[#allocation2 + $0x760] sm:$0xff] %v5745
        %6034 = vst [vmem:[#allocation2 + $0x768] sm:$0xff] %v5746
        %6035 = vst [vmem:[#allocation2 + $0x770] sm:$0xff] %v5747
        %6036 = vst [vmem:[#allocation2 + $0x778] sm:$0xff] %v5748
        %6037 = vst [vmem:[#allocation2 + $0x780] sm:$0xff] %v5749
        %6038 = vst [vmem:[#allocation2 + $0x788] sm:$0xff] %v5750
        %6039 = vst [vmem:[#allocation2 + $0x790] sm:$0xff] %v5751
        %6040 = vst [vmem:[#allocation2 + $0x798] sm:$0xff] %v5752
        %6041 = vst [vmem:[#allocation2 + $0x7a0] sm:$0xff] %v5753
        %6042 = vst [vmem:[#allocation2 + $0x7a8] sm:$0xff] %v5754
        %6043 = vst [vmem:[#allocation2 + $0x7b0] sm:$0xff] %v5755
        %6044 = vst [vmem:[#allocation2 + $0x7b8] sm:$0xff] %v5756
        %6045 = vst [vmem:[#allocation2 + $0x7c0] sm:$0xff] %v5757
        %6046 = vst [vmem:[#allocation2 + $0x7c8] sm:$0xff] %v5758
        %6047 = vst [vmem:[#allocation2 + $0x7d0] sm:$0xff] %v5759
        %6048 = vst [vmem:[#allocation2 + $0x7d8] sm:$0xff] %v5760
        %6049 = vst [vmem:[#allocation2 + $0x7e0] sm:$0xff] %v5761
        %6050 = vst [vmem:[#allocation2 + $0x7e8] sm:$0xff] %v5762
        %6051 = vst [vmem:[#allocation2 + $0x7f0] sm:$0xff] %v5763
        %6052 = vst [vmem:[#allocation2 + $0x7f8] sm:$0xff] %v5764
        %6053 = vst [vmem:[#allocation2 + $0x800] sm:$0xff] %v5765
        %6054 = vst [vmem:[#allocation2 + $0x808] sm:$0xff] %v5766
        %6055 = vst [vmem:[#allocation2 + $0x810] sm:$0xff] %v5767
        %6056 = vst [vmem:[#allocation2 + $0x818] sm:$0xff] %v5768
        %6057 = vst [vmem:[#allocation2 + $0x820] sm:$0xff] %v5769
        %6058 = vst [vmem:[#allocation2 + $0x828] sm:$0xff] %v5770
        %6059 = vst [vmem:[#allocation2 + $0x830] sm:$0xff] %v5771
        %6060 = vst [vmem:[#allocation2 + $0x838] sm:$0xff] %v5772
        %6061 = vst [vmem:[#allocation2 + $0x840] sm:$0xff] %v5773
        %6062 = vst [vmem:[#allocation2 + $0x848] sm:$0xff] %v5774
        %6063 = vst [vmem:[#allocation2 + $0x850] sm:$0xff] %v5775
        %6064 = vst [vmem:[#allocation2 + $0x858] sm:$0xff] %v5776
        %6065 = vst [vmem:[#allocation2 + $0x860] sm:$0xff] %v5777
        %6066 = vst [vmem:[#allocation2 + $0x868] sm:$0xff] %v5778
        %6067 = vst [vmem:[#allocation2 + $0x870] sm:$0xff] %v5779
        %6068 = vst [vmem:[#allocation2 + $0x878] sm:$0xff] %v5780
        %6069 = vst [vmem:[#allocation2 + $0x880] sm:$0xff] %v5781
        %6070 = vst [vmem:[#allocation2 + $0x888] sm:$0xff] %v5782
        %6071 = vst [vmem:[#allocation2 + $0x890] sm:$0xff] %v5783
        %6072 = vst [vmem:[#allocation2 + $0x898] sm:$0xff] %v5784
        %6073 = vst [vmem:[#allocation2 + $0x8a0] sm:$0xff] %v5785
        %6074 = vst [vmem:[#allocation2 + $0x8a8] sm:$0xff] %v5786
        %6075 = vst [vmem:[#allocation2 + $0x8b0] sm:$0xff] %v5787
        %6076 = vst [vmem:[#allocation2 + $0x8b8] sm:$0xff] %v5788
        %6077 = vst [vmem:[#allocation2 + $0x8c0] sm:$0xff] %v5789
        %6078 = vst [vmem:[#allocation2 + $0x8c8] sm:$0xff] %v5790
        %6079 = vst [vmem:[#allocation2 + $0x8d0] sm:$0xff] %v5791
        %6080 = vst [vmem:[#allocation2 + $0x8d8] sm:$0xff] %v5792
        %6081 = vst [vmem:[#allocation2 + $0x8e0] sm:$0xff] %v5793
        %6082 = vst [vmem:[#allocation2 + $0x8e8] sm:$0xff] %v5794
        %6083 = vst [vmem:[#allocation2 + $0x8f0] sm:$0xff] %v5795
        %6084 = vst [vmem:[#allocation2 + $0x8f8] sm:$0xff] %v5796
        %p6085 = scmp.eq.s32.totalorder %s27, 3
        // Predicated region
        $region53: #{linear_dropout_add.1} parent=35 // pred_check
          %p6086 = pneg %p6085
        $region54: #{linear_dropout_add.1} parent=35 // pred_check_branch
          %6088 = sbr.rel (%p6086) target = $region56
        $region55: #{linear_dropout_add.1} parent=35 // pred_region
          %v6089 = vld [vmem:[#allocation2] sm:$0xff]
          %v6090 = vld [vmem:[#allocation2 + $0x8] sm:$0xff]
          %v6091 = vld [vmem:[#allocation2 + $0x10] sm:$0xff]
          %v6092 = vld [vmem:[#allocation2 + $0x18] sm:$0xff]
          %v6093 = vld [vmem:[#allocation2 + $0x20] sm:$0xff]
          %v6094 = vld [vmem:[#allocation2 + $0x28] sm:$0xff]
          %v6095 = vld [vmem:[#allocation2 + $0x30] sm:$0xff]
          %v6096 = vld [vmem:[#allocation2 + $0x38] sm:$0xff]
          %v6097 = vld [vmem:[#allocation2 + $0x40] sm:$0xff]
          %v6098 = vld [vmem:[#allocation2 + $0x48] sm:$0xff]
          %v6099 = vld [vmem:[#allocation2 + $0x50] sm:$0xff]
          %v6100 = vld [vmem:[#allocation2 + $0x58] sm:$0xff]
          %v6101 = vld [vmem:[#allocation2 + $0x60] sm:$0xff]
          %v6102 = vld [vmem:[#allocation2 + $0x68] sm:$0xff]
          %v6103 = vld [vmem:[#allocation2 + $0x70] sm:$0xff]
          %v6104 = vld [vmem:[#allocation2 + $0x78] sm:$0xff]
          %v6105 = vld [vmem:[#allocation2 + $0x80] sm:$0xff]
          %v6106 = vld [vmem:[#allocation2 + $0x88] sm:$0xff]
          %v6107 = vld [vmem:[#allocation2 + $0x90] sm:$0xff]
          %v6108 = vld [vmem:[#allocation2 + $0x98] sm:$0xff]
          %v6109 = vld [vmem:[#allocation2 + $0xa0] sm:$0xff]
          %v6110 = vld [vmem:[#allocation2 + $0xa8] sm:$0xff]
          %v6111 = vld [vmem:[#allocation2 + $0xb0] sm:$0xff]
          %v6112 = vld [vmem:[#allocation2 + $0xb8] sm:$0xff]
          %v6113 = vld [vmem:[#allocation2 + $0xc0] sm:$0xff]
          %v6114 = vld [vmem:[#allocation2 + $0xc8] sm:$0xff]
          %v6115 = vld [vmem:[#allocation2 + $0xd0] sm:$0xff]
          %v6116 = vld [vmem:[#allocation2 + $0xd8] sm:$0xff]
          %v6117 = vld [vmem:[#allocation2 + $0xe0] sm:$0xff]
          %v6118 = vld [vmem:[#allocation2 + $0xe8] sm:$0xff]
          %v6119 = vld [vmem:[#allocation2 + $0xf0] sm:$0xff]
          %v6120 = vld [vmem:[#allocation2 + $0xf8] sm:$0xff]
          %v6121 = vld [vmem:[#allocation2 + $0x100] sm:$0xff]
          %v6122 = vld [vmem:[#allocation2 + $0x108] sm:$0xff]
          %v6123 = vld [vmem:[#allocation2 + $0x110] sm:$0xff]
          %v6124 = vld [vmem:[#allocation2 + $0x118] sm:$0xff]
          %v6125 = vld [vmem:[#allocation2 + $0x120] sm:$0xff]
          %v6126 = vld [vmem:[#allocation2 + $0x128] sm:$0xff]
          %v6127 = vld [vmem:[#allocation2 + $0x130] sm:$0xff]
          %v6128 = vld [vmem:[#allocation2 + $0x138] sm:$0xff]
          %v6129 = vld [vmem:[#allocation2 + $0x140] sm:$0xff]
          %v6130 = vld [vmem:[#allocation2 + $0x148] sm:$0xff]
          %v6131 = vld [vmem:[#allocation2 + $0x150] sm:$0xff]
          %v6132 = vld [vmem:[#allocation2 + $0x158] sm:$0xff]
          %v6133 = vld [vmem:[#allocation2 + $0x160] sm:$0xff]
          %v6134 = vld [vmem:[#allocation2 + $0x168] sm:$0xff]
          %v6135 = vld [vmem:[#allocation2 + $0x170] sm:$0xff]
          %v6136 = vld [vmem:[#allocation2 + $0x178] sm:$0xff]
          %v6137 = vld [vmem:[#allocation2 + $0x180] sm:$0xff]
          %v6138 = vld [vmem:[#allocation2 + $0x188] sm:$0xff]
          %v6139 = vld [vmem:[#allocation2 + $0x190] sm:$0xff]
          %v6140 = vld [vmem:[#allocation2 + $0x198] sm:$0xff]
          %v6141 = vld [vmem:[#allocation2 + $0x1a0] sm:$0xff]
          %v6142 = vld [vmem:[#allocation2 + $0x1a8] sm:$0xff]
          %v6143 = vld [vmem:[#allocation2 + $0x1b0] sm:$0xff]
          %v6144 = vld [vmem:[#allocation2 + $0x1b8] sm:$0xff]
          %v6145 = vld [vmem:[#allocation2 + $0x1c0] sm:$0xff]
          %v6146 = vld [vmem:[#allocation2 + $0x1c8] sm:$0xff]
          %v6147 = vld [vmem:[#allocation2 + $0x1d0] sm:$0xff]
          %v6148 = vld [vmem:[#allocation2 + $0x1d8] sm:$0xff]
          %v6149 = vld [vmem:[#allocation2 + $0x1e0] sm:$0xff]
          %v6150 = vld [vmem:[#allocation2 + $0x1e8] sm:$0xff]
          %v6151 = vld [vmem:[#allocation2 + $0x1f0] sm:$0xff]
          %v6152 = vld [vmem:[#allocation2 + $0x1f8] sm:$0xff]
          %v6153 = vld [vmem:[#allocation2 + $0x200] sm:$0xff]
          %v6154 = vld [vmem:[#allocation2 + $0x208] sm:$0xff]
          %v6155 = vld [vmem:[#allocation2 + $0x210] sm:$0xff]
          %v6156 = vld [vmem:[#allocation2 + $0x218] sm:$0xff]
          %v6157 = vld [vmem:[#allocation2 + $0x220] sm:$0xff]
          %v6158 = vld [vmem:[#allocation2 + $0x228] sm:$0xff]
          %v6159 = vld [vmem:[#allocation2 + $0x230] sm:$0xff]
          %v6160 = vld [vmem:[#allocation2 + $0x238] sm:$0xff]
          %v6161 = vld [vmem:[#allocation2 + $0x240] sm:$0xff]
          %v6162 = vld [vmem:[#allocation2 + $0x248] sm:$0xff]
          %v6163 = vld [vmem:[#allocation2 + $0x250] sm:$0xff]
          %v6164 = vld [vmem:[#allocation2 + $0x258] sm:$0xff]
          %v6165 = vld [vmem:[#allocation2 + $0x260] sm:$0xff]
          %v6166 = vld [vmem:[#allocation2 + $0x268] sm:$0xff]
          %v6167 = vld [vmem:[#allocation2 + $0x270] sm:$0xff]
          %v6168 = vld [vmem:[#allocation2 + $0x278] sm:$0xff]
          %v6169 = vld [vmem:[#allocation2 + $0x280] sm:$0xff]
          %v6170 = vld [vmem:[#allocation2 + $0x288] sm:$0xff]
          %v6171 = vld [vmem:[#allocation2 + $0x290] sm:$0xff]
          %v6172 = vld [vmem:[#allocation2 + $0x298] sm:$0xff]
          %v6173 = vld [vmem:[#allocation2 + $0x2a0] sm:$0xff]
          %v6174 = vld [vmem:[#allocation2 + $0x2a8] sm:$0xff]
          %v6175 = vld [vmem:[#allocation2 + $0x2b0] sm:$0xff]
          %v6176 = vld [vmem:[#allocation2 + $0x2b8] sm:$0xff]
          %v6177 = vld [vmem:[#allocation2 + $0x2c0] sm:$0xff]
          %v6178 = vld [vmem:[#allocation2 + $0x2c8] sm:$0xff]
          %v6179 = vld [vmem:[#allocation2 + $0x2d0] sm:$0xff]
          %v6180 = vld [vmem:[#allocation2 + $0x2d8] sm:$0xff]
          %v6181 = vld [vmem:[#allocation2 + $0x2e0] sm:$0xff]
          %v6182 = vld [vmem:[#allocation2 + $0x2e8] sm:$0xff]
          %v6183 = vld [vmem:[#allocation2 + $0x2f0] sm:$0xff]
          %v6184 = vld [vmem:[#allocation2 + $0x2f8] sm:$0xff]
          %v6185 = vld [vmem:[#allocation2 + $0x300] sm:$0xff]
          %v6186 = vld [vmem:[#allocation2 + $0x308] sm:$0xff]
          %v6187 = vld [vmem:[#allocation2 + $0x310] sm:$0xff]
          %v6188 = vld [vmem:[#allocation2 + $0x318] sm:$0xff]
          %v6189 = vld [vmem:[#allocation2 + $0x320] sm:$0xff]
          %v6190 = vld [vmem:[#allocation2 + $0x328] sm:$0xff]
          %v6191 = vld [vmem:[#allocation2 + $0x330] sm:$0xff]
          %v6192 = vld [vmem:[#allocation2 + $0x338] sm:$0xff]
          %v6193 = vld [vmem:[#allocation2 + $0x340] sm:$0xff]
          %v6194 = vld [vmem:[#allocation2 + $0x348] sm:$0xff]
          %v6195 = vld [vmem:[#allocation2 + $0x350] sm:$0xff]
          %v6196 = vld [vmem:[#allocation2 + $0x358] sm:$0xff]
          %v6197 = vld [vmem:[#allocation2 + $0x360] sm:$0xff]
          %v6198 = vld [vmem:[#allocation2 + $0x368] sm:$0xff]
          %v6199 = vld [vmem:[#allocation2 + $0x370] sm:$0xff]
          %v6200 = vld [vmem:[#allocation2 + $0x378] sm:$0xff]
          %v6201 = vld [vmem:[#allocation2 + $0x380] sm:$0xff]
          %v6202 = vld [vmem:[#allocation2 + $0x388] sm:$0xff]
          %v6203 = vld [vmem:[#allocation2 + $0x390] sm:$0xff]
          %v6204 = vld [vmem:[#allocation2 + $0x398] sm:$0xff]
          %v6205 = vld [vmem:[#allocation2 + $0x3a0] sm:$0xff]
          %v6206 = vld [vmem:[#allocation2 + $0x3a8] sm:$0xff]
          %v6207 = vld [vmem:[#allocation2 + $0x3b0] sm:$0xff]
          %v6208 = vld [vmem:[#allocation2 + $0x3b8] sm:$0xff]
          %v6209 = vld [vmem:[#allocation2 + $0x3c0] sm:$0xff]
          %v6210 = vld [vmem:[#allocation2 + $0x3c8] sm:$0xff]
          %v6211 = vld [vmem:[#allocation2 + $0x3d0] sm:$0xff]
          %v6212 = vld [vmem:[#allocation2 + $0x3d8] sm:$0xff]
          %v6213 = vld [vmem:[#allocation2 + $0x3e0] sm:$0xff]
          %v6214 = vld [vmem:[#allocation2 + $0x3e8] sm:$0xff]
          %v6215 = vld [vmem:[#allocation2 + $0x3f0] sm:$0xff]
          %v6216 = vld [vmem:[#allocation2 + $0x3f8] sm:$0xff]
          %v6217 = vld [vmem:[#allocation2 + $0x400] sm:$0xff]
          %v6218 = vld [vmem:[#allocation2 + $0x408] sm:$0xff]
          %v6219 = vld [vmem:[#allocation2 + $0x410] sm:$0xff]
          %v6220 = vld [vmem:[#allocation2 + $0x418] sm:$0xff]
          %v6221 = vld [vmem:[#allocation2 + $0x420] sm:$0xff]
          %v6222 = vld [vmem:[#allocation2 + $0x428] sm:$0xff]
          %v6223 = vld [vmem:[#allocation2 + $0x430] sm:$0xff]
          %v6224 = vld [vmem:[#allocation2 + $0x438] sm:$0xff]
          %v6225 = vld [vmem:[#allocation2 + $0x440] sm:$0xff]
          %v6226 = vld [vmem:[#allocation2 + $0x448] sm:$0xff]
          %v6227 = vld [vmem:[#allocation2 + $0x450] sm:$0xff]
          %v6228 = vld [vmem:[#allocation2 + $0x458] sm:$0xff]
          %v6229 = vld [vmem:[#allocation2 + $0x460] sm:$0xff]
          %v6230 = vld [vmem:[#allocation2 + $0x468] sm:$0xff]
          %v6231 = vld [vmem:[#allocation2 + $0x470] sm:$0xff]
          %v6232 = vld [vmem:[#allocation2 + $0x478] sm:$0xff]
          %v6233 = vld [vmem:[#allocation2 + $0x480] sm:$0xff]
          %v6234 = vld [vmem:[#allocation2 + $0x488] sm:$0xff]
          %v6235 = vld [vmem:[#allocation2 + $0x490] sm:$0xff]
          %v6236 = vld [vmem:[#allocation2 + $0x498] sm:$0xff]
          %v6237 = vld [vmem:[#allocation2 + $0x4a0] sm:$0xff]
          %v6238 = vld [vmem:[#allocation2 + $0x4a8] sm:$0xff]
          %v6239 = vld [vmem:[#allocation2 + $0x4b0] sm:$0xff]
          %v6240 = vld [vmem:[#allocation2 + $0x4b8] sm:$0xff]
          %v6241 = vld [vmem:[#allocation2 + $0x4c0] sm:$0xff]
          %v6242 = vld [vmem:[#allocation2 + $0x4c8] sm:$0xff]
          %v6243 = vld [vmem:[#allocation2 + $0x4d0] sm:$0xff]
          %v6244 = vld [vmem:[#allocation2 + $0x4d8] sm:$0xff]
          %v6245 = vld [vmem:[#allocation2 + $0x4e0] sm:$0xff]
          %v6246 = vld [vmem:[#allocation2 + $0x4e8] sm:$0xff]
          %v6247 = vld [vmem:[#allocation2 + $0x4f0] sm:$0xff]
          %v6248 = vld [vmem:[#allocation2 + $0x4f8] sm:$0xff]
          %v6249 = vld [vmem:[#allocation2 + $0x500] sm:$0xff]
          %v6250 = vld [vmem:[#allocation2 + $0x508] sm:$0xff]
          %v6251 = vld [vmem:[#allocation2 + $0x510] sm:$0xff]
          %v6252 = vld [vmem:[#allocation2 + $0x518] sm:$0xff]
          %v6253 = vld [vmem:[#allocation2 + $0x520] sm:$0xff]
          %v6254 = vld [vmem:[#allocation2 + $0x528] sm:$0xff]
          %v6255 = vld [vmem:[#allocation2 + $0x530] sm:$0xff]
          %v6256 = vld [vmem:[#allocation2 + $0x538] sm:$0xff]
          %v6257 = vld [vmem:[#allocation2 + $0x540] sm:$0xff]
          %v6258 = vld [vmem:[#allocation2 + $0x548] sm:$0xff]
          %v6259 = vld [vmem:[#allocation2 + $0x550] sm:$0xff]
          %v6260 = vld [vmem:[#allocation2 + $0x558] sm:$0xff]
          %v6261 = vld [vmem:[#allocation2 + $0x560] sm:$0xff]
          %v6262 = vld [vmem:[#allocation2 + $0x568] sm:$0xff]
          %v6263 = vld [vmem:[#allocation2 + $0x570] sm:$0xff]
          %v6264 = vld [vmem:[#allocation2 + $0x578] sm:$0xff]
          %v6265 = vld [vmem:[#allocation2 + $0x580] sm:$0xff]
          %v6266 = vld [vmem:[#allocation2 + $0x588] sm:$0xff]
          %v6267 = vld [vmem:[#allocation2 + $0x590] sm:$0xff]
          %v6268 = vld [vmem:[#allocation2 + $0x598] sm:$0xff]
          %v6269 = vld [vmem:[#allocation2 + $0x5a0] sm:$0xff]
          %v6270 = vld [vmem:[#allocation2 + $0x5a8] sm:$0xff]
          %v6271 = vld [vmem:[#allocation2 + $0x5b0] sm:$0xff]
          %v6272 = vld [vmem:[#allocation2 + $0x5b8] sm:$0xff]
          %v6273 = vld [vmem:[#allocation2 + $0x5c0] sm:$0xff]
          %v6274 = vld [vmem:[#allocation2 + $0x5c8] sm:$0xff]
          %v6275 = vld [vmem:[#allocation2 + $0x5d0] sm:$0xff]
          %v6276 = vld [vmem:[#allocation2 + $0x5d8] sm:$0xff]
          %v6277 = vld [vmem:[#allocation2 + $0x5e0] sm:$0xff]
          %v6278 = vld [vmem:[#allocation2 + $0x5e8] sm:$0xff]
          %v6279 = vld [vmem:[#allocation2 + $0x5f0] sm:$0xff]
          %v6280 = vld [vmem:[#allocation2 + $0x5f8] sm:$0xff]
          %v6281 = vld [vmem:[#allocation2 + $0x600] sm:$0xff]
          %v6282 = vld [vmem:[#allocation2 + $0x608] sm:$0xff]
          %v6283 = vld [vmem:[#allocation2 + $0x610] sm:$0xff]
          %v6284 = vld [vmem:[#allocation2 + $0x618] sm:$0xff]
          %v6285 = vld [vmem:[#allocation2 + $0x620] sm:$0xff]
          %v6286 = vld [vmem:[#allocation2 + $0x628] sm:$0xff]
          %v6287 = vld [vmem:[#allocation2 + $0x630] sm:$0xff]
          %v6288 = vld [vmem:[#allocation2 + $0x638] sm:$0xff]
          %v6289 = vld [vmem:[#allocation2 + $0x640] sm:$0xff]
          %v6290 = vld [vmem:[#allocation2 + $0x648] sm:$0xff]
          %v6291 = vld [vmem:[#allocation2 + $0x650] sm:$0xff]
          %v6292 = vld [vmem:[#allocation2 + $0x658] sm:$0xff]
          %v6293 = vld [vmem:[#allocation2 + $0x660] sm:$0xff]
          %v6294 = vld [vmem:[#allocation2 + $0x668] sm:$0xff]
          %v6295 = vld [vmem:[#allocation2 + $0x670] sm:$0xff]
          %v6296 = vld [vmem:[#allocation2 + $0x678] sm:$0xff]
          %v6297 = vld [vmem:[#allocation2 + $0x680] sm:$0xff]
          %v6298 = vld [vmem:[#allocation2 + $0x688] sm:$0xff]
          %v6299 = vld [vmem:[#allocation2 + $0x690] sm:$0xff]
          %v6300 = vld [vmem:[#allocation2 + $0x698] sm:$0xff]
          %v6301 = vld [vmem:[#allocation2 + $0x6a0] sm:$0xff]
          %v6302 = vld [vmem:[#allocation2 + $0x6a8] sm:$0xff]
          %v6303 = vld [vmem:[#allocation2 + $0x6b0] sm:$0xff]
          %v6304 = vld [vmem:[#allocation2 + $0x6b8] sm:$0xff]
          %v6305 = vld [vmem:[#allocation2 + $0x6c0] sm:$0xff]
          %v6306 = vld [vmem:[#allocation2 + $0x6c8] sm:$0xff]
          %v6307 = vld [vmem:[#allocation2 + $0x6d0] sm:$0xff]
          %v6308 = vld [vmem:[#allocation2 + $0x6d8] sm:$0xff]
          %v6309 = vld [vmem:[#allocation2 + $0x6e0] sm:$0xff]
          %v6310 = vld [vmem:[#allocation2 + $0x6e8] sm:$0xff]
          %v6311 = vld [vmem:[#allocation2 + $0x6f0] sm:$0xff]
          %v6312 = vld [vmem:[#allocation2 + $0x6f8] sm:$0xff]
          %v6313 = vld [vmem:[#allocation2 + $0x700] sm:$0xff]
          %v6314 = vld [vmem:[#allocation2 + $0x708] sm:$0xff]
          %v6315 = vld [vmem:[#allocation2 + $0x710] sm:$0xff]
          %v6316 = vld [vmem:[#allocation2 + $0x718] sm:$0xff]
          %v6317 = vld [vmem:[#allocation2 + $0x720] sm:$0xff]
          %v6318 = vld [vmem:[#allocation2 + $0x728] sm:$0xff]
          %v6319 = vld [vmem:[#allocation2 + $0x730] sm:$0xff]
          %v6320 = vld [vmem:[#allocation2 + $0x738] sm:$0xff]
          %v6321 = vld [vmem:[#allocation2 + $0x740] sm:$0xff]
          %v6322 = vld [vmem:[#allocation2 + $0x748] sm:$0xff]
          %v6323 = vld [vmem:[#allocation2 + $0x750] sm:$0xff]
          %v6324 = vld [vmem:[#allocation2 + $0x758] sm:$0xff]
          %v6325 = vld [vmem:[#allocation2 + $0x760] sm:$0xff]
          %v6326 = vld [vmem:[#allocation2 + $0x768] sm:$0xff]
          %v6327 = vld [vmem:[#allocation2 + $0x770] sm:$0xff]
          %v6328 = vld [vmem:[#allocation2 + $0x778] sm:$0xff]
          %v6329 = vld [vmem:[#allocation2 + $0x780] sm:$0xff]
          %v6330 = vld [vmem:[#allocation2 + $0x788] sm:$0xff]
          %v6331 = vld [vmem:[#allocation2 + $0x790] sm:$0xff]
          %v6332 = vld [vmem:[#allocation2 + $0x798] sm:$0xff]
          %v6333 = vld [vmem:[#allocation2 + $0x7a0] sm:$0xff]
          %v6334 = vld [vmem:[#allocation2 + $0x7a8] sm:$0xff]
          %v6335 = vld [vmem:[#allocation2 + $0x7b0] sm:$0xff]
          %v6336 = vld [vmem:[#allocation2 + $0x7b8] sm:$0xff]
          %v6337 = vld [vmem:[#allocation2 + $0x7c0] sm:$0xff]
          %v6338 = vld [vmem:[#allocation2 + $0x7c8] sm:$0xff]
          %v6339 = vld [vmem:[#allocation2 + $0x7d0] sm:$0xff]
          %v6340 = vld [vmem:[#allocation2 + $0x7d8] sm:$0xff]
          %v6341 = vld [vmem:[#allocation2 + $0x7e0] sm:$0xff]
          %v6342 = vld [vmem:[#allocation2 + $0x7e8] sm:$0xff]
          %v6343 = vld [vmem:[#allocation2 + $0x7f0] sm:$0xff]
          %v6344 = vld [vmem:[#allocation2 + $0x7f8] sm:$0xff]
          %v6345 = vld [vmem:[#allocation2 + $0x800] sm:$0xff]
          %v6346 = vld [vmem:[#allocation2 + $0x808] sm:$0xff]
          %v6347 = vld [vmem:[#allocation2 + $0x810] sm:$0xff]
          %v6348 = vld [vmem:[#allocation2 + $0x818] sm:$0xff]
          %v6349 = vld [vmem:[#allocation2 + $0x820] sm:$0xff]
          %v6350 = vld [vmem:[#allocation2 + $0x828] sm:$0xff]
          %v6351 = vld [vmem:[#allocation2 + $0x830] sm:$0xff]
          %v6352 = vld [vmem:[#allocation2 + $0x838] sm:$0xff]
          %v6353 = vld [vmem:[#allocation2 + $0x840] sm:$0xff]
          %v6354 = vld [vmem:[#allocation2 + $0x848] sm:$0xff]
          %v6355 = vld [vmem:[#allocation2 + $0x850] sm:$0xff]
          %v6356 = vld [vmem:[#allocation2 + $0x858] sm:$0xff]
          %v6357 = vld [vmem:[#allocation2 + $0x860] sm:$0xff]
          %v6358 = vld [vmem:[#allocation2 + $0x868] sm:$0xff]
          %v6359 = vld [vmem:[#allocation2 + $0x870] sm:$0xff]
          %v6360 = vld [vmem:[#allocation2 + $0x878] sm:$0xff]
          %v6361 = vld [vmem:[#allocation2 + $0x880] sm:$0xff]
          %v6362 = vld [vmem:[#allocation2 + $0x888] sm:$0xff]
          %v6363 = vld [vmem:[#allocation2 + $0x890] sm:$0xff]
          %v6364 = vld [vmem:[#allocation2 + $0x898] sm:$0xff]
          %v6365 = vld [vmem:[#allocation2 + $0x8a0] sm:$0xff]
          %v6366 = vld [vmem:[#allocation2 + $0x8a8] sm:$0xff]
          %v6367 = vld [vmem:[#allocation2 + $0x8b0] sm:$0xff]
          %v6368 = vld [vmem:[#allocation2 + $0x8b8] sm:$0xff]
          %v6369 = vld [vmem:[#allocation2 + $0x8c0] sm:$0xff]
          %v6370 = vld [vmem:[#allocation2 + $0x8c8] sm:$0xff]
          %v6371 = vld [vmem:[#allocation2 + $0x8d0] sm:$0xff]
          %v6372 = vld [vmem:[#allocation2 + $0x8d8] sm:$0xff]
          %v6373 = vld [vmem:[#allocation2 + $0x8e0] sm:$0xff]
          %v6374 = vld [vmem:[#allocation2 + $0x8e8] sm:$0xff]
          %v6375 = vld [vmem:[#allocation2 + $0x8f0] sm:$0xff]
          %v6376 = vld [vmem:[#allocation2 + $0x8f8] sm:$0xff]
          %v6377 = vld [vmem:[%s308] sm:$0x3f]
          %v6379 = vlaneseq
          %v6380 = vshrl.u32 %v6379, 7
          %v6381 = vsub.s32 0, %v6380
          %v6382 = vrot.slane %v6377, %v6381
          %v6383 = vlaneseq
          %v6384 = vshrl.u32 %v6383, 7
          %v6385 = vsub.s32 1, %v6384
          %v6386 = vrot.slane %v6377, %v6385
          %v6387 = vlaneseq
          %v6388 = vshrl.u32 %v6387, 7
          %v6389 = vsub.s32 2, %v6388
          %v6390 = vrot.slane %v6377, %v6389
          %v6391 = vlaneseq
          %v6392 = vshrl.u32 %v6391, 7
          %v6393 = vsub.s32 3, %v6392
          %v6394 = vrot.slane %v6377, %v6393
          %v6395 = vlaneseq
          %v6396 = vshrl.u32 %v6395, 7
          %v6397 = vsub.s32 4, %v6396
          %v6398 = vrot.slane %v6377, %v6397
          %v6399 = vlaneseq
          %v6400 = vshrl.u32 %v6399, 7
          %v6401 = vsub.s32 5, %v6400
          %v6402 = vrot.slane %v6377, %v6401
          %v6409 = vadd.f32 %v6089, %v6382
          %v6410 = vadd.f32 %v6090, %v6386
          %v6411 = vadd.f32 %v6091, %v6390
          %v6412 = vadd.f32 %v6092, %v6394
          %v6413 = vadd.f32 %v6093, %v6398
          %v6414 = vadd.f32 %v6094, %v6402
          %v6415 = vadd.f32 %v6095, %v6382
          %v6416 = vadd.f32 %v6096, %v6386
          %v6417 = vadd.f32 %v6097, %v6390
          %v6418 = vadd.f32 %v6098, %v6394
          %v6419 = vadd.f32 %v6099, %v6398
          %v6420 = vadd.f32 %v6100, %v6402
          %v6421 = vadd.f32 %v6101, %v6382
          %v6422 = vadd.f32 %v6102, %v6386
          %v6423 = vadd.f32 %v6103, %v6390
          %v6424 = vadd.f32 %v6104, %v6394
          %v6425 = vadd.f32 %v6105, %v6398
          %v6426 = vadd.f32 %v6106, %v6402
          %v6427 = vadd.f32 %v6107, %v6382
          %v6428 = vadd.f32 %v6108, %v6386
          %v6429 = vadd.f32 %v6109, %v6390
          %v6430 = vadd.f32 %v6110, %v6394
          %v6431 = vadd.f32 %v6111, %v6398
          %v6432 = vadd.f32 %v6112, %v6402
          %v6433 = vadd.f32 %v6113, %v6382
          %v6434 = vadd.f32 %v6114, %v6386
          %v6435 = vadd.f32 %v6115, %v6390
          %v6436 = vadd.f32 %v6116, %v6394
          %v6437 = vadd.f32 %v6117, %v6398
          %v6438 = vadd.f32 %v6118, %v6402
          %v6439 = vadd.f32 %v6119, %v6382
          %v6440 = vadd.f32 %v6120, %v6386
          %v6441 = vadd.f32 %v6121, %v6390
          %v6442 = vadd.f32 %v6122, %v6394
          %v6443 = vadd.f32 %v6123, %v6398
          %v6444 = vadd.f32 %v6124, %v6402
          %v6445 = vadd.f32 %v6125, %v6382
          %v6446 = vadd.f32 %v6126, %v6386
          %v6447 = vadd.f32 %v6127, %v6390
          %v6448 = vadd.f32 %v6128, %v6394
          %v6449 = vadd.f32 %v6129, %v6398
          %v6450 = vadd.f32 %v6130, %v6402
          %v6451 = vadd.f32 %v6131, %v6382
          %v6452 = vadd.f32 %v6132, %v6386
          %v6453 = vadd.f32 %v6133, %v6390
          %v6454 = vadd.f32 %v6134, %v6394
          %v6455 = vadd.f32 %v6135, %v6398
          %v6456 = vadd.f32 %v6136, %v6402
          %v6457 = vadd.f32 %v6137, %v6382
          %v6458 = vadd.f32 %v6138, %v6386
          %v6459 = vadd.f32 %v6139, %v6390
          %v6460 = vadd.f32 %v6140, %v6394
          %v6461 = vadd.f32 %v6141, %v6398
          %v6462 = vadd.f32 %v6142, %v6402
          %v6463 = vadd.f32 %v6143, %v6382
          %v6464 = vadd.f32 %v6144, %v6386
          %v6465 = vadd.f32 %v6145, %v6390
          %v6466 = vadd.f32 %v6146, %v6394
          %v6467 = vadd.f32 %v6147, %v6398
          %v6468 = vadd.f32 %v6148, %v6402
          %v6469 = vadd.f32 %v6149, %v6382
          %v6470 = vadd.f32 %v6150, %v6386
          %v6471 = vadd.f32 %v6151, %v6390
          %v6472 = vadd.f32 %v6152, %v6394
          %v6473 = vadd.f32 %v6153, %v6398
          %v6474 = vadd.f32 %v6154, %v6402
          %v6475 = vadd.f32 %v6155, %v6382
          %v6476 = vadd.f32 %v6156, %v6386
          %v6477 = vadd.f32 %v6157, %v6390
          %v6478 = vadd.f32 %v6158, %v6394
          %v6479 = vadd.f32 %v6159, %v6398
          %v6480 = vadd.f32 %v6160, %v6402
          %v6481 = vadd.f32 %v6161, %v6382
          %v6482 = vadd.f32 %v6162, %v6386
          %v6483 = vadd.f32 %v6163, %v6390
          %v6484 = vadd.f32 %v6164, %v6394
          %v6485 = vadd.f32 %v6165, %v6398
          %v6486 = vadd.f32 %v6166, %v6402
          %v6487 = vadd.f32 %v6167, %v6382
          %v6488 = vadd.f32 %v6168, %v6386
          %v6489 = vadd.f32 %v6169, %v6390
          %v6490 = vadd.f32 %v6170, %v6394
          %v6491 = vadd.f32 %v6171, %v6398
          %v6492 = vadd.f32 %v6172, %v6402
          %v6493 = vadd.f32 %v6173, %v6382
          %v6494 = vadd.f32 %v6174, %v6386
          %v6495 = vadd.f32 %v6175, %v6390
          %v6496 = vadd.f32 %v6176, %v6394
          %v6497 = vadd.f32 %v6177, %v6398
          %v6498 = vadd.f32 %v6178, %v6402
          %v6499 = vadd.f32 %v6179, %v6382
          %v6500 = vadd.f32 %v6180, %v6386
          %v6501 = vadd.f32 %v6181, %v6390
          %v6502 = vadd.f32 %v6182, %v6394
          %v6503 = vadd.f32 %v6183, %v6398
          %v6504 = vadd.f32 %v6184, %v6402
          %v6505 = vadd.f32 %v6185, %v6382
          %v6506 = vadd.f32 %v6186, %v6386
          %v6507 = vadd.f32 %v6187, %v6390
          %v6508 = vadd.f32 %v6188, %v6394
          %v6509 = vadd.f32 %v6189, %v6398
          %v6510 = vadd.f32 %v6190, %v6402
          %v6511 = vadd.f32 %v6191, %v6382
          %v6512 = vadd.f32 %v6192, %v6386
          %v6513 = vadd.f32 %v6193, %v6390
          %v6514 = vadd.f32 %v6194, %v6394
          %v6515 = vadd.f32 %v6195, %v6398
          %v6516 = vadd.f32 %v6196, %v6402
          %v6517 = vadd.f32 %v6197, %v6382
          %v6518 = vadd.f32 %v6198, %v6386
          %v6519 = vadd.f32 %v6199, %v6390
          %v6520 = vadd.f32 %v6200, %v6394
          %v6521 = vadd.f32 %v6201, %v6398
          %v6522 = vadd.f32 %v6202, %v6402
          %v6523 = vadd.f32 %v6203, %v6382
          %v6524 = vadd.f32 %v6204, %v6386
          %v6525 = vadd.f32 %v6205, %v6390
          %v6526 = vadd.f32 %v6206, %v6394
          %v6527 = vadd.f32 %v6207, %v6398
          %v6528 = vadd.f32 %v6208, %v6402
          %v6529 = vadd.f32 %v6209, %v6382
          %v6530 = vadd.f32 %v6210, %v6386
          %v6531 = vadd.f32 %v6211, %v6390
          %v6532 = vadd.f32 %v6212, %v6394
          %v6533 = vadd.f32 %v6213, %v6398
          %v6534 = vadd.f32 %v6214, %v6402
          %v6535 = vadd.f32 %v6215, %v6382
          %v6536 = vadd.f32 %v6216, %v6386
          %v6537 = vadd.f32 %v6217, %v6390
          %v6538 = vadd.f32 %v6218, %v6394
          %v6539 = vadd.f32 %v6219, %v6398
          %v6540 = vadd.f32 %v6220, %v6402
          %v6541 = vadd.f32 %v6221, %v6382
          %v6542 = vadd.f32 %v6222, %v6386
          %v6543 = vadd.f32 %v6223, %v6390
          %v6544 = vadd.f32 %v6224, %v6394
          %v6545 = vadd.f32 %v6225, %v6398
          %v6546 = vadd.f32 %v6226, %v6402
          %v6547 = vadd.f32 %v6227, %v6382
          %v6548 = vadd.f32 %v6228, %v6386
          %v6549 = vadd.f32 %v6229, %v6390
          %v6550 = vadd.f32 %v6230, %v6394
          %v6551 = vadd.f32 %v6231, %v6398
          %v6552 = vadd.f32 %v6232, %v6402
          %v6553 = vadd.f32 %v6233, %v6382
          %v6554 = vadd.f32 %v6234, %v6386
          %v6555 = vadd.f32 %v6235, %v6390
          %v6556 = vadd.f32 %v6236, %v6394
          %v6557 = vadd.f32 %v6237, %v6398
          %v6558 = vadd.f32 %v6238, %v6402
          %v6559 = vadd.f32 %v6239, %v6382
          %v6560 = vadd.f32 %v6240, %v6386
          %v6561 = vadd.f32 %v6241, %v6390
          %v6562 = vadd.f32 %v6242, %v6394
          %v6563 = vadd.f32 %v6243, %v6398
          %v6564 = vadd.f32 %v6244, %v6402
          %v6565 = vadd.f32 %v6245, %v6382
          %v6566 = vadd.f32 %v6246, %v6386
          %v6567 = vadd.f32 %v6247, %v6390
          %v6568 = vadd.f32 %v6248, %v6394
          %v6569 = vadd.f32 %v6249, %v6398
          %v6570 = vadd.f32 %v6250, %v6402
          %v6571 = vadd.f32 %v6251, %v6382
          %v6572 = vadd.f32 %v6252, %v6386
          %v6573 = vadd.f32 %v6253, %v6390
          %v6574 = vadd.f32 %v6254, %v6394
          %v6575 = vadd.f32 %v6255, %v6398
          %v6576 = vadd.f32 %v6256, %v6402
          %v6577 = vadd.f32 %v6257, %v6382
          %v6578 = vadd.f32 %v6258, %v6386
          %v6579 = vadd.f32 %v6259, %v6390
          %v6580 = vadd.f32 %v6260, %v6394
          %v6581 = vadd.f32 %v6261, %v6398
          %v6582 = vadd.f32 %v6262, %v6402
          %v6583 = vadd.f32 %v6263, %v6382
          %v6584 = vadd.f32 %v6264, %v6386
          %v6585 = vadd.f32 %v6265, %v6390
          %v6586 = vadd.f32 %v6266, %v6394
          %v6587 = vadd.f32 %v6267, %v6398
          %v6588 = vadd.f32 %v6268, %v6402
          %v6589 = vadd.f32 %v6269, %v6382
          %v6590 = vadd.f32 %v6270, %v6386
          %v6591 = vadd.f32 %v6271, %v6390
          %v6592 = vadd.f32 %v6272, %v6394
          %v6593 = vadd.f32 %v6273, %v6398
          %v6594 = vadd.f32 %v6274, %v6402
          %v6595 = vadd.f32 %v6275, %v6382
          %v6596 = vadd.f32 %v6276, %v6386
          %v6597 = vadd.f32 %v6277, %v6390
          %v6598 = vadd.f32 %v6278, %v6394
          %v6599 = vadd.f32 %v6279, %v6398
          %v6600 = vadd.f32 %v6280, %v6402
          %v6601 = vadd.f32 %v6281, %v6382
          %v6602 = vadd.f32 %v6282, %v6386
          %v6603 = vadd.f32 %v6283, %v6390
          %v6604 = vadd.f32 %v6284, %v6394
          %v6605 = vadd.f32 %v6285, %v6398
          %v6606 = vadd.f32 %v6286, %v6402
          %v6607 = vadd.f32 %v6287, %v6382
          %v6608 = vadd.f32 %v6288, %v6386
          %v6609 = vadd.f32 %v6289, %v6390
          %v6610 = vadd.f32 %v6290, %v6394
          %v6611 = vadd.f32 %v6291, %v6398
          %v6612 = vadd.f32 %v6292, %v6402
          %v6613 = vadd.f32 %v6293, %v6382
          %v6614 = vadd.f32 %v6294, %v6386
          %v6615 = vadd.f32 %v6295, %v6390
          %v6616 = vadd.f32 %v6296, %v6394
          %v6617 = vadd.f32 %v6297, %v6398
          %v6618 = vadd.f32 %v6298, %v6402
          %v6619 = vadd.f32 %v6299, %v6382
          %v6620 = vadd.f32 %v6300, %v6386
          %v6621 = vadd.f32 %v6301, %v6390
          %v6622 = vadd.f32 %v6302, %v6394
          %v6623 = vadd.f32 %v6303, %v6398
          %v6624 = vadd.f32 %v6304, %v6402
          %v6625 = vadd.f32 %v6305, %v6382
          %v6626 = vadd.f32 %v6306, %v6386
          %v6627 = vadd.f32 %v6307, %v6390
          %v6628 = vadd.f32 %v6308, %v6394
          %v6629 = vadd.f32 %v6309, %v6398
          %v6630 = vadd.f32 %v6310, %v6402
          %v6631 = vadd.f32 %v6311, %v6382
          %v6632 = vadd.f32 %v6312, %v6386
          %v6633 = vadd.f32 %v6313, %v6390
          %v6634 = vadd.f32 %v6314, %v6394
          %v6635 = vadd.f32 %v6315, %v6398
          %v6636 = vadd.f32 %v6316, %v6402
          %v6637 = vadd.f32 %v6317, %v6382
          %v6638 = vadd.f32 %v6318, %v6386
          %v6639 = vadd.f32 %v6319, %v6390
          %v6640 = vadd.f32 %v6320, %v6394
          %v6641 = vadd.f32 %v6321, %v6398
          %v6642 = vadd.f32 %v6322, %v6402
          %v6643 = vadd.f32 %v6323, %v6382
          %v6644 = vadd.f32 %v6324, %v6386
          %v6645 = vadd.f32 %v6325, %v6390
          %v6646 = vadd.f32 %v6326, %v6394
          %v6647 = vadd.f32 %v6327, %v6398
          %v6648 = vadd.f32 %v6328, %v6402
          %v6649 = vadd.f32 %v6329, %v6382
          %v6650 = vadd.f32 %v6330, %v6386
          %v6651 = vadd.f32 %v6331, %v6390
          %v6652 = vadd.f32 %v6332, %v6394
          %v6653 = vadd.f32 %v6333, %v6398
          %v6654 = vadd.f32 %v6334, %v6402
          %v6655 = vadd.f32 %v6335, %v6382
          %v6656 = vadd.f32 %v6336, %v6386
          %v6657 = vadd.f32 %v6337, %v6390
          %v6658 = vadd.f32 %v6338, %v6394
          %v6659 = vadd.f32 %v6339, %v6398
          %v6660 = vadd.f32 %v6340, %v6402
          %v6661 = vadd.f32 %v6341, %v6382
          %v6662 = vadd.f32 %v6342, %v6386
          %v6663 = vadd.f32 %v6343, %v6390
          %v6664 = vadd.f32 %v6344, %v6394
          %v6665 = vadd.f32 %v6345, %v6398
          %v6666 = vadd.f32 %v6346, %v6402
          %v6667 = vadd.f32 %v6347, %v6382
          %v6668 = vadd.f32 %v6348, %v6386
          %v6669 = vadd.f32 %v6349, %v6390
          %v6670 = vadd.f32 %v6350, %v6394
          %v6671 = vadd.f32 %v6351, %v6398
          %v6672 = vadd.f32 %v6352, %v6402
          %v6673 = vadd.f32 %v6353, %v6382
          %v6674 = vadd.f32 %v6354, %v6386
          %v6675 = vadd.f32 %v6355, %v6390
          %v6676 = vadd.f32 %v6356, %v6394
          %v6677 = vadd.f32 %v6357, %v6398
          %v6678 = vadd.f32 %v6358, %v6402
          %v6679 = vadd.f32 %v6359, %v6382
          %v6680 = vadd.f32 %v6360, %v6386
          %v6681 = vadd.f32 %v6361, %v6390
          %v6682 = vadd.f32 %v6362, %v6394
          %v6683 = vadd.f32 %v6363, %v6398
          %v6684 = vadd.f32 %v6364, %v6402
          %v6685 = vadd.f32 %v6365, %v6382
          %v6686 = vadd.f32 %v6366, %v6386
          %v6687 = vadd.f32 %v6367, %v6390
          %v6688 = vadd.f32 %v6368, %v6394
          %v6689 = vadd.f32 %v6369, %v6398
          %v6690 = vadd.f32 %v6370, %v6402
          %v6691 = vadd.f32 %v6371, %v6382
          %v6692 = vadd.f32 %v6372, %v6386
          %v6693 = vadd.f32 %v6373, %v6390
          %v6694 = vadd.f32 %v6374, %v6394
          %v6695 = vadd.f32 %v6375, %v6398
          %v6696 = vadd.f32 %v6376, %v6402
          %v6697 = vld [vmem:[#allocation8] sm:$0xff]
          %v6698 = vld [vmem:[#allocation8 + $0x8] sm:$0xff]
          %v6699 = vld [vmem:[#allocation8 + $0x10] sm:$0xff]
          %v6700 = vld [vmem:[#allocation8 + $0x18] sm:$0xff]
          %v6701 = vld [vmem:[#allocation8 + $0x20] sm:$0xff]
          %v6702 = vld [vmem:[#allocation8 + $0x28] sm:$0xff]
          %v6703 = vld [vmem:[#allocation8 + $0x30] sm:$0xff]
          %v6704 = vld [vmem:[#allocation8 + $0x38] sm:$0xff]
          %v6705 = vld [vmem:[#allocation8 + $0x40] sm:$0xff]
          %v6706 = vld [vmem:[#allocation8 + $0x48] sm:$0xff]
          %v6707 = vld [vmem:[#allocation8 + $0x50] sm:$0xff]
          %v6708 = vld [vmem:[#allocation8 + $0x58] sm:$0xff]
          %v6709 = vld [vmem:[#allocation8 + $0x60] sm:$0xff]
          %v6710 = vld [vmem:[#allocation8 + $0x68] sm:$0xff]
          %v6711 = vld [vmem:[#allocation8 + $0x70] sm:$0xff]
          %v6712 = vld [vmem:[#allocation8 + $0x78] sm:$0xff]
          %v6713 = vld [vmem:[#allocation8 + $0x80] sm:$0xff]
          %v6714 = vld [vmem:[#allocation8 + $0x88] sm:$0xff]
          %v6715 = vld [vmem:[#allocation8 + $0x90] sm:$0xff]
          %v6716 = vld [vmem:[#allocation8 + $0x98] sm:$0xff]
          %v6717 = vld [vmem:[#allocation8 + $0xa0] sm:$0xff]
          %v6718 = vld [vmem:[#allocation8 + $0xa8] sm:$0xff]
          %v6719 = vld [vmem:[#allocation8 + $0xb0] sm:$0xff]
          %v6720 = vld [vmem:[#allocation8 + $0xb8] sm:$0xff]
          %v6721 = vld [vmem:[#allocation8 + $0xc0] sm:$0xff]
          %v6722 = vld [vmem:[#allocation8 + $0xc8] sm:$0xff]
          %v6723 = vld [vmem:[#allocation8 + $0xd0] sm:$0xff]
          %v6724 = vld [vmem:[#allocation8 + $0xd8] sm:$0xff]
          %v6725 = vld [vmem:[#allocation8 + $0xe0] sm:$0xff]
          %v6726 = vld [vmem:[#allocation8 + $0xe8] sm:$0xff]
          %v6727 = vld [vmem:[#allocation8 + $0xf0] sm:$0xff]
          %v6728 = vld [vmem:[#allocation8 + $0xf8] sm:$0xff]
          %v6729 = vld [vmem:[#allocation8 + $0x100] sm:$0xff]
          %v6730 = vld [vmem:[#allocation8 + $0x108] sm:$0xff]
          %v6731 = vld [vmem:[#allocation8 + $0x110] sm:$0xff]
          %v6732 = vld [vmem:[#allocation8 + $0x118] sm:$0xff]
          %v6733 = vld [vmem:[#allocation8 + $0x120] sm:$0xff]
          %v6734 = vld [vmem:[#allocation8 + $0x128] sm:$0xff]
          %v6735 = vld [vmem:[#allocation8 + $0x130] sm:$0xff]
          %v6736 = vld [vmem:[#allocation8 + $0x138] sm:$0xff]
          %v6737 = vld [vmem:[#allocation8 + $0x140] sm:$0xff]
          %v6738 = vld [vmem:[#allocation8 + $0x148] sm:$0xff]
          %v6739 = vld [vmem:[#allocation8 + $0x150] sm:$0xff]
          %v6740 = vld [vmem:[#allocation8 + $0x158] sm:$0xff]
          %v6741 = vld [vmem:[#allocation8 + $0x160] sm:$0xff]
          %v6742 = vld [vmem:[#allocation8 + $0x168] sm:$0xff]
          %v6743 = vld [vmem:[#allocation8 + $0x170] sm:$0xff]
          %v6744 = vld [vmem:[#allocation8 + $0x178] sm:$0xff]
          %v6745 = vld [vmem:[#allocation8 + $0x180] sm:$0xff]
          %v6746 = vld [vmem:[#allocation8 + $0x188] sm:$0xff]
          %v6747 = vld [vmem:[#allocation8 + $0x190] sm:$0xff]
          %v6748 = vld [vmem:[#allocation8 + $0x198] sm:$0xff]
          %v6749 = vld [vmem:[#allocation8 + $0x1a0] sm:$0xff]
          %v6750 = vld [vmem:[#allocation8 + $0x1a8] sm:$0xff]
          %v6751 = vld [vmem:[#allocation8 + $0x1b0] sm:$0xff]
          %v6752 = vld [vmem:[#allocation8 + $0x1b8] sm:$0xff]
          %v6753 = vld [vmem:[#allocation8 + $0x1c0] sm:$0xff]
          %v6754 = vld [vmem:[#allocation8 + $0x1c8] sm:$0xff]
          %v6755 = vld [vmem:[#allocation8 + $0x1d0] sm:$0xff]
          %v6756 = vld [vmem:[#allocation8 + $0x1d8] sm:$0xff]
          %v6757 = vld [vmem:[#allocation8 + $0x1e0] sm:$0xff]
          %v6758 = vld [vmem:[#allocation8 + $0x1e8] sm:$0xff]
          %v6759 = vld [vmem:[#allocation8 + $0x1f0] sm:$0xff]
          %v6760 = vld [vmem:[#allocation8 + $0x1f8] sm:$0xff]
          %v6761 = vld [vmem:[#allocation8 + $0x200] sm:$0xff]
          %v6762 = vld [vmem:[#allocation8 + $0x208] sm:$0xff]
          %v6763 = vld [vmem:[#allocation8 + $0x210] sm:$0xff]
          %v6764 = vld [vmem:[#allocation8 + $0x218] sm:$0xff]
          %v6765 = vld [vmem:[#allocation8 + $0x220] sm:$0xff]
          %v6766 = vld [vmem:[#allocation8 + $0x228] sm:$0xff]
          %v6767 = vld [vmem:[#allocation8 + $0x230] sm:$0xff]
          %v6768 = vld [vmem:[#allocation8 + $0x238] sm:$0xff]
          %v6769 = vld [vmem:[#allocation8 + $0x240] sm:$0xff]
          %v6770 = vld [vmem:[#allocation8 + $0x248] sm:$0xff]
          %v6771 = vld [vmem:[#allocation8 + $0x250] sm:$0xff]
          %v6772 = vld [vmem:[#allocation8 + $0x258] sm:$0xff]
          %v6773 = vld [vmem:[#allocation8 + $0x260] sm:$0xff]
          %v6774 = vld [vmem:[#allocation8 + $0x268] sm:$0xff]
          %v6775 = vld [vmem:[#allocation8 + $0x270] sm:$0xff]
          %v6776 = vld [vmem:[#allocation8 + $0x278] sm:$0xff]
          %v6777 = vld [vmem:[#allocation8 + $0x280] sm:$0xff]
          %v6778 = vld [vmem:[#allocation8 + $0x288] sm:$0xff]
          %v6779 = vld [vmem:[#allocation8 + $0x290] sm:$0xff]
          %v6780 = vld [vmem:[#allocation8 + $0x298] sm:$0xff]
          %v6781 = vld [vmem:[#allocation8 + $0x2a0] sm:$0xff]
          %v6782 = vld [vmem:[#allocation8 + $0x2a8] sm:$0xff]
          %v6783 = vld [vmem:[#allocation8 + $0x2b0] sm:$0xff]
          %v6784 = vld [vmem:[#allocation8 + $0x2b8] sm:$0xff]
          %v6785 = vld [vmem:[#allocation8 + $0x2c0] sm:$0xff]
          %v6786 = vld [vmem:[#allocation8 + $0x2c8] sm:$0xff]
          %v6787 = vld [vmem:[#allocation8 + $0x2d0] sm:$0xff]
          %v6788 = vld [vmem:[#allocation8 + $0x2d8] sm:$0xff]
          %v6789 = vld [vmem:[#allocation8 + $0x2e0] sm:$0xff]
          %v6790 = vld [vmem:[#allocation8 + $0x2e8] sm:$0xff]
          %v6791 = vld [vmem:[#allocation8 + $0x2f0] sm:$0xff]
          %v6792 = vld [vmem:[#allocation8 + $0x2f8] sm:$0xff]
          %v6793 = vld [vmem:[#allocation8 + $0x300] sm:$0xff]
          %v6794 = vld [vmem:[#allocation8 + $0x308] sm:$0xff]
          %v6795 = vld [vmem:[#allocation8 + $0x310] sm:$0xff]
          %v6796 = vld [vmem:[#allocation8 + $0x318] sm:$0xff]
          %v6797 = vld [vmem:[#allocation8 + $0x320] sm:$0xff]
          %v6798 = vld [vmem:[#allocation8 + $0x328] sm:$0xff]
          %v6799 = vld [vmem:[#allocation8 + $0x330] sm:$0xff]
          %v6800 = vld [vmem:[#allocation8 + $0x338] sm:$0xff]
          %v6801 = vld [vmem:[#allocation8 + $0x340] sm:$0xff]
          %v6802 = vld [vmem:[#allocation8 + $0x348] sm:$0xff]
          %v6803 = vld [vmem:[#allocation8 + $0x350] sm:$0xff]
          %v6804 = vld [vmem:[#allocation8 + $0x358] sm:$0xff]
          %v6805 = vld [vmem:[#allocation8 + $0x360] sm:$0xff]
          %v6806 = vld [vmem:[#allocation8 + $0x368] sm:$0xff]
          %v6807 = vld [vmem:[#allocation8 + $0x370] sm:$0xff]
          %v6808 = vld [vmem:[#allocation8 + $0x378] sm:$0xff]
          %v6809 = vld [vmem:[#allocation8 + $0x380] sm:$0xff]
          %v6810 = vld [vmem:[#allocation8 + $0x388] sm:$0xff]
          %v6811 = vld [vmem:[#allocation8 + $0x390] sm:$0xff]
          %v6812 = vld [vmem:[#allocation8 + $0x398] sm:$0xff]
          %v6813 = vld [vmem:[#allocation8 + $0x3a0] sm:$0xff]
          %v6814 = vld [vmem:[#allocation8 + $0x3a8] sm:$0xff]
          %v6815 = vld [vmem:[#allocation8 + $0x3b0] sm:$0xff]
          %v6816 = vld [vmem:[#allocation8 + $0x3b8] sm:$0xff]
          %v6817 = vld [vmem:[#allocation8 + $0x3c0] sm:$0xff]
          %v6818 = vld [vmem:[#allocation8 + $0x3c8] sm:$0xff]
          %v6819 = vld [vmem:[#allocation8 + $0x3d0] sm:$0xff]
          %v6820 = vld [vmem:[#allocation8 + $0x3d8] sm:$0xff]
          %v6821 = vld [vmem:[#allocation8 + $0x3e0] sm:$0xff]
          %v6822 = vld [vmem:[#allocation8 + $0x3e8] sm:$0xff]
          %v6823 = vld [vmem:[#allocation8 + $0x3f0] sm:$0xff]
          %v6824 = vld [vmem:[#allocation8 + $0x3f8] sm:$0xff]
          %v6825 = vld [vmem:[#allocation8 + $0x400] sm:$0xff]
          %v6826 = vld [vmem:[#allocation8 + $0x408] sm:$0xff]
          %v6827 = vld [vmem:[#allocation8 + $0x410] sm:$0xff]
          %v6828 = vld [vmem:[#allocation8 + $0x418] sm:$0xff]
          %v6829 = vld [vmem:[#allocation8 + $0x420] sm:$0xff]
          %v6830 = vld [vmem:[#allocation8 + $0x428] sm:$0xff]
          %v6831 = vld [vmem:[#allocation8 + $0x430] sm:$0xff]
          %v6832 = vld [vmem:[#allocation8 + $0x438] sm:$0xff]
          %v6833 = vld [vmem:[#allocation8 + $0x440] sm:$0xff]
          %v6834 = vld [vmem:[#allocation8 + $0x448] sm:$0xff]
          %v6835 = vld [vmem:[#allocation8 + $0x450] sm:$0xff]
          %v6836 = vld [vmem:[#allocation8 + $0x458] sm:$0xff]
          %v6837 = vld [vmem:[#allocation8 + $0x460] sm:$0xff]
          %v6838 = vld [vmem:[#allocation8 + $0x468] sm:$0xff]
          %v6839 = vld [vmem:[#allocation8 + $0x470] sm:$0xff]
          %v6840 = vld [vmem:[#allocation8 + $0x478] sm:$0xff]
          %v6841 = vld [vmem:[#allocation8 + $0x480] sm:$0xff]
          %v6842 = vld [vmem:[#allocation8 + $0x488] sm:$0xff]
          %v6843 = vld [vmem:[#allocation8 + $0x490] sm:$0xff]
          %v6844 = vld [vmem:[#allocation8 + $0x498] sm:$0xff]
          %v6845 = vld [vmem:[#allocation8 + $0x4a0] sm:$0xff]
          %v6846 = vld [vmem:[#allocation8 + $0x4a8] sm:$0xff]
          %v6847 = vld [vmem:[#allocation8 + $0x4b0] sm:$0xff]
          %v6848 = vld [vmem:[#allocation8 + $0x4b8] sm:$0xff]
          %v6849 = vld [vmem:[#allocation8 + $0x4c0] sm:$0xff]
          %v6850 = vld [vmem:[#allocation8 + $0x4c8] sm:$0xff]
          %v6851 = vld [vmem:[#allocation8 + $0x4d0] sm:$0xff]
          %v6852 = vld [vmem:[#allocation8 + $0x4d8] sm:$0xff]
          %v6853 = vld [vmem:[#allocation8 + $0x4e0] sm:$0xff]
          %v6854 = vld [vmem:[#allocation8 + $0x4e8] sm:$0xff]
          %v6855 = vld [vmem:[#allocation8 + $0x4f0] sm:$0xff]
          %v6856 = vld [vmem:[#allocation8 + $0x4f8] sm:$0xff]
          %v6857 = vld [vmem:[#allocation8 + $0x500] sm:$0xff]
          %v6858 = vld [vmem:[#allocation8 + $0x508] sm:$0xff]
          %v6859 = vld [vmem:[#allocation8 + $0x510] sm:$0xff]
          %v6860 = vld [vmem:[#allocation8 + $0x518] sm:$0xff]
          %v6861 = vld [vmem:[#allocation8 + $0x520] sm:$0xff]
          %v6862 = vld [vmem:[#allocation8 + $0x528] sm:$0xff]
          %v6863 = vld [vmem:[#allocation8 + $0x530] sm:$0xff]
          %v6864 = vld [vmem:[#allocation8 + $0x538] sm:$0xff]
          %v6865 = vld [vmem:[#allocation8 + $0x540] sm:$0xff]
          %v6866 = vld [vmem:[#allocation8 + $0x548] sm:$0xff]
          %v6867 = vld [vmem:[#allocation8 + $0x550] sm:$0xff]
          %v6868 = vld [vmem:[#allocation8 + $0x558] sm:$0xff]
          %v6869 = vld [vmem:[#allocation8 + $0x560] sm:$0xff]
          %v6870 = vld [vmem:[#allocation8 + $0x568] sm:$0xff]
          %v6871 = vld [vmem:[#allocation8 + $0x570] sm:$0xff]
          %v6872 = vld [vmem:[#allocation8 + $0x578] sm:$0xff]
          %v6873 = vld [vmem:[#allocation8 + $0x580] sm:$0xff]
          %v6874 = vld [vmem:[#allocation8 + $0x588] sm:$0xff]
          %v6875 = vld [vmem:[#allocation8 + $0x590] sm:$0xff]
          %v6876 = vld [vmem:[#allocation8 + $0x598] sm:$0xff]
          %v6877 = vld [vmem:[#allocation8 + $0x5a0] sm:$0xff]
          %v6878 = vld [vmem:[#allocation8 + $0x5a8] sm:$0xff]
          %v6879 = vld [vmem:[#allocation8 + $0x5b0] sm:$0xff]
          %v6880 = vld [vmem:[#allocation8 + $0x5b8] sm:$0xff]
          %v6881 = vld [vmem:[#allocation8 + $0x5c0] sm:$0xff]
          %v6882 = vld [vmem:[#allocation8 + $0x5c8] sm:$0xff]
          %v6883 = vld [vmem:[#allocation8 + $0x5d0] sm:$0xff]
          %v6884 = vld [vmem:[#allocation8 + $0x5d8] sm:$0xff]
          %v6885 = vld [vmem:[#allocation8 + $0x5e0] sm:$0xff]
          %v6886 = vld [vmem:[#allocation8 + $0x5e8] sm:$0xff]
          %v6887 = vld [vmem:[#allocation8 + $0x5f0] sm:$0xff]
          %v6888 = vld [vmem:[#allocation8 + $0x5f8] sm:$0xff]
          %v6889 = vld [vmem:[#allocation8 + $0x600] sm:$0xff]
          %v6890 = vld [vmem:[#allocation8 + $0x608] sm:$0xff]
          %v6891 = vld [vmem:[#allocation8 + $0x610] sm:$0xff]
          %v6892 = vld [vmem:[#allocation8 + $0x618] sm:$0xff]
          %v6893 = vld [vmem:[#allocation8 + $0x620] sm:$0xff]
          %v6894 = vld [vmem:[#allocation8 + $0x628] sm:$0xff]
          %v6895 = vld [vmem:[#allocation8 + $0x630] sm:$0xff]
          %v6896 = vld [vmem:[#allocation8 + $0x638] sm:$0xff]
          %v6897 = vld [vmem:[#allocation8 + $0x640] sm:$0xff]
          %v6898 = vld [vmem:[#allocation8 + $0x648] sm:$0xff]
          %v6899 = vld [vmem:[#allocation8 + $0x650] sm:$0xff]
          %v6900 = vld [vmem:[#allocation8 + $0x658] sm:$0xff]
          %v6901 = vld [vmem:[#allocation8 + $0x660] sm:$0xff]
          %v6902 = vld [vmem:[#allocation8 + $0x668] sm:$0xff]
          %v6903 = vld [vmem:[#allocation8 + $0x670] sm:$0xff]
          %v6904 = vld [vmem:[#allocation8 + $0x678] sm:$0xff]
          %v6905 = vld [vmem:[#allocation8 + $0x680] sm:$0xff]
          %v6906 = vld [vmem:[#allocation8 + $0x688] sm:$0xff]
          %v6907 = vld [vmem:[#allocation8 + $0x690] sm:$0xff]
          %v6908 = vld [vmem:[#allocation8 + $0x698] sm:$0xff]
          %v6909 = vld [vmem:[#allocation8 + $0x6a0] sm:$0xff]
          %v6910 = vld [vmem:[#allocation8 + $0x6a8] sm:$0xff]
          %v6911 = vld [vmem:[#allocation8 + $0x6b0] sm:$0xff]
          %v6912 = vld [vmem:[#allocation8 + $0x6b8] sm:$0xff]
          %v6913 = vld [vmem:[#allocation8 + $0x6c0] sm:$0xff]
          %v6914 = vld [vmem:[#allocation8 + $0x6c8] sm:$0xff]
          %v6915 = vld [vmem:[#allocation8 + $0x6d0] sm:$0xff]
          %v6916 = vld [vmem:[#allocation8 + $0x6d8] sm:$0xff]
          %v6917 = vld [vmem:[#allocation8 + $0x6e0] sm:$0xff]
          %v6918 = vld [vmem:[#allocation8 + $0x6e8] sm:$0xff]
          %v6919 = vld [vmem:[#allocation8 + $0x6f0] sm:$0xff]
          %v6920 = vld [vmem:[#allocation8 + $0x6f8] sm:$0xff]
          %v6921 = vld [vmem:[#allocation8 + $0x700] sm:$0xff]
          %v6922 = vld [vmem:[#allocation8 + $0x708] sm:$0xff]
          %v6923 = vld [vmem:[#allocation8 + $0x710] sm:$0xff]
          %v6924 = vld [vmem:[#allocation8 + $0x718] sm:$0xff]
          %v6925 = vld [vmem:[#allocation8 + $0x720] sm:$0xff]
          %v6926 = vld [vmem:[#allocation8 + $0x728] sm:$0xff]
          %v6927 = vld [vmem:[#allocation8 + $0x730] sm:$0xff]
          %v6928 = vld [vmem:[#allocation8 + $0x738] sm:$0xff]
          %v6929 = vld [vmem:[#allocation8 + $0x740] sm:$0xff]
          %v6930 = vld [vmem:[#allocation8 + $0x748] sm:$0xff]
          %v6931 = vld [vmem:[#allocation8 + $0x750] sm:$0xff]
          %v6932 = vld [vmem:[#allocation8 + $0x758] sm:$0xff]
          %v6933 = vld [vmem:[#allocation8 + $0x760] sm:$0xff]
          %v6934 = vld [vmem:[#allocation8 + $0x768] sm:$0xff]
          %v6935 = vld [vmem:[#allocation8 + $0x770] sm:$0xff]
          %v6936 = vld [vmem:[#allocation8 + $0x778] sm:$0xff]
          %v6937 = vld [vmem:[#allocation8 + $0x780] sm:$0xff]
          %v6938 = vld [vmem:[#allocation8 + $0x788] sm:$0xff]
          %v6939 = vld [vmem:[#allocation8 + $0x790] sm:$0xff]
          %v6940 = vld [vmem:[#allocation8 + $0x798] sm:$0xff]
          %v6941 = vld [vmem:[#allocation8 + $0x7a0] sm:$0xff]
          %v6942 = vld [vmem:[#allocation8 + $0x7a8] sm:$0xff]
          %v6943 = vld [vmem:[#allocation8 + $0x7b0] sm:$0xff]
          %v6944 = vld [vmem:[#allocation8 + $0x7b8] sm:$0xff]
          %v6945 = vld [vmem:[#allocation8 + $0x7c0] sm:$0xff]
          %v6946 = vld [vmem:[#allocation8 + $0x7c8] sm:$0xff]
          %v6947 = vld [vmem:[#allocation8 + $0x7d0] sm:$0xff]
          %v6948 = vld [vmem:[#allocation8 + $0x7d8] sm:$0xff]
          %v6949 = vld [vmem:[#allocation8 + $0x7e0] sm:$0xff]
          %v6950 = vld [vmem:[#allocation8 + $0x7e8] sm:$0xff]
          %v6951 = vld [vmem:[#allocation8 + $0x7f0] sm:$0xff]
          %v6952 = vld [vmem:[#allocation8 + $0x7f8] sm:$0xff]
          %v6953 = vld [vmem:[#allocation8 + $0x800] sm:$0xff]
          %v6954 = vld [vmem:[#allocation8 + $0x808] sm:$0xff]
          %v6955 = vld [vmem:[#allocation8 + $0x810] sm:$0xff]
          %v6956 = vld [vmem:[#allocation8 + $0x818] sm:$0xff]
          %v6957 = vld [vmem:[#allocation8 + $0x820] sm:$0xff]
          %v6958 = vld [vmem:[#allocation8 + $0x828] sm:$0xff]
          %v6959 = vld [vmem:[#allocation8 + $0x830] sm:$0xff]
          %v6960 = vld [vmem:[#allocation8 + $0x838] sm:$0xff]
          %v6961 = vld [vmem:[#allocation8 + $0x840] sm:$0xff]
          %v6962 = vld [vmem:[#allocation8 + $0x848] sm:$0xff]
          %v6963 = vld [vmem:[#allocation8 + $0x850] sm:$0xff]
          %v6964 = vld [vmem:[#allocation8 + $0x858] sm:$0xff]
          %v6965 = vld [vmem:[#allocation8 + $0x860] sm:$0xff]
          %v6966 = vld [vmem:[#allocation8 + $0x868] sm:$0xff]
          %v6967 = vld [vmem:[#allocation8 + $0x870] sm:$0xff]
          %v6968 = vld [vmem:[#allocation8 + $0x878] sm:$0xff]
          %v6969 = vld [vmem:[#allocation8 + $0x880] sm:$0xff]
          %v6970 = vld [vmem:[#allocation8 + $0x888] sm:$0xff]
          %v6971 = vld [vmem:[#allocation8 + $0x890] sm:$0xff]
          %v6972 = vld [vmem:[#allocation8 + $0x898] sm:$0xff]
          %v6973 = vld [vmem:[#allocation8 + $0x8a0] sm:$0xff]
          %v6974 = vld [vmem:[#allocation8 + $0x8a8] sm:$0xff]
          %v6975 = vld [vmem:[#allocation8 + $0x8b0] sm:$0xff]
          %v6976 = vld [vmem:[#allocation8 + $0x8b8] sm:$0xff]
          %v6977 = vld [vmem:[#allocation8 + $0x8c0] sm:$0xff]
          %v6978 = vld [vmem:[#allocation8 + $0x8c8] sm:$0xff]
          %v6979 = vld [vmem:[#allocation8 + $0x8d0] sm:$0xff]
          %v6980 = vld [vmem:[#allocation8 + $0x8d8] sm:$0xff]
          %v6981 = vld [vmem:[#allocation8 + $0x8e0] sm:$0xff]
          %v6982 = vld [vmem:[#allocation8 + $0x8e8] sm:$0xff]
          %v6983 = vld [vmem:[#allocation8 + $0x8f0] sm:$0xff]
          %v6984 = vld [vmem:[#allocation8 + $0x8f8] sm:$0xff]
          %v6985 = vadd.f32 %v6409, %v6697
          %v6986 = vadd.f32 %v6410, %v6698
          %v6987 = vadd.f32 %v6411, %v6699
          %v6988 = vadd.f32 %v6412, %v6700
          %v6989 = vadd.f32 %v6413, %v6701
          %v6990 = vadd.f32 %v6414, %v6702
          %v6991 = vadd.f32 %v6415, %v6703
          %v6992 = vadd.f32 %v6416, %v6704
          %v6993 = vadd.f32 %v6417, %v6705
          %v6994 = vadd.f32 %v6418, %v6706
          %v6995 = vadd.f32 %v6419, %v6707
          %v6996 = vadd.f32 %v6420, %v6708
          %v6997 = vadd.f32 %v6421, %v6709
          %v6998 = vadd.f32 %v6422, %v6710
          %v6999 = vadd.f32 %v6423, %v6711
          %v7000 = vadd.f32 %v6424, %v6712
          %v7001 = vadd.f32 %v6425, %v6713
          %v7002 = vadd.f32 %v6426, %v6714
          %v7003 = vadd.f32 %v6427, %v6715
          %v7004 = vadd.f32 %v6428, %v6716
          %v7005 = vadd.f32 %v6429, %v6717
          %v7006 = vadd.f32 %v6430, %v6718
          %v7007 = vadd.f32 %v6431, %v6719
          %v7008 = vadd.f32 %v6432, %v6720
          %v7009 = vadd.f32 %v6433, %v6721
          %v7010 = vadd.f32 %v6434, %v6722
          %v7011 = vadd.f32 %v6435, %v6723
          %v7012 = vadd.f32 %v6436, %v6724
          %v7013 = vadd.f32 %v6437, %v6725
          %v7014 = vadd.f32 %v6438, %v6726
          %v7015 = vadd.f32 %v6439, %v6727
          %v7016 = vadd.f32 %v6440, %v6728
          %v7017 = vadd.f32 %v6441, %v6729
          %v7018 = vadd.f32 %v6442, %v6730
          %v7019 = vadd.f32 %v6443, %v6731
          %v7020 = vadd.f32 %v6444, %v6732
          %v7021 = vadd.f32 %v6445, %v6733
          %v7022 = vadd.f32 %v6446, %v6734
          %v7023 = vadd.f32 %v6447, %v6735
          %v7024 = vadd.f32 %v6448, %v6736
          %v7025 = vadd.f32 %v6449, %v6737
          %v7026 = vadd.f32 %v6450, %v6738
          %v7027 = vadd.f32 %v6451, %v6739
          %v7028 = vadd.f32 %v6452, %v6740
          %v7029 = vadd.f32 %v6453, %v6741
          %v7030 = vadd.f32 %v6454, %v6742
          %v7031 = vadd.f32 %v6455, %v6743
          %v7032 = vadd.f32 %v6456, %v6744
          %v7033 = vadd.f32 %v6457, %v6745
          %v7034 = vadd.f32 %v6458, %v6746
          %v7035 = vadd.f32 %v6459, %v6747
          %v7036 = vadd.f32 %v6460, %v6748
          %v7037 = vadd.f32 %v6461, %v6749
          %v7038 = vadd.f32 %v6462, %v6750
          %v7039 = vadd.f32 %v6463, %v6751
          %v7040 = vadd.f32 %v6464, %v6752
          %v7041 = vadd.f32 %v6465, %v6753
          %v7042 = vadd.f32 %v6466, %v6754
          %v7043 = vadd.f32 %v6467, %v6755
          %v7044 = vadd.f32 %v6468, %v6756
          %v7045 = vadd.f32 %v6469, %v6757
          %v7046 = vadd.f32 %v6470, %v6758
          %v7047 = vadd.f32 %v6471, %v6759
          %v7048 = vadd.f32 %v6472, %v6760
          %v7049 = vadd.f32 %v6473, %v6761
          %v7050 = vadd.f32 %v6474, %v6762
          %v7051 = vadd.f32 %v6475, %v6763
          %v7052 = vadd.f32 %v6476, %v6764
          %v7053 = vadd.f32 %v6477, %v6765
          %v7054 = vadd.f32 %v6478, %v6766
          %v7055 = vadd.f32 %v6479, %v6767
          %v7056 = vadd.f32 %v6480, %v6768
          %v7057 = vadd.f32 %v6481, %v6769
          %v7058 = vadd.f32 %v6482, %v6770
          %v7059 = vadd.f32 %v6483, %v6771
          %v7060 = vadd.f32 %v6484, %v6772
          %v7061 = vadd.f32 %v6485, %v6773
          %v7062 = vadd.f32 %v6486, %v6774
          %v7063 = vadd.f32 %v6487, %v6775
          %v7064 = vadd.f32 %v6488, %v6776
          %v7065 = vadd.f32 %v6489, %v6777
          %v7066 = vadd.f32 %v6490, %v6778
          %v7067 = vadd.f32 %v6491, %v6779
          %v7068 = vadd.f32 %v6492, %v6780
          %v7069 = vadd.f32 %v6493, %v6781
          %v7070 = vadd.f32 %v6494, %v6782
          %v7071 = vadd.f32 %v6495, %v6783
          %v7072 = vadd.f32 %v6496, %v6784
          %v7073 = vadd.f32 %v6497, %v6785
          %v7074 = vadd.f32 %v6498, %v6786
          %v7075 = vadd.f32 %v6499, %v6787
          %v7076 = vadd.f32 %v6500, %v6788
          %v7077 = vadd.f32 %v6501, %v6789
          %v7078 = vadd.f32 %v6502, %v6790
          %v7079 = vadd.f32 %v6503, %v6791
          %v7080 = vadd.f32 %v6504, %v6792
          %v7081 = vadd.f32 %v6505, %v6793
          %v7082 = vadd.f32 %v6506, %v6794
          %v7083 = vadd.f32 %v6507, %v6795
          %v7084 = vadd.f32 %v6508, %v6796
          %v7085 = vadd.f32 %v6509, %v6797
          %v7086 = vadd.f32 %v6510, %v6798
          %v7087 = vadd.f32 %v6511, %v6799
          %v7088 = vadd.f32 %v6512, %v6800
          %v7089 = vadd.f32 %v6513, %v6801
          %v7090 = vadd.f32 %v6514, %v6802
          %v7091 = vadd.f32 %v6515, %v6803
          %v7092 = vadd.f32 %v6516, %v6804
          %v7093 = vadd.f32 %v6517, %v6805
          %v7094 = vadd.f32 %v6518, %v6806
          %v7095 = vadd.f32 %v6519, %v6807
          %v7096 = vadd.f32 %v6520, %v6808
          %v7097 = vadd.f32 %v6521, %v6809
          %v7098 = vadd.f32 %v6522, %v6810
          %v7099 = vadd.f32 %v6523, %v6811
          %v7100 = vadd.f32 %v6524, %v6812
          %v7101 = vadd.f32 %v6525, %v6813
          %v7102 = vadd.f32 %v6526, %v6814
          %v7103 = vadd.f32 %v6527, %v6815
          %v7104 = vadd.f32 %v6528, %v6816
          %v7105 = vadd.f32 %v6529, %v6817
          %v7106 = vadd.f32 %v6530, %v6818
          %v7107 = vadd.f32 %v6531, %v6819
          %v7108 = vadd.f32 %v6532, %v6820
          %v7109 = vadd.f32 %v6533, %v6821
          %v7110 = vadd.f32 %v6534, %v6822
          %v7111 = vadd.f32 %v6535, %v6823
          %v7112 = vadd.f32 %v6536, %v6824
          %v7113 = vadd.f32 %v6537, %v6825
          %v7114 = vadd.f32 %v6538, %v6826
          %v7115 = vadd.f32 %v6539, %v6827
          %v7116 = vadd.f32 %v6540, %v6828
          %v7117 = vadd.f32 %v6541, %v6829
          %v7118 = vadd.f32 %v6542, %v6830
          %v7119 = vadd.f32 %v6543, %v6831
          %v7120 = vadd.f32 %v6544, %v6832
          %v7121 = vadd.f32 %v6545, %v6833
          %v7122 = vadd.f32 %v6546, %v6834
          %v7123 = vadd.f32 %v6547, %v6835
          %v7124 = vadd.f32 %v6548, %v6836
          %v7125 = vadd.f32 %v6549, %v6837
          %v7126 = vadd.f32 %v6550, %v6838
          %v7127 = vadd.f32 %v6551, %v6839
          %v7128 = vadd.f32 %v6552, %v6840
          %v7129 = vadd.f32 %v6553, %v6841
          %v7130 = vadd.f32 %v6554, %v6842
          %v7131 = vadd.f32 %v6555, %v6843
          %v7132 = vadd.f32 %v6556, %v6844
          %v7133 = vadd.f32 %v6557, %v6845
          %v7134 = vadd.f32 %v6558, %v6846
          %v7135 = vadd.f32 %v6559, %v6847
          %v7136 = vadd.f32 %v6560, %v6848
          %v7137 = vadd.f32 %v6561, %v6849
          %v7138 = vadd.f32 %v6562, %v6850
          %v7139 = vadd.f32 %v6563, %v6851
          %v7140 = vadd.f32 %v6564, %v6852
          %v7141 = vadd.f32 %v6565, %v6853
          %v7142 = vadd.f32 %v6566, %v6854
          %v7143 = vadd.f32 %v6567, %v6855
          %v7144 = vadd.f32 %v6568, %v6856
          %v7145 = vadd.f32 %v6569, %v6857
          %v7146 = vadd.f32 %v6570, %v6858
          %v7147 = vadd.f32 %v6571, %v6859
          %v7148 = vadd.f32 %v6572, %v6860
          %v7149 = vadd.f32 %v6573, %v6861
          %v7150 = vadd.f32 %v6574, %v6862
          %v7151 = vadd.f32 %v6575, %v6863
          %v7152 = vadd.f32 %v6576, %v6864
          %v7153 = vadd.f32 %v6577, %v6865
          %v7154 = vadd.f32 %v6578, %v6866
          %v7155 = vadd.f32 %v6579, %v6867
          %v7156 = vadd.f32 %v6580, %v6868
          %v7157 = vadd.f32 %v6581, %v6869
          %v7158 = vadd.f32 %v6582, %v6870
          %v7159 = vadd.f32 %v6583, %v6871
          %v7160 = vadd.f32 %v6584, %v6872
          %v7161 = vadd.f32 %v6585, %v6873
          %v7162 = vadd.f32 %v6586, %v6874
          %v7163 = vadd.f32 %v6587, %v6875
          %v7164 = vadd.f32 %v6588, %v6876
          %v7165 = vadd.f32 %v6589, %v6877
          %v7166 = vadd.f32 %v6590, %v6878
          %v7167 = vadd.f32 %v6591, %v6879
          %v7168 = vadd.f32 %v6592, %v6880
          %v7169 = vadd.f32 %v6593, %v6881
          %v7170 = vadd.f32 %v6594, %v6882
          %v7171 = vadd.f32 %v6595, %v6883
          %v7172 = vadd.f32 %v6596, %v6884
          %v7173 = vadd.f32 %v6597, %v6885
          %v7174 = vadd.f32 %v6598, %v6886
          %v7175 = vadd.f32 %v6599, %v6887
          %v7176 = vadd.f32 %v6600, %v6888
          %v7177 = vadd.f32 %v6601, %v6889
          %v7178 = vadd.f32 %v6602, %v6890
          %v7179 = vadd.f32 %v6603, %v6891
          %v7180 = vadd.f32 %v6604, %v6892
          %v7181 = vadd.f32 %v6605, %v6893
          %v7182 = vadd.f32 %v6606, %v6894
          %v7183 = vadd.f32 %v6607, %v6895
          %v7184 = vadd.f32 %v6608, %v6896
          %v7185 = vadd.f32 %v6609, %v6897
          %v7186 = vadd.f32 %v6610, %v6898
          %v7187 = vadd.f32 %v6611, %v6899
          %v7188 = vadd.f32 %v6612, %v6900
          %v7189 = vadd.f32 %v6613, %v6901
          %v7190 = vadd.f32 %v6614, %v6902
          %v7191 = vadd.f32 %v6615, %v6903
          %v7192 = vadd.f32 %v6616, %v6904
          %v7193 = vadd.f32 %v6617, %v6905
          %v7194 = vadd.f32 %v6618, %v6906
          %v7195 = vadd.f32 %v6619, %v6907
          %v7196 = vadd.f32 %v6620, %v6908
          %v7197 = vadd.f32 %v6621, %v6909
          %v7198 = vadd.f32 %v6622, %v6910
          %v7199 = vadd.f32 %v6623, %v6911
          %v7200 = vadd.f32 %v6624, %v6912
          %v7201 = vadd.f32 %v6625, %v6913
          %v7202 = vadd.f32 %v6626, %v6914
          %v7203 = vadd.f32 %v6627, %v6915
          %v7204 = vadd.f32 %v6628, %v6916
          %v7205 = vadd.f32 %v6629, %v6917
          %v7206 = vadd.f32 %v6630, %v6918
          %v7207 = vadd.f32 %v6631, %v6919
          %v7208 = vadd.f32 %v6632, %v6920
          %v7209 = vadd.f32 %v6633, %v6921
          %v7210 = vadd.f32 %v6634, %v6922
          %v7211 = vadd.f32 %v6635, %v6923
          %v7212 = vadd.f32 %v6636, %v6924
          %v7213 = vadd.f32 %v6637, %v6925
          %v7214 = vadd.f32 %v6638, %v6926
          %v7215 = vadd.f32 %v6639, %v6927
          %v7216 = vadd.f32 %v6640, %v6928
          %v7217 = vadd.f32 %v6641, %v6929
          %v7218 = vadd.f32 %v6642, %v6930
          %v7219 = vadd.f32 %v6643, %v6931
          %v7220 = vadd.f32 %v6644, %v6932
          %v7221 = vadd.f32 %v6645, %v6933
          %v7222 = vadd.f32 %v6646, %v6934
          %v7223 = vadd.f32 %v6647, %v6935
          %v7224 = vadd.f32 %v6648, %v6936
          %v7225 = vadd.f32 %v6649, %v6937
          %v7226 = vadd.f32 %v6650, %v6938
          %v7227 = vadd.f32 %v6651, %v6939
          %v7228 = vadd.f32 %v6652, %v6940
          %v7229 = vadd.f32 %v6653, %v6941
          %v7230 = vadd.f32 %v6654, %v6942
          %v7231 = vadd.f32 %v6655, %v6943
          %v7232 = vadd.f32 %v6656, %v6944
          %v7233 = vadd.f32 %v6657, %v6945
          %v7234 = vadd.f32 %v6658, %v6946
          %v7235 = vadd.f32 %v6659, %v6947
          %v7236 = vadd.f32 %v6660, %v6948
          %v7237 = vadd.f32 %v6661, %v6949
          %v7238 = vadd.f32 %v6662, %v6950
          %v7239 = vadd.f32 %v6663, %v6951
          %v7240 = vadd.f32 %v6664, %v6952
          %v7241 = vadd.f32 %v6665, %v6953
          %v7242 = vadd.f32 %v6666, %v6954
          %v7243 = vadd.f32 %v6667, %v6955
          %v7244 = vadd.f32 %v6668, %v6956
          %v7245 = vadd.f32 %v6669, %v6957
          %v7246 = vadd.f32 %v6670, %v6958
          %v7247 = vadd.f32 %v6671, %v6959
          %v7248 = vadd.f32 %v6672, %v6960
          %v7249 = vadd.f32 %v6673, %v6961
          %v7250 = vadd.f32 %v6674, %v6962
          %v7251 = vadd.f32 %v6675, %v6963
          %v7252 = vadd.f32 %v6676, %v6964
          %v7253 = vadd.f32 %v6677, %v6965
          %v7254 = vadd.f32 %v6678, %v6966
          %v7255 = vadd.f32 %v6679, %v6967
          %v7256 = vadd.f32 %v6680, %v6968
          %v7257 = vadd.f32 %v6681, %v6969
          %v7258 = vadd.f32 %v6682, %v6970
          %v7259 = vadd.f32 %v6683, %v6971
          %v7260 = vadd.f32 %v6684, %v6972
          %v7261 = vadd.f32 %v6685, %v6973
          %v7262 = vadd.f32 %v6686, %v6974
          %v7263 = vadd.f32 %v6687, %v6975
          %v7264 = vadd.f32 %v6688, %v6976
          %v7265 = vadd.f32 %v6689, %v6977
          %v7266 = vadd.f32 %v6690, %v6978
          %v7267 = vadd.f32 %v6691, %v6979
          %v7268 = vadd.f32 %v6692, %v6980
          %v7269 = vadd.f32 %v6693, %v6981
          %v7270 = vadd.f32 %v6694, %v6982
          %v7271 = vadd.f32 %v6695, %v6983
          %v7272 = vadd.f32 %v6696, %v6984
          %7273 = vst [vmem:[#allocation9] sm:$0xff] %v6985
          %7274 = vst [vmem:[#allocation9 + $0x8] sm:$0xff] %v6986
          %7275 = vst [vmem:[#allocation9 + $0x10] sm:$0xff] %v6987
          %7276 = vst [vmem:[#allocation9 + $0x18] sm:$0xff] %v6988
          %7277 = vst [vmem:[#allocation9 + $0x20] sm:$0xff] %v6989
          %7278 = vst [vmem:[#allocation9 + $0x28] sm:$0xff] %v6990
          %7279 = vst [vmem:[#allocation9 + $0x30] sm:$0xff] %v6991
          %7280 = vst [vmem:[#allocation9 + $0x38] sm:$0xff] %v6992
          %7281 = vst [vmem:[#allocation9 + $0x40] sm:$0xff] %v6993
          %7282 = vst [vmem:[#allocation9 + $0x48] sm:$0xff] %v6994
          %7283 = vst [vmem:[#allocation9 + $0x50] sm:$0xff] %v6995
          %7284 = vst [vmem:[#allocation9 + $0x58] sm:$0xff] %v6996
          %7285 = vst [vmem:[#allocation9 + $0x60] sm:$0xff] %v6997
          %7286 = vst [vmem:[#allocation9 + $0x68] sm:$0xff] %v6998
          %7287 = vst [vmem:[#allocation9 + $0x70] sm:$0xff] %v6999
          %7288 = vst [vmem:[#allocation9 + $0x78] sm:$0xff] %v7000
          %7289 = vst [vmem:[#allocation9 + $0x80] sm:$0xff] %v7001
          %7290 = vst [vmem:[#allocation9 + $0x88] sm:$0xff] %v7002
          %7291 = vst [vmem:[#allocation9 + $0x90] sm:$0xff] %v7003
          %7292 = vst [vmem:[#allocation9 + $0x98] sm:$0xff] %v7004
          %7293 = vst [vmem:[#allocation9 + $0xa0] sm:$0xff] %v7005
          %7294 = vst [vmem:[#allocation9 + $0xa8] sm:$0xff] %v7006
          %7295 = vst [vmem:[#allocation9 + $0xb0] sm:$0xff] %v7007
          %7296 = vst [vmem:[#allocation9 + $0xb8] sm:$0xff] %v7008
          %7297 = vst [vmem:[#allocation9 + $0xc0] sm:$0xff] %v7009
          %7298 = vst [vmem:[#allocation9 + $0xc8] sm:$0xff] %v7010
          %7299 = vst [vmem:[#allocation9 + $0xd0] sm:$0xff] %v7011
          %7300 = vst [vmem:[#allocation9 + $0xd8] sm:$0xff] %v7012
          %7301 = vst [vmem:[#allocation9 + $0xe0] sm:$0xff] %v7013
          %7302 = vst [vmem:[#allocation9 + $0xe8] sm:$0xff] %v7014
          %7303 = vst [vmem:[#allocation9 + $0xf0] sm:$0xff] %v7015
          %7304 = vst [vmem:[#allocation9 + $0xf8] sm:$0xff] %v7016
          %7305 = vst [vmem:[#allocation9 + $0x100] sm:$0xff] %v7017
          %7306 = vst [vmem:[#allocation9 + $0x108] sm:$0xff] %v7018
          %7307 = vst [vmem:[#allocation9 + $0x110] sm:$0xff] %v7019
          %7308 = vst [vmem:[#allocation9 + $0x118] sm:$0xff] %v7020
          %7309 = vst [vmem:[#allocation9 + $0x120] sm:$0xff] %v7021
          %7310 = vst [vmem:[#allocation9 + $0x128] sm:$0xff] %v7022
          %7311 = vst [vmem:[#allocation9 + $0x130] sm:$0xff] %v7023
          %7312 = vst [vmem:[#allocation9 + $0x138] sm:$0xff] %v7024
          %7313 = vst [vmem:[#allocation9 + $0x140] sm:$0xff] %v7025
          %7314 = vst [vmem:[#allocation9 + $0x148] sm:$0xff] %v7026
          %7315 = vst [vmem:[#allocation9 + $0x150] sm:$0xff] %v7027
          %7316 = vst [vmem:[#allocation9 + $0x158] sm:$0xff] %v7028
          %7317 = vst [vmem:[#allocation9 + $0x160] sm:$0xff] %v7029
          %7318 = vst [vmem:[#allocation9 + $0x168] sm:$0xff] %v7030
          %7319 = vst [vmem:[#allocation9 + $0x170] sm:$0xff] %v7031
          %7320 = vst [vmem:[#allocation9 + $0x178] sm:$0xff] %v7032
          %7321 = vst [vmem:[#allocation9 + $0x180] sm:$0xff] %v7033
          %7322 = vst [vmem:[#allocation9 + $0x188] sm:$0xff] %v7034
          %7323 = vst [vmem:[#allocation9 + $0x190] sm:$0xff] %v7035
          %7324 = vst [vmem:[#allocation9 + $0x198] sm:$0xff] %v7036
          %7325 = vst [vmem:[#allocation9 + $0x1a0] sm:$0xff] %v7037
          %7326 = vst [vmem:[#allocation9 + $0x1a8] sm:$0xff] %v7038
          %7327 = vst [vmem:[#allocation9 + $0x1b0] sm:$0xff] %v7039
          %7328 = vst [vmem:[#allocation9 + $0x1b8] sm:$0xff] %v7040
          %7329 = vst [vmem:[#allocation9 + $0x1c0] sm:$0xff] %v7041
          %7330 = vst [vmem:[#allocation9 + $0x1c8] sm:$0xff] %v7042
          %7331 = vst [vmem:[#allocation9 + $0x1d0] sm:$0xff] %v7043
          %7332 = vst [vmem:[#allocation9 + $0x1d8] sm:$0xff] %v7044
          %7333 = vst [vmem:[#allocation9 + $0x1e0] sm:$0xff] %v7045
          %7334 = vst [vmem:[#allocation9 + $0x1e8] sm:$0xff] %v7046
          %7335 = vst [vmem:[#allocation9 + $0x1f0] sm:$0xff] %v7047
          %7336 = vst [vmem:[#allocation9 + $0x1f8] sm:$0xff] %v7048
          %7337 = vst [vmem:[#allocation9 + $0x200] sm:$0xff] %v7049
          %7338 = vst [vmem:[#allocation9 + $0x208] sm:$0xff] %v7050
          %7339 = vst [vmem:[#allocation9 + $0x210] sm:$0xff] %v7051
          %7340 = vst [vmem:[#allocation9 + $0x218] sm:$0xff] %v7052
          %7341 = vst [vmem:[#allocation9 + $0x220] sm:$0xff] %v7053
          %7342 = vst [vmem:[#allocation9 + $0x228] sm:$0xff] %v7054
          %7343 = vst [vmem:[#allocation9 + $0x230] sm:$0xff] %v7055
          %7344 = vst [vmem:[#allocation9 + $0x238] sm:$0xff] %v7056
          %7345 = vst [vmem:[#allocation9 + $0x240] sm:$0xff] %v7057
          %7346 = vst [vmem:[#allocation9 + $0x248] sm:$0xff] %v7058
          %7347 = vst [vmem:[#allocation9 + $0x250] sm:$0xff] %v7059
          %7348 = vst [vmem:[#allocation9 + $0x258] sm:$0xff] %v7060
          %7349 = vst [vmem:[#allocation9 + $0x260] sm:$0xff] %v7061
          %7350 = vst [vmem:[#allocation9 + $0x268] sm:$0xff] %v7062
          %7351 = vst [vmem:[#allocation9 + $0x270] sm:$0xff] %v7063
          %7352 = vst [vmem:[#allocation9 + $0x278] sm:$0xff] %v7064
          %7353 = vst [vmem:[#allocation9 + $0x280] sm:$0xff] %v7065
          %7354 = vst [vmem:[#allocation9 + $0x288] sm:$0xff] %v7066
          %7355 = vst [vmem:[#allocation9 + $0x290] sm:$0xff] %v7067
          %7356 = vst [vmem:[#allocation9 + $0x298] sm:$0xff] %v7068
          %7357 = vst [vmem:[#allocation9 + $0x2a0] sm:$0xff] %v7069
          %7358 = vst [vmem:[#allocation9 + $0x2a8] sm:$0xff] %v7070
          %7359 = vst [vmem:[#allocation9 + $0x2b0] sm:$0xff] %v7071
          %7360 = vst [vmem:[#allocation9 + $0x2b8] sm:$0xff] %v7072
          %7361 = vst [vmem:[#allocation9 + $0x2c0] sm:$0xff] %v7073
          %7362 = vst [vmem:[#allocation9 + $0x2c8] sm:$0xff] %v7074
          %7363 = vst [vmem:[#allocation9 + $0x2d0] sm:$0xff] %v7075
          %7364 = vst [vmem:[#allocation9 + $0x2d8] sm:$0xff] %v7076
          %7365 = vst [vmem:[#allocation9 + $0x2e0] sm:$0xff] %v7077
          %7366 = vst [vmem:[#allocation9 + $0x2e8] sm:$0xff] %v7078
          %7367 = vst [vmem:[#allocation9 + $0x2f0] sm:$0xff] %v7079
          %7368 = vst [vmem:[#allocation9 + $0x2f8] sm:$0xff] %v7080
          %7369 = vst [vmem:[#allocation9 + $0x300] sm:$0xff] %v7081
          %7370 = vst [vmem:[#allocation9 + $0x308] sm:$0xff] %v7082
          %7371 = vst [vmem:[#allocation9 + $0x310] sm:$0xff] %v7083
          %7372 = vst [vmem:[#allocation9 + $0x318] sm:$0xff] %v7084
          %7373 = vst [vmem:[#allocation9 + $0x320] sm:$0xff] %v7085
          %7374 = vst [vmem:[#allocation9 + $0x328] sm:$0xff] %v7086
          %7375 = vst [vmem:[#allocation9 + $0x330] sm:$0xff] %v7087
          %7376 = vst [vmem:[#allocation9 + $0x338] sm:$0xff] %v7088
          %7377 = vst [vmem:[#allocation9 + $0x340] sm:$0xff] %v7089
          %7378 = vst [vmem:[#allocation9 + $0x348] sm:$0xff] %v7090
          %7379 = vst [vmem:[#allocation9 + $0x350] sm:$0xff] %v7091
          %7380 = vst [vmem:[#allocation9 + $0x358] sm:$0xff] %v7092
          %7381 = vst [vmem:[#allocation9 + $0x360] sm:$0xff] %v7093
          %7382 = vst [vmem:[#allocation9 + $0x368] sm:$0xff] %v7094
          %7383 = vst [vmem:[#allocation9 + $0x370] sm:$0xff] %v7095
          %7384 = vst [vmem:[#allocation9 + $0x378] sm:$0xff] %v7096
          %7385 = vst [vmem:[#allocation9 + $0x380] sm:$0xff] %v7097
          %7386 = vst [vmem:[#allocation9 + $0x388] sm:$0xff] %v7098
          %7387 = vst [vmem:[#allocation9 + $0x390] sm:$0xff] %v7099
          %7388 = vst [vmem:[#allocation9 + $0x398] sm:$0xff] %v7100
          %7389 = vst [vmem:[#allocation9 + $0x3a0] sm:$0xff] %v7101
          %7390 = vst [vmem:[#allocation9 + $0x3a8] sm:$0xff] %v7102
          %7391 = vst [vmem:[#allocation9 + $0x3b0] sm:$0xff] %v7103
          %7392 = vst [vmem:[#allocation9 + $0x3b8] sm:$0xff] %v7104
          %7393 = vst [vmem:[#allocation9 + $0x3c0] sm:$0xff] %v7105
          %7394 = vst [vmem:[#allocation9 + $0x3c8] sm:$0xff] %v7106
          %7395 = vst [vmem:[#allocation9 + $0x3d0] sm:$0xff] %v7107
          %7396 = vst [vmem:[#allocation9 + $0x3d8] sm:$0xff] %v7108
          %7397 = vst [vmem:[#allocation9 + $0x3e0] sm:$0xff] %v7109
          %7398 = vst [vmem:[#allocation9 + $0x3e8] sm:$0xff] %v7110
          %7399 = vst [vmem:[#allocation9 + $0x3f0] sm:$0xff] %v7111
          %7400 = vst [vmem:[#allocation9 + $0x3f8] sm:$0xff] %v7112
          %7401 = vst [vmem:[#allocation9 + $0x400] sm:$0xff] %v7113
          %7402 = vst [vmem:[#allocation9 + $0x408] sm:$0xff] %v7114
          %7403 = vst [vmem:[#allocation9 + $0x410] sm:$0xff] %v7115
          %7404 = vst [vmem:[#allocation9 + $0x418] sm:$0xff] %v7116
          %7405 = vst [vmem:[#allocation9 + $0x420] sm:$0xff] %v7117
          %7406 = vst [vmem:[#allocation9 + $0x428] sm:$0xff] %v7118
          %7407 = vst [vmem:[#allocation9 + $0x430] sm:$0xff] %v7119
          %7408 = vst [vmem:[#allocation9 + $0x438] sm:$0xff] %v7120
          %7409 = vst [vmem:[#allocation9 + $0x440] sm:$0xff] %v7121
          %7410 = vst [vmem:[#allocation9 + $0x448] sm:$0xff] %v7122
          %7411 = vst [vmem:[#allocation9 + $0x450] sm:$0xff] %v7123
          %7412 = vst [vmem:[#allocation9 + $0x458] sm:$0xff] %v7124
          %7413 = vst [vmem:[#allocation9 + $0x460] sm:$0xff] %v7125
          %7414 = vst [vmem:[#allocation9 + $0x468] sm:$0xff] %v7126
          %7415 = vst [vmem:[#allocation9 + $0x470] sm:$0xff] %v7127
          %7416 = vst [vmem:[#allocation9 + $0x478] sm:$0xff] %v7128
          %7417 = vst [vmem:[#allocation9 + $0x480] sm:$0xff] %v7129
          %7418 = vst [vmem:[#allocation9 + $0x488] sm:$0xff] %v7130
          %7419 = vst [vmem:[#allocation9 + $0x490] sm:$0xff] %v7131
          %7420 = vst [vmem:[#allocation9 + $0x498] sm:$0xff] %v7132
          %7421 = vst [vmem:[#allocation9 + $0x4a0] sm:$0xff] %v7133
          %7422 = vst [vmem:[#allocation9 + $0x4a8] sm:$0xff] %v7134
          %7423 = vst [vmem:[#allocation9 + $0x4b0] sm:$0xff] %v7135
          %7424 = vst [vmem:[#allocation9 + $0x4b8] sm:$0xff] %v7136
          %7425 = vst [vmem:[#allocation9 + $0x4c0] sm:$0xff] %v7137
          %7426 = vst [vmem:[#allocation9 + $0x4c8] sm:$0xff] %v7138
          %7427 = vst [vmem:[#allocation9 + $0x4d0] sm:$0xff] %v7139
          %7428 = vst [vmem:[#allocation9 + $0x4d8] sm:$0xff] %v7140
          %7429 = vst [vmem:[#allocation9 + $0x4e0] sm:$0xff] %v7141
          %7430 = vst [vmem:[#allocation9 + $0x4e8] sm:$0xff] %v7142
          %7431 = vst [vmem:[#allocation9 + $0x4f0] sm:$0xff] %v7143
          %7432 = vst [vmem:[#allocation9 + $0x4f8] sm:$0xff] %v7144
          %7433 = vst [vmem:[#allocation9 + $0x500] sm:$0xff] %v7145
          %7434 = vst [vmem:[#allocation9 + $0x508] sm:$0xff] %v7146
          %7435 = vst [vmem:[#allocation9 + $0x510] sm:$0xff] %v7147
          %7436 = vst [vmem:[#allocation9 + $0x518] sm:$0xff] %v7148
          %7437 = vst [vmem:[#allocation9 + $0x520] sm:$0xff] %v7149
          %7438 = vst [vmem:[#allocation9 + $0x528] sm:$0xff] %v7150
          %7439 = vst [vmem:[#allocation9 + $0x530] sm:$0xff] %v7151
          %7440 = vst [vmem:[#allocation9 + $0x538] sm:$0xff] %v7152
          %7441 = vst [vmem:[#allocation9 + $0x540] sm:$0xff] %v7153
          %7442 = vst [vmem:[#allocation9 + $0x548] sm:$0xff] %v7154
          %7443 = vst [vmem:[#allocation9 + $0x550] sm:$0xff] %v7155
          %7444 = vst [vmem:[#allocation9 + $0x558] sm:$0xff] %v7156
          %7445 = vst [vmem:[#allocation9 + $0x560] sm:$0xff] %v7157
          %7446 = vst [vmem:[#allocation9 + $0x568] sm:$0xff] %v7158
          %7447 = vst [vmem:[#allocation9 + $0x570] sm:$0xff] %v7159
          %7448 = vst [vmem:[#allocation9 + $0x578] sm:$0xff] %v7160
          %7449 = vst [vmem:[#allocation9 + $0x580] sm:$0xff] %v7161
          %7450 = vst [vmem:[#allocation9 + $0x588] sm:$0xff] %v7162
          %7451 = vst [vmem:[#allocation9 + $0x590] sm:$0xff] %v7163
          %7452 = vst [vmem:[#allocation9 + $0x598] sm:$0xff] %v7164
          %7453 = vst [vmem:[#allocation9 + $0x5a0] sm:$0xff] %v7165
          %7454 = vst [vmem:[#allocation9 + $0x5a8] sm:$0xff] %v7166
          %7455 = vst [vmem:[#allocation9 + $0x5b0] sm:$0xff] %v7167
          %7456 = vst [vmem:[#allocation9 + $0x5b8] sm:$0xff] %v7168
          %7457 = vst [vmem:[#allocation9 + $0x5c0] sm:$0xff] %v7169
          %7458 = vst [vmem:[#allocation9 + $0x5c8] sm:$0xff] %v7170
          %7459 = vst [vmem:[#allocation9 + $0x5d0] sm:$0xff] %v7171
          %7460 = vst [vmem:[#allocation9 + $0x5d8] sm:$0xff] %v7172
          %7461 = vst [vmem:[#allocation9 + $0x5e0] sm:$0xff] %v7173
          %7462 = vst [vmem:[#allocation9 + $0x5e8] sm:$0xff] %v7174
          %7463 = vst [vmem:[#allocation9 + $0x5f0] sm:$0xff] %v7175
          %7464 = vst [vmem:[#allocation9 + $0x5f8] sm:$0xff] %v7176
          %7465 = vst [vmem:[#allocation9 + $0x600] sm:$0xff] %v7177
          %7466 = vst [vmem:[#allocation9 + $0x608] sm:$0xff] %v7178
          %7467 = vst [vmem:[#allocation9 + $0x610] sm:$0xff] %v7179
          %7468 = vst [vmem:[#allocation9 + $0x618] sm:$0xff] %v7180
          %7469 = vst [vmem:[#allocation9 + $0x620] sm:$0xff] %v7181
          %7470 = vst [vmem:[#allocation9 + $0x628] sm:$0xff] %v7182
          %7471 = vst [vmem:[#allocation9 + $0x630] sm:$0xff] %v7183
          %7472 = vst [vmem:[#allocation9 + $0x638] sm:$0xff] %v7184
          %7473 = vst [vmem:[#allocation9 + $0x640] sm:$0xff] %v7185
          %7474 = vst [vmem:[#allocation9 + $0x648] sm:$0xff] %v7186
          %7475 = vst [vmem:[#allocation9 + $0x650] sm:$0xff] %v7187
          %7476 = vst [vmem:[#allocation9 + $0x658] sm:$0xff] %v7188
          %7477 = vst [vmem:[#allocation9 + $0x660] sm:$0xff] %v7189
          %7478 = vst [vmem:[#allocation9 + $0x668] sm:$0xff] %v7190
          %7479 = vst [vmem:[#allocation9 + $0x670] sm:$0xff] %v7191
          %7480 = vst [vmem:[#allocation9 + $0x678] sm:$0xff] %v7192
          %7481 = vst [vmem:[#allocation9 + $0x680] sm:$0xff] %v7193
          %7482 = vst [vmem:[#allocation9 + $0x688] sm:$0xff] %v7194
          %7483 = vst [vmem:[#allocation9 + $0x690] sm:$0xff] %v7195
          %7484 = vst [vmem:[#allocation9 + $0x698] sm:$0xff] %v7196
          %7485 = vst [vmem:[#allocation9 + $0x6a0] sm:$0xff] %v7197
          %7486 = vst [vmem:[#allocation9 + $0x6a8] sm:$0xff] %v7198
          %7487 = vst [vmem:[#allocation9 + $0x6b0] sm:$0xff] %v7199
          %7488 = vst [vmem:[#allocation9 + $0x6b8] sm:$0xff] %v7200
          %7489 = vst [vmem:[#allocation9 + $0x6c0] sm:$0xff] %v7201
          %7490 = vst [vmem:[#allocation9 + $0x6c8] sm:$0xff] %v7202
          %7491 = vst [vmem:[#allocation9 + $0x6d0] sm:$0xff] %v7203
          %7492 = vst [vmem:[#allocation9 + $0x6d8] sm:$0xff] %v7204
          %7493 = vst [vmem:[#allocation9 + $0x6e0] sm:$0xff] %v7205
          %7494 = vst [vmem:[#allocation9 + $0x6e8] sm:$0xff] %v7206
          %7495 = vst [vmem:[#allocation9 + $0x6f0] sm:$0xff] %v7207
          %7496 = vst [vmem:[#allocation9 + $0x6f8] sm:$0xff] %v7208
          %7497 = vst [vmem:[#allocation9 + $0x700] sm:$0xff] %v7209
          %7498 = vst [vmem:[#allocation9 + $0x708] sm:$0xff] %v7210
          %7499 = vst [vmem:[#allocation9 + $0x710] sm:$0xff] %v7211
          %7500 = vst [vmem:[#allocation9 + $0x718] sm:$0xff] %v7212
          %7501 = vst [vmem:[#allocation9 + $0x720] sm:$0xff] %v7213
          %7502 = vst [vmem:[#allocation9 + $0x728] sm:$0xff] %v7214
          %7503 = vst [vmem:[#allocation9 + $0x730] sm:$0xff] %v7215
          %7504 = vst [vmem:[#allocation9 + $0x738] sm:$0xff] %v7216
          %7505 = vst [vmem:[#allocation9 + $0x740] sm:$0xff] %v7217
          %7506 = vst [vmem:[#allocation9 + $0x748] sm:$0xff] %v7218
          %7507 = vst [vmem:[#allocation9 + $0x750] sm:$0xff] %v7219
          %7508 = vst [vmem:[#allocation9 + $0x758] sm:$0xff] %v7220
          %7509 = vst [vmem:[#allocation9 + $0x760] sm:$0xff] %v7221
          %7510 = vst [vmem:[#allocation9 + $0x768] sm:$0xff] %v7222
          %7511 = vst [vmem:[#allocation9 + $0x770] sm:$0xff] %v7223
          %7512 = vst [vmem:[#allocation9 + $0x778] sm:$0xff] %v7224
          %7513 = vst [vmem:[#allocation9 + $0x780] sm:$0xff] %v7225
          %7514 = vst [vmem:[#allocation9 + $0x788] sm:$0xff] %v7226
          %7515 = vst [vmem:[#allocation9 + $0x790] sm:$0xff] %v7227
          %7516 = vst [vmem:[#allocation9 + $0x798] sm:$0xff] %v7228
          %7517 = vst [vmem:[#allocation9 + $0x7a0] sm:$0xff] %v7229
          %7518 = vst [vmem:[#allocation9 + $0x7a8] sm:$0xff] %v7230
          %7519 = vst [vmem:[#allocation9 + $0x7b0] sm:$0xff] %v7231
          %7520 = vst [vmem:[#allocation9 + $0x7b8] sm:$0xff] %v7232
          %7521 = vst [vmem:[#allocation9 + $0x7c0] sm:$0xff] %v7233
          %7522 = vst [vmem:[#allocation9 + $0x7c8] sm:$0xff] %v7234
          %7523 = vst [vmem:[#allocation9 + $0x7d0] sm:$0xff] %v7235
          %7524 = vst [vmem:[#allocation9 + $0x7d8] sm:$0xff] %v7236
          %7525 = vst [vmem:[#allocation9 + $0x7e0] sm:$0xff] %v7237
          %7526 = vst [vmem:[#allocation9 + $0x7e8] sm:$0xff] %v7238
          %7527 = vst [vmem:[#allocation9 + $0x7f0] sm:$0xff] %v7239
          %7528 = vst [vmem:[#allocation9 + $0x7f8] sm:$0xff] %v7240
          %7529 = vst [vmem:[#allocation9 + $0x800] sm:$0xff] %v7241
          %7530 = vst [vmem:[#allocation9 + $0x808] sm:$0xff] %v7242
          %7531 = vst [vmem:[#allocation9 + $0x810] sm:$0xff] %v7243
          %7532 = vst [vmem:[#allocation9 + $0x818] sm:$0xff] %v7244
          %7533 = vst [vmem:[#allocation9 + $0x820] sm:$0xff] %v7245
          %7534 = vst [vmem:[#allocation9 + $0x828] sm:$0xff] %v7246
          %7535 = vst [vmem:[#allocation9 + $0x830] sm:$0xff] %v7247
          %7536 = vst [vmem:[#allocation9 + $0x838] sm:$0xff] %v7248
          %7537 = vst [vmem:[#allocation9 + $0x840] sm:$0xff] %v7249
          %7538 = vst [vmem:[#allocation9 + $0x848] sm:$0xff] %v7250
          %7539 = vst [vmem:[#allocation9 + $0x850] sm:$0xff] %v7251
          %7540 = vst [vmem:[#allocation9 + $0x858] sm:$0xff] %v7252
          %7541 = vst [vmem:[#allocation9 + $0x860] sm:$0xff] %v7253
          %7542 = vst [vmem:[#allocation9 + $0x868] sm:$0xff] %v7254
          %7543 = vst [vmem:[#allocation9 + $0x870] sm:$0xff] %v7255
          %7544 = vst [vmem:[#allocation9 + $0x878] sm:$0xff] %v7256
          %7545 = vst [vmem:[#allocation9 + $0x880] sm:$0xff] %v7257
          %7546 = vst [vmem:[#allocation9 + $0x888] sm:$0xff] %v7258
          %7547 = vst [vmem:[#allocation9 + $0x890] sm:$0xff] %v7259
          %7548 = vst [vmem:[#allocation9 + $0x898] sm:$0xff] %v7260
          %7549 = vst [vmem:[#allocation9 + $0x8a0] sm:$0xff] %v7261
          %7550 = vst [vmem:[#allocation9 + $0x8a8] sm:$0xff] %v7262
          %7551 = vst [vmem:[#allocation9 + $0x8b0] sm:$0xff] %v7263
          %7552 = vst [vmem:[#allocation9 + $0x8b8] sm:$0xff] %v7264
          %7553 = vst [vmem:[#allocation9 + $0x8c0] sm:$0xff] %v7265
          %7554 = vst [vmem:[#allocation9 + $0x8c8] sm:$0xff] %v7266
          %7555 = vst [vmem:[#allocation9 + $0x8d0] sm:$0xff] %v7267
          %7556 = vst [vmem:[#allocation9 + $0x8d8] sm:$0xff] %v7268
          %7557 = vst [vmem:[#allocation9 + $0x8e0] sm:$0xff] %v7269
          %7558 = vst [vmem:[#allocation9 + $0x8e8] sm:$0xff] %v7270
          %7559 = vst [vmem:[#allocation9 + $0x8f0] sm:$0xff] %v7271
          %7560 = vst [vmem:[#allocation9 + $0x8f8] sm:$0xff] %v7272
        $region56: #{linear_dropout_add.1} parent=35 // pred_fallthru
          _
        // Predicated region
        $region57: #{linear_dropout_add.1} parent=35 // pred_check
          %p7561 = pneg %p158
        $region58: #{linear_dropout_add.1} parent=35 // pred_check_branch
          %7563 = sbr.rel (%p7561) target = $region60
        $region59: #{linear_dropout_add.1} parent=35 // pred_region
          %s7564 = smul.u32 6, %s26
          %s7566 = ssub.s32 36864, 36864
          %7567 = vsyncadd [#allocation5], %s7566
          %s7568 = smul.addr %s7564, 128
          %s7569 = scalar_lea.hbm %s4, %s7568
          %s7570 = sshll.u32 [#allocation9], 4
          %s7571 = int_to_ptr.vmem [resolvable:$true] %s7570
          %7576 = dma.vmem_to_hbm [thread:$0]  %s7571, 36864, %s7569, [#allocation5], 768, 768, 48
        $region60: #{linear_dropout_add.1} parent=35 // pred_fallthru
          _
        // Predicated region
        $region61: #{linear_dropout_add.1} parent=35 // pred_check
          %p7577 = pneg %p158
        $region62: #{linear_dropout_add.1} parent=35 // pred_check_branch
          %7579 = sbr.rel (%p7577) target = $region64
        $region63: #{linear_dropout_add.1} parent=35 // pred_region
          %7580 = dma.done [#allocation5], 36864
        $region64: #{linear_dropout_add.1} parent=35 // pred_fallthru
          _
      $region36: #{linear_dropout_add.1} parent=5 // pred_fallthru
        _
      %p7581 = scmp.le.s32.totalorder 2, %s17
      // Predicated region
      $region65: #{linear_dropout_add.1} parent=5 // pred_check
        %p7582 = pneg %p7581
      $region66: #{linear_dropout_add.1} parent=5 // pred_check_branch
        %7584 = sbr.rel (%p7582) target = $region68
      $region67: #{linear_dropout_add.1} parent=5 // pred_region
        %s7585 = ssub.s32 %s17, 2
      $region68: #{linear_dropout_add.1} parent=5 // pred_fallthru
        _
    $region6: #{linear_dropout_add.1} parent=1 // loop_footer
      %s21 = sadd.s32 1, %s17
    $region7: #{linear_dropout_add.1} parent=1 // loop_footer_branch
      %16 = sbr.rel target = $region3
    $region8: #{linear_dropout_add.1} parent=1 // loop_exit
      _
    %7586 = vsyncpa [#allocation4], 1
    %s7587 = scalar_lea.sflag [#allocation4], 1
    %7588 = vsyncpa %s7587, 1
    %7589 = vsyncpa [#allocation7], 1
    %s7590 = scalar_lea.sflag [#allocation7], 1
    %7591 = vsyncpa %s7590, 1
    %7592 = vsyncpa [#allocation5], 1
    %s7593 = scalar_lea.sflag [#allocation5], 1
    %7594 = vsyncpa %s7593, 1

</llo_original>
